<compile_context>
chip_gen: v6e
topology: v6e:2x2x1
jax: 0.10.0
libtpu: 0.0.40
codegen_flags: <defaults>
</compile_context>

<pallas_src>
import jax
import jax.numpy as jnp
from jax import lax
from jax.experimental import pallas as pl
from jax.experimental.pallas import tpu as pltpu

EPS = 1e-5
LANE = 128  # TPU lane width; channel axis is padded to this.


def _bn_relu(x2d, gamma, beta):
    """Training-mode BatchNorm over axis 0 (= B*H*W) + ReLU, one-pass stats.

    x2d: (N, LANE) f32; gamma/beta: (1, LANE) f32 (zero on padded lanes).
    """
    n = x2d.shape[0]
    inv_n = 1.0 / n
    s1 = jnp.sum(x2d, axis=0, keepdims=True)
    s2 = jnp.sum(x2d * x2d, axis=0, keepdims=True)
    mean = s1 * inv_n
    var = s2 * inv_n - mean * mean              # biased variance, like torch
    scale = lax.rsqrt(var + EPS) * gamma        # (1, LANE), broadcast once
    shift = beta - mean * scale
    return jnp.maximum(x2d * scale + shift, 0.0)


def _conv3x3_im2col(act2d, w_ref, pad_ref, col_ref, B, H, W, C):
    """3x3 / stride-1 / pad-1 conv as one im2col MXU matmul.

    act2d: (B*H*W, C); w_ref: (9*C, C); pad_ref halo already zero.
    """
    N = B * H * W
    pad_ref[:, 1:H + 1, 1:W + 1, :] = act2d.reshape(B, H, W, C)
    for kh in range(3):
        for kw in range(3):
            t = kh * 3 + kw
            col_ref[:, t * C:(t + 1) * C] = (
                pad_ref[:, kh:kh + H, kw:kw + W, :].reshape(N, C))
    return jnp.dot(col_ref[...], w_ref[...], preferred_element_type=jnp.float32)


def preact_block_kernel(x_ref, w1_ref, w2_ref, wsc_ref,
                        g1_ref, b1_ref, g2_ref, b2_ref,
                        out_ref, pad_ref, col_ref):
    B, H, W, C = x_ref.shape
    N = B * H * W

    # Zero only the 1-pixel halo of the shared padded scratch, once; both convs
    # only ever write its interior.
    zrow = jnp.zeros((B, 1, W + 2, C), jnp.float32)
    zcol = jnp.zeros((B, H + 2, 1, C), jnp.float32)
    pad_ref[:, 0:1, :, :] = zrow
    pad_ref[:, H + 1:H + 2, :, :] = zrow
    pad_ref[:, :, 0:1, :] = zcol
    pad_ref[:, :, W + 1:W + 2, :] = zcol

    x = x_ref[...].reshape(N, C)

    # out = relu(bn1(x))
    act1 = _bn_relu(x, g1_ref[...], b1_ref[...])

    # shortcut = 1x1 conv (in_planes != planes, stride == 1)
    shortcut = jnp.dot(act1, wsc_ref[...], preferred_element_type=jnp.float32)

    # out = conv1(out)
    h1 = _conv3x3_im2col(act1, w1_ref, pad_ref, col_ref, B, H, W, C)

    # out = conv2(relu(bn2(out)))
    act2 = _bn_relu(h1, g2_ref[...], b2_ref[...])
    h2 = _conv3x3_im2col(act2, w2_ref, pad_ref, col_ref, B, H, W, C)

    # out += shortcut
    out_ref[...] = (h2 + shortcut).reshape(B, H, W, C)


def pack_params(params):
    """One-time weight packing: OIHW -> im2col (9*LANE, LANE), channel pad."""
    w1, w2, wsc = params["w1"], params["w2"], params["wsc"]
    cout, cin = int(w1.shape[0]), int(w1.shape[1])
    assert cin <= LANE and cout <= LANE

    def pack3x3(w):  # OIHW -> HWIO -> zero-pad channels -> (9*LANE, LANE)
        hwio = jnp.transpose(w, (2, 3, 1, 0)).astype(jnp.float32)
        hwio = jnp.pad(hwio, ((0, 0), (0, 0),
                              (0, LANE - hwio.shape[2]),
                              (0, LANE - hwio.shape[3])))
        return hwio.reshape(9 * LANE, LANE)

    def pack_vec(v):
        v = v.astype(jnp.float32)
        return jnp.pad(v, (0, LANE - v.shape[0])).reshape(1, LANE)

    wsc2d = jnp.transpose(wsc[:, :, 0, 0], (1, 0)).astype(jnp.float32)  # (ci, co)
    wsc2d = jnp.pad(wsc2d, ((0, LANE - cin), (0, LANE - cout)))

    packed = dict(w1=pack3x3(w1), w2=pack3x3(w2), wsc=wsc2d,
                  g1=pack_vec(params["g1"]), b1=pack_vec(params["b1"]),
                  g2=pack_vec(params["g2"]), b2=pack_vec(params["b2"]))
    return packed, cout


def preact_block(x_nchw, packed, cout, stride=1):
    """Pallas-fused PreActBlock forward. Input/output are NCHW float32."""
    if stride != 1:
        # TODO(synk): stride>1 not implemented in-kernel.
        raise NotImplementedError("stride > 1 not implemented")
    B, cin, H, W = x_nchw.shape
    N = B * H * W

    x_nhwc = jnp.transpose(x_nchw, (0, 2, 3, 1)).astype(jnp.float32)
    x_p = jnp.pad(x_nhwc, ((0, 0), (0, 0), (0, 0), (0, LANE - cin)))

    vmem = pl.BlockSpec(memory_space=pltpu.MemorySpace.VMEM)
    out_nhwc = pl.pallas_call(
        preact_block_kernel,
        out_shape=jax.ShapeDtypeStruct((B, H, W, LANE), jnp.float32),
        in_specs=[vmem] * 8,
        out_specs=vmem,
        scratch_shapes=[
            pltpu.VMEM((B, H + 2, W + 2, LANE), jnp.float32),  # shared padded act
            pltpu.VMEM((N, 9 * LANE), jnp.float32),            # shared im2col buf
        ],
        compiler_params=pltpu.CompilerParams(vmem_limit_bytes=32 * 1024 * 1024),
    )(x_p, packed["w1"], packed["w2"], packed["wsc"],
      packed["g1"], packed["b1"], packed["g2"], packed["b2"])

    out = out_nhwc[..., :cout]
    return jnp.transpose(out, (0, 3, 1, 2))


def preact_block_ref(x, p):
    """Pure-JAX reference mirroring the PyTorch forward (training-mode BN)."""
    def bn(x, g, b):
        mean = x.mean(axis=(0, 2, 3), keepdims=True)
        var = ((x - mean) ** 2).mean(axis=(0, 2, 3), keepdims=True)
        return (x - mean) * lax.rsqrt(var + EPS) * g.reshape(1, -1, 1, 1) \
            + b.reshape(1, -1, 1, 1)

    def conv(x, w, pad):
        return lax.conv_general_dilated(
            x, w, window_strides=(1, 1), padding=[(pad, pad), (pad, pad)],
            dimension_numbers=("NCHW", "OIHW", "NCHW"),
            precision=lax.Precision.HIGHEST,
            preferred_element_type=jnp.float32)

    out = jax.nn.relu(bn(x, p["g1"], p["b1"]))
    shortcut = conv(out, p["wsc"], 0)
    out = conv(out, p["w1"], 1)
    out = conv(jax.nn.relu(bn(out, p["g2"], p["b2"])), p["w2"], 1)
    return out + shortcut


def init_params(key, in_planes, planes):
    ks = jax.random.split(key, 7)
    return dict(
        w1=0.1 * jax.random.normal(ks[0], (planes, in_planes, 3, 3), jnp.float32),
        w2=0.1 * jax.random.normal(ks[1], (planes, planes, 3, 3), jnp.float32),
        wsc=0.1 * jax.random.normal(ks[2], (planes, in_planes, 1, 1), jnp.float32),
        g1=1.0 + 0.1 * jax.random.normal(ks[3], (in_planes,), jnp.float32),
        b1=0.1 * jax.random.normal(ks[4], (in_planes,), jnp.float32),
        g2=1.0 + 0.1 * jax.random.normal(ks[5], (planes,), jnp.float32),
        b2=0.1 * jax.random.normal(ks[6], (planes,), jnp.float32),
    )


if __name__ == "__main__":
    key = jax.random.PRNGKey(0)
    kx, kp = jax.random.split(key)
    in_planes, planes = 4, 8
    x = jax.random.normal(kx, (2, in_planes, 16, 16), jnp.float32)  # NCHW
    params = init_params(kp, in_planes, planes)

    packed, cout = pack_params(params)     # one-time packing, not per forward
    out = preact_block(x, packed, cout, stride=1)
    jax.block_until_ready(out)

    ref = preact_block_ref(x, params)
    assert out.shape == ref.shape == (2, planes, 16, 16)
    err = float(jnp.max(jnp.abs(out - ref)))
    assert jnp.allclose(out, ref, rtol=1e-5, atol=1e-5), err
    print("KERNEL_OK")
</pallas_src>

<mosaic_0001>
module attributes {stable_mosaic.version = 11 : i64} {
  func.func @preact_block_kernel(%arg0: memref<2x16x16x128xf32, #tpu.memory_space<vmem>>, %arg1: memref<1152x128xf32, #tpu.memory_space<vmem>>, %arg2: memref<1152x128xf32, #tpu.memory_space<vmem>>, %arg3: memref<128x128xf32, #tpu.memory_space<vmem>>, %arg4: memref<1x128xf32, #tpu.memory_space<vmem>>, %arg5: memref<1x128xf32, #tpu.memory_space<vmem>>, %arg6: memref<1x128xf32, #tpu.memory_space<vmem>>, %arg7: memref<1x128xf32, #tpu.memory_space<vmem>>, %arg8: memref<2x16x16x128xf32, #tpu.memory_space<vmem>>, %arg9: memref<2x18x18x128xf32, #tpu.memory_space<vmem>>, %arg10: memref<512x1152xf32, #tpu.memory_space<vmem>>) attributes {dimension_semantics = [], scalar_prefetch = 0 : i64, scratch_operands = 2 : i64, tpu.core_type = #tpu.core_type<tc>} {
    %cst = arith.constant 0.000000e+00 : f32
    %0 = vector.broadcast %cst : f32 to vector<2x1x18x128xf32>
    %cst_0 = arith.constant 0.000000e+00 : f32
    %1 = vector.broadcast %cst_0 : f32 to vector<2x18x1x128xf32>
    %c0 = arith.constant 0 : index
    %c0_1 = arith.constant 0 : index
    %c0_2 = arith.constant 0 : index
    %c0_3 = arith.constant 0 : index
    %2 = vector.load %arg9[%c0, %c0_1, %c0_2, %c0_3] : memref<2x18x18x128xf32, #tpu.memory_space<vmem>>, vector<2x1x18x128xf32>
    tpu.vector_store %arg9[%c0, %c0_1, %c0_2, %c0_3], %0 {strides = array<i32>} : memref<2x18x18x128xf32, #tpu.memory_space<vmem>>, vector<2x1x18x128xf32>,
    %c0_4 = arith.constant 0 : index
    %c17 = arith.constant 17 : index
    %c0_5 = arith.constant 0 : index
    %c0_6 = arith.constant 0 : index
    %3 = vector.load %arg9[%c0_4, %c17, %c0_5, %c0_6] : memref<2x18x18x128xf32, #tpu.memory_space<vmem>>, vector<2x1x18x128xf32>
    tpu.vector_store %arg9[%c0_4, %c17, %c0_5, %c0_6], %0 {strides = array<i32>} : memref<2x18x18x128xf32, #tpu.memory_space<vmem>>, vector<2x1x18x128xf32>,
    %c0_7 = arith.constant 0 : index
    %c0_8 = arith.constant 0 : index
    %c0_9 = arith.constant 0 : index
    %c0_10 = arith.constant 0 : index
    %4 = vector.load %arg9[%c0_7, %c0_8, %c0_9, %c0_10] : memref<2x18x18x128xf32, #tpu.memory_space<vmem>>, vector<2x18x1x128xf32>
    tpu.vector_store %arg9[%c0_7, %c0_8, %c0_9, %c0_10], %1 {strides = array<i32>} : memref<2x18x18x128xf32, #tpu.memory_space<vmem>>, vector<2x18x1x128xf32>,
    %c0_11 = arith.constant 0 : index
    %c0_12 = arith.constant 0 : index
    %c17_13 = arith.constant 17 : index
    %c0_14 = arith.constant 0 : index
    %5 = vector.load %arg9[%c0_11, %c0_12, %c17_13, %c0_14] : memref<2x18x18x128xf32, #tpu.memory_space<vmem>>, vector<2x18x1x128xf32>
    tpu.vector_store %arg9[%c0_11, %c0_12, %c17_13, %c0_14], %1 {strides = array<i32>} : memref<2x18x18x128xf32, #tpu.memory_space<vmem>>, vector<2x18x1x128xf32>,
    %c0_15 = arith.constant 0 : index
    %c0_16 = arith.constant 0 : index
    %c0_17 = arith.constant 0 : index
    %c0_18 = arith.constant 0 : index
    %6 = vector.load %arg0[%c0_15, %c0_16, %c0_17, %c0_18] : memref<2x16x16x128xf32, #tpu.memory_space<vmem>>, vector<2x16x16x128xf32>
    %7 = vector.shape_cast %6 : vector<2x16x16x128xf32> to vector<512x128xf32>
    %c0_19 = arith.constant 0 : index
    %c0_20 = arith.constant 0 : index
    %8 = vector.load %arg4[%c0_19, %c0_20] : memref<1x128xf32, #tpu.memory_space<vmem>>, vector<1x128xf32>
    %c0_21 = arith.constant 0 : index
    %c0_22 = arith.constant 0 : index
    %9 = vector.load %arg5[%c0_21, %c0_22] : memref<1x128xf32, #tpu.memory_space<vmem>>, vector<1x128xf32>
    %cst_23 = arith.constant dense<0.000000e+00> : vector<128xf32>
    %10 = vector.multi_reduction <add>, %7, %cst_23 [0] : vector<512x128xf32> to vector<128xf32>
    %11 = vector.shape_cast %10 : vector<128xf32> to vector<1x128xf32>
    %12 = arith.mulf %7, %7 : vector<512x128xf32>
    %cst_24 = arith.constant dense<0.000000e+00> : vector<128xf32>
    %13 = vector.multi_reduction <add>, %12, %cst_24 [0] : vector<512x128xf32> to vector<128xf32>
    %14 = vector.shape_cast %13 : vector<128xf32> to vector<1x128xf32>
    %cst_25 = arith.constant 0.001953125 : f32
    %15 = vector.broadcast %cst_25 : f32 to vector<1x128xf32>
    %16 = arith.mulf %11, %15 : vector<1x128xf32>
    %cst_26 = arith.constant 0.001953125 : f32
    %17 = vector.broadcast %cst_26 : f32 to vector<1x128xf32>
    %18 = arith.mulf %14, %17 : vector<1x128xf32>
    %19 = arith.mulf %16, %16 : vector<1x128xf32>
    %20 = arith.subf %18, %19 : vector<1x128xf32>
    %cst_27 = arith.constant 9.99999974E-6 : f32
    %21 = vector.broadcast %cst_27 : f32 to vector<1x128xf32>
    %22 = arith.addf %20, %21 : vector<1x128xf32>
    %23 = math.rsqrt %22 : vector<1x128xf32>
    %24 = arith.mulf %23, %8 : vector<1x128xf32>
    %25 = arith.mulf %16, %24 : vector<1x128xf32>
    %26 = arith.subf %9, %25 : vector<1x128xf32>
    %27 = vector.broadcast %24 : vector<1x128xf32> to vector<512x128xf32>
    %28 = arith.mulf %7, %27 : vector<512x128xf32>
    %29 = vector.broadcast %26 : vector<1x128xf32> to vector<512x128xf32>
    %30 = arith.addf %28, %29 : vector<512x128xf32>
    %cst_28 = arith.constant 0.000000e+00 : f32
    %31 = vector.broadcast %cst_28 : f32 to vector<512x128xf32>
    %32 = arith.maximumf %30, %31 : vector<512x128xf32>
    %c0_29 = arith.constant 0 : index
    %c0_30 = arith.constant 0 : index
    %33 = vector.load %arg3[%c0_29, %c0_30] : memref<128x128xf32, #tpu.memory_space<vmem>>, vector<128x128xf32>
    %cst_31 = arith.constant dense<0.000000e+00> : vector<512x128xf32>
    %34 = tpu.matmul %32, %33, %cst_31 {dimension_numbers = #tpu.dot_dimension_numbers<[1], [0], [0], [1], [0, 0, 1, 1], [], []>} : vector<512x128xf32>, vector<128x128xf32>, vector<512x128xf32> -> vector<512x128xf32>
    %35 = vector.shape_cast %32 : vector<512x128xf32> to vector<2x16x16x128xf32>
    %c0_32 = arith.constant 0 : index
    %c1 = arith.constant 1 : index
    %c1_33 = arith.constant 1 : index
    %c0_34 = arith.constant 0 : index
    %36 = vector.load %arg9[%c0_32, %c1, %c1_33, %c0_34] : memref<2x18x18x128xf32, #tpu.memory_space<vmem>>, vector<2x16x16x128xf32>
    tpu.vector_store %arg9[%c0_32, %c1, %c1_33, %c0_34], %35 {strides = array<i32>} : memref<2x18x18x128xf32, #tpu.memory_space<vmem>>, vector<2x16x16x128xf32>,
    %c0_35 = arith.constant 0 : index
    %c0_36 = arith.constant 0 : index
    %c0_37 = arith.constant 0 : index
    %c0_38 = arith.constant 0 : index
    %37 = vector.load %arg9[%c0_35, %c0_36, %c0_37, %c0_38] : memref<2x18x18x128xf32, #tpu.memory_space<vmem>>, vector<2x16x16x128xf32>
    %38 = vector.shape_cast %37 : vector<2x16x16x128xf32> to vector<512x128xf32>
    %c0_39 = arith.constant 0 : index
    %c0_40 = arith.constant 0 : index
    %39 = vector.load %arg10[%c0_39, %c0_40] : memref<512x1152xf32, #tpu.memory_space<vmem>>, vector<512x128xf32>
    tpu.vector_store %arg10[%c0_39, %c0_40], %38 {strides = array<i32>} : memref<512x1152xf32, #tpu.memory_space<vmem>>, vector<512x128xf32>,
    %c0_41 = arith.constant 0 : index
    %c0_42 = arith.constant 0 : index
    %c1_43 = arith.constant 1 : index
    %c0_44 = arith.constant 0 : index
    %40 = vector.load %arg9[%c0_41, %c0_42, %c1_43, %c0_44] : memref<2x18x18x128xf32, #tpu.memory_space<vmem>>, vector<2x16x16x128xf32>
    %41 = vector.shape_cast %40 : vector<2x16x16x128xf32> to vector<512x128xf32>
    %c0_45 = arith.constant 0 : index
    %c128 = arith.constant 128 : index
    %42 = vector.load %arg10[%c0_45, %c128] : memref<512x1152xf32, #tpu.memory_space<vmem>>, vector<512x128xf32>
    tpu.vector_store %arg10[%c0_45, %c128], %41 {strides = array<i32>} : memref<512x1152xf32, #tpu.memory_space<vmem>>, vector<512x128xf32>,
    %c0_46 = arith.constant 0 : index
    %c0_47 = arith.constant 0 : index
    %c2 = arith.constant 2 : index
    %c0_48 = arith.constant 0 : index
    %43 = vector.load %arg9[%c0_46, %c0_47, %c2, %c0_48] : memref<2x18x18x128xf32, #tpu.memory_space<vmem>>, vector<2x16x16x128xf32>
    %44 = vector.shape_cast %43 : vector<2x16x16x128xf32> to vector<512x128xf32>
    %c0_49 = arith.constant 0 : index
    %c256 = arith.constant 256 : index
    %45 = vector.load %arg10[%c0_49, %c256] : memref<512x1152xf32, #tpu.memory_space<vmem>>, vector<512x128xf32>
    tpu.vector_store %arg10[%c0_49, %c256], %44 {strides = array<i32>} : memref<512x1152xf32, #tpu.memory_space<vmem>>, vector<512x128xf32>,
    %c0_50 = arith.constant 0 : index
    %c1_51 = arith.constant 1 : index
    %c0_52 = arith.constant 0 : index
    %c0_53 = arith.constant 0 : index
    %46 = vector.load %arg9[%c0_50, %c1_51, %c0_52, %c0_53] : memref<2x18x18x128xf32, #tpu.memory_space<vmem>>, vector<2x16x16x128xf32>
    %47 = vector.shape_cast %46 : vector<2x16x16x128xf32> to vector<512x128xf32>
    %c0_54 = arith.constant 0 : index
    %c384 = arith.constant 384 : index
    %48 = vector.load %arg10[%c0_54, %c384] : memref<512x1152xf32, #tpu.memory_space<vmem>>, vector<512x128xf32>
    tpu.vector_store %arg10[%c0_54, %c384], %47 {strides = array<i32>} : memref<512x1152xf32, #tpu.memory_space<vmem>>, vector<512x128xf32>,
    %c0_55 = arith.constant 0 : index
    %c1_56 = arith.constant 1 : index
    %c1_57 = arith.constant 1 : index
    %c0_58 = arith.constant 0 : index
    %49 = vector.load %arg9[%c0_55, %c1_56, %c1_57, %c0_58] : memref<2x18x18x128xf32, #tpu.memory_space<vmem>>, vector<2x16x16x128xf32>
    %50 = vector.shape_cast %49 : vector<2x16x16x128xf32> to vector<512x128xf32>
    %c0_59 = arith.constant 0 : index
    %c512 = arith.constant 512 : index
    %51 = vector.load %arg10[%c0_59, %c512] : memref<512x1152xf32, #tpu.memory_space<vmem>>, vector<512x128xf32>
    tpu.vector_store %arg10[%c0_59, %c512], %50 {strides = array<i32>} : memref<512x1152xf32, #tpu.memory_space<vmem>>, vector<512x128xf32>,
    %c0_60 = arith.constant 0 : index
    %c1_61 = arith.constant 1 : index
    %c2_62 = arith.constant 2 : index
    %c0_63 = arith.constant 0 : index
    %52 = vector.load %arg9[%c0_60, %c1_61, %c2_62, %c0_63] : memref<2x18x18x128xf32, #tpu.memory_space<vmem>>, vector<2x16x16x128xf32>
    %53 = vector.shape_cast %52 : vector<2x16x16x128xf32> to vector<512x128xf32>
    %c0_64 = arith.constant 0 : index
    %c640 = arith.constant 640 : index
    %54 = vector.load %arg10[%c0_64, %c640] : memref<512x1152xf32, #tpu.memory_space<vmem>>, vector<512x128xf32>
    tpu.vector_store %arg10[%c0_64, %c640], %53 {strides = array<i32>} : memref<512x1152xf32, #tpu.memory_space<vmem>>, vector<512x128xf32>,
    %c0_65 = arith.constant 0 : index
    %c2_66 = arith.constant 2 : index
    %c0_67 = arith.constant 0 : index
    %c0_68 = arith.constant 0 : index
    %55 = vector.load %arg9[%c0_65, %c2_66, %c0_67, %c0_68] : memref<2x18x18x128xf32, #tpu.memory_space<vmem>>, vector<2x16x16x128xf32>
    %56 = vector.shape_cast %55 : vector<2x16x16x128xf32> to vector<512x128xf32>
    %c0_69 = arith.constant 0 : index
    %c768 = arith.constant 768 : index
    %57 = vector.load %arg10[%c0_69, %c768] : memref<512x1152xf32, #tpu.memory_space<vmem>>, vector<512x128xf32>
    tpu.vector_store %arg10[%c0_69, %c768], %56 {strides = array<i32>} : memref<512x1152xf32, #tpu.memory_space<vmem>>, vector<512x128xf32>,
    %c0_70 = arith.constant 0 : index
    %c2_71 = arith.constant 2 : index
    %c1_72 = arith.constant 1 : index
    %c0_73 = arith.constant 0 : index
    %58 = vector.load %arg9[%c0_70, %c2_71, %c1_72, %c0_73] : memref<2x18x18x128xf32, #tpu.memory_space<vmem>>, vector<2x16x16x128xf32>
    %59 = vector.shape_cast %58 : vector<2x16x16x128xf32> to vector<512x128xf32>
    %c0_74 = arith.constant 0 : index
    %c896 = arith.constant 896 : index
    %60 = vector.load %arg10[%c0_74, %c896] : memref<512x1152xf32, #tpu.memory_space<vmem>>, vector<512x128xf32>
    tpu.vector_store %arg10[%c0_74, %c896], %59 {strides = array<i32>} : memref<512x1152xf32, #tpu.memory_space<vmem>>, vector<512x128xf32>,
    %c0_75 = arith.constant 0 : index
    %c2_76 = arith.constant 2 : index
    %c2_77 = arith.constant 2 : index
    %c0_78 = arith.constant 0 : index
    %61 = vector.load %arg9[%c0_75, %c2_76, %c2_77, %c0_78] : memref<2x18x18x128xf32, #tpu.memory_space<vmem>>, vector<2x16x16x128xf32>
    %62 = vector.shape_cast %61 : vector<2x16x16x128xf32> to vector<512x128xf32>
    %c0_79 = arith.constant 0 : index
    %c1024 = arith.constant 1024 : index
    %63 = vector.load %arg10[%c0_79, %c1024] : memref<512x1152xf32, #tpu.memory_space<vmem>>, vector<512x128xf32>
    tpu.vector_store %arg10[%c0_79, %c1024], %62 {strides = array<i32>} : memref<512x1152xf32, #tpu.memory_space<vmem>>, vector<512x128xf32>,
    %c0_80 = arith.constant 0 : index
    %c0_81 = arith.constant 0 : index
    %64 = vector.load %arg10[%c0_80, %c0_81] : memref<512x1152xf32, #tpu.memory_space<vmem>>, vector<512x1152xf32>
    %c0_82 = arith.constant 0 : index
    %c0_83 = arith.constant 0 : index
    %65 = vector.load %arg1[%c0_82, %c0_83] : memref<1152x128xf32, #tpu.memory_space<vmem>>, vector<1152x128xf32>
    %cst_84 = arith.constant dense<0.000000e+00> : vector<512x128xf32>
    %66 = tpu.matmul %64, %65, %cst_84 {dimension_numbers = #tpu.dot_dimension_numbers<[1], [0], [0], [1], [0, 0, 1, 1], [], []>} : vector<512x1152xf32>, vector<1152x128xf32>, vector<512x128xf32> -> vector<512x128xf32>
    %c0_85 = arith.constant 0 : index
    %c0_86 = arith.constant 0 : index
    %67 = vector.load %arg6[%c0_85, %c0_86] : memref<1x128xf32, #tpu.memory_space<vmem>>, vector<1x128xf32>
    %c0_87 = arith.constant 0 : index
    %c0_88 = arith.constant 0 : index
    %68 = vector.load %arg7[%c0_87, %c0_88] : memref<1x128xf32, #tpu.memory_space<vmem>>, vector<1x128xf32>
    %cst_89 = arith.constant dense<0.000000e+00> : vector<128xf32>
    %69 = vector.multi_reduction <add>, %66, %cst_89 [0] : vector<512x128xf32> to vector<128xf32>
    %70 = vector.shape_cast %69 : vector<128xf32> to vector<1x128xf32>
    %71 = arith.mulf %66, %66 : vector<512x128xf32>
    %cst_90 = arith.constant dense<0.000000e+00> : vector<128xf32>
    %72 = vector.multi_reduction <add>, %71, %cst_90 [0] : vector<512x128xf32> to vector<128xf32>
    %73 = vector.shape_cast %72 : vector<128xf32> to vector<1x128xf32>
    %cst_91 = arith.constant 0.001953125 : f32
    %74 = vector.broadcast %cst_91 : f32 to vector<1x128xf32>
    %75 = arith.mulf %70, %74 : vector<1x128xf32>
    %cst_92 = arith.constant 0.001953125 : f32
    %76 = vector.broadcast %cst_92 : f32 to vector<1x128xf32>
    %77 = arith.mulf %73, %76 : vector<1x128xf32>
    %78 = arith.mulf %75, %75 : vector<1x128xf32>
    %79 = arith.subf %77, %78 : vector<1x128xf32>
    %cst_93 = arith.constant 9.99999974E-6 : f32
    %80 = vector.broadcast %cst_93 : f32 to vector<1x128xf32>
    %81 = arith.addf %79, %80 : vector<1x128xf32>
    %82 = math.rsqrt %81 : vector<1x128xf32>
    %83 = arith.mulf %82, %67 : vector<1x128xf32>
    %84 = arith.mulf %75, %83 : vector<1x128xf32>
    %85 = arith.subf %68, %84 : vector<1x128xf32>
    %86 = vector.broadcast %83 : vector<1x128xf32> to vector<512x128xf32>
    %87 = arith.mulf %66, %86 : vector<512x128xf32>
    %88 = vector.broadcast %85 : vector<1x128xf32> to vector<512x128xf32>
    %89 = arith.addf %87, %88 : vector<512x128xf32>
    %cst_94 = arith.constant 0.000000e+00 : f32
    %90 = vector.broadcast %cst_94 : f32 to vector<512x128xf32>
    %91 = arith.maximumf %89, %90 : vector<512x128xf32>
    %92 = vector.shape_cast %91 : vector<512x128xf32> to vector<2x16x16x128xf32>
    %c0_95 = arith.constant 0 : index
    %c1_96 = arith.constant 1 : index
    %c1_97 = arith.constant 1 : index
    %c0_98 = arith.constant 0 : index
    %93 = vector.load %arg9[%c0_95, %c1_96, %c1_97, %c0_98] : memref<2x18x18x128xf32, #tpu.memory_space<vmem>>, vector<2x16x16x128xf32>
    tpu.vector_store %arg9[%c0_95, %c1_96, %c1_97, %c0_98], %92 {strides = array<i32>} : memref<2x18x18x128xf32, #tpu.memory_space<vmem>>, vector<2x16x16x128xf32>,
    %c0_99 = arith.constant 0 : index
    %c0_100 = arith.constant 0 : index
    %c0_101 = arith.constant 0 : index
    %c0_102 = arith.constant 0 : index
    %94 = vector.load %arg9[%c0_99, %c0_100, %c0_101, %c0_102] : memref<2x18x18x128xf32, #tpu.memory_space<vmem>>, vector<2x16x16x128xf32>
    %95 = vector.shape_cast %94 : vector<2x16x16x128xf32> to vector<512x128xf32>
    %c0_103 = arith.constant 0 : index
    %c0_104 = arith.constant 0 : index
    %96 = vector.load %arg10[%c0_103, %c0_104] : memref<512x1152xf32, #tpu.memory_space<vmem>>, vector<512x128xf32>
    tpu.vector_store %arg10[%c0_103, %c0_104], %95 {strides = array<i32>} : memref<512x1152xf32, #tpu.memory_space<vmem>>, vector<512x128xf32>,
    %c0_105 = arith.constant 0 : index
    %c0_106 = arith.constant 0 : index
    %c1_107 = arith.constant 1 : index
    %c0_108 = arith.constant 0 : index
    %97 = vector.load %arg9[%c0_105, %c0_106, %c1_107, %c0_108] : memref<2x18x18x128xf32, #tpu.memory_space<vmem>>, vector<2x16x16x128xf32>
    %98 = vector.shape_cast %97 : vector<2x16x16x128xf32> to vector<512x128xf32>
    %c0_109 = arith.constant 0 : index
    %c128_110 = arith.constant 128 : index
    %99 = vector.load %arg10[%c0_109, %c128_110] : memref<512x1152xf32, #tpu.memory_space<vmem>>, vector<512x128xf32>
    tpu.vector_store %arg10[%c0_109, %c128_110], %98 {strides = array<i32>} : memref<512x1152xf32, #tpu.memory_space<vmem>>, vector<512x128xf32>,
    %c0_111 = arith.constant 0 : index
    %c0_112 = arith.constant 0 : index
    %c2_113 = arith.constant 2 : index
    %c0_114 = arith.constant 0 : index
    %100 = vector.load %arg9[%c0_111, %c0_112, %c2_113, %c0_114] : memref<2x18x18x128xf32, #tpu.memory_space<vmem>>, vector<2x16x16x128xf32>
    %101 = vector.shape_cast %100 : vector<2x16x16x128xf32> to vector<512x128xf32>
    %c0_115 = arith.constant 0 : index
    %c256_116 = arith.constant 256 : index
    %102 = vector.load %arg10[%c0_115, %c256_116] : memref<512x1152xf32, #tpu.memory_space<vmem>>, vector<512x128xf32>
    tpu.vector_store %arg10[%c0_115, %c256_116], %101 {strides = array<i32>} : memref<512x1152xf32, #tpu.memory_space<vmem>>, vector<512x128xf32>,
    %c0_117 = arith.constant 0 : index
    %c1_118 = arith.constant 1 : index
    %c0_119 = arith.constant 0 : index
    %c0_120 = arith.constant 0 : index
    %103 = vector.load %arg9[%c0_117, %c1_118, %c0_119, %c0_120] : memref<2x18x18x128xf32, #tpu.memory_space<vmem>>, vector<2x16x16x128xf32>
    %104 = vector.shape_cast %103 : vector<2x16x16x128xf32> to vector<512x128xf32>
    %c0_121 = arith.constant 0 : index
    %c384_122 = arith.constant 384 : index
    %105 = vector.load %arg10[%c0_121, %c384_122] : memref<512x1152xf32, #tpu.memory_space<vmem>>, vector<512x128xf32>
    tpu.vector_store %arg10[%c0_121, %c384_122], %104 {strides = array<i32>} : memref<512x1152xf32, #tpu.memory_space<vmem>>, vector<512x128xf32>,
    %c0_123 = arith.constant 0 : index
    %c1_124 = arith.constant 1 : index
    %c1_125 = arith.constant 1 : index
    %c0_126 = arith.constant 0 : index
    %106 = vector.load %arg9[%c0_123, %c1_124, %c1_125, %c0_126] : memref<2x18x18x128xf32, #tpu.memory_space<vmem>>, vector<2x16x16x128xf32>
    %107 = vector.shape_cast %106 : vector<2x16x16x128xf32> to vector<512x128xf32>
    %c0_127 = arith.constant 0 : index
    %c512_128 = arith.constant 512 : index
    %108 = vector.load %arg10[%c0_127, %c512_128] : memref<512x1152xf32, #tpu.memory_space<vmem>>, vector<512x128xf32>
    tpu.vector_store %arg10[%c0_127, %c512_128], %107 {strides = array<i32>} : memref<512x1152xf32, #tpu.memory_space<vmem>>, vector<512x128xf32>,
    %c0_129 = arith.constant 0 : index
    %c1_130 = arith.constant 1 : index
    %c2_131 = arith.constant 2 : index
    %c0_132 = arith.constant 0 : index
    %109 = vector.load %arg9[%c0_129, %c1_130, %c2_131, %c0_132] : memref<2x18x18x128xf32, #tpu.memory_space<vmem>>, vector<2x16x16x128xf32>
    %110 = vector.shape_cast %109 : vector<2x16x16x128xf32> to vector<512x128xf32>
    %c0_133 = arith.constant 0 : index
    %c640_134 = arith.constant 640 : index
    %111 = vector.load %arg10[%c0_133, %c640_134] : memref<512x1152xf32, #tpu.memory_space<vmem>>, vector<512x128xf32>
    tpu.vector_store %arg10[%c0_133, %c640_134], %110 {strides = array<i32>} : memref<512x1152xf32, #tpu.memory_space<vmem>>, vector<512x128xf32>,
    %c0_135 = arith.constant 0 : index
    %c2_136 = arith.constant 2 : index
    %c0_137 = arith.constant 0 : index
    %c0_138 = arith.constant 0 : index
    %112 = vector.load %arg9[%c0_135, %c2_136, %c0_137, %c0_138] : memref<2x18x18x128xf32, #tpu.memory_space<vmem>>, vector<2x16x16x128xf32>
    %113 = vector.shape_cast %112 : vector<2x16x16x128xf32> to vector<512x128xf32>
    %c0_139 = arith.constant 0 : index
    %c768_140 = arith.constant 768 : index
    %114 = vector.load %arg10[%c0_139, %c768_140] : memref<512x1152xf32, #tpu.memory_space<vmem>>, vector<512x128xf32>
    tpu.vector_store %arg10[%c0_139, %c768_140], %113 {strides = array<i32>} : memref<512x1152xf32, #tpu.memory_space<vmem>>, vector<512x128xf32>,
    %c0_141 = arith.constant 0 : index
    %c2_142 = arith.constant 2 : index
    %c1_143 = arith.constant 1 : index
    %c0_144 = arith.constant 0 : index
    %115 = vector.load %arg9[%c0_141, %c2_142, %c1_143, %c0_144] : memref<2x18x18x128xf32, #tpu.memory_space<vmem>>, vector<2x16x16x128xf32>
    %116 = vector.shape_cast %115 : vector<2x16x16x128xf32> to vector<512x128xf32>
    %c0_145 = arith.constant 0 : index
    %c896_146 = arith.constant 896 : index
    %117 = vector.load %arg10[%c0_145, %c896_146] : memref<512x1152xf32, #tpu.memory_space<vmem>>, vector<512x128xf32>
    tpu.vector_store %arg10[%c0_145, %c896_146], %116 {strides = array<i32>} : memref<512x1152xf32, #tpu.memory_space<vmem>>, vector<512x128xf32>,
    %c0_147 = arith.constant 0 : index
    %c2_148 = arith.constant 2 : index
    %c2_149 = arith.constant 2 : index
    %c0_150 = arith.constant 0 : index
    %118 = vector.load %arg9[%c0_147, %c2_148, %c2_149, %c0_150] : memref<2x18x18x128xf32, #tpu.memory_space<vmem>>, vector<2x16x16x128xf32>
    %119 = vector.shape_cast %118 : vector<2x16x16x128xf32> to vector<512x128xf32>
    %c0_151 = arith.constant 0 : index
    %c1024_152 = arith.constant 1024 : index
    %120 = vector.load %arg10[%c0_151, %c1024_152] : memref<512x1152xf32, #tpu.memory_space<vmem>>, vector<512x128xf32>
    tpu.vector_store %arg10[%c0_151, %c1024_152], %119 {strides = array<i32>} : memref<512x1152xf32, #tpu.memory_space<vmem>>, vector<512x128xf32>,
    %c0_153 = arith.constant 0 : index
    %c0_154 = arith.constant 0 : index
    %121 = vector.load %arg10[%c0_153, %c0_154] : memref<512x1152xf32, #tpu.memory_space<vmem>>, vector<512x1152xf32>
    %c0_155 = arith.constant 0 : index
    %c0_156 = arith.constant 0 : index
    %122 = vector.load %arg2[%c0_155, %c0_156] : memref<1152x128xf32, #tpu.memory_space<vmem>>, vector<1152x128xf32>
    %cst_157 = arith.constant dense<0.000000e+00> : vector<512x128xf32>
    %123 = tpu.matmul %121, %122, %cst_157 {dimension_numbers = #tpu.dot_dimension_numbers<[1], [0], [0], [1], [0, 0, 1, 1], [], []>} : vector<512x1152xf32>, vector<1152x128xf32>, vector<512x128xf32> -> vector<512x128xf32>
    %124 = arith.addf %123, %34 : vector<512x128xf32>
    %125 = vector.shape_cast %124 : vector<512x128xf32> to vector<2x16x16x128xf32>
    %c0_158 = arith.constant 0 : index
    %c0_159 = arith.constant 0 : index
    %c0_160 = arith.constant 0 : index
    %c0_161 = arith.constant 0 : index
    %126 = vector.load %arg8[%c0_158, %c0_159, %c0_160, %c0_161] : memref<2x16x16x128xf32, #tpu.memory_space<vmem>>, vector<2x16x16x128xf32>
    tpu.vector_store %arg8[%c0_158, %c0_159, %c0_160, %c0_161], %125 {strides = array<i32>} : memref<2x16x16x128xf32, #tpu.memory_space<vmem>>, vector<2x16x16x128xf32>,
    return
  }
}

</mosaic_0001>

<llo_original>
// kernel: tpu_custom_call.1
$region0: #{tpu_custom_call.1}
  #allocation0 [shape = 'u32[]', space=smem, size = 0x4, offset = 0x4, fixed_abs, tag = 'smem constant byte address 0x4 - core index']
  #allocation1 [shape = 'u32[144,128]{1,0:T(1,128)}', space=vmem, size = 0x12000, scoped, tag = 'internal scratch']
  #allocation2 [shape = 'f32[2,18,18,128]{3,2,1,0:T(8,128)}', space=vmem, size = 0x6c000, scoped, tag = 'scratch operand']
  #allocation3 [shape = 'f32[512,1152]{1,0:T(8,128)}', space=vmem, size = 0x240000, scoped, tag = 'scratch operand']
  %s0 = inlined_call_operand.hbm [shape: f32[2,16,16,128], index: 0, kind: input, shape index: {}]
  %s1 = inlined_call_operand.hbm [shape: f32[1152,128], index: 1, kind: input, shape index: {}]
  %s2 = inlined_call_operand.hbm [shape: f32[1152,128], index: 2, kind: input, shape index: {}]
  %s3 = inlined_call_operand.hbm [shape: f32[128,128], index: 3, kind: input, shape index: {}]
  %s4 = inlined_call_operand.vmem [shape: f32[1,128], index: 4, kind: input, shape index: {}]
  %s5 = inlined_call_operand.vmem [shape: f32[1,128], index: 5, kind: input, shape index: {}]
  %s6 = inlined_call_operand.vmem [shape: f32[1,128], index: 6, kind: input, shape index: {}]
  %s7 = inlined_call_operand.vmem [shape: f32[1,128], index: 7, kind: input, shape index: {}]
  %s8 = inlined_call_operand.hbm [shape: f32[2,16,16,128], index: 8, kind: output, shape index: {}]
  %s9 = sld [smem:[#allocation0]]
  $region58: #{tpu_custom_call.1} parent=0
    _
  %s11 = ssub.s32 1, %s9
  %s12 = scalar_select 0, %s11, %s9
  $region1: #{tpu_custom_call.1} parent=0
    #allocation4 [shape = 'u8[262144]{0}', space=vmem, size = 0x40000, scoped, tag = 'input window, operand 0, single buffered']
    #allocation5 [shape = 's32[1]{0}', space=sflag, size = 0x4, scoped, tag = 'scoped memory for tpu_custom_call.1']
    #allocation6 [shape = 's32[1]{0}', space=sflag, size = 0x4, scoped, tag = 'scoped memory for tpu_custom_call.1']
    #allocation7 [shape = 'u8[589824]{0}', space=vmem, size = 0x90000, scoped, tag = 'input window, operand 1, single buffered']
    #allocation8 [shape = 's32[1]{0}', space=sflag, size = 0x4, scoped, tag = 'scoped memory for tpu_custom_call.1']
    #allocation9 [shape = 'u8[589824]{0}', space=vmem, size = 0x90000, scoped, tag = 'input window, operand 2, single buffered']
    #allocation10 [shape = 'u8[65536]{0}', space=vmem, size = 0x10000, scoped, tag = 'input window, operand 3, single buffered']
    #allocation11 [shape = 's32[1]{0}', space=sflag, size = 0x4, scoped, tag = 'scoped memory for tpu_custom_call.1']
    #allocation12 [shape = 'u8[262144]{0}', space=vmem, size = 0x40000, scoped, tag = 'output window, operand 0, single buffered']
    %13 = vsyncpa [#allocation5], 0
    %14 = vsyncpa [#allocation8], 0
    %15 = vsyncpa [#allocation11], 0
    %16 = vsyncpa [#allocation6], 0
    // Predicated region
    $region2: #{tpu_custom_call.1} parent=1 // pred_check
      _
    $region3: #{tpu_custom_call.1} parent=1 // pred_check_branch
      %18 = sbr.rel (0) target = $region5
    $region4: #{tpu_custom_call.1} parent=1 // pred_region
      %s20 = ssub.s32 8192, 8192
      %21 = vsyncadd [#allocation5], %s20
      %s22 = sshll.u32 [#allocation4], 4
      %s23 = int_to_ptr.vmem [resolvable:$true] %s22
      %28 = dma.hbm_to_vmem [thread:$0]  %s0, 8192, %s23, [#allocation5], 128, 128, 8
    $region5: #{tpu_custom_call.1} parent=1 // pred_fallthru
      _
    // Predicated region
    $region6: #{tpu_custom_call.1} parent=1 // pred_check
      _
    $region7: #{tpu_custom_call.1} parent=1 // pred_check_branch
      %30 = sbr.rel (0) target = $region9
    $region8: #{tpu_custom_call.1} parent=1 // pred_region
      %s32 = ssub.s32 18432, 18432
      %33 = vsyncadd [#allocation8], %s32
      %s34 = sshll.u32 [#allocation7], 4
      %s35 = int_to_ptr.vmem [resolvable:$true] %s34
      %40 = dma.hbm_to_vmem [thread:$0]  %s1, 18432, %s35, [#allocation8], 128, 128, 8
    $region9: #{tpu_custom_call.1} parent=1 // pred_fallthru
      _
    // Predicated region
    $region10: #{tpu_custom_call.1} parent=1 // pred_check
      _
    $region11: #{tpu_custom_call.1} parent=1 // pred_check_branch
      %42 = sbr.rel (0) target = $region13
    $region12: #{tpu_custom_call.1} parent=1 // pred_region
      %s44 = ssub.s32 18432, 18432
      %45 = vsyncadd [#allocation8], %s44
      %s46 = sshll.u32 [#allocation9], 4
      %s47 = int_to_ptr.vmem [resolvable:$true] %s46
      %52 = dma.hbm_to_vmem [thread:$0]  %s2, 18432, %s47, [#allocation8], 128, 128, 8
    $region13: #{tpu_custom_call.1} parent=1 // pred_fallthru
      _
    // Predicated region
    $region14: #{tpu_custom_call.1} parent=1 // pred_check
      _
    $region15: #{tpu_custom_call.1} parent=1 // pred_check_branch
      %54 = sbr.rel (0) target = $region17
    $region16: #{tpu_custom_call.1} parent=1 // pred_region
      %s56 = ssub.s32 2048, 2048
      %57 = vsyncadd [#allocation11], %s56
      %s58 = sshll.u32 [#allocation10], 4
      %s59 = int_to_ptr.vmem [resolvable:$true] %s58
      %64 = dma.hbm_to_vmem [thread:$0]  %s3, 2048, %s59, [#allocation11], 128, 128, 8
    $region17: #{tpu_custom_call.1} parent=1 // pred_fallthru
      _
    // Predicated region
    $region18: #{tpu_custom_call.1} parent=1 // pred_check
      _
    $region19: #{tpu_custom_call.1} parent=1 // pred_check_branch
      %66 = sbr.rel (0) target = $region21
    $region20: #{tpu_custom_call.1} parent=1 // pred_region
      _
    $region21: #{tpu_custom_call.1} parent=1 // pred_fallthru
      _
    // Predicated region
    $region22: #{tpu_custom_call.1} parent=1 // pred_check
      _
    $region23: #{tpu_custom_call.1} parent=1 // pred_check_branch
      %68 = sbr.rel (0) target = $region25
    $region24: #{tpu_custom_call.1} parent=1 // pred_region
      _
    $region25: #{tpu_custom_call.1} parent=1 // pred_fallthru
      _
    // Predicated region
    $region26: #{tpu_custom_call.1} parent=1 // pred_check
      _
    $region27: #{tpu_custom_call.1} parent=1 // pred_check_branch
      %70 = sbr.rel (0) target = $region29
    $region28: #{tpu_custom_call.1} parent=1 // pred_region
      _
    $region29: #{tpu_custom_call.1} parent=1 // pred_fallthru
      _
    // Predicated region
    $region30: #{tpu_custom_call.1} parent=1 // pred_check
      _
    $region31: #{tpu_custom_call.1} parent=1 // pred_check_branch
      %72 = sbr.rel (0) target = $region33
    $region32: #{tpu_custom_call.1} parent=1 // pred_region
      _
    $region33: #{tpu_custom_call.1} parent=1 // pred_fallthru
      _
    // Predicated region
    $region34: #{tpu_custom_call.1} parent=1 // pred_check
      _
    $region35: #{tpu_custom_call.1} parent=1 // pred_check_branch
      %74 = sbr.rel (0) target = $region37
    $region36: #{tpu_custom_call.1} parent=1 // pred_region
      %75 = dma.done [#allocation5], 8192
    $region37: #{tpu_custom_call.1} parent=1 // pred_fallthru
      _
    // Predicated region
    $region38: #{tpu_custom_call.1} parent=1 // pred_check
      _
    $region39: #{tpu_custom_call.1} parent=1 // pred_check_branch
      %77 = sbr.rel (0) target = $region41
    $region40: #{tpu_custom_call.1} parent=1 // pred_region
      %78 = dma.done [#allocation8], 18432
    $region41: #{tpu_custom_call.1} parent=1 // pred_fallthru
      _
    // Predicated region
    $region42: #{tpu_custom_call.1} parent=1 // pred_check
      _
    $region43: #{tpu_custom_call.1} parent=1 // pred_check_branch
      %80 = sbr.rel (0) target = $region45
    $region44: #{tpu_custom_call.1} parent=1 // pred_region
      %81 = dma.done [#allocation8], 18432
    $region45: #{tpu_custom_call.1} parent=1 // pred_fallthru
      _
    // Predicated region
    $region46: #{tpu_custom_call.1} parent=1 // pred_check
      _
    $region47: #{tpu_custom_call.1} parent=1 // pred_check_branch
      %83 = sbr.rel (0) target = $region49
    $region48: #{tpu_custom_call.1} parent=1 // pred_region
      %84 = dma.done [#allocation11], 2048
    $region49: #{tpu_custom_call.1} parent=1 // pred_fallthru
      _
    %85 = vst [vmem:[#allocation2] sm:$0xff] 0.0
    %86 = vst [vmem:[#allocation2 + $0x8] sm:$0xff] 0.0
    %87 = vst [vmem:[#allocation2 + $0x10] sm:$0x3] 0.0
    %88 = vst [vmem:[#allocation2 + $0x1b0] sm:$0xff] 0.0
    %89 = vst [vmem:[#allocation2 + $0x1b8] sm:$0xff] 0.0
    %90 = vst [vmem:[#allocation2 + $0x1c0] sm:$0x3] 0.0
    %s91 = scalar_lea.vmem [#allocation2], 408
    %92 = vst [vmem:[%s91] sm:$0xff] 0.0
    %93 = vst [vmem:[%s91 + $0x8] sm:$0xff] 0.0
    %94 = vst [vmem:[%s91 + $0x10] sm:$0x3] 0.0
    %95 = vst [vmem:[%s91 + $0x1b0] sm:$0xff] 0.0
    %96 = vst [vmem:[%s91 + $0x1b8] sm:$0xff] 0.0
    %97 = vst [vmem:[%s91 + $0x1c0] sm:$0x3] 0.0
    %98 = vst [vmem:[#allocation2] sm:$0x1] 0.0
    %99 = vst [vmem:[#allocation2 + $0x18] sm:$0x1] 0.0
    %100 = vst [vmem:[#allocation2 + $0x30] sm:$0x1] 0.0
    %101 = vst [vmem:[#allocation2 + $0x48] sm:$0x1] 0.0
    %102 = vst [vmem:[#allocation2 + $0x60] sm:$0x1] 0.0
    %103 = vst [vmem:[#allocation2 + $0x78] sm:$0x1] 0.0
    %104 = vst [vmem:[#allocation2 + $0x90] sm:$0x1] 0.0
    %105 = vst [vmem:[#allocation2 + $0xa8] sm:$0x1] 0.0
    %106 = vst [vmem:[#allocation2 + $0xc0] sm:$0x1] 0.0
    %107 = vst [vmem:[#allocation2 + $0xd8] sm:$0x1] 0.0
    %108 = vst [vmem:[#allocation2 + $0xf0] sm:$0x1] 0.0
    %109 = vst [vmem:[#allocation2 + $0x108] sm:$0x1] 0.0
    %110 = vst [vmem:[#allocation2 + $0x120] sm:$0x1] 0.0
    %111 = vst [vmem:[#allocation2 + $0x138] sm:$0x1] 0.0
    %112 = vst [vmem:[#allocation2 + $0x150] sm:$0x1] 0.0
    %113 = vst [vmem:[#allocation2 + $0x168] sm:$0x1] 0.0
    %114 = vst [vmem:[#allocation2 + $0x180] sm:$0x1] 0.0
    %115 = vst [vmem:[#allocation2 + $0x198] sm:$0x1] 0.0
    %116 = vst [vmem:[#allocation2 + $0x1b0] sm:$0x1] 0.0
    %117 = vst [vmem:[#allocation2 + $0x1c8] sm:$0x1] 0.0
    %118 = vst [vmem:[#allocation2 + $0x1e0] sm:$0x1] 0.0
    %119 = vst [vmem:[#allocation2 + $0x1f8] sm:$0x1] 0.0
    %120 = vst [vmem:[#allocation2 + $0x210] sm:$0x1] 0.0
    %121 = vst [vmem:[#allocation2 + $0x228] sm:$0x1] 0.0
    %122 = vst [vmem:[#allocation2 + $0x240] sm:$0x1] 0.0
    %123 = vst [vmem:[#allocation2 + $0x258] sm:$0x1] 0.0
    %124 = vst [vmem:[#allocation2 + $0x270] sm:$0x1] 0.0
    %125 = vst [vmem:[#allocation2 + $0x288] sm:$0x1] 0.0
    %126 = vst [vmem:[#allocation2 + $0x2a0] sm:$0x1] 0.0
    %127 = vst [vmem:[#allocation2 + $0x2b8] sm:$0x1] 0.0
    %128 = vst [vmem:[#allocation2 + $0x2d0] sm:$0x1] 0.0
    %129 = vst [vmem:[#allocation2 + $0x2e8] sm:$0x1] 0.0
    %130 = vst [vmem:[#allocation2 + $0x300] sm:$0x1] 0.0
    %131 = vst [vmem:[#allocation2 + $0x318] sm:$0x1] 0.0
    %132 = vst [vmem:[#allocation2 + $0x330] sm:$0x1] 0.0
    %133 = vst [vmem:[#allocation2 + $0x348] sm:$0x1] 0.0
    %134 = vst [vmem:[#allocation2 + $0x11] sm:$0x1] 0.0
    %135 = vst [vmem:[#allocation2 + $0x29] sm:$0x1] 0.0
    %136 = vst [vmem:[#allocation2 + $0x41] sm:$0x1] 0.0
    %137 = vst [vmem:[#allocation2 + $0x59] sm:$0x1] 0.0
    %138 = vst [vmem:[#allocation2 + $0x71] sm:$0x1] 0.0
    %139 = vst [vmem:[#allocation2 + $0x89] sm:$0x1] 0.0
    %140 = vst [vmem:[#allocation2 + $0xa1] sm:$0x1] 0.0
    %141 = vst [vmem:[#allocation2 + $0xb9] sm:$0x1] 0.0
    %142 = vst [vmem:[#allocation2 + $0xd1] sm:$0x1] 0.0
    %143 = vst [vmem:[#allocation2 + $0xe9] sm:$0x1] 0.0
    %144 = vst [vmem:[#allocation2 + $0x101] sm:$0x1] 0.0
    %145 = vst [vmem:[#allocation2 + $0x119] sm:$0x1] 0.0
    %146 = vst [vmem:[#allocation2 + $0x131] sm:$0x1] 0.0
    %147 = vst [vmem:[#allocation2 + $0x149] sm:$0x1] 0.0
    %148 = vst [vmem:[#allocation2 + $0x161] sm:$0x1] 0.0
    %149 = vst [vmem:[#allocation2 + $0x179] sm:$0x1] 0.0
    %150 = vst [vmem:[#allocation2 + $0x191] sm:$0x1] 0.0
    %151 = vst [vmem:[#allocation2 + $0x1a9] sm:$0x1] 0.0
    %152 = vst [vmem:[#allocation2 + $0x1c1] sm:$0x1] 0.0
    %153 = vst [vmem:[#allocation2 + $0x1d9] sm:$0x1] 0.0
    %154 = vst [vmem:[#allocation2 + $0x1f1] sm:$0x1] 0.0
    %155 = vst [vmem:[#allocation2 + $0x209] sm:$0x1] 0.0
    %156 = vst [vmem:[#allocation2 + $0x221] sm:$0x1] 0.0
    %157 = vst [vmem:[#allocation2 + $0x239] sm:$0x1] 0.0
    %158 = vst [vmem:[#allocation2 + $0x251] sm:$0x1] 0.0
    %159 = vst [vmem:[#allocation2 + $0x269] sm:$0x1] 0.0
    %160 = vst [vmem:[#allocation2 + $0x281] sm:$0x1] 0.0
    %161 = vst [vmem:[#allocation2 + $0x299] sm:$0x1] 0.0
    %162 = vst [vmem:[#allocation2 + $0x2b1] sm:$0x1] 0.0
    %163 = vst [vmem:[#allocation2 + $0x2c9] sm:$0x1] 0.0
    %164 = vst [vmem:[#allocation2 + $0x2e1] sm:$0x1] 0.0
    %165 = vst [vmem:[#allocation2 + $0x2f9] sm:$0x1] 0.0
    %166 = vst [vmem:[#allocation2 + $0x311] sm:$0x1] 0.0
    %167 = vst [vmem:[#allocation2 + $0x329] sm:$0x1] 0.0
    %168 = vst [vmem:[#allocation2 + $0x341] sm:$0x1] 0.0
    %169 = vst [vmem:[#allocation2 + $0x359] sm:$0x1] 0.0
    %v170 = vld [vmem:[#allocation4] sm:$0xff]
    %v171 = vld [vmem:[#allocation4 + $0x8] sm:$0xff]
    %v172 = vld [vmem:[#allocation4 + $0x10] sm:$0xff]
    %v173 = vld [vmem:[#allocation4 + $0x18] sm:$0xff]
    %v174 = vld [vmem:[#allocation4 + $0x20] sm:$0xff]
    %v175 = vld [vmem:[#allocation4 + $0x28] sm:$0xff]
    %v176 = vld [vmem:[#allocation4 + $0x30] sm:$0xff]
    %v177 = vld [vmem:[#allocation4 + $0x38] sm:$0xff]
    %v178 = vld [vmem:[#allocation4 + $0x40] sm:$0xff]
    %v179 = vld [vmem:[#allocation4 + $0x48] sm:$0xff]
    %v180 = vld [vmem:[#allocation4 + $0x50] sm:$0xff]
    %v181 = vld [vmem:[#allocation4 + $0x58] sm:$0xff]
    %v182 = vld [vmem:[#allocation4 + $0x60] sm:$0xff]
    %v183 = vld [vmem:[#allocation4 + $0x68] sm:$0xff]
    %v184 = vld [vmem:[#allocation4 + $0x70] sm:$0xff]
    %v185 = vld [vmem:[#allocation4 + $0x78] sm:$0xff]
    %v186 = vld [vmem:[#allocation4 + $0x80] sm:$0xff]
    %v187 = vld [vmem:[#allocation4 + $0x88] sm:$0xff]
    %v188 = vld [vmem:[#allocation4 + $0x90] sm:$0xff]
    %v189 = vld [vmem:[#allocation4 + $0x98] sm:$0xff]
    %v190 = vld [vmem:[#allocation4 + $0xa0] sm:$0xff]
    %v191 = vld [vmem:[#allocation4 + $0xa8] sm:$0xff]
    %v192 = vld [vmem:[#allocation4 + $0xb0] sm:$0xff]
    %v193 = vld [vmem:[#allocation4 + $0xb8] sm:$0xff]
    %v194 = vld [vmem:[#allocation4 + $0xc0] sm:$0xff]
    %v195 = vld [vmem:[#allocation4 + $0xc8] sm:$0xff]
    %v196 = vld [vmem:[#allocation4 + $0xd0] sm:$0xff]
    %v197 = vld [vmem:[#allocation4 + $0xd8] sm:$0xff]
    %v198 = vld [vmem:[#allocation4 + $0xe0] sm:$0xff]
    %v199 = vld [vmem:[#allocation4 + $0xe8] sm:$0xff]
    %v200 = vld [vmem:[#allocation4 + $0xf0] sm:$0xff]
    %v201 = vld [vmem:[#allocation4 + $0xf8] sm:$0xff]
    %v202 = vld [vmem:[#allocation4 + $0x100] sm:$0xff]
    %v203 = vld [vmem:[#allocation4 + $0x108] sm:$0xff]
    %v204 = vld [vmem:[#allocation4 + $0x110] sm:$0xff]
    %v205 = vld [vmem:[#allocation4 + $0x118] sm:$0xff]
    %v206 = vld [vmem:[#allocation4 + $0x120] sm:$0xff]
    %v207 = vld [vmem:[#allocation4 + $0x128] sm:$0xff]
    %v208 = vld [vmem:[#allocation4 + $0x130] sm:$0xff]
    %v209 = vld [vmem:[#allocation4 + $0x138] sm:$0xff]
    %v210 = vld [vmem:[#allocation4 + $0x140] sm:$0xff]
    %v211 = vld [vmem:[#allocation4 + $0x148] sm:$0xff]
    %v212 = vld [vmem:[#allocation4 + $0x150] sm:$0xff]
    %v213 = vld [vmem:[#allocation4 + $0x158] sm:$0xff]
    %v214 = vld [vmem:[#allocation4 + $0x160] sm:$0xff]
    %v215 = vld [vmem:[#allocation4 + $0x168] sm:$0xff]
    %v216 = vld [vmem:[#allocation4 + $0x170] sm:$0xff]
    %v217 = vld [vmem:[#allocation4 + $0x178] sm:$0xff]
    %v218 = vld [vmem:[#allocation4 + $0x180] sm:$0xff]
    %v219 = vld [vmem:[#allocation4 + $0x188] sm:$0xff]
    %v220 = vld [vmem:[#allocation4 + $0x190] sm:$0xff]
    %v221 = vld [vmem:[#allocation4 + $0x198] sm:$0xff]
    %v222 = vld [vmem:[#allocation4 + $0x1a0] sm:$0xff]
    %v223 = vld [vmem:[#allocation4 + $0x1a8] sm:$0xff]
    %v224 = vld [vmem:[#allocation4 + $0x1b0] sm:$0xff]
    %v225 = vld [vmem:[#allocation4 + $0x1b8] sm:$0xff]
    %v226 = vld [vmem:[#allocation4 + $0x1c0] sm:$0xff]
    %v227 = vld [vmem:[#allocation4 + $0x1c8] sm:$0xff]
    %v228 = vld [vmem:[#allocation4 + $0x1d0] sm:$0xff]
    %v229 = vld [vmem:[#allocation4 + $0x1d8] sm:$0xff]
    %v230 = vld [vmem:[#allocation4 + $0x1e0] sm:$0xff]
    %v231 = vld [vmem:[#allocation4 + $0x1e8] sm:$0xff]
    %v232 = vld [vmem:[#allocation4 + $0x1f0] sm:$0xff]
    %v233 = vld [vmem:[#allocation4 + $0x1f8] sm:$0xff]
    %v234 = vld [vmem:[%s4] sm:$0x1]
    %v235 = vld [vmem:[%s5] sm:$0x1]
    %v236 = vadd.f32 %v170, %v171
    %v237 = vadd.f32 %v236, %v172
    %v238 = vadd.f32 %v237, %v173
    %v239 = vadd.f32 %v238, %v174
    %v240 = vadd.f32 %v239, %v175
    %v241 = vadd.f32 %v240, %v176
    %v242 = vadd.f32 %v241, %v177
    %v243 = vadd.f32 %v242, %v178
    %v244 = vadd.f32 %v243, %v179
    %v245 = vadd.f32 %v244, %v180
    %v246 = vadd.f32 %v245, %v181
    %v247 = vadd.f32 %v246, %v182
    %v248 = vadd.f32 %v247, %v183
    %v249 = vadd.f32 %v248, %v184
    %v250 = vadd.f32 %v249, %v185
    %v251 = vadd.f32 %v250, %v186
    %v252 = vadd.f32 %v251, %v187
    %v253 = vadd.f32 %v252, %v188
    %v254 = vadd.f32 %v253, %v189
    %v255 = vadd.f32 %v254, %v190
    %v256 = vadd.f32 %v255, %v191
    %v257 = vadd.f32 %v256, %v192
    %v258 = vadd.f32 %v257, %v193
    %v259 = vadd.f32 %v258, %v194
    %v260 = vadd.f32 %v259, %v195
    %v261 = vadd.f32 %v260, %v196
    %v262 = vadd.f32 %v261, %v197
    %v263 = vadd.f32 %v262, %v198
    %v264 = vadd.f32 %v263, %v199
    %v265 = vadd.f32 %v264, %v200
    %v266 = vadd.f32 %v265, %v201
    %v267 = vadd.f32 %v266, %v202
    %v268 = vadd.f32 %v267, %v203
    %v269 = vadd.f32 %v268, %v204
    %v270 = vadd.f32 %v269, %v205
    %v271 = vadd.f32 %v270, %v206
    %v272 = vadd.f32 %v271, %v207
    %v273 = vadd.f32 %v272, %v208
    %v274 = vadd.f32 %v273, %v209
    %v275 = vadd.f32 %v274, %v210
    %v276 = vadd.f32 %v275, %v211
    %v277 = vadd.f32 %v276, %v212
    %v278 = vadd.f32 %v277, %v213
    %v279 = vadd.f32 %v278, %v214
    %v280 = vadd.f32 %v279, %v215
    %v281 = vadd.f32 %v280, %v216
    %v282 = vadd.f32 %v281, %v217
    %v283 = vadd.f32 %v282, %v218
    %v284 = vadd.f32 %v283, %v219
    %v285 = vadd.f32 %v284, %v220
    %v286 = vadd.f32 %v285, %v221
    %v287 = vadd.f32 %v286, %v222
    %v288 = vadd.f32 %v287, %v223
    %v289 = vadd.f32 %v288, %v224
    %v290 = vadd.f32 %v289, %v225
    %v291 = vadd.f32 %v290, %v226
    %v292 = vadd.f32 %v291, %v227
    %v293 = vadd.f32 %v292, %v228
    %v294 = vadd.f32 %v293, %v229
    %v295 = vadd.f32 %v294, %v230
    %v296 = vadd.f32 %v295, %v231
    %v297 = vadd.f32 %v296, %v232
    %v298 = vadd.f32 %v297, %v233
    %v299 = vrot.slane %v298, 4
    %v300 = vadd.f32 %v298, %v299
    %v301 = vrot.slane %v300, 2
    %v302 = vadd.f32 %v300, %v301
    %v303 = vrot.slane %v302, 1
    %v304 = vadd.f32 %v302, %v303
    %v305 = vmul.f32 %v170, %v170
    %v306 = vmul.f32 %v171, %v171
    %v307 = vmul.f32 %v172, %v172
    %v308 = vmul.f32 %v173, %v173
    %v309 = vmul.f32 %v174, %v174
    %v310 = vmul.f32 %v175, %v175
    %v311 = vmul.f32 %v176, %v176
    %v312 = vmul.f32 %v177, %v177
    %v313 = vmul.f32 %v178, %v178
    %v314 = vmul.f32 %v179, %v179
    %v315 = vmul.f32 %v180, %v180
    %v316 = vmul.f32 %v181, %v181
    %v317 = vmul.f32 %v182, %v182
    %v318 = vmul.f32 %v183, %v183
    %v319 = vmul.f32 %v184, %v184
    %v320 = vmul.f32 %v185, %v185
    %v321 = vmul.f32 %v186, %v186
    %v322 = vmul.f32 %v187, %v187
    %v323 = vmul.f32 %v188, %v188
    %v324 = vmul.f32 %v189, %v189
    %v325 = vmul.f32 %v190, %v190
    %v326 = vmul.f32 %v191, %v191
    %v327 = vmul.f32 %v192, %v192
    %v328 = vmul.f32 %v193, %v193
    %v329 = vmul.f32 %v194, %v194
    %v330 = vmul.f32 %v195, %v195
    %v331 = vmul.f32 %v196, %v196
    %v332 = vmul.f32 %v197, %v197
    %v333 = vmul.f32 %v198, %v198
    %v334 = vmul.f32 %v199, %v199
    %v335 = vmul.f32 %v200, %v200
    %v336 = vmul.f32 %v201, %v201
    %v337 = vmul.f32 %v202, %v202
    %v338 = vmul.f32 %v203, %v203
    %v339 = vmul.f32 %v204, %v204
    %v340 = vmul.f32 %v205, %v205
    %v341 = vmul.f32 %v206, %v206
    %v342 = vmul.f32 %v207, %v207
    %v343 = vmul.f32 %v208, %v208
    %v344 = vmul.f32 %v209, %v209
    %v345 = vmul.f32 %v210, %v210
    %v346 = vmul.f32 %v211, %v211
    %v347 = vmul.f32 %v212, %v212
    %v348 = vmul.f32 %v213, %v213
    %v349 = vmul.f32 %v214, %v214
    %v350 = vmul.f32 %v215, %v215
    %v351 = vmul.f32 %v216, %v216
    %v352 = vmul.f32 %v217, %v217
    %v353 = vmul.f32 %v218, %v218
    %v354 = vmul.f32 %v219, %v219
    %v355 = vmul.f32 %v220, %v220
    %v356 = vmul.f32 %v221, %v221
    %v357 = vmul.f32 %v222, %v222
    %v358 = vmul.f32 %v223, %v223
    %v359 = vmul.f32 %v224, %v224
    %v360 = vmul.f32 %v225, %v225
    %v361 = vmul.f32 %v226, %v226
    %v362 = vmul.f32 %v227, %v227
    %v363 = vmul.f32 %v228, %v228
    %v364 = vmul.f32 %v229, %v229
    %v365 = vmul.f32 %v230, %v230
    %v366 = vmul.f32 %v231, %v231
    %v367 = vmul.f32 %v232, %v232
    %v368 = vmul.f32 %v233, %v233
    %v369 = vadd.f32 %v305, %v306
    %v370 = vadd.f32 %v369, %v307
    %v371 = vadd.f32 %v370, %v308
    %v372 = vadd.f32 %v371, %v309
    %v373 = vadd.f32 %v372, %v310
    %v374 = vadd.f32 %v373, %v311
    %v375 = vadd.f32 %v374, %v312
    %v376 = vadd.f32 %v375, %v313
    %v377 = vadd.f32 %v376, %v314
    %v378 = vadd.f32 %v377, %v315
    %v379 = vadd.f32 %v378, %v316
    %v380 = vadd.f32 %v379, %v317
    %v381 = vadd.f32 %v380, %v318
    %v382 = vadd.f32 %v381, %v319
    %v383 = vadd.f32 %v382, %v320
    %v384 = vadd.f32 %v383, %v321
    %v385 = vadd.f32 %v384, %v322
    %v386 = vadd.f32 %v385, %v323
    %v387 = vadd.f32 %v386, %v324
    %v388 = vadd.f32 %v387, %v325
    %v389 = vadd.f32 %v388, %v326
    %v390 = vadd.f32 %v389, %v327
    %v391 = vadd.f32 %v390, %v328
    %v392 = vadd.f32 %v391, %v329
    %v393 = vadd.f32 %v392, %v330
    %v394 = vadd.f32 %v393, %v331
    %v395 = vadd.f32 %v394, %v332
    %v396 = vadd.f32 %v395, %v333
    %v397 = vadd.f32 %v396, %v334
    %v398 = vadd.f32 %v397, %v335
    %v399 = vadd.f32 %v398, %v336
    %v400 = vadd.f32 %v399, %v337
    %v401 = vadd.f32 %v400, %v338
    %v402 = vadd.f32 %v401, %v339
    %v403 = vadd.f32 %v402, %v340
    %v404 = vadd.f32 %v403, %v341
    %v405 = vadd.f32 %v404, %v342
    %v406 = vadd.f32 %v405, %v343
    %v407 = vadd.f32 %v406, %v344
    %v408 = vadd.f32 %v407, %v345
    %v409 = vadd.f32 %v408, %v346
    %v410 = vadd.f32 %v409, %v347
    %v411 = vadd.f32 %v410, %v348
    %v412 = vadd.f32 %v411, %v349
    %v413 = vadd.f32 %v412, %v350
    %v414 = vadd.f32 %v413, %v351
    %v415 = vadd.f32 %v414, %v352
    %v416 = vadd.f32 %v415, %v353
    %v417 = vadd.f32 %v416, %v354
    %v418 = vadd.f32 %v417, %v355
    %v419 = vadd.f32 %v418, %v356
    %v420 = vadd.f32 %v419, %v357
    %v421 = vadd.f32 %v420, %v358
    %v422 = vadd.f32 %v421, %v359
    %v423 = vadd.f32 %v422, %v360
    %v424 = vadd.f32 %v423, %v361
    %v425 = vadd.f32 %v424, %v362
    %v426 = vadd.f32 %v425, %v363
    %v427 = vadd.f32 %v426, %v364
    %v428 = vadd.f32 %v427, %v365
    %v429 = vadd.f32 %v428, %v366
    %v430 = vadd.f32 %v429, %v367
    %v431 = vadd.f32 %v430, %v368
    %v432 = vrot.slane %v431, 4
    %v433 = vadd.f32 %v431, %v432
    %v434 = vrot.slane %v433, 2
    %v435 = vadd.f32 %v433, %v434
    %v436 = vrot.slane %v435, 1
    %v437 = vadd.f32 %v435, %v436
    %v438 = vmul.f32 %v304, 0.001953125
    %v439 = vmul.f32 %v437, 0.001953125
    %v440 = vmul.f32 %v438, %v438
    %v441 = vsub.f32 %v439, %v440
    %v442 = vadd.f32 %v441, 1e-05
    %v443 = vrsqrt.pop %v442
    %v444 = vmul.f32 %v443, %v234
    %v445 = vmul.f32 %v438, %v444
    %v446 = vsub.f32 %v235, %v445
    %v447 = vlaneseq
    %v448 = vshrl.u32 %v447, 7
    %v449 = vsub.s32 0, %v448
    %v450 = vrot.slane %v444, %v449
    %v451 = vmul.f32 %v170, %v450
    %v452 = vmul.f32 %v171, %v450
    %v453 = vmul.f32 %v172, %v450
    %v454 = vmul.f32 %v173, %v450
    %v455 = vmul.f32 %v174, %v450
    %v456 = vmul.f32 %v175, %v450
    %v457 = vmul.f32 %v176, %v450
    %v458 = vmul.f32 %v177, %v450
    %v459 = vmul.f32 %v178, %v450
    %v460 = vmul.f32 %v179, %v450
    %v461 = vmul.f32 %v180, %v450
    %v462 = vmul.f32 %v181, %v450
    %v463 = vmul.f32 %v182, %v450
    %v464 = vmul.f32 %v183, %v450
    %v465 = vmul.f32 %v184, %v450
    %v466 = vmul.f32 %v185, %v450
    %v467 = vmul.f32 %v186, %v450
    %v468 = vmul.f32 %v187, %v450
    %v469 = vmul.f32 %v188, %v450
    %v470 = vmul.f32 %v189, %v450
    %v471 = vmul.f32 %v190, %v450
    %v472 = vmul.f32 %v191, %v450
    %v473 = vmul.f32 %v192, %v450
    %v474 = vmul.f32 %v193, %v450
    %v475 = vmul.f32 %v194, %v450
    %v476 = vmul.f32 %v195, %v450
    %v477 = vmul.f32 %v196, %v450
    %v478 = vmul.f32 %v197, %v450
    %v479 = vmul.f32 %v198, %v450
    %v480 = vmul.f32 %v199, %v450
    %v481 = vmul.f32 %v200, %v450
    %v482 = vmul.f32 %v201, %v450
    %v483 = vmul.f32 %v202, %v450
    %v484 = vmul.f32 %v203, %v450
    %v485 = vmul.f32 %v204, %v450
    %v486 = vmul.f32 %v205, %v450
    %v487 = vmul.f32 %v206, %v450
    %v488 = vmul.f32 %v207, %v450
    %v489 = vmul.f32 %v208, %v450
    %v490 = vmul.f32 %v209, %v450
    %v491 = vmul.f32 %v210, %v450
    %v492 = vmul.f32 %v211, %v450
    %v493 = vmul.f32 %v212, %v450
    %v494 = vmul.f32 %v213, %v450
    %v495 = vmul.f32 %v214, %v450
    %v496 = vmul.f32 %v215, %v450
    %v497 = vmul.f32 %v216, %v450
    %v498 = vmul.f32 %v217, %v450
    %v499 = vmul.f32 %v218, %v450
    %v500 = vmul.f32 %v219, %v450
    %v501 = vmul.f32 %v220, %v450
    %v502 = vmul.f32 %v221, %v450
    %v503 = vmul.f32 %v222, %v450
    %v504 = vmul.f32 %v223, %v450
    %v505 = vmul.f32 %v224, %v450
    %v506 = vmul.f32 %v225, %v450
    %v507 = vmul.f32 %v226, %v450
    %v508 = vmul.f32 %v227, %v450
    %v509 = vmul.f32 %v228, %v450
    %v510 = vmul.f32 %v229, %v450
    %v511 = vmul.f32 %v230, %v450
    %v512 = vmul.f32 %v231, %v450
    %v513 = vmul.f32 %v232, %v450
    %v514 = vmul.f32 %v233, %v450
    %v516 = vlaneseq
    %v517 = vshrl.u32 %v516, 7
    %v518 = vsub.s32 0, %v517
    %v519 = vrot.slane %v446, %v518
    %v521 = vadd.f32 %v451, %v519
    %v522 = vadd.f32 %v452, %v519
    %v523 = vadd.f32 %v453, %v519
    %v524 = vadd.f32 %v454, %v519
    %v525 = vadd.f32 %v455, %v519
    %v526 = vadd.f32 %v456, %v519
    %v527 = vadd.f32 %v457, %v519
    %v528 = vadd.f32 %v458, %v519
    %v529 = vadd.f32 %v459, %v519
    %v530 = vadd.f32 %v460, %v519
    %v531 = vadd.f32 %v461, %v519
    %v532 = vadd.f32 %v462, %v519
    %v533 = vadd.f32 %v463, %v519
    %v534 = vadd.f32 %v464, %v519
    %v535 = vadd.f32 %v465, %v519
    %v536 = vadd.f32 %v466, %v519
    %v537 = vadd.f32 %v467, %v519
    %v538 = vadd.f32 %v468, %v519
    %v539 = vadd.f32 %v469, %v519
    %v540 = vadd.f32 %v470, %v519
    %v541 = vadd.f32 %v471, %v519
    %v542 = vadd.f32 %v472, %v519
    %v543 = vadd.f32 %v473, %v519
    %v544 = vadd.f32 %v474, %v519
    %v545 = vadd.f32 %v475, %v519
    %v546 = vadd.f32 %v476, %v519
    %v547 = vadd.f32 %v477, %v519
    %v548 = vadd.f32 %v478, %v519
    %v549 = vadd.f32 %v479, %v519
    %v550 = vadd.f32 %v480, %v519
    %v551 = vadd.f32 %v481, %v519
    %v552 = vadd.f32 %v482, %v519
    %v553 = vadd.f32 %v483, %v519
    %v554 = vadd.f32 %v484, %v519
    %v555 = vadd.f32 %v485, %v519
    %v556 = vadd.f32 %v486, %v519
    %v557 = vadd.f32 %v487, %v519
    %v558 = vadd.f32 %v488, %v519
    %v559 = vadd.f32 %v489, %v519
    %v560 = vadd.f32 %v490, %v519
    %v561 = vadd.f32 %v491, %v519
    %v562 = vadd.f32 %v492, %v519
    %v563 = vadd.f32 %v493, %v519
    %v564 = vadd.f32 %v494, %v519
    %v565 = vadd.f32 %v495, %v519
    %v566 = vadd.f32 %v496, %v519
    %v567 = vadd.f32 %v497, %v519
    %v568 = vadd.f32 %v498, %v519
    %v569 = vadd.f32 %v499, %v519
    %v570 = vadd.f32 %v500, %v519
    %v571 = vadd.f32 %v501, %v519
    %v572 = vadd.f32 %v502, %v519
    %v573 = vadd.f32 %v503, %v519
    %v574 = vadd.f32 %v504, %v519
    %v575 = vadd.f32 %v505, %v519
    %v576 = vadd.f32 %v506, %v519
    %v577 = vadd.f32 %v507, %v519
    %v578 = vadd.f32 %v508, %v519
    %v579 = vadd.f32 %v509, %v519
    %v580 = vadd.f32 %v510, %v519
    %v581 = vadd.f32 %v511, %v519
    %v582 = vadd.f32 %v512, %v519
    %v583 = vadd.f32 %v513, %v519
    %v584 = vadd.f32 %v514, %v519
    %v585 = vmax.f32 %v521, 0.0
    %v586 = vmax.f32 %v522, 0.0
    %v587 = vmax.f32 %v523, 0.0
    %v588 = vmax.f32 %v524, 0.0
    %v589 = vmax.f32 %v525, 0.0
    %v590 = vmax.f32 %v526, 0.0
    %v591 = vmax.f32 %v527, 0.0
    %v592 = vmax.f32 %v528, 0.0
    %v593 = vmax.f32 %v529, 0.0
    %v594 = vmax.f32 %v530, 0.0
    %v595 = vmax.f32 %v531, 0.0
    %v596 = vmax.f32 %v532, 0.0
    %v597 = vmax.f32 %v533, 0.0
    %v598 = vmax.f32 %v534, 0.0
    %v599 = vmax.f32 %v535, 0.0
    %v600 = vmax.f32 %v536, 0.0
    %v601 = vmax.f32 %v537, 0.0
    %v602 = vmax.f32 %v538, 0.0
    %v603 = vmax.f32 %v539, 0.0
    %v604 = vmax.f32 %v540, 0.0
    %v605 = vmax.f32 %v541, 0.0
    %v606 = vmax.f32 %v542, 0.0
    %v607 = vmax.f32 %v543, 0.0
    %v608 = vmax.f32 %v544, 0.0
    %v609 = vmax.f32 %v545, 0.0
    %v610 = vmax.f32 %v546, 0.0
    %v611 = vmax.f32 %v547, 0.0
    %v612 = vmax.f32 %v548, 0.0
    %v613 = vmax.f32 %v549, 0.0
    %v614 = vmax.f32 %v550, 0.0
    %v615 = vmax.f32 %v551, 0.0
    %v616 = vmax.f32 %v552, 0.0
    %v617 = vmax.f32 %v553, 0.0
    %v618 = vmax.f32 %v554, 0.0
    %v619 = vmax.f32 %v555, 0.0
    %v620 = vmax.f32 %v556, 0.0
    %v621 = vmax.f32 %v557, 0.0
    %v622 = vmax.f32 %v558, 0.0
    %v623 = vmax.f32 %v559, 0.0
    %v624 = vmax.f32 %v560, 0.0
    %v625 = vmax.f32 %v561, 0.0
    %v626 = vmax.f32 %v562, 0.0
    %v627 = vmax.f32 %v563, 0.0
    %v628 = vmax.f32 %v564, 0.0
    %v629 = vmax.f32 %v565, 0.0
    %v630 = vmax.f32 %v566, 0.0
    %v631 = vmax.f32 %v567, 0.0
    %v632 = vmax.f32 %v568, 0.0
    %v633 = vmax.f32 %v569, 0.0
    %v634 = vmax.f32 %v570, 0.0
    %v635 = vmax.f32 %v571, 0.0
    %v636 = vmax.f32 %v572, 0.0
    %v637 = vmax.f32 %v573, 0.0
    %v638 = vmax.f32 %v574, 0.0
    %v639 = vmax.f32 %v575, 0.0
    %v640 = vmax.f32 %v576, 0.0
    %v641 = vmax.f32 %v577, 0.0
    %v642 = vmax.f32 %v578, 0.0
    %v643 = vmax.f32 %v579, 0.0
    %v644 = vmax.f32 %v580, 0.0
    %v645 = vmax.f32 %v581, 0.0
    %v646 = vmax.f32 %v582, 0.0
    %v647 = vmax.f32 %v583, 0.0
    %v648 = vmax.f32 %v584, 0.0
    %v649 = vld [vmem:[#allocation10] sm:$0xff]
    %v650 = vld [vmem:[#allocation10 + $0x8] sm:$0xff]
    %v651 = vld [vmem:[#allocation10 + $0x10] sm:$0xff]
    %v652 = vld [vmem:[#allocation10 + $0x18] sm:$0xff]
    %v653 = vld [vmem:[#allocation10 + $0x20] sm:$0xff]
    %v654 = vld [vmem:[#allocation10 + $0x28] sm:$0xff]
    %v655 = vld [vmem:[#allocation10 + $0x30] sm:$0xff]
    %v656 = vld [vmem:[#allocation10 + $0x38] sm:$0xff]
    %v657 = vld [vmem:[#allocation10 + $0x40] sm:$0xff]
    %v658 = vld [vmem:[#allocation10 + $0x48] sm:$0xff]
    %v659 = vld [vmem:[#allocation10 + $0x50] sm:$0xff]
    %v660 = vld [vmem:[#allocation10 + $0x58] sm:$0xff]
    %v661 = vld [vmem:[#allocation10 + $0x60] sm:$0xff]
    %v662 = vld [vmem:[#allocation10 + $0x68] sm:$0xff]
    %v663 = vld [vmem:[#allocation10 + $0x70] sm:$0xff]
    %v664 = vld [vmem:[#allocation10 + $0x78] sm:$0xff]
    %665 = vmatprep.subr.mxu0 0.0
    %666 = vmatpush1.msra.mxu0 %v664
    %667 = vmatprep.subr.mxu0 0.0
    %668 = vmatpush1.msra.mxu0 %v663
    %669 = vmatprep.subr.mxu0 0.0
    %670 = vmatpush1.msra.mxu0 %v662
    %671 = vmatprep.subr.mxu0 0.0
    %672 = vmatpush1.msra.mxu0 %v661
    %673 = vmatprep.subr.mxu0 0.0
    %674 = vmatpush1.msra.mxu0 %v660
    %675 = vmatprep.subr.mxu0 0.0
    %676 = vmatpush1.msra.mxu0 %v659
    %677 = vmatprep.subr.mxu0 0.0
    %678 = vmatpush1.msra.mxu0 %v658
    %679 = vmatprep.subr.mxu0 0.0
    %680 = vmatpush1.msra.mxu0 %v657
    %681 = vmatprep.subr.mxu0 0.0
    %682 = vmatpush1.msra.mxu0 %v656
    %683 = vmatprep.subr.mxu0 0.0
    %684 = vmatpush1.msra.mxu0 %v655
    %685 = vmatprep.subr.mxu0 0.0
    %686 = vmatpush1.msra.mxu0 %v654
    %687 = vmatprep.subr.mxu0 0.0
    %688 = vmatpush1.msra.mxu0 %v653
    %689 = vmatprep.subr.mxu0 0.0
    %690 = vmatpush1.msra.mxu0 %v652
    %691 = vmatprep.subr.mxu0 0.0
    %692 = vmatpush1.msra.mxu0 %v651
    %693 = vmatprep.subr.mxu0 0.0
    %694 = vmatpush1.msra.mxu0 %v650
    %695 = vmatprep.subr.mxu0 0.0
    %696 = vmatpush1.msra.mxu0 %v649
    %697 = vmatprep.subr.mxu0 0.0
    %698 = vmatpush2.msra.mxu0 0.0
    %699 = vmatprep.subr.mxu0 0.0
    %700 = vmatpush2.msra.mxu0 0.0
    %701 = vmatprep.subr.mxu0 0.0
    %702 = vmatpush2.msra.mxu0 0.0
    %703 = vmatprep.subr.mxu0 0.0
    %704 = vmatpush2.msra.mxu0 0.0
    %705 = vmatprep.subr.mxu0 0.0
    %706 = vmatpush2.msra.mxu0 0.0
    %707 = vmatprep.subr.mxu0 0.0
    %708 = vmatpush2.msra.mxu0 0.0
    %709 = vmatprep.subr.mxu0 0.0
    %710 = vmatpush2.msra.mxu0 0.0
    %711 = vmatprep.subr.mxu0 0.0
    %712 = vmatpush2.msra.mxu0 0.0
    %713 = vmatprep.subr.mxu0 0.0
    %714 = vmatpush2.msra.mxu0 0.0
    %715 = vmatprep.subr.mxu0 0.0
    %716 = vmatpush2.msra.mxu0 0.0
    %717 = vmatprep.subr.mxu0 0.0
    %718 = vmatpush2.msra.mxu0 0.0
    %719 = vmatprep.subr.mxu0 0.0
    %720 = vmatpush2.msra.mxu0 0.0
    %721 = vmatprep.subr.mxu0 0.0
    %722 = vmatpush2.msra.mxu0 0.0
    %723 = vmatprep.subr.mxu0 0.0
    %724 = vmatpush2.msra.mxu0 0.0
    %725 = vmatprep.subr.mxu0 0.0
    %726 = vmatpush2.msra.mxu0 0.0
    %727 = vmatprep.subr.mxu0 0.0
    %728 = vmatpush2.msra.mxu0 0.0
    %729 = vmatprep.mubr.f32.mxu0 0.0
    %730 = vmatmul.mubr.f32.gmra.mxu0 %v585
    %v731 = vpop.f32.mrf.mxu0
    %v732 = vadd.f32 0.0, %v731
    %v733 = vpop.f32.mrf.mxu0
    %734 = vmatprep.mubr.f32.mxu0 0.0
    %735 = vmatmul.mubr.f32.gmra.mxu0 %v586
    %v736 = vpop.f32.mrf.mxu0
    %v737 = vadd.f32 0.0, %v736
    %v738 = vpop.f32.mrf.mxu0
    %739 = vmatprep.mubr.f32.mxu0 0.0
    %740 = vmatmul.mubr.f32.gmra.mxu0 %v587
    %v741 = vpop.f32.mrf.mxu0
    %v742 = vadd.f32 0.0, %v741
    %v743 = vpop.f32.mrf.mxu0
    %744 = vmatprep.mubr.f32.mxu0 0.0
    %745 = vmatmul.mubr.f32.gmra.mxu0 %v588
    %v746 = vpop.f32.mrf.mxu0
    %v747 = vadd.f32 0.0, %v746
    %v748 = vpop.f32.mrf.mxu0
    %749 = vmatprep.mubr.f32.mxu0 0.0
    %750 = vmatmul.mubr.f32.gmra.mxu0 %v589
    %v751 = vpop.f32.mrf.mxu0
    %v752 = vadd.f32 0.0, %v751
    %v753 = vpop.f32.mrf.mxu0
    %754 = vmatprep.mubr.f32.mxu0 0.0
    %755 = vmatmul.mubr.f32.gmra.mxu0 %v590
    %v756 = vpop.f32.mrf.mxu0
    %v757 = vadd.f32 0.0, %v756
    %v758 = vpop.f32.mrf.mxu0
    %759 = vmatprep.mubr.f32.mxu0 0.0
    %760 = vmatmul.mubr.f32.gmra.mxu0 %v591
    %v761 = vpop.f32.mrf.mxu0
    %v762 = vadd.f32 0.0, %v761
    %v763 = vpop.f32.mrf.mxu0
    %764 = vmatprep.mubr.f32.mxu0 0.0
    %765 = vmatmul.mubr.f32.gmra.mxu0 %v592
    %v766 = vpop.f32.mrf.mxu0
    %v767 = vadd.f32 0.0, %v766
    %v768 = vpop.f32.mrf.mxu0
    %769 = vmatprep.mubr.f32.mxu0 0.0
    %770 = vmatmul.mubr.f32.gmra.mxu0 %v593
    %v771 = vpop.f32.mrf.mxu0
    %v772 = vadd.f32 0.0, %v771
    %v773 = vpop.f32.mrf.mxu0
    %774 = vmatprep.mubr.f32.mxu0 0.0
    %775 = vmatmul.mubr.f32.gmra.mxu0 %v594
    %v776 = vpop.f32.mrf.mxu0
    %v777 = vadd.f32 0.0, %v776
    %v778 = vpop.f32.mrf.mxu0
    %779 = vmatprep.mubr.f32.mxu0 0.0
    %780 = vmatmul.mubr.f32.gmra.mxu0 %v595
    %v781 = vpop.f32.mrf.mxu0
    %v782 = vadd.f32 0.0, %v781
    %v783 = vpop.f32.mrf.mxu0
    %784 = vmatprep.mubr.f32.mxu0 0.0
    %785 = vmatmul.mubr.f32.gmra.mxu0 %v596
    %v786 = vpop.f32.mrf.mxu0
    %v787 = vadd.f32 0.0, %v786
    %v788 = vpop.f32.mrf.mxu0
    %789 = vmatprep.mubr.f32.mxu0 0.0
    %790 = vmatmul.mubr.f32.gmra.mxu0 %v597
    %v791 = vpop.f32.mrf.mxu0
    %v792 = vadd.f32 0.0, %v791
    %v793 = vpop.f32.mrf.mxu0
    %794 = vmatprep.mubr.f32.mxu0 0.0
    %795 = vmatmul.mubr.f32.gmra.mxu0 %v598
    %v796 = vpop.f32.mrf.mxu0
    %v797 = vadd.f32 0.0, %v796
    %v798 = vpop.f32.mrf.mxu0
    %799 = vmatprep.mubr.f32.mxu0 0.0
    %800 = vmatmul.mubr.f32.gmra.mxu0 %v599
    %v801 = vpop.f32.mrf.mxu0
    %v802 = vadd.f32 0.0, %v801
    %v803 = vpop.f32.mrf.mxu0
    %804 = vmatprep.mubr.f32.mxu0 0.0
    %805 = vmatmul.mubr.f32.gmra.mxu0 %v600
    %v806 = vpop.f32.mrf.mxu0
    %v807 = vadd.f32 0.0, %v806
    %v808 = vpop.f32.mrf.mxu0
    %809 = vmatprep.mubr.f32.mxu0 0.0
    %810 = vmatmul.mubr.f32.gmra.mxu0 %v601
    %v811 = vpop.f32.mrf.mxu0
    %v812 = vadd.f32 0.0, %v811
    %v813 = vpop.f32.mrf.mxu0
    %814 = vmatprep.mubr.f32.mxu0 0.0
    %815 = vmatmul.mubr.f32.gmra.mxu0 %v602
    %v816 = vpop.f32.mrf.mxu0
    %v817 = vadd.f32 0.0, %v816
    %v818 = vpop.f32.mrf.mxu0
    %819 = vmatprep.mubr.f32.mxu0 0.0
    %820 = vmatmul.mubr.f32.gmra.mxu0 %v603
    %v821 = vpop.f32.mrf.mxu0
    %v822 = vadd.f32 0.0, %v821
    %v823 = vpop.f32.mrf.mxu0
    %824 = vmatprep.mubr.f32.mxu0 0.0
    %825 = vmatmul.mubr.f32.gmra.mxu0 %v604
    %v826 = vpop.f32.mrf.mxu0
    %v827 = vadd.f32 0.0, %v826
    %v828 = vpop.f32.mrf.mxu0
    %829 = vmatprep.mubr.f32.mxu0 0.0
    %830 = vmatmul.mubr.f32.gmra.mxu0 %v605
    %v831 = vpop.f32.mrf.mxu0
    %v832 = vadd.f32 0.0, %v831
    %v833 = vpop.f32.mrf.mxu0
    %834 = vmatprep.mubr.f32.mxu0 0.0
    %835 = vmatmul.mubr.f32.gmra.mxu0 %v606
    %v836 = vpop.f32.mrf.mxu0
    %v837 = vadd.f32 0.0, %v836
    %v838 = vpop.f32.mrf.mxu0
    %839 = vmatprep.mubr.f32.mxu0 0.0
    %840 = vmatmul.mubr.f32.gmra.mxu0 %v607
    %v841 = vpop.f32.mrf.mxu0
    %v842 = vadd.f32 0.0, %v841
    %v843 = vpop.f32.mrf.mxu0
    %844 = vmatprep.mubr.f32.mxu0 0.0
    %845 = vmatmul.mubr.f32.gmra.mxu0 %v608
    %v846 = vpop.f32.mrf.mxu0
    %v847 = vadd.f32 0.0, %v846
    %v848 = vpop.f32.mrf.mxu0
    %849 = vmatprep.mubr.f32.mxu0 0.0
    %850 = vmatmul.mubr.f32.gmra.mxu0 %v609
    %v851 = vpop.f32.mrf.mxu0
    %v852 = vadd.f32 0.0, %v851
    %v853 = vpop.f32.mrf.mxu0
    %854 = vmatprep.mubr.f32.mxu0 0.0
    %855 = vmatmul.mubr.f32.gmra.mxu0 %v610
    %v856 = vpop.f32.mrf.mxu0
    %v857 = vadd.f32 0.0, %v856
    %v858 = vpop.f32.mrf.mxu0
    %859 = vmatprep.mubr.f32.mxu0 0.0
    %860 = vmatmul.mubr.f32.gmra.mxu0 %v611
    %v861 = vpop.f32.mrf.mxu0
    %v862 = vadd.f32 0.0, %v861
    %v863 = vpop.f32.mrf.mxu0
    %864 = vmatprep.mubr.f32.mxu0 0.0
    %865 = vmatmul.mubr.f32.gmra.mxu0 %v612
    %v866 = vpop.f32.mrf.mxu0
    %v867 = vadd.f32 0.0, %v866
    %v868 = vpop.f32.mrf.mxu0
    %869 = vmatprep.mubr.f32.mxu0 0.0
    %870 = vmatmul.mubr.f32.gmra.mxu0 %v613
    %v871 = vpop.f32.mrf.mxu0
    %v872 = vadd.f32 0.0, %v871
    %v873 = vpop.f32.mrf.mxu0
    %874 = vmatprep.mubr.f32.mxu0 0.0
    %875 = vmatmul.mubr.f32.gmra.mxu0 %v614
    %v876 = vpop.f32.mrf.mxu0
    %v877 = vadd.f32 0.0, %v876
    %v878 = vpop.f32.mrf.mxu0
    %879 = vmatprep.mubr.f32.mxu0 0.0
    %880 = vmatmul.mubr.f32.gmra.mxu0 %v615
    %v881 = vpop.f32.mrf.mxu0
    %v882 = vadd.f32 0.0, %v881
    %v883 = vpop.f32.mrf.mxu0
    %884 = vmatprep.mubr.f32.mxu0 0.0
    %885 = vmatmul.mubr.f32.gmra.mxu0 %v616
    %v886 = vpop.f32.mrf.mxu0
    %v887 = vadd.f32 0.0, %v886
    %v888 = vpop.f32.mrf.mxu0
    %889 = vmatprep.mubr.f32.mxu0 0.0
    %890 = vmatmul.mubr.f32.gmra.mxu0 %v617
    %v891 = vpop.f32.mrf.mxu0
    %v892 = vadd.f32 0.0, %v891
    %v893 = vpop.f32.mrf.mxu0
    %894 = vmatprep.mubr.f32.mxu0 0.0
    %895 = vmatmul.mubr.f32.gmra.mxu0 %v618
    %v896 = vpop.f32.mrf.mxu0
    %v897 = vadd.f32 0.0, %v896
    %v898 = vpop.f32.mrf.mxu0
    %899 = vmatprep.mubr.f32.mxu0 0.0
    %900 = vmatmul.mubr.f32.gmra.mxu0 %v619
    %v901 = vpop.f32.mrf.mxu0
    %v902 = vadd.f32 0.0, %v901
    %v903 = vpop.f32.mrf.mxu0
    %904 = vmatprep.mubr.f32.mxu0 0.0
    %905 = vmatmul.mubr.f32.gmra.mxu0 %v620
    %v906 = vpop.f32.mrf.mxu0
    %v907 = vadd.f32 0.0, %v906
    %v908 = vpop.f32.mrf.mxu0
    %909 = vmatprep.mubr.f32.mxu0 0.0
    %910 = vmatmul.mubr.f32.gmra.mxu0 %v621
    %v911 = vpop.f32.mrf.mxu0
    %v912 = vadd.f32 0.0, %v911
    %v913 = vpop.f32.mrf.mxu0
    %914 = vmatprep.mubr.f32.mxu0 0.0
    %915 = vmatmul.mubr.f32.gmra.mxu0 %v622
    %v916 = vpop.f32.mrf.mxu0
    %v917 = vadd.f32 0.0, %v916
    %v918 = vpop.f32.mrf.mxu0
    %919 = vmatprep.mubr.f32.mxu0 0.0
    %920 = vmatmul.mubr.f32.gmra.mxu0 %v623
    %v921 = vpop.f32.mrf.mxu0
    %v922 = vadd.f32 0.0, %v921
    %v923 = vpop.f32.mrf.mxu0
    %924 = vmatprep.mubr.f32.mxu0 0.0
    %925 = vmatmul.mubr.f32.gmra.mxu0 %v624
    %v926 = vpop.f32.mrf.mxu0
    %v927 = vadd.f32 0.0, %v926
    %v928 = vpop.f32.mrf.mxu0
    %929 = vmatprep.mubr.f32.mxu0 0.0
    %930 = vmatmul.mubr.f32.gmra.mxu0 %v625
    %v931 = vpop.f32.mrf.mxu0
    %v932 = vadd.f32 0.0, %v931
    %v933 = vpop.f32.mrf.mxu0
    %934 = vmatprep.mubr.f32.mxu0 0.0
    %935 = vmatmul.mubr.f32.gmra.mxu0 %v626
    %v936 = vpop.f32.mrf.mxu0
    %v937 = vadd.f32 0.0, %v936
    %v938 = vpop.f32.mrf.mxu0
    %939 = vmatprep.mubr.f32.mxu0 0.0
    %940 = vmatmul.mubr.f32.gmra.mxu0 %v627
    %v941 = vpop.f32.mrf.mxu0
    %v942 = vadd.f32 0.0, %v941
    %v943 = vpop.f32.mrf.mxu0
    %944 = vmatprep.mubr.f32.mxu0 0.0
    %945 = vmatmul.mubr.f32.gmra.mxu0 %v628
    %v946 = vpop.f32.mrf.mxu0
    %v947 = vadd.f32 0.0, %v946
    %v948 = vpop.f32.mrf.mxu0
    %949 = vmatprep.mubr.f32.mxu0 0.0
    %950 = vmatmul.mubr.f32.gmra.mxu0 %v629
    %v951 = vpop.f32.mrf.mxu0
    %v952 = vadd.f32 0.0, %v951
    %v953 = vpop.f32.mrf.mxu0
    %954 = vmatprep.mubr.f32.mxu0 0.0
    %955 = vmatmul.mubr.f32.gmra.mxu0 %v630
    %v956 = vpop.f32.mrf.mxu0
    %v957 = vadd.f32 0.0, %v956
    %v958 = vpop.f32.mrf.mxu0
    %959 = vmatprep.mubr.f32.mxu0 0.0
    %960 = vmatmul.mubr.f32.gmra.mxu0 %v631
    %v961 = vpop.f32.mrf.mxu0
    %v962 = vadd.f32 0.0, %v961
    %v963 = vpop.f32.mrf.mxu0
    %964 = vmatprep.mubr.f32.mxu0 0.0
    %965 = vmatmul.mubr.f32.gmra.mxu0 %v632
    %v966 = vpop.f32.mrf.mxu0
    %v967 = vadd.f32 0.0, %v966
    %v968 = vpop.f32.mrf.mxu0
    %969 = vmatprep.mubr.f32.mxu0 0.0
    %970 = vmatmul.mubr.f32.gmra.mxu0 %v633
    %v971 = vpop.f32.mrf.mxu0
    %v972 = vadd.f32 0.0, %v971
    %v973 = vpop.f32.mrf.mxu0
    %974 = vmatprep.mubr.f32.mxu0 0.0
    %975 = vmatmul.mubr.f32.gmra.mxu0 %v634
    %v976 = vpop.f32.mrf.mxu0
    %v977 = vadd.f32 0.0, %v976
    %v978 = vpop.f32.mrf.mxu0
    %979 = vmatprep.mubr.f32.mxu0 0.0
    %980 = vmatmul.mubr.f32.gmra.mxu0 %v635
    %v981 = vpop.f32.mrf.mxu0
    %v982 = vadd.f32 0.0, %v981
    %v983 = vpop.f32.mrf.mxu0
    %984 = vmatprep.mubr.f32.mxu0 0.0
    %985 = vmatmul.mubr.f32.gmra.mxu0 %v636
    %v986 = vpop.f32.mrf.mxu0
    %v987 = vadd.f32 0.0, %v986
    %v988 = vpop.f32.mrf.mxu0
    %989 = vmatprep.mubr.f32.mxu0 0.0
    %990 = vmatmul.mubr.f32.gmra.mxu0 %v637
    %v991 = vpop.f32.mrf.mxu0
    %v992 = vadd.f32 0.0, %v991
    %v993 = vpop.f32.mrf.mxu0
    %994 = vmatprep.mubr.f32.mxu0 0.0
    %995 = vmatmul.mubr.f32.gmra.mxu0 %v638
    %v996 = vpop.f32.mrf.mxu0
    %v997 = vadd.f32 0.0, %v996
    %v998 = vpop.f32.mrf.mxu0
    %999 = vmatprep.mubr.f32.mxu0 0.0
    %1000 = vmatmul.mubr.f32.gmra.mxu0 %v639
    %v1001 = vpop.f32.mrf.mxu0
    %v1002 = vadd.f32 0.0, %v1001
    %v1003 = vpop.f32.mrf.mxu0
    %1004 = vmatprep.mubr.f32.mxu0 0.0
    %1005 = vmatmul.mubr.f32.gmra.mxu0 %v640
    %v1006 = vpop.f32.mrf.mxu0
    %v1007 = vadd.f32 0.0, %v1006
    %v1008 = vpop.f32.mrf.mxu0
    %1009 = vmatprep.mubr.f32.mxu0 0.0
    %1010 = vmatmul.mubr.f32.gmra.mxu0 %v641
    %v1011 = vpop.f32.mrf.mxu0
    %v1012 = vadd.f32 0.0, %v1011
    %v1013 = vpop.f32.mrf.mxu0
    %1014 = vmatprep.mubr.f32.mxu0 0.0
    %1015 = vmatmul.mubr.f32.gmra.mxu0 %v642
    %v1016 = vpop.f32.mrf.mxu0
    %v1017 = vadd.f32 0.0, %v1016
    %v1018 = vpop.f32.mrf.mxu0
    %1019 = vmatprep.mubr.f32.mxu0 0.0
    %1020 = vmatmul.mubr.f32.gmra.mxu0 %v643
    %v1021 = vpop.f32.mrf.mxu0
    %v1022 = vadd.f32 0.0, %v1021
    %v1023 = vpop.f32.mrf.mxu0
    %1024 = vmatprep.mubr.f32.mxu0 0.0
    %1025 = vmatmul.mubr.f32.gmra.mxu0 %v644
    %v1026 = vpop.f32.mrf.mxu0
    %v1027 = vadd.f32 0.0, %v1026
    %v1028 = vpop.f32.mrf.mxu0
    %1029 = vmatprep.mubr.f32.mxu0 0.0
    %1030 = vmatmul.mubr.f32.gmra.mxu0 %v645
    %v1031 = vpop.f32.mrf.mxu0
    %v1032 = vadd.f32 0.0, %v1031
    %v1033 = vpop.f32.mrf.mxu0
    %1034 = vmatprep.mubr.f32.mxu0 0.0
    %1035 = vmatmul.mubr.f32.gmra.mxu0 %v646
    %v1036 = vpop.f32.mrf.mxu0
    %v1037 = vadd.f32 0.0, %v1036
    %v1038 = vpop.f32.mrf.mxu0
    %1039 = vmatprep.mubr.f32.mxu0 0.0
    %1040 = vmatmul.mubr.f32.gmra.mxu0 %v647
    %v1041 = vpop.f32.mrf.mxu0
    %v1042 = vadd.f32 0.0, %v1041
    %v1043 = vpop.f32.mrf.mxu0
    %1044 = vmatprep.mubr.f32.mxu0 0.0
    %1045 = vmatmul.mubr.f32.gmra.mxu0 %v648
    %v1046 = vpop.f32.mrf.mxu0
    %v1047 = vadd.f32 0.0, %v1046
    %v1048 = vpop.f32.mrf.mxu0
    %1049 = vdwg.mxu0
    %s1050 = scalar_lea.vmem [#allocation2], 24
    %1051 = vst [vmem:[%s1050 + $0x1] sm:$0xff] %v585
    %1052 = vst [vmem:[%s1050 + $0x9] sm:$0xff] %v586
    %1053 = vst [vmem:[%s1050 + $0x19] sm:$0xff] %v587
    %1054 = vst [vmem:[%s1050 + $0x21] sm:$0xff] %v588
    %1055 = vst [vmem:[%s1050 + $0x31] sm:$0xff] %v589
    %1056 = vst [vmem:[%s1050 + $0x39] sm:$0xff] %v590
    %1057 = vst [vmem:[%s1050 + $0x49] sm:$0xff] %v591
    %1058 = vst [vmem:[%s1050 + $0x51] sm:$0xff] %v592
    %1059 = vst [vmem:[%s1050 + $0x61] sm:$0xff] %v593
    %1060 = vst [vmem:[%s1050 + $0x69] sm:$0xff] %v594
    %1061 = vst [vmem:[%s1050 + $0x79] sm:$0xff] %v595
    %1062 = vst [vmem:[%s1050 + $0x81] sm:$0xff] %v596
    %1063 = vst [vmem:[%s1050 + $0x91] sm:$0xff] %v597
    %1064 = vst [vmem:[%s1050 + $0x99] sm:$0xff] %v598
    %1065 = vst [vmem:[%s1050 + $0xa9] sm:$0xff] %v599
    %1066 = vst [vmem:[%s1050 + $0xb1] sm:$0xff] %v600
    %1067 = vst [vmem:[%s1050 + $0xc1] sm:$0xff] %v601
    %1068 = vst [vmem:[%s1050 + $0xc9] sm:$0xff] %v602
    %1069 = vst [vmem:[%s1050 + $0xd9] sm:$0xff] %v603
    %1070 = vst [vmem:[%s1050 + $0xe1] sm:$0xff] %v604
    %1071 = vst [vmem:[%s1050 + $0xf1] sm:$0xff] %v605
    %1072 = vst [vmem:[%s1050 + $0xf9] sm:$0xff] %v606
    %1073 = vst [vmem:[%s1050 + $0x109] sm:$0xff] %v607
    %1074 = vst [vmem:[%s1050 + $0x111] sm:$0xff] %v608
    %1075 = vst [vmem:[%s1050 + $0x121] sm:$0xff] %v609
    %1076 = vst [vmem:[%s1050 + $0x129] sm:$0xff] %v610
    %1077 = vst [vmem:[%s1050 + $0x139] sm:$0xff] %v611
    %1078 = vst [vmem:[%s1050 + $0x141] sm:$0xff] %v612
    %1079 = vst [vmem:[%s1050 + $0x151] sm:$0xff] %v613
    %1080 = vst [vmem:[%s1050 + $0x159] sm:$0xff] %v614
    %1081 = vst [vmem:[%s1050 + $0x169] sm:$0xff] %v615
    %1082 = vst [vmem:[%s1050 + $0x171] sm:$0xff] %v616
    %1083 = vst [vmem:[%s1050 + $0x1b1] sm:$0xff] %v617
    %1084 = vst [vmem:[%s1050 + $0x1b9] sm:$0xff] %v618
    %1085 = vst [vmem:[%s1050 + $0x1c9] sm:$0xff] %v619
    %1086 = vst [vmem:[%s1050 + $0x1d1] sm:$0xff] %v620
    %1087 = vst [vmem:[%s1050 + $0x1e1] sm:$0xff] %v621
    %1088 = vst [vmem:[%s1050 + $0x1e9] sm:$0xff] %v622
    %1089 = vst [vmem:[%s1050 + $0x1f9] sm:$0xff] %v623
    %1090 = vst [vmem:[%s1050 + $0x201] sm:$0xff] %v624
    %1091 = vst [vmem:[%s1050 + $0x211] sm:$0xff] %v625
    %1092 = vst [vmem:[%s1050 + $0x219] sm:$0xff] %v626
    %1093 = vst [vmem:[%s1050 + $0x229] sm:$0xff] %v627
    %1094 = vst [vmem:[%s1050 + $0x231] sm:$0xff] %v628
    %1095 = vst [vmem:[%s1050 + $0x241] sm:$0xff] %v629
    %1096 = vst [vmem:[%s1050 + $0x249] sm:$0xff] %v630
    %1097 = vst [vmem:[%s1050 + $0x259] sm:$0xff] %v631
    %1098 = vst [vmem:[%s1050 + $0x261] sm:$0xff] %v632
    %1099 = vst [vmem:[%s1050 + $0x271] sm:$0xff] %v633
    %1100 = vst [vmem:[%s1050 + $0x279] sm:$0xff] %v634
    %1101 = vst [vmem:[%s1050 + $0x289] sm:$0xff] %v635
    %1102 = vst [vmem:[%s1050 + $0x291] sm:$0xff] %v636
    %1103 = vst [vmem:[%s1050 + $0x2a1] sm:$0xff] %v637
    %1104 = vst [vmem:[%s1050 + $0x2a9] sm:$0xff] %v638
    %1105 = vst [vmem:[%s1050 + $0x2b9] sm:$0xff] %v639
    %1106 = vst [vmem:[%s1050 + $0x2c1] sm:$0xff] %v640
    %1107 = vst [vmem:[%s1050 + $0x2d1] sm:$0xff] %v641
    %1108 = vst [vmem:[%s1050 + $0x2d9] sm:$0xff] %v642
    %1109 = vst [vmem:[%s1050 + $0x2e9] sm:$0xff] %v643
    %1110 = vst [vmem:[%s1050 + $0x2f1] sm:$0xff] %v644
    %1111 = vst [vmem:[%s1050 + $0x301] sm:$0xff] %v645
    %1112 = vst [vmem:[%s1050 + $0x309] sm:$0xff] %v646
    %1113 = vst [vmem:[%s1050 + $0x319] sm:$0xff] %v647
    %1114 = vst [vmem:[%s1050 + $0x321] sm:$0xff] %v648
    %v1115 = vld [vmem:[#allocation2] sm:$0xff]
    %v1116 = vld [vmem:[#allocation2 + $0x8] sm:$0xff]
    %v1117 = vld [vmem:[#allocation2 + $0x18] sm:$0xff]
    %v1118 = vld [vmem:[#allocation2 + $0x20] sm:$0xff]
    %v1119 = vld [vmem:[#allocation2 + $0x30] sm:$0xff]
    %v1120 = vld [vmem:[#allocation2 + $0x38] sm:$0xff]
    %v1121 = vld [vmem:[#allocation2 + $0x48] sm:$0xff]
    %v1122 = vld [vmem:[#allocation2 + $0x50] sm:$0xff]
    %v1123 = vld [vmem:[#allocation2 + $0x60] sm:$0xff]
    %v1124 = vld [vmem:[#allocation2 + $0x68] sm:$0xff]
    %v1125 = vld [vmem:[#allocation2 + $0x78] sm:$0xff]
    %v1126 = vld [vmem:[#allocation2 + $0x80] sm:$0xff]
    %v1127 = vld [vmem:[#allocation2 + $0x90] sm:$0xff]
    %v1128 = vld [vmem:[#allocation2 + $0x98] sm:$0xff]
    %v1129 = vld [vmem:[#allocation2 + $0xa8] sm:$0xff]
    %v1130 = vld [vmem:[#allocation2 + $0xb0] sm:$0xff]
    %v1131 = vld [vmem:[#allocation2 + $0xc0] sm:$0xff]
    %v1132 = vld [vmem:[#allocation2 + $0xc8] sm:$0xff]
    %v1133 = vld [vmem:[#allocation2 + $0xd8] sm:$0xff]
    %v1134 = vld [vmem:[#allocation2 + $0xe0] sm:$0xff]
    %v1135 = vld [vmem:[#allocation2 + $0xf0] sm:$0xff]
    %v1136 = vld [vmem:[#allocation2 + $0xf8] sm:$0xff]
    %v1137 = vld [vmem:[#allocation2 + $0x108] sm:$0xff]
    %v1138 = vld [vmem:[#allocation2 + $0x110] sm:$0xff]
    %v1139 = vld [vmem:[#allocation2 + $0x120] sm:$0xff]
    %v1140 = vld [vmem:[#allocation2 + $0x128] sm:$0xff]
    %v1141 = vld [vmem:[#allocation2 + $0x138] sm:$0xff]
    %v1142 = vld [vmem:[#allocation2 + $0x140] sm:$0xff]
    %v1143 = vld [vmem:[#allocation2 + $0x150] sm:$0xff]
    %v1144 = vld [vmem:[#allocation2 + $0x158] sm:$0xff]
    %v1145 = vld [vmem:[#allocation2 + $0x168] sm:$0xff]
    %v1146 = vld [vmem:[#allocation2 + $0x170] sm:$0xff]
    %v1147 = vld [vmem:[#allocation2 + $0x1b0] sm:$0xff]
    %v1148 = vld [vmem:[#allocation2 + $0x1b8] sm:$0xff]
    %v1149 = vld [vmem:[#allocation2 + $0x1c8] sm:$0xff]
    %v1150 = vld [vmem:[#allocation2 + $0x1d0] sm:$0xff]
    %v1151 = vld [vmem:[#allocation2 + $0x1e0] sm:$0xff]
    %v1152 = vld [vmem:[#allocation2 + $0x1e8] sm:$0xff]
    %v1153 = vld [vmem:[#allocation2 + $0x1f8] sm:$0xff]
    %v1154 = vld [vmem:[#allocation2 + $0x200] sm:$0xff]
    %v1155 = vld [vmem:[#allocation2 + $0x210] sm:$0xff]
    %v1156 = vld [vmem:[#allocation2 + $0x218] sm:$0xff]
    %v1157 = vld [vmem:[#allocation2 + $0x228] sm:$0xff]
    %v1158 = vld [vmem:[#allocation2 + $0x230] sm:$0xff]
    %v1159 = vld [vmem:[#allocation2 + $0x240] sm:$0xff]
    %v1160 = vld [vmem:[#allocation2 + $0x248] sm:$0xff]
    %v1161 = vld [vmem:[#allocation2 + $0x258] sm:$0xff]
    %v1162 = vld [vmem:[#allocation2 + $0x260] sm:$0xff]
    %v1163 = vld [vmem:[#allocation2 + $0x270] sm:$0xff]
    %v1164 = vld [vmem:[#allocation2 + $0x278] sm:$0xff]
    %v1165 = vld [vmem:[#allocation2 + $0x288] sm:$0xff]
    %v1166 = vld [vmem:[#allocation2 + $0x290] sm:$0xff]
    %v1167 = vld [vmem:[#allocation2 + $0x2a0] sm:$0xff]
    %v1168 = vld [vmem:[#allocation2 + $0x2a8] sm:$0xff]
    %v1169 = vld [vmem:[#allocation2 + $0x2b8] sm:$0xff]
    %v1170 = vld [vmem:[#allocation2 + $0x2c0] sm:$0xff]
    %v1171 = vld [vmem:[#allocation2 + $0x2d0] sm:$0xff]
    %v1172 = vld [vmem:[#allocation2 + $0x2d8] sm:$0xff]
    %v1173 = vld [vmem:[#allocation2 + $0x2e8] sm:$0xff]
    %v1174 = vld [vmem:[#allocation2 + $0x2f0] sm:$0xff]
    %v1175 = vld [vmem:[#allocation2 + $0x300] sm:$0xff]
    %v1176 = vld [vmem:[#allocation2 + $0x308] sm:$0xff]
    %v1177 = vld [vmem:[#allocation2 + $0x318] sm:$0xff]
    %v1178 = vld [vmem:[#allocation2 + $0x320] sm:$0xff]
    %1179 = vst [vmem:[#allocation3] sm:$0xff] %v1115
    %1180 = vst [vmem:[#allocation3 + $0x48] sm:$0xff] %v1116
    %1181 = vst [vmem:[#allocation3 + $0x90] sm:$0xff] %v1117
    %1182 = vst [vmem:[#allocation3 + $0xd8] sm:$0xff] %v1118
    %1183 = vst [vmem:[#allocation3 + $0x120] sm:$0xff] %v1119
    %1184 = vst [vmem:[#allocation3 + $0x168] sm:$0xff] %v1120
    %1185 = vst [vmem:[#allocation3 + $0x1b0] sm:$0xff] %v1121
    %1186 = vst [vmem:[#allocation3 + $0x1f8] sm:$0xff] %v1122
    %1187 = vst [vmem:[#allocation3 + $0x240] sm:$0xff] %v1123
    %1188 = vst [vmem:[#allocation3 + $0x288] sm:$0xff] %v1124
    %1189 = vst [vmem:[#allocation3 + $0x2d0] sm:$0xff] %v1125
    %1190 = vst [vmem:[#allocation3 + $0x318] sm:$0xff] %v1126
    %1191 = vst [vmem:[#allocation3 + $0x360] sm:$0xff] %v1127
    %1192 = vst [vmem:[#allocation3 + $0x3a8] sm:$0xff] %v1128
    %1193 = vst [vmem:[#allocation3 + $0x3f0] sm:$0xff] %v1129
    %1194 = vst [vmem:[#allocation3 + $0x438] sm:$0xff] %v1130
    %1195 = vst [vmem:[#allocation3 + $0x480] sm:$0xff] %v1131
    %1196 = vst [vmem:[#allocation3 + $0x4c8] sm:$0xff] %v1132
    %1197 = vst [vmem:[#allocation3 + $0x510] sm:$0xff] %v1133
    %1198 = vst [vmem:[#allocation3 + $0x558] sm:$0xff] %v1134
    %1199 = vst [vmem:[#allocation3 + $0x5a0] sm:$0xff] %v1135
    %1200 = vst [vmem:[#allocation3 + $0x5e8] sm:$0xff] %v1136
    %1201 = vst [vmem:[#allocation3 + $0x630] sm:$0xff] %v1137
    %1202 = vst [vmem:[#allocation3 + $0x678] sm:$0xff] %v1138
    %1203 = vst [vmem:[#allocation3 + $0x6c0] sm:$0xff] %v1139
    %1204 = vst [vmem:[#allocation3 + $0x708] sm:$0xff] %v1140
    %1205 = vst [vmem:[#allocation3 + $0x750] sm:$0xff] %v1141
    %1206 = vst [vmem:[#allocation3 + $0x798] sm:$0xff] %v1142
    %1207 = vst [vmem:[#allocation3 + $0x7e0] sm:$0xff] %v1143
    %1208 = vst [vmem:[#allocation3 + $0x828] sm:$0xff] %v1144
    %1209 = vst [vmem:[#allocation3 + $0x870] sm:$0xff] %v1145
    %1210 = vst [vmem:[#allocation3 + $0x8b8] sm:$0xff] %v1146
    %1211 = vst [vmem:[#allocation3 + $0x900] sm:$0xff] %v1147
    %1212 = vst [vmem:[#allocation3 + $0x948] sm:$0xff] %v1148
    %1213 = vst [vmem:[#allocation3 + $0x990] sm:$0xff] %v1149
    %1214 = vst [vmem:[#allocation3 + $0x9d8] sm:$0xff] %v1150
    %1215 = vst [vmem:[#allocation3 + $0xa20] sm:$0xff] %v1151
    %1216 = vst [vmem:[#allocation3 + $0xa68] sm:$0xff] %v1152
    %1217 = vst [vmem:[#allocation3 + $0xab0] sm:$0xff] %v1153
    %1218 = vst [vmem:[#allocation3 + $0xaf8] sm:$0xff] %v1154
    %1219 = vst [vmem:[#allocation3 + $0xb40] sm:$0xff] %v1155
    %1220 = vst [vmem:[#allocation3 + $0xb88] sm:$0xff] %v1156
    %1221 = vst [vmem:[#allocation3 + $0xbd0] sm:$0xff] %v1157
    %1222 = vst [vmem:[#allocation3 + $0xc18] sm:$0xff] %v1158
    %1223 = vst [vmem:[#allocation3 + $0xc60] sm:$0xff] %v1159
    %1224 = vst [vmem:[#allocation3 + $0xca8] sm:$0xff] %v1160
    %1225 = vst [vmem:[#allocation3 + $0xcf0] sm:$0xff] %v1161
    %1226 = vst [vmem:[#allocation3 + $0xd38] sm:$0xff] %v1162
    %1227 = vst [vmem:[#allocation3 + $0xd80] sm:$0xff] %v1163
    %1228 = vst [vmem:[#allocation3 + $0xdc8] sm:$0xff] %v1164
    %1229 = vst [vmem:[#allocation3 + $0xe10] sm:$0xff] %v1165
    %1230 = vst [vmem:[#allocation3 + $0xe58] sm:$0xff] %v1166
    %1231 = vst [vmem:[#allocation3 + $0xea0] sm:$0xff] %v1167
    %1232 = vst [vmem:[#allocation3 + $0xee8] sm:$0xff] %v1168
    %1233 = vst [vmem:[#allocation3 + $0xf30] sm:$0xff] %v1169
    %1234 = vst [vmem:[#allocation3 + $0xf78] sm:$0xff] %v1170
    %1235 = vst [vmem:[#allocation3 + $0xfc0] sm:$0xff] %v1171
    %1236 = vst [vmem:[#allocation3 + $0x1008] sm:$0xff] %v1172
    %1237 = vst [vmem:[#allocation3 + $0x1050] sm:$0xff] %v1173
    %1238 = vst [vmem:[#allocation3 + $0x1098] sm:$0xff] %v1174
    %1239 = vst [vmem:[#allocation3 + $0x10e0] sm:$0xff] %v1175
    %1240 = vst [vmem:[#allocation3 + $0x1128] sm:$0xff] %v1176
    %1241 = vst [vmem:[#allocation3 + $0x1170] sm:$0xff] %v1177
    %1242 = vst [vmem:[#allocation3 + $0x11b8] sm:$0xff] %v1178
    %v1243 = vld [vmem:[#allocation2 + $0x1] sm:$0xff]
    %v1244 = vld [vmem:[#allocation2 + $0x9] sm:$0xff]
    %v1245 = vld [vmem:[#allocation2 + $0x19] sm:$0xff]
    %v1246 = vld [vmem:[#allocation2 + $0x21] sm:$0xff]
    %v1247 = vld [vmem:[#allocation2 + $0x31] sm:$0xff]
    %v1248 = vld [vmem:[#allocation2 + $0x39] sm:$0xff]
    %v1249 = vld [vmem:[#allocation2 + $0x49] sm:$0xff]
    %v1250 = vld [vmem:[#allocation2 + $0x51] sm:$0xff]
    %v1251 = vld [vmem:[#allocation2 + $0x61] sm:$0xff]
    %v1252 = vld [vmem:[#allocation2 + $0x69] sm:$0xff]
    %v1253 = vld [vmem:[#allocation2 + $0x79] sm:$0xff]
    %v1254 = vld [vmem:[#allocation2 + $0x81] sm:$0xff]
    %v1255 = vld [vmem:[#allocation2 + $0x91] sm:$0xff]
    %v1256 = vld [vmem:[#allocation2 + $0x99] sm:$0xff]
    %v1257 = vld [vmem:[#allocation2 + $0xa9] sm:$0xff]
    %v1258 = vld [vmem:[#allocation2 + $0xb1] sm:$0xff]
    %v1259 = vld [vmem:[#allocation2 + $0xc1] sm:$0xff]
    %v1260 = vld [vmem:[#allocation2 + $0xc9] sm:$0xff]
    %v1261 = vld [vmem:[#allocation2 + $0xd9] sm:$0xff]
    %v1262 = vld [vmem:[#allocation2 + $0xe1] sm:$0xff]
    %v1263 = vld [vmem:[#allocation2 + $0xf1] sm:$0xff]
    %v1264 = vld [vmem:[#allocation2 + $0xf9] sm:$0xff]
    %v1265 = vld [vmem:[#allocation2 + $0x109] sm:$0xff]
    %v1266 = vld [vmem:[#allocation2 + $0x111] sm:$0xff]
    %v1267 = vld [vmem:[#allocation2 + $0x121] sm:$0xff]
    %v1268 = vld [vmem:[#allocation2 + $0x129] sm:$0xff]
    %v1269 = vld [vmem:[#allocation2 + $0x139] sm:$0xff]
    %v1270 = vld [vmem:[#allocation2 + $0x141] sm:$0xff]
    %v1271 = vld [vmem:[#allocation2 + $0x151] sm:$0xff]
    %v1272 = vld [vmem:[#allocation2 + $0x159] sm:$0xff]
    %v1273 = vld [vmem:[#allocation2 + $0x169] sm:$0xff]
    %v1274 = vld [vmem:[#allocation2 + $0x171] sm:$0xff]
    %v1275 = vld [vmem:[#allocation2 + $0x1b1] sm:$0xff]
    %v1276 = vld [vmem:[#allocation2 + $0x1b9] sm:$0xff]
    %v1277 = vld [vmem:[#allocation2 + $0x1c9] sm:$0xff]
    %v1278 = vld [vmem:[#allocation2 + $0x1d1] sm:$0xff]
    %v1279 = vld [vmem:[#allocation2 + $0x1e1] sm:$0xff]
    %v1280 = vld [vmem:[#allocation2 + $0x1e9] sm:$0xff]
    %v1281 = vld [vmem:[#allocation2 + $0x1f9] sm:$0xff]
    %v1282 = vld [vmem:[#allocation2 + $0x201] sm:$0xff]
    %v1283 = vld [vmem:[#allocation2 + $0x211] sm:$0xff]
    %v1284 = vld [vmem:[#allocation2 + $0x219] sm:$0xff]
    %v1285 = vld [vmem:[#allocation2 + $0x229] sm:$0xff]
    %v1286 = vld [vmem:[#allocation2 + $0x231] sm:$0xff]
    %v1287 = vld [vmem:[#allocation2 + $0x241] sm:$0xff]
    %v1288 = vld [vmem:[#allocation2 + $0x249] sm:$0xff]
    %v1289 = vld [vmem:[#allocation2 + $0x259] sm:$0xff]
    %v1290 = vld [vmem:[#allocation2 + $0x261] sm:$0xff]
    %v1291 = vld [vmem:[#allocation2 + $0x271] sm:$0xff]
    %v1292 = vld [vmem:[#allocation2 + $0x279] sm:$0xff]
    %v1293 = vld [vmem:[#allocation2 + $0x289] sm:$0xff]
    %v1294 = vld [vmem:[#allocation2 + $0x291] sm:$0xff]
    %v1295 = vld [vmem:[#allocation2 + $0x2a1] sm:$0xff]
    %v1296 = vld [vmem:[#allocation2 + $0x2a9] sm:$0xff]
    %v1297 = vld [vmem:[#allocation2 + $0x2b9] sm:$0xff]
    %v1298 = vld [vmem:[#allocation2 + $0x2c1] sm:$0xff]
    %v1299 = vld [vmem:[#allocation2 + $0x2d1] sm:$0xff]
    %v1300 = vld [vmem:[#allocation2 + $0x2d9] sm:$0xff]
    %v1301 = vld [vmem:[#allocation2 + $0x2e9] sm:$0xff]
    %v1302 = vld [vmem:[#allocation2 + $0x2f1] sm:$0xff]
    %v1303 = vld [vmem:[#allocation2 + $0x301] sm:$0xff]
    %v1304 = vld [vmem:[#allocation2 + $0x309] sm:$0xff]
    %v1305 = vld [vmem:[#allocation2 + $0x319] sm:$0xff]
    %v1306 = vld [vmem:[#allocation2 + $0x321] sm:$0xff]
    %1307 = vst [vmem:[#allocation3 + $0x8] sm:$0xff] %v1243
    %1308 = vst [vmem:[#allocation3 + $0x50] sm:$0xff] %v1244
    %1309 = vst [vmem:[#allocation3 + $0x98] sm:$0xff] %v1245
    %1310 = vst [vmem:[#allocation3 + $0xe0] sm:$0xff] %v1246
    %1311 = vst [vmem:[#allocation3 + $0x128] sm:$0xff] %v1247
    %1312 = vst [vmem:[#allocation3 + $0x170] sm:$0xff] %v1248
    %1313 = vst [vmem:[#allocation3 + $0x1b8] sm:$0xff] %v1249
    %1314 = vst [vmem:[#allocation3 + $0x200] sm:$0xff] %v1250
    %1315 = vst [vmem:[#allocation3 + $0x248] sm:$0xff] %v1251
    %1316 = vst [vmem:[#allocation3 + $0x290] sm:$0xff] %v1252
    %1317 = vst [vmem:[#allocation3 + $0x2d8] sm:$0xff] %v1253
    %1318 = vst [vmem:[#allocation3 + $0x320] sm:$0xff] %v1254
    %1319 = vst [vmem:[#allocation3 + $0x368] sm:$0xff] %v1255
    %1320 = vst [vmem:[#allocation3 + $0x3b0] sm:$0xff] %v1256
    %1321 = vst [vmem:[#allocation3 + $0x3f8] sm:$0xff] %v1257
    %1322 = vst [vmem:[#allocation3 + $0x440] sm:$0xff] %v1258
    %1323 = vst [vmem:[#allocation3 + $0x488] sm:$0xff] %v1259
    %1324 = vst [vmem:[#allocation3 + $0x4d0] sm:$0xff] %v1260
    %1325 = vst [vmem:[#allocation3 + $0x518] sm:$0xff] %v1261
    %1326 = vst [vmem:[#allocation3 + $0x560] sm:$0xff] %v1262
    %1327 = vst [vmem:[#allocation3 + $0x5a8] sm:$0xff] %v1263
    %1328 = vst [vmem:[#allocation3 + $0x5f0] sm:$0xff] %v1264
    %1329 = vst [vmem:[#allocation3 + $0x638] sm:$0xff] %v1265
    %1330 = vst [vmem:[#allocation3 + $0x680] sm:$0xff] %v1266
    %1331 = vst [vmem:[#allocation3 + $0x6c8] sm:$0xff] %v1267
    %1332 = vst [vmem:[#allocation3 + $0x710] sm:$0xff] %v1268
    %1333 = vst [vmem:[#allocation3 + $0x758] sm:$0xff] %v1269
    %1334 = vst [vmem:[#allocation3 + $0x7a0] sm:$0xff] %v1270
    %1335 = vst [vmem:[#allocation3 + $0x7e8] sm:$0xff] %v1271
    %1336 = vst [vmem:[#allocation3 + $0x830] sm:$0xff] %v1272
    %1337 = vst [vmem:[#allocation3 + $0x878] sm:$0xff] %v1273
    %1338 = vst [vmem:[#allocation3 + $0x8c0] sm:$0xff] %v1274
    %1339 = vst [vmem:[#allocation3 + $0x908] sm:$0xff] %v1275
    %1340 = vst [vmem:[#allocation3 + $0x950] sm:$0xff] %v1276
    %1341 = vst [vmem:[#allocation3 + $0x998] sm:$0xff] %v1277
    %1342 = vst [vmem:[#allocation3 + $0x9e0] sm:$0xff] %v1278
    %1343 = vst [vmem:[#allocation3 + $0xa28] sm:$0xff] %v1279
    %1344 = vst [vmem:[#allocation3 + $0xa70] sm:$0xff] %v1280
    %1345 = vst [vmem:[#allocation3 + $0xab8] sm:$0xff] %v1281
    %1346 = vst [vmem:[#allocation3 + $0xb00] sm:$0xff] %v1282
    %1347 = vst [vmem:[#allocation3 + $0xb48] sm:$0xff] %v1283
    %1348 = vst [vmem:[#allocation3 + $0xb90] sm:$0xff] %v1284
    %1349 = vst [vmem:[#allocation3 + $0xbd8] sm:$0xff] %v1285
    %1350 = vst [vmem:[#allocation3 + $0xc20] sm:$0xff] %v1286
    %1351 = vst [vmem:[#allocation3 + $0xc68] sm:$0xff] %v1287
    %1352 = vst [vmem:[#allocation3 + $0xcb0] sm:$0xff] %v1288
    %1353 = vst [vmem:[#allocation3 + $0xcf8] sm:$0xff] %v1289
    %1354 = vst [vmem:[#allocation3 + $0xd40] sm:$0xff] %v1290
    %1355 = vst [vmem:[#allocation3 + $0xd88] sm:$0xff] %v1291
    %1356 = vst [vmem:[#allocation3 + $0xdd0] sm:$0xff] %v1292
    %1357 = vst [vmem:[#allocation3 + $0xe18] sm:$0xff] %v1293
    %1358 = vst [vmem:[#allocation3 + $0xe60] sm:$0xff] %v1294
    %1359 = vst [vmem:[#allocation3 + $0xea8] sm:$0xff] %v1295
    %1360 = vst [vmem:[#allocation3 + $0xef0] sm:$0xff] %v1296
    %1361 = vst [vmem:[#allocation3 + $0xf38] sm:$0xff] %v1297
    %1362 = vst [vmem:[#allocation3 + $0xf80] sm:$0xff] %v1298
    %1363 = vst [vmem:[#allocation3 + $0xfc8] sm:$0xff] %v1299
    %1364 = vst [vmem:[#allocation3 + $0x1010] sm:$0xff] %v1300
    %1365 = vst [vmem:[#allocation3 + $0x1058] sm:$0xff] %v1301
    %1366 = vst [vmem:[#allocation3 + $0x10a0] sm:$0xff] %v1302
    %1367 = vst [vmem:[#allocation3 + $0x10e8] sm:$0xff] %v1303
    %1368 = vst [vmem:[#allocation3 + $0x1130] sm:$0xff] %v1304
    %1369 = vst [vmem:[#allocation3 + $0x1178] sm:$0xff] %v1305
    %1370 = vst [vmem:[#allocation3 + $0x11c0] sm:$0xff] %v1306
    %v1371 = vld [vmem:[#allocation2 + $0x2] sm:$0xff]
    %v1372 = vld [vmem:[#allocation2 + $0xa] sm:$0xff]
    %v1373 = vld [vmem:[#allocation2 + $0x1a] sm:$0xff]
    %v1374 = vld [vmem:[#allocation2 + $0x22] sm:$0xff]
    %v1375 = vld [vmem:[#allocation2 + $0x32] sm:$0xff]
    %v1376 = vld [vmem:[#allocation2 + $0x3a] sm:$0xff]
    %v1377 = vld [vmem:[#allocation2 + $0x4a] sm:$0xff]
    %v1378 = vld [vmem:[#allocation2 + $0x52] sm:$0xff]
    %v1379 = vld [vmem:[#allocation2 + $0x62] sm:$0xff]
    %v1380 = vld [vmem:[#allocation2 + $0x6a] sm:$0xff]
    %v1381 = vld [vmem:[#allocation2 + $0x7a] sm:$0xff]
    %v1382 = vld [vmem:[#allocation2 + $0x82] sm:$0xff]
    %v1383 = vld [vmem:[#allocation2 + $0x92] sm:$0xff]
    %v1384 = vld [vmem:[#allocation2 + $0x9a] sm:$0xff]
    %v1385 = vld [vmem:[#allocation2 + $0xaa] sm:$0xff]
    %v1386 = vld [vmem:[#allocation2 + $0xb2] sm:$0xff]
    %v1387 = vld [vmem:[#allocation2 + $0xc2] sm:$0xff]
    %v1388 = vld [vmem:[#allocation2 + $0xca] sm:$0xff]
    %v1389 = vld [vmem:[#allocation2 + $0xda] sm:$0xff]
    %v1390 = vld [vmem:[#allocation2 + $0xe2] sm:$0xff]
    %v1391 = vld [vmem:[#allocation2 + $0xf2] sm:$0xff]
    %v1392 = vld [vmem:[#allocation2 + $0xfa] sm:$0xff]
    %v1393 = vld [vmem:[#allocation2 + $0x10a] sm:$0xff]
    %v1394 = vld [vmem:[#allocation2 + $0x112] sm:$0xff]
    %v1395 = vld [vmem:[#allocation2 + $0x122] sm:$0xff]
    %v1396 = vld [vmem:[#allocation2 + $0x12a] sm:$0xff]
    %v1397 = vld [vmem:[#allocation2 + $0x13a] sm:$0xff]
    %v1398 = vld [vmem:[#allocation2 + $0x142] sm:$0xff]
    %v1399 = vld [vmem:[#allocation2 + $0x152] sm:$0xff]
    %v1400 = vld [vmem:[#allocation2 + $0x15a] sm:$0xff]
    %v1401 = vld [vmem:[#allocation2 + $0x16a] sm:$0xff]
    %v1402 = vld [vmem:[#allocation2 + $0x172] sm:$0xff]
    %v1403 = vld [vmem:[#allocation2 + $0x1b2] sm:$0xff]
    %v1404 = vld [vmem:[#allocation2 + $0x1ba] sm:$0xff]
    %v1405 = vld [vmem:[#allocation2 + $0x1ca] sm:$0xff]
    %v1406 = vld [vmem:[#allocation2 + $0x1d2] sm:$0xff]
    %v1407 = vld [vmem:[#allocation2 + $0x1e2] sm:$0xff]
    %v1408 = vld [vmem:[#allocation2 + $0x1ea] sm:$0xff]
    %v1409 = vld [vmem:[#allocation2 + $0x1fa] sm:$0xff]
    %v1410 = vld [vmem:[#allocation2 + $0x202] sm:$0xff]
    %v1411 = vld [vmem:[#allocation2 + $0x212] sm:$0xff]
    %v1412 = vld [vmem:[#allocation2 + $0x21a] sm:$0xff]
    %v1413 = vld [vmem:[#allocation2 + $0x22a] sm:$0xff]
    %v1414 = vld [vmem:[#allocation2 + $0x232] sm:$0xff]
    %v1415 = vld [vmem:[#allocation2 + $0x242] sm:$0xff]
    %v1416 = vld [vmem:[#allocation2 + $0x24a] sm:$0xff]
    %v1417 = vld [vmem:[#allocation2 + $0x25a] sm:$0xff]
    %v1418 = vld [vmem:[#allocation2 + $0x262] sm:$0xff]
    %v1419 = vld [vmem:[#allocation2 + $0x272] sm:$0xff]
    %v1420 = vld [vmem:[#allocation2 + $0x27a] sm:$0xff]
    %v1421 = vld [vmem:[#allocation2 + $0x28a] sm:$0xff]
    %v1422 = vld [vmem:[#allocation2 + $0x292] sm:$0xff]
    %v1423 = vld [vmem:[#allocation2 + $0x2a2] sm:$0xff]
    %v1424 = vld [vmem:[#allocation2 + $0x2aa] sm:$0xff]
    %v1425 = vld [vmem:[#allocation2 + $0x2ba] sm:$0xff]
    %v1426 = vld [vmem:[#allocation2 + $0x2c2] sm:$0xff]
    %v1427 = vld [vmem:[#allocation2 + $0x2d2] sm:$0xff]
    %v1428 = vld [vmem:[#allocation2 + $0x2da] sm:$0xff]
    %v1429 = vld [vmem:[#allocation2 + $0x2ea] sm:$0xff]
    %v1430 = vld [vmem:[#allocation2 + $0x2f2] sm:$0xff]
    %v1431 = vld [vmem:[#allocation2 + $0x302] sm:$0xff]
    %v1432 = vld [vmem:[#allocation2 + $0x30a] sm:$0xff]
    %v1433 = vld [vmem:[#allocation2 + $0x31a] sm:$0xff]
    %v1434 = vld [vmem:[#allocation2 + $0x322] sm:$0xff]
    %1435 = vst [vmem:[#allocation3 + $0x10] sm:$0xff] %v1371
    %1436 = vst [vmem:[#allocation3 + $0x58] sm:$0xff] %v1372
    %1437 = vst [vmem:[#allocation3 + $0xa0] sm:$0xff] %v1373
    %1438 = vst [vmem:[#allocation3 + $0xe8] sm:$0xff] %v1374
    %1439 = vst [vmem:[#allocation3 + $0x130] sm:$0xff] %v1375
    %1440 = vst [vmem:[#allocation3 + $0x178] sm:$0xff] %v1376
    %1441 = vst [vmem:[#allocation3 + $0x1c0] sm:$0xff] %v1377
    %1442 = vst [vmem:[#allocation3 + $0x208] sm:$0xff] %v1378
    %1443 = vst [vmem:[#allocation3 + $0x250] sm:$0xff] %v1379
    %1444 = vst [vmem:[#allocation3 + $0x298] sm:$0xff] %v1380
    %1445 = vst [vmem:[#allocation3 + $0x2e0] sm:$0xff] %v1381
    %1446 = vst [vmem:[#allocation3 + $0x328] sm:$0xff] %v1382
    %1447 = vst [vmem:[#allocation3 + $0x370] sm:$0xff] %v1383
    %1448 = vst [vmem:[#allocation3 + $0x3b8] sm:$0xff] %v1384
    %1449 = vst [vmem:[#allocation3 + $0x400] sm:$0xff] %v1385
    %1450 = vst [vmem:[#allocation3 + $0x448] sm:$0xff] %v1386
    %1451 = vst [vmem:[#allocation3 + $0x490] sm:$0xff] %v1387
    %1452 = vst [vmem:[#allocation3 + $0x4d8] sm:$0xff] %v1388
    %1453 = vst [vmem:[#allocation3 + $0x520] sm:$0xff] %v1389
    %1454 = vst [vmem:[#allocation3 + $0x568] sm:$0xff] %v1390
    %1455 = vst [vmem:[#allocation3 + $0x5b0] sm:$0xff] %v1391
    %1456 = vst [vmem:[#allocation3 + $0x5f8] sm:$0xff] %v1392
    %1457 = vst [vmem:[#allocation3 + $0x640] sm:$0xff] %v1393
    %1458 = vst [vmem:[#allocation3 + $0x688] sm:$0xff] %v1394
    %1459 = vst [vmem:[#allocation3 + $0x6d0] sm:$0xff] %v1395
    %1460 = vst [vmem:[#allocation3 + $0x718] sm:$0xff] %v1396
    %1461 = vst [vmem:[#allocation3 + $0x760] sm:$0xff] %v1397
    %1462 = vst [vmem:[#allocation3 + $0x7a8] sm:$0xff] %v1398
    %1463 = vst [vmem:[#allocation3 + $0x7f0] sm:$0xff] %v1399
    %1464 = vst [vmem:[#allocation3 + $0x838] sm:$0xff] %v1400
    %1465 = vst [vmem:[#allocation3 + $0x880] sm:$0xff] %v1401
    %1466 = vst [vmem:[#allocation3 + $0x8c8] sm:$0xff] %v1402
    %1467 = vst [vmem:[#allocation3 + $0x910] sm:$0xff] %v1403
    %1468 = vst [vmem:[#allocation3 + $0x958] sm:$0xff] %v1404
    %1469 = vst [vmem:[#allocation3 + $0x9a0] sm:$0xff] %v1405
    %1470 = vst [vmem:[#allocation3 + $0x9e8] sm:$0xff] %v1406
    %1471 = vst [vmem:[#allocation3 + $0xa30] sm:$0xff] %v1407
    %1472 = vst [vmem:[#allocation3 + $0xa78] sm:$0xff] %v1408
    %1473 = vst [vmem:[#allocation3 + $0xac0] sm:$0xff] %v1409
    %1474 = vst [vmem:[#allocation3 + $0xb08] sm:$0xff] %v1410
    %1475 = vst [vmem:[#allocation3 + $0xb50] sm:$0xff] %v1411
    %1476 = vst [vmem:[#allocation3 + $0xb98] sm:$0xff] %v1412
    %1477 = vst [vmem:[#allocation3 + $0xbe0] sm:$0xff] %v1413
    %1478 = vst [vmem:[#allocation3 + $0xc28] sm:$0xff] %v1414
    %1479 = vst [vmem:[#allocation3 + $0xc70] sm:$0xff] %v1415
    %1480 = vst [vmem:[#allocation3 + $0xcb8] sm:$0xff] %v1416
    %1481 = vst [vmem:[#allocation3 + $0xd00] sm:$0xff] %v1417
    %1482 = vst [vmem:[#allocation3 + $0xd48] sm:$0xff] %v1418
    %1483 = vst [vmem:[#allocation3 + $0xd90] sm:$0xff] %v1419
    %1484 = vst [vmem:[#allocation3 + $0xdd8] sm:$0xff] %v1420
    %1485 = vst [vmem:[#allocation3 + $0xe20] sm:$0xff] %v1421
    %1486 = vst [vmem:[#allocation3 + $0xe68] sm:$0xff] %v1422
    %1487 = vst [vmem:[#allocation3 + $0xeb0] sm:$0xff] %v1423
    %1488 = vst [vmem:[#allocation3 + $0xef8] sm:$0xff] %v1424
    %1489 = vst [vmem:[#allocation3 + $0xf40] sm:$0xff] %v1425
    %1490 = vst [vmem:[#allocation3 + $0xf88] sm:$0xff] %v1426
    %1491 = vst [vmem:[#allocation3 + $0xfd0] sm:$0xff] %v1427
    %1492 = vst [vmem:[#allocation3 + $0x1018] sm:$0xff] %v1428
    %1493 = vst [vmem:[#allocation3 + $0x1060] sm:$0xff] %v1429
    %1494 = vst [vmem:[#allocation3 + $0x10a8] sm:$0xff] %v1430
    %1495 = vst [vmem:[#allocation3 + $0x10f0] sm:$0xff] %v1431
    %1496 = vst [vmem:[#allocation3 + $0x1138] sm:$0xff] %v1432
    %1497 = vst [vmem:[#allocation3 + $0x1180] sm:$0xff] %v1433
    %1498 = vst [vmem:[#allocation3 + $0x11c8] sm:$0xff] %v1434
    %v1499 = vld [vmem:[%s1050] sm:$0xff]
    %v1500 = vld [vmem:[%s1050 + $0x8] sm:$0xff]
    %v1501 = vld [vmem:[%s1050 + $0x18] sm:$0xff]
    %v1502 = vld [vmem:[%s1050 + $0x20] sm:$0xff]
    %v1503 = vld [vmem:[%s1050 + $0x30] sm:$0xff]
    %v1504 = vld [vmem:[%s1050 + $0x38] sm:$0xff]
    %v1505 = vld [vmem:[%s1050 + $0x48] sm:$0xff]
    %v1506 = vld [vmem:[%s1050 + $0x50] sm:$0xff]
    %v1507 = vld [vmem:[%s1050 + $0x60] sm:$0xff]
    %v1508 = vld [vmem:[%s1050 + $0x68] sm:$0xff]
    %v1509 = vld [vmem:[%s1050 + $0x78] sm:$0xff]
    %v1510 = vld [vmem:[%s1050 + $0x80] sm:$0xff]
    %v1511 = vld [vmem:[%s1050 + $0x90] sm:$0xff]
    %v1512 = vld [vmem:[%s1050 + $0x98] sm:$0xff]
    %v1513 = vld [vmem:[%s1050 + $0xa8] sm:$0xff]
    %v1514 = vld [vmem:[%s1050 + $0xb0] sm:$0xff]
    %v1515 = vld [vmem:[%s1050 + $0xc0] sm:$0xff]
    %v1516 = vld [vmem:[%s1050 + $0xc8] sm:$0xff]
    %v1517 = vld [vmem:[%s1050 + $0xd8] sm:$0xff]
    %v1518 = vld [vmem:[%s1050 + $0xe0] sm:$0xff]
    %v1519 = vld [vmem:[%s1050 + $0xf0] sm:$0xff]
    %v1520 = vld [vmem:[%s1050 + $0xf8] sm:$0xff]
    %v1521 = vld [vmem:[%s1050 + $0x108] sm:$0xff]
    %v1522 = vld [vmem:[%s1050 + $0x110] sm:$0xff]
    %v1523 = vld [vmem:[%s1050 + $0x120] sm:$0xff]
    %v1524 = vld [vmem:[%s1050 + $0x128] sm:$0xff]
    %v1525 = vld [vmem:[%s1050 + $0x138] sm:$0xff]
    %v1526 = vld [vmem:[%s1050 + $0x140] sm:$0xff]
    %v1527 = vld [vmem:[%s1050 + $0x150] sm:$0xff]
    %v1528 = vld [vmem:[%s1050 + $0x158] sm:$0xff]
    %v1529 = vld [vmem:[%s1050 + $0x168] sm:$0xff]
    %v1530 = vld [vmem:[%s1050 + $0x170] sm:$0xff]
    %v1531 = vld [vmem:[%s1050 + $0x1b0] sm:$0xff]
    %v1532 = vld [vmem:[%s1050 + $0x1b8] sm:$0xff]
    %v1533 = vld [vmem:[%s1050 + $0x1c8] sm:$0xff]
    %v1534 = vld [vmem:[%s1050 + $0x1d0] sm:$0xff]
    %v1535 = vld [vmem:[%s1050 + $0x1e0] sm:$0xff]
    %v1536 = vld [vmem:[%s1050 + $0x1e8] sm:$0xff]
    %v1537 = vld [vmem:[%s1050 + $0x1f8] sm:$0xff]
    %v1538 = vld [vmem:[%s1050 + $0x200] sm:$0xff]
    %v1539 = vld [vmem:[%s1050 + $0x210] sm:$0xff]
    %v1540 = vld [vmem:[%s1050 + $0x218] sm:$0xff]
    %v1541 = vld [vmem:[%s1050 + $0x228] sm:$0xff]
    %v1542 = vld [vmem:[%s1050 + $0x230] sm:$0xff]
    %v1543 = vld [vmem:[%s1050 + $0x240] sm:$0xff]
    %v1544 = vld [vmem:[%s1050 + $0x248] sm:$0xff]
    %v1545 = vld [vmem:[%s1050 + $0x258] sm:$0xff]
    %v1546 = vld [vmem:[%s1050 + $0x260] sm:$0xff]
    %v1547 = vld [vmem:[%s1050 + $0x270] sm:$0xff]
    %v1548 = vld [vmem:[%s1050 + $0x278] sm:$0xff]
    %v1549 = vld [vmem:[%s1050 + $0x288] sm:$0xff]
    %v1550 = vld [vmem:[%s1050 + $0x290] sm:$0xff]
    %v1551 = vld [vmem:[%s1050 + $0x2a0] sm:$0xff]
    %v1552 = vld [vmem:[%s1050 + $0x2a8] sm:$0xff]
    %v1553 = vld [vmem:[%s1050 + $0x2b8] sm:$0xff]
    %v1554 = vld [vmem:[%s1050 + $0x2c0] sm:$0xff]
    %v1555 = vld [vmem:[%s1050 + $0x2d0] sm:$0xff]
    %v1556 = vld [vmem:[%s1050 + $0x2d8] sm:$0xff]
    %v1557 = vld [vmem:[%s1050 + $0x2e8] sm:$0xff]
    %v1558 = vld [vmem:[%s1050 + $0x2f0] sm:$0xff]
    %v1559 = vld [vmem:[%s1050 + $0x300] sm:$0xff]
    %v1560 = vld [vmem:[%s1050 + $0x308] sm:$0xff]
    %v1561 = vld [vmem:[%s1050 + $0x318] sm:$0xff]
    %v1562 = vld [vmem:[%s1050 + $0x320] sm:$0xff]
    %1563 = vst [vmem:[#allocation3 + $0x18] sm:$0xff] %v1499
    %1564 = vst [vmem:[#allocation3 + $0x60] sm:$0xff] %v1500
    %1565 = vst [vmem:[#allocation3 + $0xa8] sm:$0xff] %v1501
    %1566 = vst [vmem:[#allocation3 + $0xf0] sm:$0xff] %v1502
    %1567 = vst [vmem:[#allocation3 + $0x138] sm:$0xff] %v1503
    %1568 = vst [vmem:[#allocation3 + $0x180] sm:$0xff] %v1504
    %1569 = vst [vmem:[#allocation3 + $0x1c8] sm:$0xff] %v1505
    %1570 = vst [vmem:[#allocation3 + $0x210] sm:$0xff] %v1506
    %1571 = vst [vmem:[#allocation3 + $0x258] sm:$0xff] %v1507
    %1572 = vst [vmem:[#allocation3 + $0x2a0] sm:$0xff] %v1508
    %1573 = vst [vmem:[#allocation3 + $0x2e8] sm:$0xff] %v1509
    %1574 = vst [vmem:[#allocation3 + $0x330] sm:$0xff] %v1510
    %1575 = vst [vmem:[#allocation3 + $0x378] sm:$0xff] %v1511
    %1576 = vst [vmem:[#allocation3 + $0x3c0] sm:$0xff] %v1512
    %1577 = vst [vmem:[#allocation3 + $0x408] sm:$0xff] %v1513
    %1578 = vst [vmem:[#allocation3 + $0x450] sm:$0xff] %v1514
    %1579 = vst [vmem:[#allocation3 + $0x498] sm:$0xff] %v1515
    %1580 = vst [vmem:[#allocation3 + $0x4e0] sm:$0xff] %v1516
    %1581 = vst [vmem:[#allocation3 + $0x528] sm:$0xff] %v1517
    %1582 = vst [vmem:[#allocation3 + $0x570] sm:$0xff] %v1518
    %1583 = vst [vmem:[#allocation3 + $0x5b8] sm:$0xff] %v1519
    %1584 = vst [vmem:[#allocation3 + $0x600] sm:$0xff] %v1520
    %1585 = vst [vmem:[#allocation3 + $0x648] sm:$0xff] %v1521
    %1586 = vst [vmem:[#allocation3 + $0x690] sm:$0xff] %v1522
    %1587 = vst [vmem:[#allocation3 + $0x6d8] sm:$0xff] %v1523
    %1588 = vst [vmem:[#allocation3 + $0x720] sm:$0xff] %v1524
    %1589 = vst [vmem:[#allocation3 + $0x768] sm:$0xff] %v1525
    %1590 = vst [vmem:[#allocation3 + $0x7b0] sm:$0xff] %v1526
    %1591 = vst [vmem:[#allocation3 + $0x7f8] sm:$0xff] %v1527
    %1592 = vst [vmem:[#allocation3 + $0x840] sm:$0xff] %v1528
    %1593 = vst [vmem:[#allocation3 + $0x888] sm:$0xff] %v1529
    %1594 = vst [vmem:[#allocation3 + $0x8d0] sm:$0xff] %v1530
    %1595 = vst [vmem:[#allocation3 + $0x918] sm:$0xff] %v1531
    %1596 = vst [vmem:[#allocation3 + $0x960] sm:$0xff] %v1532
    %1597 = vst [vmem:[#allocation3 + $0x9a8] sm:$0xff] %v1533
    %1598 = vst [vmem:[#allocation3 + $0x9f0] sm:$0xff] %v1534
    %1599 = vst [vmem:[#allocation3 + $0xa38] sm:$0xff] %v1535
    %1600 = vst [vmem:[#allocation3 + $0xa80] sm:$0xff] %v1536
    %1601 = vst [vmem:[#allocation3 + $0xac8] sm:$0xff] %v1537
    %1602 = vst [vmem:[#allocation3 + $0xb10] sm:$0xff] %v1538
    %1603 = vst [vmem:[#allocation3 + $0xb58] sm:$0xff] %v1539
    %1604 = vst [vmem:[#allocation3 + $0xba0] sm:$0xff] %v1540
    %1605 = vst [vmem:[#allocation3 + $0xbe8] sm:$0xff] %v1541
    %1606 = vst [vmem:[#allocation3 + $0xc30] sm:$0xff] %v1542
    %1607 = vst [vmem:[#allocation3 + $0xc78] sm:$0xff] %v1543
    %1608 = vst [vmem:[#allocation3 + $0xcc0] sm:$0xff] %v1544
    %1609 = vst [vmem:[#allocation3 + $0xd08] sm:$0xff] %v1545
    %1610 = vst [vmem:[#allocation3 + $0xd50] sm:$0xff] %v1546
    %1611 = vst [vmem:[#allocation3 + $0xd98] sm:$0xff] %v1547
    %1612 = vst [vmem:[#allocation3 + $0xde0] sm:$0xff] %v1548
    %1613 = vst [vmem:[#allocation3 + $0xe28] sm:$0xff] %v1549
    %1614 = vst [vmem:[#allocation3 + $0xe70] sm:$0xff] %v1550
    %1615 = vst [vmem:[#allocation3 + $0xeb8] sm:$0xff] %v1551
    %1616 = vst [vmem:[#allocation3 + $0xf00] sm:$0xff] %v1552
    %1617 = vst [vmem:[#allocation3 + $0xf48] sm:$0xff] %v1553
    %1618 = vst [vmem:[#allocation3 + $0xf90] sm:$0xff] %v1554
    %1619 = vst [vmem:[#allocation3 + $0xfd8] sm:$0xff] %v1555
    %1620 = vst [vmem:[#allocation3 + $0x1020] sm:$0xff] %v1556
    %1621 = vst [vmem:[#allocation3 + $0x1068] sm:$0xff] %v1557
    %1622 = vst [vmem:[#allocation3 + $0x10b0] sm:$0xff] %v1558
    %1623 = vst [vmem:[#allocation3 + $0x10f8] sm:$0xff] %v1559
    %1624 = vst [vmem:[#allocation3 + $0x1140] sm:$0xff] %v1560
    %1625 = vst [vmem:[#allocation3 + $0x1188] sm:$0xff] %v1561
    %1626 = vst [vmem:[#allocation3 + $0x11d0] sm:$0xff] %v1562
    %v1627 = vld [vmem:[%s1050 + $0x1] sm:$0xff]
    %v1628 = vld [vmem:[%s1050 + $0x9] sm:$0xff]
    %v1629 = vld [vmem:[%s1050 + $0x19] sm:$0xff]
    %v1630 = vld [vmem:[%s1050 + $0x21] sm:$0xff]
    %v1631 = vld [vmem:[%s1050 + $0x31] sm:$0xff]
    %v1632 = vld [vmem:[%s1050 + $0x39] sm:$0xff]
    %v1633 = vld [vmem:[%s1050 + $0x49] sm:$0xff]
    %v1634 = vld [vmem:[%s1050 + $0x51] sm:$0xff]
    %v1635 = vld [vmem:[%s1050 + $0x61] sm:$0xff]
    %v1636 = vld [vmem:[%s1050 + $0x69] sm:$0xff]
    %v1637 = vld [vmem:[%s1050 + $0x79] sm:$0xff]
    %v1638 = vld [vmem:[%s1050 + $0x81] sm:$0xff]
    %v1639 = vld [vmem:[%s1050 + $0x91] sm:$0xff]
    %v1640 = vld [vmem:[%s1050 + $0x99] sm:$0xff]
    %v1641 = vld [vmem:[%s1050 + $0xa9] sm:$0xff]
    %v1642 = vld [vmem:[%s1050 + $0xb1] sm:$0xff]
    %v1643 = vld [vmem:[%s1050 + $0xc1] sm:$0xff]
    %v1644 = vld [vmem:[%s1050 + $0xc9] sm:$0xff]
    %v1645 = vld [vmem:[%s1050 + $0xd9] sm:$0xff]
    %v1646 = vld [vmem:[%s1050 + $0xe1] sm:$0xff]
    %v1647 = vld [vmem:[%s1050 + $0xf1] sm:$0xff]
    %v1648 = vld [vmem:[%s1050 + $0xf9] sm:$0xff]
    %v1649 = vld [vmem:[%s1050 + $0x109] sm:$0xff]
    %v1650 = vld [vmem:[%s1050 + $0x111] sm:$0xff]
    %v1651 = vld [vmem:[%s1050 + $0x121] sm:$0xff]
    %v1652 = vld [vmem:[%s1050 + $0x129] sm:$0xff]
    %v1653 = vld [vmem:[%s1050 + $0x139] sm:$0xff]
    %v1654 = vld [vmem:[%s1050 + $0x141] sm:$0xff]
    %v1655 = vld [vmem:[%s1050 + $0x151] sm:$0xff]
    %v1656 = vld [vmem:[%s1050 + $0x159] sm:$0xff]
    %v1657 = vld [vmem:[%s1050 + $0x169] sm:$0xff]
    %v1658 = vld [vmem:[%s1050 + $0x171] sm:$0xff]
    %v1659 = vld [vmem:[%s1050 + $0x1b1] sm:$0xff]
    %v1660 = vld [vmem:[%s1050 + $0x1b9] sm:$0xff]
    %v1661 = vld [vmem:[%s1050 + $0x1c9] sm:$0xff]
    %v1662 = vld [vmem:[%s1050 + $0x1d1] sm:$0xff]
    %v1663 = vld [vmem:[%s1050 + $0x1e1] sm:$0xff]
    %v1664 = vld [vmem:[%s1050 + $0x1e9] sm:$0xff]
    %v1665 = vld [vmem:[%s1050 + $0x1f9] sm:$0xff]
    %v1666 = vld [vmem:[%s1050 + $0x201] sm:$0xff]
    %v1667 = vld [vmem:[%s1050 + $0x211] sm:$0xff]
    %v1668 = vld [vmem:[%s1050 + $0x219] sm:$0xff]
    %v1669 = vld [vmem:[%s1050 + $0x229] sm:$0xff]
    %v1670 = vld [vmem:[%s1050 + $0x231] sm:$0xff]
    %v1671 = vld [vmem:[%s1050 + $0x241] sm:$0xff]
    %v1672 = vld [vmem:[%s1050 + $0x249] sm:$0xff]
    %v1673 = vld [vmem:[%s1050 + $0x259] sm:$0xff]
    %v1674 = vld [vmem:[%s1050 + $0x261] sm:$0xff]
    %v1675 = vld [vmem:[%s1050 + $0x271] sm:$0xff]
    %v1676 = vld [vmem:[%s1050 + $0x279] sm:$0xff]
    %v1677 = vld [vmem:[%s1050 + $0x289] sm:$0xff]
    %v1678 = vld [vmem:[%s1050 + $0x291] sm:$0xff]
    %v1679 = vld [vmem:[%s1050 + $0x2a1] sm:$0xff]
    %v1680 = vld [vmem:[%s1050 + $0x2a9] sm:$0xff]
    %v1681 = vld [vmem:[%s1050 + $0x2b9] sm:$0xff]
    %v1682 = vld [vmem:[%s1050 + $0x2c1] sm:$0xff]
    %v1683 = vld [vmem:[%s1050 + $0x2d1] sm:$0xff]
    %v1684 = vld [vmem:[%s1050 + $0x2d9] sm:$0xff]
    %v1685 = vld [vmem:[%s1050 + $0x2e9] sm:$0xff]
    %v1686 = vld [vmem:[%s1050 + $0x2f1] sm:$0xff]
    %v1687 = vld [vmem:[%s1050 + $0x301] sm:$0xff]
    %v1688 = vld [vmem:[%s1050 + $0x309] sm:$0xff]
    %v1689 = vld [vmem:[%s1050 + $0x319] sm:$0xff]
    %v1690 = vld [vmem:[%s1050 + $0x321] sm:$0xff]
    %1691 = vst [vmem:[#allocation3 + $0x20] sm:$0xff] %v1627
    %1692 = vst [vmem:[#allocation3 + $0x68] sm:$0xff] %v1628
    %1693 = vst [vmem:[#allocation3 + $0xb0] sm:$0xff] %v1629
    %1694 = vst [vmem:[#allocation3 + $0xf8] sm:$0xff] %v1630
    %1695 = vst [vmem:[#allocation3 + $0x140] sm:$0xff] %v1631
    %1696 = vst [vmem:[#allocation3 + $0x188] sm:$0xff] %v1632
    %1697 = vst [vmem:[#allocation3 + $0x1d0] sm:$0xff] %v1633
    %1698 = vst [vmem:[#allocation3 + $0x218] sm:$0xff] %v1634
    %1699 = vst [vmem:[#allocation3 + $0x260] sm:$0xff] %v1635
    %1700 = vst [vmem:[#allocation3 + $0x2a8] sm:$0xff] %v1636
    %1701 = vst [vmem:[#allocation3 + $0x2f0] sm:$0xff] %v1637
    %1702 = vst [vmem:[#allocation3 + $0x338] sm:$0xff] %v1638
    %1703 = vst [vmem:[#allocation3 + $0x380] sm:$0xff] %v1639
    %1704 = vst [vmem:[#allocation3 + $0x3c8] sm:$0xff] %v1640
    %1705 = vst [vmem:[#allocation3 + $0x410] sm:$0xff] %v1641
    %1706 = vst [vmem:[#allocation3 + $0x458] sm:$0xff] %v1642
    %1707 = vst [vmem:[#allocation3 + $0x4a0] sm:$0xff] %v1643
    %1708 = vst [vmem:[#allocation3 + $0x4e8] sm:$0xff] %v1644
    %1709 = vst [vmem:[#allocation3 + $0x530] sm:$0xff] %v1645
    %1710 = vst [vmem:[#allocation3 + $0x578] sm:$0xff] %v1646
    %1711 = vst [vmem:[#allocation3 + $0x5c0] sm:$0xff] %v1647
    %1712 = vst [vmem:[#allocation3 + $0x608] sm:$0xff] %v1648
    %1713 = vst [vmem:[#allocation3 + $0x650] sm:$0xff] %v1649
    %1714 = vst [vmem:[#allocation3 + $0x698] sm:$0xff] %v1650
    %1715 = vst [vmem:[#allocation3 + $0x6e0] sm:$0xff] %v1651
    %1716 = vst [vmem:[#allocation3 + $0x728] sm:$0xff] %v1652
    %1717 = vst [vmem:[#allocation3 + $0x770] sm:$0xff] %v1653
    %1718 = vst [vmem:[#allocation3 + $0x7b8] sm:$0xff] %v1654
    %1719 = vst [vmem:[#allocation3 + $0x800] sm:$0xff] %v1655
    %1720 = vst [vmem:[#allocation3 + $0x848] sm:$0xff] %v1656
    %1721 = vst [vmem:[#allocation3 + $0x890] sm:$0xff] %v1657
    %1722 = vst [vmem:[#allocation3 + $0x8d8] sm:$0xff] %v1658
    %1723 = vst [vmem:[#allocation3 + $0x920] sm:$0xff] %v1659
    %1724 = vst [vmem:[#allocation3 + $0x968] sm:$0xff] %v1660
    %1725 = vst [vmem:[#allocation3 + $0x9b0] sm:$0xff] %v1661
    %1726 = vst [vmem:[#allocation3 + $0x9f8] sm:$0xff] %v1662
    %1727 = vst [vmem:[#allocation3 + $0xa40] sm:$0xff] %v1663
    %1728 = vst [vmem:[#allocation3 + $0xa88] sm:$0xff] %v1664
    %1729 = vst [vmem:[#allocation3 + $0xad0] sm:$0xff] %v1665
    %1730 = vst [vmem:[#allocation3 + $0xb18] sm:$0xff] %v1666
    %1731 = vst [vmem:[#allocation3 + $0xb60] sm:$0xff] %v1667
    %1732 = vst [vmem:[#allocation3 + $0xba8] sm:$0xff] %v1668
    %1733 = vst [vmem:[#allocation3 + $0xbf0] sm:$0xff] %v1669
    %1734 = vst [vmem:[#allocation3 + $0xc38] sm:$0xff] %v1670
    %1735 = vst [vmem:[#allocation3 + $0xc80] sm:$0xff] %v1671
    %1736 = vst [vmem:[#allocation3 + $0xcc8] sm:$0xff] %v1672
    %1737 = vst [vmem:[#allocation3 + $0xd10] sm:$0xff] %v1673
    %1738 = vst [vmem:[#allocation3 + $0xd58] sm:$0xff] %v1674
    %1739 = vst [vmem:[#allocation3 + $0xda0] sm:$0xff] %v1675
    %1740 = vst [vmem:[#allocation3 + $0xde8] sm:$0xff] %v1676
    %1741 = vst [vmem:[#allocation3 + $0xe30] sm:$0xff] %v1677
    %1742 = vst [vmem:[#allocation3 + $0xe78] sm:$0xff] %v1678
    %1743 = vst [vmem:[#allocation3 + $0xec0] sm:$0xff] %v1679
    %1744 = vst [vmem:[#allocation3 + $0xf08] sm:$0xff] %v1680
    %1745 = vst [vmem:[#allocation3 + $0xf50] sm:$0xff] %v1681
    %1746 = vst [vmem:[#allocation3 + $0xf98] sm:$0xff] %v1682
    %1747 = vst [vmem:[#allocation3 + $0xfe0] sm:$0xff] %v1683
    %1748 = vst [vmem:[#allocation3 + $0x1028] sm:$0xff] %v1684
    %1749 = vst [vmem:[#allocation3 + $0x1070] sm:$0xff] %v1685
    %1750 = vst [vmem:[#allocation3 + $0x10b8] sm:$0xff] %v1686
    %1751 = vst [vmem:[#allocation3 + $0x1100] sm:$0xff] %v1687
    %1752 = vst [vmem:[#allocation3 + $0x1148] sm:$0xff] %v1688
    %1753 = vst [vmem:[#allocation3 + $0x1190] sm:$0xff] %v1689
    %1754 = vst [vmem:[#allocation3 + $0x11d8] sm:$0xff] %v1690
    %v1755 = vld [vmem:[%s1050 + $0x2] sm:$0xff]
    %v1756 = vld [vmem:[%s1050 + $0xa] sm:$0xff]
    %v1757 = vld [vmem:[%s1050 + $0x1a] sm:$0xff]
    %v1758 = vld [vmem:[%s1050 + $0x22] sm:$0xff]
    %v1759 = vld [vmem:[%s1050 + $0x32] sm:$0xff]
    %v1760 = vld [vmem:[%s1050 + $0x3a] sm:$0xff]
    %v1761 = vld [vmem:[%s1050 + $0x4a] sm:$0xff]
    %v1762 = vld [vmem:[%s1050 + $0x52] sm:$0xff]
    %v1763 = vld [vmem:[%s1050 + $0x62] sm:$0xff]
    %v1764 = vld [vmem:[%s1050 + $0x6a] sm:$0xff]
    %v1765 = vld [vmem:[%s1050 + $0x7a] sm:$0xff]
    %v1766 = vld [vmem:[%s1050 + $0x82] sm:$0xff]
    %v1767 = vld [vmem:[%s1050 + $0x92] sm:$0xff]
    %v1768 = vld [vmem:[%s1050 + $0x9a] sm:$0xff]
    %v1769 = vld [vmem:[%s1050 + $0xaa] sm:$0xff]
    %v1770 = vld [vmem:[%s1050 + $0xb2] sm:$0xff]
    %v1771 = vld [vmem:[%s1050 + $0xc2] sm:$0xff]
    %v1772 = vld [vmem:[%s1050 + $0xca] sm:$0xff]
    %v1773 = vld [vmem:[%s1050 + $0xda] sm:$0xff]
    %v1774 = vld [vmem:[%s1050 + $0xe2] sm:$0xff]
    %v1775 = vld [vmem:[%s1050 + $0xf2] sm:$0xff]
    %v1776 = vld [vmem:[%s1050 + $0xfa] sm:$0xff]
    %v1777 = vld [vmem:[%s1050 + $0x10a] sm:$0xff]
    %v1778 = vld [vmem:[%s1050 + $0x112] sm:$0xff]
    %v1779 = vld [vmem:[%s1050 + $0x122] sm:$0xff]
    %v1780 = vld [vmem:[%s1050 + $0x12a] sm:$0xff]
    %v1781 = vld [vmem:[%s1050 + $0x13a] sm:$0xff]
    %v1782 = vld [vmem:[%s1050 + $0x142] sm:$0xff]
    %v1783 = vld [vmem:[%s1050 + $0x152] sm:$0xff]
    %v1784 = vld [vmem:[%s1050 + $0x15a] sm:$0xff]
    %v1785 = vld [vmem:[%s1050 + $0x16a] sm:$0xff]
    %v1786 = vld [vmem:[%s1050 + $0x172] sm:$0xff]
    %v1787 = vld [vmem:[%s1050 + $0x1b2] sm:$0xff]
    %v1788 = vld [vmem:[%s1050 + $0x1ba] sm:$0xff]
    %v1789 = vld [vmem:[%s1050 + $0x1ca] sm:$0xff]
    %v1790 = vld [vmem:[%s1050 + $0x1d2] sm:$0xff]
    %v1791 = vld [vmem:[%s1050 + $0x1e2] sm:$0xff]
    %v1792 = vld [vmem:[%s1050 + $0x1ea] sm:$0xff]
    %v1793 = vld [vmem:[%s1050 + $0x1fa] sm:$0xff]
    %v1794 = vld [vmem:[%s1050 + $0x202] sm:$0xff]
    %v1795 = vld [vmem:[%s1050 + $0x212] sm:$0xff]
    %v1796 = vld [vmem:[%s1050 + $0x21a] sm:$0xff]
    %v1797 = vld [vmem:[%s1050 + $0x22a] sm:$0xff]
    %v1798 = vld [vmem:[%s1050 + $0x232] sm:$0xff]
    %v1799 = vld [vmem:[%s1050 + $0x242] sm:$0xff]
    %v1800 = vld [vmem:[%s1050 + $0x24a] sm:$0xff]
    %v1801 = vld [vmem:[%s1050 + $0x25a] sm:$0xff]
    %v1802 = vld [vmem:[%s1050 + $0x262] sm:$0xff]
    %v1803 = vld [vmem:[%s1050 + $0x272] sm:$0xff]
    %v1804 = vld [vmem:[%s1050 + $0x27a] sm:$0xff]
    %v1805 = vld [vmem:[%s1050 + $0x28a] sm:$0xff]
    %v1806 = vld [vmem:[%s1050 + $0x292] sm:$0xff]
    %v1807 = vld [vmem:[%s1050 + $0x2a2] sm:$0xff]
    %v1808 = vld [vmem:[%s1050 + $0x2aa] sm:$0xff]
    %v1809 = vld [vmem:[%s1050 + $0x2ba] sm:$0xff]
    %v1810 = vld [vmem:[%s1050 + $0x2c2] sm:$0xff]
    %v1811 = vld [vmem:[%s1050 + $0x2d2] sm:$0xff]
    %v1812 = vld [vmem:[%s1050 + $0x2da] sm:$0xff]
    %v1813 = vld [vmem:[%s1050 + $0x2ea] sm:$0xff]
    %v1814 = vld [vmem:[%s1050 + $0x2f2] sm:$0xff]
    %v1815 = vld [vmem:[%s1050 + $0x302] sm:$0xff]
    %v1816 = vld [vmem:[%s1050 + $0x30a] sm:$0xff]
    %v1817 = vld [vmem:[%s1050 + $0x31a] sm:$0xff]
    %v1818 = vld [vmem:[%s1050 + $0x322] sm:$0xff]
    %1819 = vst [vmem:[#allocation3 + $0x28] sm:$0xff] %v1755
    %1820 = vst [vmem:[#allocation3 + $0x70] sm:$0xff] %v1756
    %1821 = vst [vmem:[#allocation3 + $0xb8] sm:$0xff] %v1757
    %1822 = vst [vmem:[#allocation3 + $0x100] sm:$0xff] %v1758
    %1823 = vst [vmem:[#allocation3 + $0x148] sm:$0xff] %v1759
    %1824 = vst [vmem:[#allocation3 + $0x190] sm:$0xff] %v1760
    %1825 = vst [vmem:[#allocation3 + $0x1d8] sm:$0xff] %v1761
    %1826 = vst [vmem:[#allocation3 + $0x220] sm:$0xff] %v1762
    %1827 = vst [vmem:[#allocation3 + $0x268] sm:$0xff] %v1763
    %1828 = vst [vmem:[#allocation3 + $0x2b0] sm:$0xff] %v1764
    %1829 = vst [vmem:[#allocation3 + $0x2f8] sm:$0xff] %v1765
    %1830 = vst [vmem:[#allocation3 + $0x340] sm:$0xff] %v1766
    %1831 = vst [vmem:[#allocation3 + $0x388] sm:$0xff] %v1767
    %1832 = vst [vmem:[#allocation3 + $0x3d0] sm:$0xff] %v1768
    %1833 = vst [vmem:[#allocation3 + $0x418] sm:$0xff] %v1769
    %1834 = vst [vmem:[#allocation3 + $0x460] sm:$0xff] %v1770
    %1835 = vst [vmem:[#allocation3 + $0x4a8] sm:$0xff] %v1771
    %1836 = vst [vmem:[#allocation3 + $0x4f0] sm:$0xff] %v1772
    %1837 = vst [vmem:[#allocation3 + $0x538] sm:$0xff] %v1773
    %1838 = vst [vmem:[#allocation3 + $0x580] sm:$0xff] %v1774
    %1839 = vst [vmem:[#allocation3 + $0x5c8] sm:$0xff] %v1775
    %1840 = vst [vmem:[#allocation3 + $0x610] sm:$0xff] %v1776
    %1841 = vst [vmem:[#allocation3 + $0x658] sm:$0xff] %v1777
    %1842 = vst [vmem:[#allocation3 + $0x6a0] sm:$0xff] %v1778
    %1843 = vst [vmem:[#allocation3 + $0x6e8] sm:$0xff] %v1779
    %1844 = vst [vmem:[#allocation3 + $0x730] sm:$0xff] %v1780
    %1845 = vst [vmem:[#allocation3 + $0x778] sm:$0xff] %v1781
    %1846 = vst [vmem:[#allocation3 + $0x7c0] sm:$0xff] %v1782
    %1847 = vst [vmem:[#allocation3 + $0x808] sm:$0xff] %v1783
    %1848 = vst [vmem:[#allocation3 + $0x850] sm:$0xff] %v1784
    %1849 = vst [vmem:[#allocation3 + $0x898] sm:$0xff] %v1785
    %1850 = vst [vmem:[#allocation3 + $0x8e0] sm:$0xff] %v1786
    %1851 = vst [vmem:[#allocation3 + $0x928] sm:$0xff] %v1787
    %1852 = vst [vmem:[#allocation3 + $0x970] sm:$0xff] %v1788
    %1853 = vst [vmem:[#allocation3 + $0x9b8] sm:$0xff] %v1789
    %1854 = vst [vmem:[#allocation3 + $0xa00] sm:$0xff] %v1790
    %1855 = vst [vmem:[#allocation3 + $0xa48] sm:$0xff] %v1791
    %1856 = vst [vmem:[#allocation3 + $0xa90] sm:$0xff] %v1792
    %1857 = vst [vmem:[#allocation3 + $0xad8] sm:$0xff] %v1793
    %1858 = vst [vmem:[#allocation3 + $0xb20] sm:$0xff] %v1794
    %1859 = vst [vmem:[#allocation3 + $0xb68] sm:$0xff] %v1795
    %1860 = vst [vmem:[#allocation3 + $0xbb0] sm:$0xff] %v1796
    %1861 = vst [vmem:[#allocation3 + $0xbf8] sm:$0xff] %v1797
    %1862 = vst [vmem:[#allocation3 + $0xc40] sm:$0xff] %v1798
    %1863 = vst [vmem:[#allocation3 + $0xc88] sm:$0xff] %v1799
    %1864 = vst [vmem:[#allocation3 + $0xcd0] sm:$0xff] %v1800
    %1865 = vst [vmem:[#allocation3 + $0xd18] sm:$0xff] %v1801
    %1866 = vst [vmem:[#allocation3 + $0xd60] sm:$0xff] %v1802
    %1867 = vst [vmem:[#allocation3 + $0xda8] sm:$0xff] %v1803
    %1868 = vst [vmem:[#allocation3 + $0xdf0] sm:$0xff] %v1804
    %1869 = vst [vmem:[#allocation3 + $0xe38] sm:$0xff] %v1805
    %1870 = vst [vmem:[#allocation3 + $0xe80] sm:$0xff] %v1806
    %1871 = vst [vmem:[#allocation3 + $0xec8] sm:$0xff] %v1807
    %1872 = vst [vmem:[#allocation3 + $0xf10] sm:$0xff] %v1808
    %1873 = vst [vmem:[#allocation3 + $0xf58] sm:$0xff] %v1809
    %1874 = vst [vmem:[#allocation3 + $0xfa0] sm:$0xff] %v1810
    %1875 = vst [vmem:[#allocation3 + $0xfe8] sm:$0xff] %v1811
    %1876 = vst [vmem:[#allocation3 + $0x1030] sm:$0xff] %v1812
    %1877 = vst [vmem:[#allocation3 + $0x1078] sm:$0xff] %v1813
    %1878 = vst [vmem:[#allocation3 + $0x10c0] sm:$0xff] %v1814
    %1879 = vst [vmem:[#allocation3 + $0x1108] sm:$0xff] %v1815
    %1880 = vst [vmem:[#allocation3 + $0x1150] sm:$0xff] %v1816
    %1881 = vst [vmem:[#allocation3 + $0x1198] sm:$0xff] %v1817
    %1882 = vst [vmem:[#allocation3 + $0x11e0] sm:$0xff] %v1818
    %s1883 = scalar_lea.vmem [#allocation2], 48
    %v1884 = vld [vmem:[%s1883] sm:$0xff]
    %v1885 = vld [vmem:[%s1883 + $0x8] sm:$0xff]
    %v1886 = vld [vmem:[%s1883 + $0x18] sm:$0xff]
    %v1887 = vld [vmem:[%s1883 + $0x20] sm:$0xff]
    %v1888 = vld [vmem:[%s1883 + $0x30] sm:$0xff]
    %v1889 = vld [vmem:[%s1883 + $0x38] sm:$0xff]
    %v1890 = vld [vmem:[%s1883 + $0x48] sm:$0xff]
    %v1891 = vld [vmem:[%s1883 + $0x50] sm:$0xff]
    %v1892 = vld [vmem:[%s1883 + $0x60] sm:$0xff]
    %v1893 = vld [vmem:[%s1883 + $0x68] sm:$0xff]
    %v1894 = vld [vmem:[%s1883 + $0x78] sm:$0xff]
    %v1895 = vld [vmem:[%s1883 + $0x80] sm:$0xff]
    %v1896 = vld [vmem:[%s1883 + $0x90] sm:$0xff]
    %v1897 = vld [vmem:[%s1883 + $0x98] sm:$0xff]
    %v1898 = vld [vmem:[%s1883 + $0xa8] sm:$0xff]
    %v1899 = vld [vmem:[%s1883 + $0xb0] sm:$0xff]
    %v1900 = vld [vmem:[%s1883 + $0xc0] sm:$0xff]
    %v1901 = vld [vmem:[%s1883 + $0xc8] sm:$0xff]
    %v1902 = vld [vmem:[%s1883 + $0xd8] sm:$0xff]
    %v1903 = vld [vmem:[%s1883 + $0xe0] sm:$0xff]
    %v1904 = vld [vmem:[%s1883 + $0xf0] sm:$0xff]
    %v1905 = vld [vmem:[%s1883 + $0xf8] sm:$0xff]
    %v1906 = vld [vmem:[%s1883 + $0x108] sm:$0xff]
    %v1907 = vld [vmem:[%s1883 + $0x110] sm:$0xff]
    %v1908 = vld [vmem:[%s1883 + $0x120] sm:$0xff]
    %v1909 = vld [vmem:[%s1883 + $0x128] sm:$0xff]
    %v1910 = vld [vmem:[%s1883 + $0x138] sm:$0xff]
    %v1911 = vld [vmem:[%s1883 + $0x140] sm:$0xff]
    %v1912 = vld [vmem:[%s1883 + $0x150] sm:$0xff]
    %v1913 = vld [vmem:[%s1883 + $0x158] sm:$0xff]
    %v1914 = vld [vmem:[%s1883 + $0x168] sm:$0xff]
    %v1915 = vld [vmem:[%s1883 + $0x170] sm:$0xff]
    %v1916 = vld [vmem:[%s1883 + $0x1b0] sm:$0xff]
    %v1917 = vld [vmem:[%s1883 + $0x1b8] sm:$0xff]
    %v1918 = vld [vmem:[%s1883 + $0x1c8] sm:$0xff]
    %v1919 = vld [vmem:[%s1883 + $0x1d0] sm:$0xff]
    %v1920 = vld [vmem:[%s1883 + $0x1e0] sm:$0xff]
    %v1921 = vld [vmem:[%s1883 + $0x1e8] sm:$0xff]
    %v1922 = vld [vmem:[%s1883 + $0x1f8] sm:$0xff]
    %v1923 = vld [vmem:[%s1883 + $0x200] sm:$0xff]
    %v1924 = vld [vmem:[%s1883 + $0x210] sm:$0xff]
    %v1925 = vld [vmem:[%s1883 + $0x218] sm:$0xff]
    %v1926 = vld [vmem:[%s1883 + $0x228] sm:$0xff]
    %v1927 = vld [vmem:[%s1883 + $0x230] sm:$0xff]
    %v1928 = vld [vmem:[%s1883 + $0x240] sm:$0xff]
    %v1929 = vld [vmem:[%s1883 + $0x248] sm:$0xff]
    %v1930 = vld [vmem:[%s1883 + $0x258] sm:$0xff]
    %v1931 = vld [vmem:[%s1883 + $0x260] sm:$0xff]
    %v1932 = vld [vmem:[%s1883 + $0x270] sm:$0xff]
    %v1933 = vld [vmem:[%s1883 + $0x278] sm:$0xff]
    %v1934 = vld [vmem:[%s1883 + $0x288] sm:$0xff]
    %v1935 = vld [vmem:[%s1883 + $0x290] sm:$0xff]
    %v1936 = vld [vmem:[%s1883 + $0x2a0] sm:$0xff]
    %v1937 = vld [vmem:[%s1883 + $0x2a8] sm:$0xff]
    %v1938 = vld [vmem:[%s1883 + $0x2b8] sm:$0xff]
    %v1939 = vld [vmem:[%s1883 + $0x2c0] sm:$0xff]
    %v1940 = vld [vmem:[%s1883 + $0x2d0] sm:$0xff]
    %v1941 = vld [vmem:[%s1883 + $0x2d8] sm:$0xff]
    %v1942 = vld [vmem:[%s1883 + $0x2e8] sm:$0xff]
    %v1943 = vld [vmem:[%s1883 + $0x2f0] sm:$0xff]
    %v1944 = vld [vmem:[%s1883 + $0x300] sm:$0xff]
    %v1945 = vld [vmem:[%s1883 + $0x308] sm:$0xff]
    %v1946 = vld [vmem:[%s1883 + $0x318] sm:$0xff]
    %v1947 = vld [vmem:[%s1883 + $0x320] sm:$0xff]
    %1948 = vst [vmem:[#allocation3 + $0x30] sm:$0xff] %v1884
    %1949 = vst [vmem:[#allocation3 + $0x78] sm:$0xff] %v1885
    %1950 = vst [vmem:[#allocation3 + $0xc0] sm:$0xff] %v1886
    %1951 = vst [vmem:[#allocation3 + $0x108] sm:$0xff] %v1887
    %1952 = vst [vmem:[#allocation3 + $0x150] sm:$0xff] %v1888
    %1953 = vst [vmem:[#allocation3 + $0x198] sm:$0xff] %v1889
    %1954 = vst [vmem:[#allocation3 + $0x1e0] sm:$0xff] %v1890
    %1955 = vst [vmem:[#allocation3 + $0x228] sm:$0xff] %v1891
    %1956 = vst [vmem:[#allocation3 + $0x270] sm:$0xff] %v1892
    %1957 = vst [vmem:[#allocation3 + $0x2b8] sm:$0xff] %v1893
    %1958 = vst [vmem:[#allocation3 + $0x300] sm:$0xff] %v1894
    %1959 = vst [vmem:[#allocation3 + $0x348] sm:$0xff] %v1895
    %1960 = vst [vmem:[#allocation3 + $0x390] sm:$0xff] %v1896
    %1961 = vst [vmem:[#allocation3 + $0x3d8] sm:$0xff] %v1897
    %1962 = vst [vmem:[#allocation3 + $0x420] sm:$0xff] %v1898
    %1963 = vst [vmem:[#allocation3 + $0x468] sm:$0xff] %v1899
    %1964 = vst [vmem:[#allocation3 + $0x4b0] sm:$0xff] %v1900
    %1965 = vst [vmem:[#allocation3 + $0x4f8] sm:$0xff] %v1901
    %1966 = vst [vmem:[#allocation3 + $0x540] sm:$0xff] %v1902
    %1967 = vst [vmem:[#allocation3 + $0x588] sm:$0xff] %v1903
    %1968 = vst [vmem:[#allocation3 + $0x5d0] sm:$0xff] %v1904
    %1969 = vst [vmem:[#allocation3 + $0x618] sm:$0xff] %v1905
    %1970 = vst [vmem:[#allocation3 + $0x660] sm:$0xff] %v1906
    %1971 = vst [vmem:[#allocation3 + $0x6a8] sm:$0xff] %v1907
    %1972 = vst [vmem:[#allocation3 + $0x6f0] sm:$0xff] %v1908
    %1973 = vst [vmem:[#allocation3 + $0x738] sm:$0xff] %v1909
    %1974 = vst [vmem:[#allocation3 + $0x780] sm:$0xff] %v1910
    %1975 = vst [vmem:[#allocation3 + $0x7c8] sm:$0xff] %v1911
    %1976 = vst [vmem:[#allocation3 + $0x810] sm:$0xff] %v1912
    %1977 = vst [vmem:[#allocation3 + $0x858] sm:$0xff] %v1913
    %1978 = vst [vmem:[#allocation3 + $0x8a0] sm:$0xff] %v1914
    %1979 = vst [vmem:[#allocation3 + $0x8e8] sm:$0xff] %v1915
    %1980 = vst [vmem:[#allocation3 + $0x930] sm:$0xff] %v1916
    %1981 = vst [vmem:[#allocation3 + $0x978] sm:$0xff] %v1917
    %1982 = vst [vmem:[#allocation3 + $0x9c0] sm:$0xff] %v1918
    %1983 = vst [vmem:[#allocation3 + $0xa08] sm:$0xff] %v1919
    %1984 = vst [vmem:[#allocation3 + $0xa50] sm:$0xff] %v1920
    %1985 = vst [vmem:[#allocation3 + $0xa98] sm:$0xff] %v1921
    %1986 = vst [vmem:[#allocation3 + $0xae0] sm:$0xff] %v1922
    %1987 = vst [vmem:[#allocation3 + $0xb28] sm:$0xff] %v1923
    %1988 = vst [vmem:[#allocation3 + $0xb70] sm:$0xff] %v1924
    %1989 = vst [vmem:[#allocation3 + $0xbb8] sm:$0xff] %v1925
    %1990 = vst [vmem:[#allocation3 + $0xc00] sm:$0xff] %v1926
    %1991 = vst [vmem:[#allocation3 + $0xc48] sm:$0xff] %v1927
    %1992 = vst [vmem:[#allocation3 + $0xc90] sm:$0xff] %v1928
    %1993 = vst [vmem:[#allocation3 + $0xcd8] sm:$0xff] %v1929
    %1994 = vst [vmem:[#allocation3 + $0xd20] sm:$0xff] %v1930
    %1995 = vst [vmem:[#allocation3 + $0xd68] sm:$0xff] %v1931
    %1996 = vst [vmem:[#allocation3 + $0xdb0] sm:$0xff] %v1932
    %1997 = vst [vmem:[#allocation3 + $0xdf8] sm:$0xff] %v1933
    %1998 = vst [vmem:[#allocation3 + $0xe40] sm:$0xff] %v1934
    %1999 = vst [vmem:[#allocation3 + $0xe88] sm:$0xff] %v1935
    %2000 = vst [vmem:[#allocation3 + $0xed0] sm:$0xff] %v1936
    %2001 = vst [vmem:[#allocation3 + $0xf18] sm:$0xff] %v1937
    %2002 = vst [vmem:[#allocation3 + $0xf60] sm:$0xff] %v1938
    %2003 = vst [vmem:[#allocation3 + $0xfa8] sm:$0xff] %v1939
    %2004 = vst [vmem:[#allocation3 + $0xff0] sm:$0xff] %v1940
    %2005 = vst [vmem:[#allocation3 + $0x1038] sm:$0xff] %v1941
    %2006 = vst [vmem:[#allocation3 + $0x1080] sm:$0xff] %v1942
    %2007 = vst [vmem:[#allocation3 + $0x10c8] sm:$0xff] %v1943
    %2008 = vst [vmem:[#allocation3 + $0x1110] sm:$0xff] %v1944
    %2009 = vst [vmem:[#allocation3 + $0x1158] sm:$0xff] %v1945
    %2010 = vst [vmem:[#allocation3 + $0x11a0] sm:$0xff] %v1946
    %2011 = vst [vmem:[#allocation3 + $0x11e8] sm:$0xff] %v1947
    %v2012 = vld [vmem:[%s1883 + $0x1] sm:$0xff]
    %v2013 = vld [vmem:[%s1883 + $0x9] sm:$0xff]
    %v2014 = vld [vmem:[%s1883 + $0x19] sm:$0xff]
    %v2015 = vld [vmem:[%s1883 + $0x21] sm:$0xff]
    %v2016 = vld [vmem:[%s1883 + $0x31] sm:$0xff]
    %v2017 = vld [vmem:[%s1883 + $0x39] sm:$0xff]
    %v2018 = vld [vmem:[%s1883 + $0x49] sm:$0xff]
    %v2019 = vld [vmem:[%s1883 + $0x51] sm:$0xff]
    %v2020 = vld [vmem:[%s1883 + $0x61] sm:$0xff]
    %v2021 = vld [vmem:[%s1883 + $0x69] sm:$0xff]
    %v2022 = vld [vmem:[%s1883 + $0x79] sm:$0xff]
    %v2023 = vld [vmem:[%s1883 + $0x81] sm:$0xff]
    %v2024 = vld [vmem:[%s1883 + $0x91] sm:$0xff]
    %v2025 = vld [vmem:[%s1883 + $0x99] sm:$0xff]
    %v2026 = vld [vmem:[%s1883 + $0xa9] sm:$0xff]
    %v2027 = vld [vmem:[%s1883 + $0xb1] sm:$0xff]
    %v2028 = vld [vmem:[%s1883 + $0xc1] sm:$0xff]
    %v2029 = vld [vmem:[%s1883 + $0xc9] sm:$0xff]
    %v2030 = vld [vmem:[%s1883 + $0xd9] sm:$0xff]
    %v2031 = vld [vmem:[%s1883 + $0xe1] sm:$0xff]
    %v2032 = vld [vmem:[%s1883 + $0xf1] sm:$0xff]
    %v2033 = vld [vmem:[%s1883 + $0xf9] sm:$0xff]
    %v2034 = vld [vmem:[%s1883 + $0x109] sm:$0xff]
    %v2035 = vld [vmem:[%s1883 + $0x111] sm:$0xff]
    %v2036 = vld [vmem:[%s1883 + $0x121] sm:$0xff]
    %v2037 = vld [vmem:[%s1883 + $0x129] sm:$0xff]
    %v2038 = vld [vmem:[%s1883 + $0x139] sm:$0xff]
    %v2039 = vld [vmem:[%s1883 + $0x141] sm:$0xff]
    %v2040 = vld [vmem:[%s1883 + $0x151] sm:$0xff]
    %v2041 = vld [vmem:[%s1883 + $0x159] sm:$0xff]
    %v2042 = vld [vmem:[%s1883 + $0x169] sm:$0xff]
    %v2043 = vld [vmem:[%s1883 + $0x171] sm:$0xff]
    %v2044 = vld [vmem:[%s1883 + $0x1b1] sm:$0xff]
    %v2045 = vld [vmem:[%s1883 + $0x1b9] sm:$0xff]
    %v2046 = vld [vmem:[%s1883 + $0x1c9] sm:$0xff]
    %v2047 = vld [vmem:[%s1883 + $0x1d1] sm:$0xff]
    %v2048 = vld [vmem:[%s1883 + $0x1e1] sm:$0xff]
    %v2049 = vld [vmem:[%s1883 + $0x1e9] sm:$0xff]
    %v2050 = vld [vmem:[%s1883 + $0x1f9] sm:$0xff]
    %v2051 = vld [vmem:[%s1883 + $0x201] sm:$0xff]
    %v2052 = vld [vmem:[%s1883 + $0x211] sm:$0xff]
    %v2053 = vld [vmem:[%s1883 + $0x219] sm:$0xff]
    %v2054 = vld [vmem:[%s1883 + $0x229] sm:$0xff]
    %v2055 = vld [vmem:[%s1883 + $0x231] sm:$0xff]
    %v2056 = vld [vmem:[%s1883 + $0x241] sm:$0xff]
    %v2057 = vld [vmem:[%s1883 + $0x249] sm:$0xff]
    %v2058 = vld [vmem:[%s1883 + $0x259] sm:$0xff]
    %v2059 = vld [vmem:[%s1883 + $0x261] sm:$0xff]
    %v2060 = vld [vmem:[%s1883 + $0x271] sm:$0xff]
    %v2061 = vld [vmem:[%s1883 + $0x279] sm:$0xff]
    %v2062 = vld [vmem:[%s1883 + $0x289] sm:$0xff]
    %v2063 = vld [vmem:[%s1883 + $0x291] sm:$0xff]
    %v2064 = vld [vmem:[%s1883 + $0x2a1] sm:$0xff]
    %v2065 = vld [vmem:[%s1883 + $0x2a9] sm:$0xff]
    %v2066 = vld [vmem:[%s1883 + $0x2b9] sm:$0xff]
    %v2067 = vld [vmem:[%s1883 + $0x2c1] sm:$0xff]
    %v2068 = vld [vmem:[%s1883 + $0x2d1] sm:$0xff]
    %v2069 = vld [vmem:[%s1883 + $0x2d9] sm:$0xff]
    %v2070 = vld [vmem:[%s1883 + $0x2e9] sm:$0xff]
    %v2071 = vld [vmem:[%s1883 + $0x2f1] sm:$0xff]
    %v2072 = vld [vmem:[%s1883 + $0x301] sm:$0xff]
    %v2073 = vld [vmem:[%s1883 + $0x309] sm:$0xff]
    %v2074 = vld [vmem:[%s1883 + $0x319] sm:$0xff]
    %v2075 = vld [vmem:[%s1883 + $0x321] sm:$0xff]
    %2076 = vst [vmem:[#allocation3 + $0x38] sm:$0xff] %v2012
    %2077 = vst [vmem:[#allocation3 + $0x80] sm:$0xff] %v2013
    %2078 = vst [vmem:[#allocation3 + $0xc8] sm:$0xff] %v2014
    %2079 = vst [vmem:[#allocation3 + $0x110] sm:$0xff] %v2015
    %2080 = vst [vmem:[#allocation3 + $0x158] sm:$0xff] %v2016
    %2081 = vst [vmem:[#allocation3 + $0x1a0] sm:$0xff] %v2017
    %2082 = vst [vmem:[#allocation3 + $0x1e8] sm:$0xff] %v2018
    %2083 = vst [vmem:[#allocation3 + $0x230] sm:$0xff] %v2019
    %2084 = vst [vmem:[#allocation3 + $0x278] sm:$0xff] %v2020
    %2085 = vst [vmem:[#allocation3 + $0x2c0] sm:$0xff] %v2021
    %2086 = vst [vmem:[#allocation3 + $0x308] sm:$0xff] %v2022
    %2087 = vst [vmem:[#allocation3 + $0x350] sm:$0xff] %v2023
    %2088 = vst [vmem:[#allocation3 + $0x398] sm:$0xff] %v2024
    %2089 = vst [vmem:[#allocation3 + $0x3e0] sm:$0xff] %v2025
    %2090 = vst [vmem:[#allocation3 + $0x428] sm:$0xff] %v2026
    %2091 = vst [vmem:[#allocation3 + $0x470] sm:$0xff] %v2027
    %2092 = vst [vmem:[#allocation3 + $0x4b8] sm:$0xff] %v2028
    %2093 = vst [vmem:[#allocation3 + $0x500] sm:$0xff] %v2029
    %2094 = vst [vmem:[#allocation3 + $0x548] sm:$0xff] %v2030
    %2095 = vst [vmem:[#allocation3 + $0x590] sm:$0xff] %v2031
    %2096 = vst [vmem:[#allocation3 + $0x5d8] sm:$0xff] %v2032
    %2097 = vst [vmem:[#allocation3 + $0x620] sm:$0xff] %v2033
    %2098 = vst [vmem:[#allocation3 + $0x668] sm:$0xff] %v2034
    %2099 = vst [vmem:[#allocation3 + $0x6b0] sm:$0xff] %v2035
    %2100 = vst [vmem:[#allocation3 + $0x6f8] sm:$0xff] %v2036
    %2101 = vst [vmem:[#allocation3 + $0x740] sm:$0xff] %v2037
    %2102 = vst [vmem:[#allocation3 + $0x788] sm:$0xff] %v2038
    %2103 = vst [vmem:[#allocation3 + $0x7d0] sm:$0xff] %v2039
    %2104 = vst [vmem:[#allocation3 + $0x818] sm:$0xff] %v2040
    %2105 = vst [vmem:[#allocation3 + $0x860] sm:$0xff] %v2041
    %2106 = vst [vmem:[#allocation3 + $0x8a8] sm:$0xff] %v2042
    %2107 = vst [vmem:[#allocation3 + $0x8f0] sm:$0xff] %v2043
    %2108 = vst [vmem:[#allocation3 + $0x938] sm:$0xff] %v2044
    %2109 = vst [vmem:[#allocation3 + $0x980] sm:$0xff] %v2045
    %2110 = vst [vmem:[#allocation3 + $0x9c8] sm:$0xff] %v2046
    %2111 = vst [vmem:[#allocation3 + $0xa10] sm:$0xff] %v2047
    %2112 = vst [vmem:[#allocation3 + $0xa58] sm:$0xff] %v2048
    %2113 = vst [vmem:[#allocation3 + $0xaa0] sm:$0xff] %v2049
    %2114 = vst [vmem:[#allocation3 + $0xae8] sm:$0xff] %v2050
    %2115 = vst [vmem:[#allocation3 + $0xb30] sm:$0xff] %v2051
    %2116 = vst [vmem:[#allocation3 + $0xb78] sm:$0xff] %v2052
    %2117 = vst [vmem:[#allocation3 + $0xbc0] sm:$0xff] %v2053
    %2118 = vst [vmem:[#allocation3 + $0xc08] sm:$0xff] %v2054
    %2119 = vst [vmem:[#allocation3 + $0xc50] sm:$0xff] %v2055
    %2120 = vst [vmem:[#allocation3 + $0xc98] sm:$0xff] %v2056
    %2121 = vst [vmem:[#allocation3 + $0xce0] sm:$0xff] %v2057
    %2122 = vst [vmem:[#allocation3 + $0xd28] sm:$0xff] %v2058
    %2123 = vst [vmem:[#allocation3 + $0xd70] sm:$0xff] %v2059
    %2124 = vst [vmem:[#allocation3 + $0xdb8] sm:$0xff] %v2060
    %2125 = vst [vmem:[#allocation3 + $0xe00] sm:$0xff] %v2061
    %2126 = vst [vmem:[#allocation3 + $0xe48] sm:$0xff] %v2062
    %2127 = vst [vmem:[#allocation3 + $0xe90] sm:$0xff] %v2063
    %2128 = vst [vmem:[#allocation3 + $0xed8] sm:$0xff] %v2064
    %2129 = vst [vmem:[#allocation3 + $0xf20] sm:$0xff] %v2065
    %2130 = vst [vmem:[#allocation3 + $0xf68] sm:$0xff] %v2066
    %2131 = vst [vmem:[#allocation3 + $0xfb0] sm:$0xff] %v2067
    %2132 = vst [vmem:[#allocation3 + $0xff8] sm:$0xff] %v2068
    %2133 = vst [vmem:[#allocation3 + $0x1040] sm:$0xff] %v2069
    %2134 = vst [vmem:[#allocation3 + $0x1088] sm:$0xff] %v2070
    %2135 = vst [vmem:[#allocation3 + $0x10d0] sm:$0xff] %v2071
    %2136 = vst [vmem:[#allocation3 + $0x1118] sm:$0xff] %v2072
    %2137 = vst [vmem:[#allocation3 + $0x1160] sm:$0xff] %v2073
    %2138 = vst [vmem:[#allocation3 + $0x11a8] sm:$0xff] %v2074
    %2139 = vst [vmem:[#allocation3 + $0x11f0] sm:$0xff] %v2075
    %v2140 = vld [vmem:[%s1883 + $0x2] sm:$0xff]
    %v2141 = vld [vmem:[%s1883 + $0xa] sm:$0xff]
    %v2142 = vld [vmem:[%s1883 + $0x1a] sm:$0xff]
    %v2143 = vld [vmem:[%s1883 + $0x22] sm:$0xff]
    %v2144 = vld [vmem:[%s1883 + $0x32] sm:$0xff]
    %v2145 = vld [vmem:[%s1883 + $0x3a] sm:$0xff]
    %v2146 = vld [vmem:[%s1883 + $0x4a] sm:$0xff]
    %v2147 = vld [vmem:[%s1883 + $0x52] sm:$0xff]
    %v2148 = vld [vmem:[%s1883 + $0x62] sm:$0xff]
    %v2149 = vld [vmem:[%s1883 + $0x6a] sm:$0xff]
    %v2150 = vld [vmem:[%s1883 + $0x7a] sm:$0xff]
    %v2151 = vld [vmem:[%s1883 + $0x82] sm:$0xff]
    %v2152 = vld [vmem:[%s1883 + $0x92] sm:$0xff]
    %v2153 = vld [vmem:[%s1883 + $0x9a] sm:$0xff]
    %v2154 = vld [vmem:[%s1883 + $0xaa] sm:$0xff]
    %v2155 = vld [vmem:[%s1883 + $0xb2] sm:$0xff]
    %v2156 = vld [vmem:[%s1883 + $0xc2] sm:$0xff]
    %v2157 = vld [vmem:[%s1883 + $0xca] sm:$0xff]
    %v2158 = vld [vmem:[%s1883 + $0xda] sm:$0xff]
    %v2159 = vld [vmem:[%s1883 + $0xe2] sm:$0xff]
    %v2160 = vld [vmem:[%s1883 + $0xf2] sm:$0xff]
    %v2161 = vld [vmem:[%s1883 + $0xfa] sm:$0xff]
    %v2162 = vld [vmem:[%s1883 + $0x10a] sm:$0xff]
    %v2163 = vld [vmem:[%s1883 + $0x112] sm:$0xff]
    %v2164 = vld [vmem:[%s1883 + $0x122] sm:$0xff]
    %v2165 = vld [vmem:[%s1883 + $0x12a] sm:$0xff]
    %v2166 = vld [vmem:[%s1883 + $0x13a] sm:$0xff]
    %v2167 = vld [vmem:[%s1883 + $0x142] sm:$0xff]
    %v2168 = vld [vmem:[%s1883 + $0x152] sm:$0xff]
    %v2169 = vld [vmem:[%s1883 + $0x15a] sm:$0xff]
    %v2170 = vld [vmem:[%s1883 + $0x16a] sm:$0xff]
    %v2171 = vld [vmem:[%s1883 + $0x172] sm:$0xff]
    %v2172 = vld [vmem:[%s1883 + $0x1b2] sm:$0xff]
    %v2173 = vld [vmem:[%s1883 + $0x1ba] sm:$0xff]
    %v2174 = vld [vmem:[%s1883 + $0x1ca] sm:$0xff]
    %v2175 = vld [vmem:[%s1883 + $0x1d2] sm:$0xff]
    %v2176 = vld [vmem:[%s1883 + $0x1e2] sm:$0xff]
    %v2177 = vld [vmem:[%s1883 + $0x1ea] sm:$0xff]
    %v2178 = vld [vmem:[%s1883 + $0x1fa] sm:$0xff]
    %v2179 = vld [vmem:[%s1883 + $0x202] sm:$0xff]
    %v2180 = vld [vmem:[%s1883 + $0x212] sm:$0xff]
    %v2181 = vld [vmem:[%s1883 + $0x21a] sm:$0xff]
    %v2182 = vld [vmem:[%s1883 + $0x22a] sm:$0xff]
    %v2183 = vld [vmem:[%s1883 + $0x232] sm:$0xff]
    %v2184 = vld [vmem:[%s1883 + $0x242] sm:$0xff]
    %v2185 = vld [vmem:[%s1883 + $0x24a] sm:$0xff]
    %v2186 = vld [vmem:[%s1883 + $0x25a] sm:$0xff]
    %v2187 = vld [vmem:[%s1883 + $0x262] sm:$0xff]
    %v2188 = vld [vmem:[%s1883 + $0x272] sm:$0xff]
    %v2189 = vld [vmem:[%s1883 + $0x27a] sm:$0xff]
    %v2190 = vld [vmem:[%s1883 + $0x28a] sm:$0xff]
    %v2191 = vld [vmem:[%s1883 + $0x292] sm:$0xff]
    %v2192 = vld [vmem:[%s1883 + $0x2a2] sm:$0xff]
    %v2193 = vld [vmem:[%s1883 + $0x2aa] sm:$0xff]
    %v2194 = vld [vmem:[%s1883 + $0x2ba] sm:$0xff]
    %v2195 = vld [vmem:[%s1883 + $0x2c2] sm:$0xff]
    %v2196 = vld [vmem:[%s1883 + $0x2d2] sm:$0xff]
    %v2197 = vld [vmem:[%s1883 + $0x2da] sm:$0xff]
    %v2198 = vld [vmem:[%s1883 + $0x2ea] sm:$0xff]
    %v2199 = vld [vmem:[%s1883 + $0x2f2] sm:$0xff]
    %v2200 = vld [vmem:[%s1883 + $0x302] sm:$0xff]
    %v2201 = vld [vmem:[%s1883 + $0x30a] sm:$0xff]
    %v2202 = vld [vmem:[%s1883 + $0x31a] sm:$0xff]
    %v2203 = vld [vmem:[%s1883 + $0x322] sm:$0xff]
    %2204 = vst [vmem:[#allocation3 + $0x40] sm:$0xff] %v2140
    %2205 = vst [vmem:[#allocation3 + $0x88] sm:$0xff] %v2141
    %2206 = vst [vmem:[#allocation3 + $0xd0] sm:$0xff] %v2142
    %2207 = vst [vmem:[#allocation3 + $0x118] sm:$0xff] %v2143
    %2208 = vst [vmem:[#allocation3 + $0x160] sm:$0xff] %v2144
    %2209 = vst [vmem:[#allocation3 + $0x1a8] sm:$0xff] %v2145
    %2210 = vst [vmem:[#allocation3 + $0x1f0] sm:$0xff] %v2146
    %2211 = vst [vmem:[#allocation3 + $0x238] sm:$0xff] %v2147
    %2212 = vst [vmem:[#allocation3 + $0x280] sm:$0xff] %v2148
    %2213 = vst [vmem:[#allocation3 + $0x2c8] sm:$0xff] %v2149
    %2214 = vst [vmem:[#allocation3 + $0x310] sm:$0xff] %v2150
    %2215 = vst [vmem:[#allocation3 + $0x358] sm:$0xff] %v2151
    %2216 = vst [vmem:[#allocation3 + $0x3a0] sm:$0xff] %v2152
    %2217 = vst [vmem:[#allocation3 + $0x3e8] sm:$0xff] %v2153
    %2218 = vst [vmem:[#allocation3 + $0x430] sm:$0xff] %v2154
    %2219 = vst [vmem:[#allocation3 + $0x478] sm:$0xff] %v2155
    %2220 = vst [vmem:[#allocation3 + $0x4c0] sm:$0xff] %v2156
    %2221 = vst [vmem:[#allocation3 + $0x508] sm:$0xff] %v2157
    %2222 = vst [vmem:[#allocation3 + $0x550] sm:$0xff] %v2158
    %2223 = vst [vmem:[#allocation3 + $0x598] sm:$0xff] %v2159
    %2224 = vst [vmem:[#allocation3 + $0x5e0] sm:$0xff] %v2160
    %2225 = vst [vmem:[#allocation3 + $0x628] sm:$0xff] %v2161
    %2226 = vst [vmem:[#allocation3 + $0x670] sm:$0xff] %v2162
    %2227 = vst [vmem:[#allocation3 + $0x6b8] sm:$0xff] %v2163
    %2228 = vst [vmem:[#allocation3 + $0x700] sm:$0xff] %v2164
    %2229 = vst [vmem:[#allocation3 + $0x748] sm:$0xff] %v2165
    %2230 = vst [vmem:[#allocation3 + $0x790] sm:$0xff] %v2166
    %2231 = vst [vmem:[#allocation3 + $0x7d8] sm:$0xff] %v2167
    %2232 = vst [vmem:[#allocation3 + $0x820] sm:$0xff] %v2168
    %2233 = vst [vmem:[#allocation3 + $0x868] sm:$0xff] %v2169
    %2234 = vst [vmem:[#allocation3 + $0x8b0] sm:$0xff] %v2170
    %2235 = vst [vmem:[#allocation3 + $0x8f8] sm:$0xff] %v2171
    %2236 = vst [vmem:[#allocation3 + $0x940] sm:$0xff] %v2172
    %2237 = vst [vmem:[#allocation3 + $0x988] sm:$0xff] %v2173
    %2238 = vst [vmem:[#allocation3 + $0x9d0] sm:$0xff] %v2174
    %2239 = vst [vmem:[#allocation3 + $0xa18] sm:$0xff] %v2175
    %2240 = vst [vmem:[#allocation3 + $0xa60] sm:$0xff] %v2176
    %2241 = vst [vmem:[#allocation3 + $0xaa8] sm:$0xff] %v2177
    %2242 = vst [vmem:[#allocation3 + $0xaf0] sm:$0xff] %v2178
    %2243 = vst [vmem:[#allocation3 + $0xb38] sm:$0xff] %v2179
    %2244 = vst [vmem:[#allocation3 + $0xb80] sm:$0xff] %v2180
    %2245 = vst [vmem:[#allocation3 + $0xbc8] sm:$0xff] %v2181
    %2246 = vst [vmem:[#allocation3 + $0xc10] sm:$0xff] %v2182
    %2247 = vst [vmem:[#allocation3 + $0xc58] sm:$0xff] %v2183
    %2248 = vst [vmem:[#allocation3 + $0xca0] sm:$0xff] %v2184
    %2249 = vst [vmem:[#allocation3 + $0xce8] sm:$0xff] %v2185
    %2250 = vst [vmem:[#allocation3 + $0xd30] sm:$0xff] %v2186
    %2251 = vst [vmem:[#allocation3 + $0xd78] sm:$0xff] %v2187
    %2252 = vst [vmem:[#allocation3 + $0xdc0] sm:$0xff] %v2188
    %2253 = vst [vmem:[#allocation3 + $0xe08] sm:$0xff] %v2189
    %2254 = vst [vmem:[#allocation3 + $0xe50] sm:$0xff] %v2190
    %2255 = vst [vmem:[#allocation3 + $0xe98] sm:$0xff] %v2191
    %2256 = vst [vmem:[#allocation3 + $0xee0] sm:$0xff] %v2192
    %2257 = vst [vmem:[#allocation3 + $0xf28] sm:$0xff] %v2193
    %2258 = vst [vmem:[#allocation3 + $0xf70] sm:$0xff] %v2194
    %2259 = vst [vmem:[#allocation3 + $0xfb8] sm:$0xff] %v2195
    %2260 = vst [vmem:[#allocation3 + $0x1000] sm:$0xff] %v2196
    %2261 = vst [vmem:[#allocation3 + $0x1048] sm:$0xff] %v2197
    %2262 = vst [vmem:[#allocation3 + $0x1090] sm:$0xff] %v2198
    %2263 = vst [vmem:[#allocation3 + $0x10d8] sm:$0xff] %v2199
    %2264 = vst [vmem:[#allocation3 + $0x1120] sm:$0xff] %v2200
    %2265 = vst [vmem:[#allocation3 + $0x1168] sm:$0xff] %v2201
    %2266 = vst [vmem:[#allocation3 + $0x11b0] sm:$0xff] %v2202
    %2267 = vst [vmem:[#allocation3 + $0x11f8] sm:$0xff] %v2203
    %v2268 = vld [vmem:[#allocation3] sm:$0xff]
    %v2269 = vld [vmem:[#allocation3 + $0x8] sm:$0xff]
    %v2270 = vld [vmem:[#allocation3 + $0x10] sm:$0xff]
    %v2271 = vld [vmem:[#allocation3 + $0x18] sm:$0xff]
    %v2272 = vld [vmem:[#allocation3 + $0x20] sm:$0xff]
    %v2273 = vld [vmem:[#allocation3 + $0x28] sm:$0xff]
    %v2274 = vld [vmem:[#allocation3 + $0x30] sm:$0xff]
    %v2275 = vld [vmem:[#allocation3 + $0x38] sm:$0xff]
    %v2276 = vld [vmem:[#allocation3 + $0x40] sm:$0xff]
    %v2277 = vld [vmem:[#allocation3 + $0x48] sm:$0xff]
    %v2278 = vld [vmem:[#allocation3 + $0x50] sm:$0xff]
    %v2279 = vld [vmem:[#allocation3 + $0x58] sm:$0xff]
    %v2280 = vld [vmem:[#allocation3 + $0x60] sm:$0xff]
    %v2281 = vld [vmem:[#allocation3 + $0x68] sm:$0xff]
    %v2282 = vld [vmem:[#allocation3 + $0x70] sm:$0xff]
    %v2283 = vld [vmem:[#allocation3 + $0x78] sm:$0xff]
    %v2284 = vld [vmem:[#allocation3 + $0x80] sm:$0xff]
    %v2285 = vld [vmem:[#allocation3 + $0x88] sm:$0xff]
    %v2286 = vld [vmem:[#allocation3 + $0x90] sm:$0xff]
    %v2287 = vld [vmem:[#allocation3 + $0x98] sm:$0xff]
    %v2288 = vld [vmem:[#allocation3 + $0xa0] sm:$0xff]
    %v2289 = vld [vmem:[#allocation3 + $0xa8] sm:$0xff]
    %v2290 = vld [vmem:[#allocation3 + $0xb0] sm:$0xff]
    %v2291 = vld [vmem:[#allocation3 + $0xb8] sm:$0xff]
    %v2292 = vld [vmem:[#allocation3 + $0xc0] sm:$0xff]
    %v2293 = vld [vmem:[#allocation3 + $0xc8] sm:$0xff]
    %v2294 = vld [vmem:[#allocation3 + $0xd0] sm:$0xff]
    %v2295 = vld [vmem:[#allocation3 + $0xd8] sm:$0xff]
    %v2296 = vld [vmem:[#allocation3 + $0xe0] sm:$0xff]
    %v2297 = vld [vmem:[#allocation3 + $0xe8] sm:$0xff]
    %v2298 = vld [vmem:[#allocation3 + $0xf0] sm:$0xff]
    %v2299 = vld [vmem:[#allocation3 + $0xf8] sm:$0xff]
    %v2300 = vld [vmem:[#allocation3 + $0x100] sm:$0xff]
    %v2301 = vld [vmem:[#allocation3 + $0x108] sm:$0xff]
    %v2302 = vld [vmem:[#allocation3 + $0x110] sm:$0xff]
    %v2303 = vld [vmem:[#allocation3 + $0x118] sm:$0xff]
    %v2304 = vld [vmem:[#allocation3 + $0x120] sm:$0xff]
    %v2305 = vld [vmem:[#allocation3 + $0x128] sm:$0xff]
    %v2306 = vld [vmem:[#allocation3 + $0x130] sm:$0xff]
    %v2307 = vld [vmem:[#allocation3 + $0x138] sm:$0xff]
    %v2308 = vld [vmem:[#allocation3 + $0x140] sm:$0xff]
    %v2309 = vld [vmem:[#allocation3 + $0x148] sm:$0xff]
    %v2310 = vld [vmem:[#allocation3 + $0x150] sm:$0xff]
    %v2311 = vld [vmem:[#allocation3 + $0x158] sm:$0xff]
    %v2312 = vld [vmem:[#allocation3 + $0x160] sm:$0xff]
    %v2313 = vld [vmem:[#allocation3 + $0x168] sm:$0xff]
    %v2314 = vld [vmem:[#allocation3 + $0x170] sm:$0xff]
    %v2315 = vld [vmem:[#allocation3 + $0x178] sm:$0xff]
    %v2316 = vld [vmem:[#allocation3 + $0x180] sm:$0xff]
    %v2317 = vld [vmem:[#allocation3 + $0x188] sm:$0xff]
    %v2318 = vld [vmem:[#allocation3 + $0x190] sm:$0xff]
    %v2319 = vld [vmem:[#allocation3 + $0x198] sm:$0xff]
    %v2320 = vld [vmem:[#allocation3 + $0x1a0] sm:$0xff]
    %v2321 = vld [vmem:[#allocation3 + $0x1a8] sm:$0xff]
    %v2322 = vld [vmem:[#allocation3 + $0x1b0] sm:$0xff]
    %v2323 = vld [vmem:[#allocation3 + $0x1b8] sm:$0xff]
    %v2324 = vld [vmem:[#allocation3 + $0x1c0] sm:$0xff]
    %v2325 = vld [vmem:[#allocation3 + $0x1c8] sm:$0xff]
    %v2326 = vld [vmem:[#allocation3 + $0x1d0] sm:$0xff]
    %v2327 = vld [vmem:[#allocation3 + $0x1d8] sm:$0xff]
    %v2328 = vld [vmem:[#allocation3 + $0x1e0] sm:$0xff]
    %v2329 = vld [vmem:[#allocation3 + $0x1e8] sm:$0xff]
    %v2330 = vld [vmem:[#allocation3 + $0x1f0] sm:$0xff]
    %v2331 = vld [vmem:[#allocation3 + $0x1f8] sm:$0xff]
    %v2332 = vld [vmem:[#allocation3 + $0x200] sm:$0xff]
    %v2333 = vld [vmem:[#allocation3 + $0x208] sm:$0xff]
    %v2334 = vld [vmem:[#allocation3 + $0x210] sm:$0xff]
    %v2335 = vld [vmem:[#allocation3 + $0x218] sm:$0xff]
    %v2336 = vld [vmem:[#allocation3 + $0x220] sm:$0xff]
    %v2337 = vld [vmem:[#allocation3 + $0x228] sm:$0xff]
    %v2338 = vld [vmem:[#allocation3 + $0x230] sm:$0xff]
    %v2339 = vld [vmem:[#allocation3 + $0x238] sm:$0xff]
    %v2340 = vld [vmem:[#allocation3 + $0x240] sm:$0xff]
    %v2341 = vld [vmem:[#allocation3 + $0x248] sm:$0xff]
    %v2342 = vld [vmem:[#allocation3 + $0x250] sm:$0xff]
    %v2343 = vld [vmem:[#allocation3 + $0x258] sm:$0xff]
    %v2344 = vld [vmem:[#allocation3 + $0x260] sm:$0xff]
    %v2345 = vld [vmem:[#allocation3 + $0x268] sm:$0xff]
    %v2346 = vld [vmem:[#allocation3 + $0x270] sm:$0xff]
    %v2347 = vld [vmem:[#allocation3 + $0x278] sm:$0xff]
    %v2348 = vld [vmem:[#allocation3 + $0x280] sm:$0xff]
    %v2349 = vld [vmem:[#allocation3 + $0x288] sm:$0xff]
    %v2350 = vld [vmem:[#allocation3 + $0x290] sm:$0xff]
    %v2351 = vld [vmem:[#allocation3 + $0x298] sm:$0xff]
    %v2352 = vld [vmem:[#allocation3 + $0x2a0] sm:$0xff]
    %v2353 = vld [vmem:[#allocation3 + $0x2a8] sm:$0xff]
    %v2354 = vld [vmem:[#allocation3 + $0x2b0] sm:$0xff]
    %v2355 = vld [vmem:[#allocation3 + $0x2b8] sm:$0xff]
    %v2356 = vld [vmem:[#allocation3 + $0x2c0] sm:$0xff]
    %v2357 = vld [vmem:[#allocation3 + $0x2c8] sm:$0xff]
    %v2358 = vld [vmem:[#allocation3 + $0x2d0] sm:$0xff]
    %v2359 = vld [vmem:[#allocation3 + $0x2d8] sm:$0xff]
    %v2360 = vld [vmem:[#allocation3 + $0x2e0] sm:$0xff]
    %v2361 = vld [vmem:[#allocation3 + $0x2e8] sm:$0xff]
    %v2362 = vld [vmem:[#allocation3 + $0x2f0] sm:$0xff]
    %v2363 = vld [vmem:[#allocation3 + $0x2f8] sm:$0xff]
    %v2364 = vld [vmem:[#allocation3 + $0x300] sm:$0xff]
    %v2365 = vld [vmem:[#allocation3 + $0x308] sm:$0xff]
    %v2366 = vld [vmem:[#allocation3 + $0x310] sm:$0xff]
    %v2367 = vld [vmem:[#allocation3 + $0x318] sm:$0xff]
    %v2368 = vld [vmem:[#allocation3 + $0x320] sm:$0xff]
    %v2369 = vld [vmem:[#allocation3 + $0x328] sm:$0xff]
    %v2370 = vld [vmem:[#allocation3 + $0x330] sm:$0xff]
    %v2371 = vld [vmem:[#allocation3 + $0x338] sm:$0xff]
    %v2372 = vld [vmem:[#allocation3 + $0x340] sm:$0xff]
    %v2373 = vld [vmem:[#allocation3 + $0x348] sm:$0xff]
    %v2374 = vld [vmem:[#allocation3 + $0x350] sm:$0xff]
    %v2375 = vld [vmem:[#allocation3 + $0x358] sm:$0xff]
    %v2376 = vld [vmem:[#allocation3 + $0x360] sm:$0xff]
    %v2377 = vld [vmem:[#allocation3 + $0x368] sm:$0xff]
    %v2378 = vld [vmem:[#allocation3 + $0x370] sm:$0xff]
    %v2379 = vld [vmem:[#allocation3 + $0x378] sm:$0xff]
    %v2380 = vld [vmem:[#allocation3 + $0x380] sm:$0xff]
    %v2381 = vld [vmem:[#allocation3 + $0x388] sm:$0xff]
    %v2382 = vld [vmem:[#allocation3 + $0x390] sm:$0xff]
    %v2383 = vld [vmem:[#allocation3 + $0x398] sm:$0xff]
    %v2384 = vld [vmem:[#allocation3 + $0x3a0] sm:$0xff]
    %v2385 = vld [vmem:[#allocation3 + $0x3a8] sm:$0xff]
    %v2386 = vld [vmem:[#allocation3 + $0x3b0] sm:$0xff]
    %v2387 = vld [vmem:[#allocation3 + $0x3b8] sm:$0xff]
    %v2388 = vld [vmem:[#allocation3 + $0x3c0] sm:$0xff]
    %v2389 = vld [vmem:[#allocation3 + $0x3c8] sm:$0xff]
    %v2390 = vld [vmem:[#allocation3 + $0x3d0] sm:$0xff]
    %v2391 = vld [vmem:[#allocation3 + $0x3d8] sm:$0xff]
    %v2392 = vld [vmem:[#allocation3 + $0x3e0] sm:$0xff]
    %v2393 = vld [vmem:[#allocation3 + $0x3e8] sm:$0xff]
    %v2394 = vld [vmem:[#allocation3 + $0x3f0] sm:$0xff]
    %v2395 = vld [vmem:[#allocation3 + $0x3f8] sm:$0xff]
    %v2396 = vld [vmem:[#allocation3 + $0x400] sm:$0xff]
    %v2397 = vld [vmem:[#allocation3 + $0x408] sm:$0xff]
    %v2398 = vld [vmem:[#allocation3 + $0x410] sm:$0xff]
    %v2399 = vld [vmem:[#allocation3 + $0x418] sm:$0xff]
    %v2400 = vld [vmem:[#allocation3 + $0x420] sm:$0xff]
    %v2401 = vld [vmem:[#allocation3 + $0x428] sm:$0xff]
    %v2402 = vld [vmem:[#allocation3 + $0x430] sm:$0xff]
    %v2403 = vld [vmem:[#allocation3 + $0x438] sm:$0xff]
    %v2404 = vld [vmem:[#allocation3 + $0x440] sm:$0xff]
    %v2405 = vld [vmem:[#allocation3 + $0x448] sm:$0xff]
    %v2406 = vld [vmem:[#allocation3 + $0x450] sm:$0xff]
    %v2407 = vld [vmem:[#allocation3 + $0x458] sm:$0xff]
    %v2408 = vld [vmem:[#allocation3 + $0x460] sm:$0xff]
    %v2409 = vld [vmem:[#allocation3 + $0x468] sm:$0xff]
    %v2410 = vld [vmem:[#allocation3 + $0x470] sm:$0xff]
    %v2411 = vld [vmem:[#allocation3 + $0x478] sm:$0xff]
    %v2412 = vld [vmem:[#allocation3 + $0x480] sm:$0xff]
    %v2413 = vld [vmem:[#allocation3 + $0x488] sm:$0xff]
    %v2414 = vld [vmem:[#allocation3 + $0x490] sm:$0xff]
    %v2415 = vld [vmem:[#allocation3 + $0x498] sm:$0xff]
    %v2416 = vld [vmem:[#allocation3 + $0x4a0] sm:$0xff]
    %v2417 = vld [vmem:[#allocation3 + $0x4a8] sm:$0xff]
    %v2418 = vld [vmem:[#allocation3 + $0x4b0] sm:$0xff]
    %v2419 = vld [vmem:[#allocation3 + $0x4b8] sm:$0xff]
    %v2420 = vld [vmem:[#allocation3 + $0x4c0] sm:$0xff]
    %v2421 = vld [vmem:[#allocation3 + $0x4c8] sm:$0xff]
    %v2422 = vld [vmem:[#allocation3 + $0x4d0] sm:$0xff]
    %v2423 = vld [vmem:[#allocation3 + $0x4d8] sm:$0xff]
    %v2424 = vld [vmem:[#allocation3 + $0x4e0] sm:$0xff]
    %v2425 = vld [vmem:[#allocation3 + $0x4e8] sm:$0xff]
    %v2426 = vld [vmem:[#allocation3 + $0x4f0] sm:$0xff]
    %v2427 = vld [vmem:[#allocation3 + $0x4f8] sm:$0xff]
    %v2428 = vld [vmem:[#allocation3 + $0x500] sm:$0xff]
    %v2429 = vld [vmem:[#allocation3 + $0x508] sm:$0xff]
    %v2430 = vld [vmem:[#allocation3 + $0x510] sm:$0xff]
    %v2431 = vld [vmem:[#allocation3 + $0x518] sm:$0xff]
    %v2432 = vld [vmem:[#allocation3 + $0x520] sm:$0xff]
    %v2433 = vld [vmem:[#allocation3 + $0x528] sm:$0xff]
    %v2434 = vld [vmem:[#allocation3 + $0x530] sm:$0xff]
    %v2435 = vld [vmem:[#allocation3 + $0x538] sm:$0xff]
    %v2436 = vld [vmem:[#allocation3 + $0x540] sm:$0xff]
    %v2437 = vld [vmem:[#allocation3 + $0x548] sm:$0xff]
    %v2438 = vld [vmem:[#allocation3 + $0x550] sm:$0xff]
    %v2439 = vld [vmem:[#allocation3 + $0x558] sm:$0xff]
    %v2440 = vld [vmem:[#allocation3 + $0x560] sm:$0xff]
    %v2441 = vld [vmem:[#allocation3 + $0x568] sm:$0xff]
    %v2442 = vld [vmem:[#allocation3 + $0x570] sm:$0xff]
    %v2443 = vld [vmem:[#allocation3 + $0x578] sm:$0xff]
    %v2444 = vld [vmem:[#allocation3 + $0x580] sm:$0xff]
    %v2445 = vld [vmem:[#allocation3 + $0x588] sm:$0xff]
    %v2446 = vld [vmem:[#allocation3 + $0x590] sm:$0xff]
    %v2447 = vld [vmem:[#allocation3 + $0x598] sm:$0xff]
    %v2448 = vld [vmem:[#allocation3 + $0x5a0] sm:$0xff]
    %v2449 = vld [vmem:[#allocation3 + $0x5a8] sm:$0xff]
    %v2450 = vld [vmem:[#allocation3 + $0x5b0] sm:$0xff]
    %v2451 = vld [vmem:[#allocation3 + $0x5b8] sm:$0xff]
    %v2452 = vld [vmem:[#allocation3 + $0x5c0] sm:$0xff]
    %v2453 = vld [vmem:[#allocation3 + $0x5c8] sm:$0xff]
    %v2454 = vld [vmem:[#allocation3 + $0x5d0] sm:$0xff]
    %v2455 = vld [vmem:[#allocation3 + $0x5d8] sm:$0xff]
    %v2456 = vld [vmem:[#allocation3 + $0x5e0] sm:$0xff]
    %v2457 = vld [vmem:[#allocation3 + $0x5e8] sm:$0xff]
    %v2458 = vld [vmem:[#allocation3 + $0x5f0] sm:$0xff]
    %v2459 = vld [vmem:[#allocation3 + $0x5f8] sm:$0xff]
    %v2460 = vld [vmem:[#allocation3 + $0x600] sm:$0xff]
    %v2461 = vld [vmem:[#allocation3 + $0x608] sm:$0xff]
    %v2462 = vld [vmem:[#allocation3 + $0x610] sm:$0xff]
    %v2463 = vld [vmem:[#allocation3 + $0x618] sm:$0xff]
    %v2464 = vld [vmem:[#allocation3 + $0x620] sm:$0xff]
    %v2465 = vld [vmem:[#allocation3 + $0x628] sm:$0xff]
    %v2466 = vld [vmem:[#allocation3 + $0x630] sm:$0xff]
    %v2467 = vld [vmem:[#allocation3 + $0x638] sm:$0xff]
    %v2468 = vld [vmem:[#allocation3 + $0x640] sm:$0xff]
    %v2469 = vld [vmem:[#allocation3 + $0x648] sm:$0xff]
    %v2470 = vld [vmem:[#allocation3 + $0x650] sm:$0xff]
    %v2471 = vld [vmem:[#allocation3 + $0x658] sm:$0xff]
    %v2472 = vld [vmem:[#allocation3 + $0x660] sm:$0xff]
    %v2473 = vld [vmem:[#allocation3 + $0x668] sm:$0xff]
    %v2474 = vld [vmem:[#allocation3 + $0x670] sm:$0xff]
    %v2475 = vld [vmem:[#allocation3 + $0x678] sm:$0xff]
    %v2476 = vld [vmem:[#allocation3 + $0x680] sm:$0xff]
    %v2477 = vld [vmem:[#allocation3 + $0x688] sm:$0xff]
    %v2478 = vld [vmem:[#allocation3 + $0x690] sm:$0xff]
    %v2479 = vld [vmem:[#allocation3 + $0x698] sm:$0xff]
    %v2480 = vld [vmem:[#allocation3 + $0x6a0] sm:$0xff]
    %v2481 = vld [vmem:[#allocation3 + $0x6a8] sm:$0xff]
    %v2482 = vld [vmem:[#allocation3 + $0x6b0] sm:$0xff]
    %v2483 = vld [vmem:[#allocation3 + $0x6b8] sm:$0xff]
    %v2484 = vld [vmem:[#allocation3 + $0x6c0] sm:$0xff]
    %v2485 = vld [vmem:[#allocation3 + $0x6c8] sm:$0xff]
    %v2486 = vld [vmem:[#allocation3 + $0x6d0] sm:$0xff]
    %v2487 = vld [vmem:[#allocation3 + $0x6d8] sm:$0xff]
    %v2488 = vld [vmem:[#allocation3 + $0x6e0] sm:$0xff]
    %v2489 = vld [vmem:[#allocation3 + $0x6e8] sm:$0xff]
    %v2490 = vld [vmem:[#allocation3 + $0x6f0] sm:$0xff]
    %v2491 = vld [vmem:[#allocation3 + $0x6f8] sm:$0xff]
    %v2492 = vld [vmem:[#allocation3 + $0x700] sm:$0xff]
    %v2493 = vld [vmem:[#allocation3 + $0x708] sm:$0xff]
    %v2494 = vld [vmem:[#allocation3 + $0x710] sm:$0xff]
    %v2495 = vld [vmem:[#allocation3 + $0x718] sm:$0xff]
    %v2496 = vld [vmem:[#allocation3 + $0x720] sm:$0xff]
    %v2497 = vld [vmem:[#allocation3 + $0x728] sm:$0xff]
    %v2498 = vld [vmem:[#allocation3 + $0x730] sm:$0xff]
    %v2499 = vld [vmem:[#allocation3 + $0x738] sm:$0xff]
    %v2500 = vld [vmem:[#allocation3 + $0x740] sm:$0xff]
    %v2501 = vld [vmem:[#allocation3 + $0x748] sm:$0xff]
    %v2502 = vld [vmem:[#allocation3 + $0x750] sm:$0xff]
    %v2503 = vld [vmem:[#allocation3 + $0x758] sm:$0xff]
    %v2504 = vld [vmem:[#allocation3 + $0x760] sm:$0xff]
    %v2505 = vld [vmem:[#allocation3 + $0x768] sm:$0xff]
    %v2506 = vld [vmem:[#allocation3 + $0x770] sm:$0xff]
    %v2507 = vld [vmem:[#allocation3 + $0x778] sm:$0xff]
    %v2508 = vld [vmem:[#allocation3 + $0x780] sm:$0xff]
    %v2509 = vld [vmem:[#allocation3 + $0x788] sm:$0xff]
    %v2510 = vld [vmem:[#allocation3 + $0x790] sm:$0xff]
    %v2511 = vld [vmem:[#allocation3 + $0x798] sm:$0xff]
    %v2512 = vld [vmem:[#allocation3 + $0x7a0] sm:$0xff]
    %v2513 = vld [vmem:[#allocation3 + $0x7a8] sm:$0xff]
    %v2514 = vld [vmem:[#allocation3 + $0x7b0] sm:$0xff]
    %v2515 = vld [vmem:[#allocation3 + $0x7b8] sm:$0xff]
    %v2516 = vld [vmem:[#allocation3 + $0x7c0] sm:$0xff]
    %v2517 = vld [vmem:[#allocation3 + $0x7c8] sm:$0xff]
    %v2518 = vld [vmem:[#allocation3 + $0x7d0] sm:$0xff]
    %v2519 = vld [vmem:[#allocation3 + $0x7d8] sm:$0xff]
    %v2520 = vld [vmem:[#allocation3 + $0x7e0] sm:$0xff]
    %v2521 = vld [vmem:[#allocation3 + $0x7e8] sm:$0xff]
    %v2522 = vld [vmem:[#allocation3 + $0x7f0] sm:$0xff]
    %v2523 = vld [vmem:[#allocation3 + $0x7f8] sm:$0xff]
    %v2524 = vld [vmem:[#allocation3 + $0x800] sm:$0xff]
    %v2525 = vld [vmem:[#allocation3 + $0x808] sm:$0xff]
    %v2526 = vld [vmem:[#allocation3 + $0x810] sm:$0xff]
    %v2527 = vld [vmem:[#allocation3 + $0x818] sm:$0xff]
    %v2528 = vld [vmem:[#allocation3 + $0x820] sm:$0xff]
    %v2529 = vld [vmem:[#allocation3 + $0x828] sm:$0xff]
    %v2530 = vld [vmem:[#allocation3 + $0x830] sm:$0xff]
    %v2531 = vld [vmem:[#allocation3 + $0x838] sm:$0xff]
    %v2532 = vld [vmem:[#allocation3 + $0x840] sm:$0xff]
    %v2533 = vld [vmem:[#allocation3 + $0x848] sm:$0xff]
    %v2534 = vld [vmem:[#allocation3 + $0x850] sm:$0xff]
    %v2535 = vld [vmem:[#allocation3 + $0x858] sm:$0xff]
    %v2536 = vld [vmem:[#allocation3 + $0x860] sm:$0xff]
    %v2537 = vld [vmem:[#allocation3 + $0x868] sm:$0xff]
    %v2538 = vld [vmem:[#allocation3 + $0x870] sm:$0xff]
    %v2539 = vld [vmem:[#allocation3 + $0x878] sm:$0xff]
    %v2540 = vld [vmem:[#allocation3 + $0x880] sm:$0xff]
    %v2541 = vld [vmem:[#allocation3 + $0x888] sm:$0xff]
    %v2542 = vld [vmem:[#allocation3 + $0x890] sm:$0xff]
    %v2543 = vld [vmem:[#allocation3 + $0x898] sm:$0xff]
    %v2544 = vld [vmem:[#allocation3 + $0x8a0] sm:$0xff]
    %v2545 = vld [vmem:[#allocation3 + $0x8a8] sm:$0xff]
    %v2546 = vld [vmem:[#allocation3 + $0x8b0] sm:$0xff]
    %v2547 = vld [vmem:[#allocation3 + $0x8b8] sm:$0xff]
    %v2548 = vld [vmem:[#allocation3 + $0x8c0] sm:$0xff]
    %v2549 = vld [vmem:[#allocation3 + $0x8c8] sm:$0xff]
    %v2550 = vld [vmem:[#allocation3 + $0x8d0] sm:$0xff]
    %v2551 = vld [vmem:[#allocation3 + $0x8d8] sm:$0xff]
    %v2552 = vld [vmem:[#allocation3 + $0x8e0] sm:$0xff]
    %v2553 = vld [vmem:[#allocation3 + $0x8e8] sm:$0xff]
    %v2554 = vld [vmem:[#allocation3 + $0x8f0] sm:$0xff]
    %v2555 = vld [vmem:[#allocation3 + $0x8f8] sm:$0xff]
    %v2556 = vld [vmem:[#allocation3 + $0x900] sm:$0xff]
    %v2557 = vld [vmem:[#allocation3 + $0x908] sm:$0xff]
    %v2558 = vld [vmem:[#allocation3 + $0x910] sm:$0xff]
    %v2559 = vld [vmem:[#allocation3 + $0x918] sm:$0xff]
    %v2560 = vld [vmem:[#allocation3 + $0x920] sm:$0xff]
    %v2561 = vld [vmem:[#allocation3 + $0x928] sm:$0xff]
    %v2562 = vld [vmem:[#allocation3 + $0x930] sm:$0xff]
    %v2563 = vld [vmem:[#allocation3 + $0x938] sm:$0xff]
    %v2564 = vld [vmem:[#allocation3 + $0x940] sm:$0xff]
    %v2565 = vld [vmem:[#allocation3 + $0x948] sm:$0xff]
    %v2566 = vld [vmem:[#allocation3 + $0x950] sm:$0xff]
    %v2567 = vld [vmem:[#allocation3 + $0x958] sm:$0xff]
    %v2568 = vld [vmem:[#allocation3 + $0x960] sm:$0xff]
    %v2569 = vld [vmem:[#allocation3 + $0x968] sm:$0xff]
    %v2570 = vld [vmem:[#allocation3 + $0x970] sm:$0xff]
    %v2571 = vld [vmem:[#allocation3 + $0x978] sm:$0xff]
    %v2572 = vld [vmem:[#allocation3 + $0x980] sm:$0xff]
    %v2573 = vld [vmem:[#allocation3 + $0x988] sm:$0xff]
    %v2574 = vld [vmem:[#allocation3 + $0x990] sm:$0xff]
    %v2575 = vld [vmem:[#allocation3 + $0x998] sm:$0xff]
    %v2576 = vld [vmem:[#allocation3 + $0x9a0] sm:$0xff]
    %v2577 = vld [vmem:[#allocation3 + $0x9a8] sm:$0xff]
    %v2578 = vld [vmem:[#allocation3 + $0x9b0] sm:$0xff]
    %v2579 = vld [vmem:[#allocation3 + $0x9b8] sm:$0xff]
    %v2580 = vld [vmem:[#allocation3 + $0x9c0] sm:$0xff]
    %v2581 = vld [vmem:[#allocation3 + $0x9c8] sm:$0xff]
    %v2582 = vld [vmem:[#allocation3 + $0x9d0] sm:$0xff]
    %v2583 = vld [vmem:[#allocation3 + $0x9d8] sm:$0xff]
    %v2584 = vld [vmem:[#allocation3 + $0x9e0] sm:$0xff]
    %v2585 = vld [vmem:[#allocation3 + $0x9e8] sm:$0xff]
    %v2586 = vld [vmem:[#allocation3 + $0x9f0] sm:$0xff]
    %v2587 = vld [vmem:[#allocation3 + $0x9f8] sm:$0xff]
    %v2588 = vld [vmem:[#allocation3 + $0xa00] sm:$0xff]
    %v2589 = vld [vmem:[#allocation3 + $0xa08] sm:$0xff]
    %v2590 = vld [vmem:[#allocation3 + $0xa10] sm:$0xff]
    %v2591 = vld [vmem:[#allocation3 + $0xa18] sm:$0xff]
    %v2592 = vld [vmem:[#allocation3 + $0xa20] sm:$0xff]
    %v2593 = vld [vmem:[#allocation3 + $0xa28] sm:$0xff]
    %v2594 = vld [vmem:[#allocation3 + $0xa30] sm:$0xff]
    %v2595 = vld [vmem:[#allocation3 + $0xa38] sm:$0xff]
    %v2596 = vld [vmem:[#allocation3 + $0xa40] sm:$0xff]
    %v2597 = vld [vmem:[#allocation3 + $0xa48] sm:$0xff]
    %v2598 = vld [vmem:[#allocation3 + $0xa50] sm:$0xff]
    %v2599 = vld [vmem:[#allocation3 + $0xa58] sm:$0xff]
    %v2600 = vld [vmem:[#allocation3 + $0xa60] sm:$0xff]
    %v2601 = vld [vmem:[#allocation3 + $0xa68] sm:$0xff]
    %v2602 = vld [vmem:[#allocation3 + $0xa70] sm:$0xff]
    %v2603 = vld [vmem:[#allocation3 + $0xa78] sm:$0xff]
    %v2604 = vld [vmem:[#allocation3 + $0xa80] sm:$0xff]
    %v2605 = vld [vmem:[#allocation3 + $0xa88] sm:$0xff]
    %v2606 = vld [vmem:[#allocation3 + $0xa90] sm:$0xff]
    %v2607 = vld [vmem:[#allocation3 + $0xa98] sm:$0xff]
    %v2608 = vld [vmem:[#allocation3 + $0xaa0] sm:$0xff]
    %v2609 = vld [vmem:[#allocation3 + $0xaa8] sm:$0xff]
    %v2610 = vld [vmem:[#allocation3 + $0xab0] sm:$0xff]
    %v2611 = vld [vmem:[#allocation3 + $0xab8] sm:$0xff]
    %v2612 = vld [vmem:[#allocation3 + $0xac0] sm:$0xff]
    %v2613 = vld [vmem:[#allocation3 + $0xac8] sm:$0xff]
    %v2614 = vld [vmem:[#allocation3 + $0xad0] sm:$0xff]
    %v2615 = vld [vmem:[#allocation3 + $0xad8] sm:$0xff]
    %v2616 = vld [vmem:[#allocation3 + $0xae0] sm:$0xff]
    %v2617 = vld [vmem:[#allocation3 + $0xae8] sm:$0xff]
    %v2618 = vld [vmem:[#allocation3 + $0xaf0] sm:$0xff]
    %v2619 = vld [vmem:[#allocation3 + $0xaf8] sm:$0xff]
    %v2620 = vld [vmem:[#allocation3 + $0xb00] sm:$0xff]
    %v2621 = vld [vmem:[#allocation3 + $0xb08] sm:$0xff]
    %v2622 = vld [vmem:[#allocation3 + $0xb10] sm:$0xff]
    %v2623 = vld [vmem:[#allocation3 + $0xb18] sm:$0xff]
    %v2624 = vld [vmem:[#allocation3 + $0xb20] sm:$0xff]
    %v2625 = vld [vmem:[#allocation3 + $0xb28] sm:$0xff]
    %v2626 = vld [vmem:[#allocation3 + $0xb30] sm:$0xff]
    %v2627 = vld [vmem:[#allocation3 + $0xb38] sm:$0xff]
    %v2628 = vld [vmem:[#allocation3 + $0xb40] sm:$0xff]
    %v2629 = vld [vmem:[#allocation3 + $0xb48] sm:$0xff]
    %v2630 = vld [vmem:[#allocation3 + $0xb50] sm:$0xff]
    %v2631 = vld [vmem:[#allocation3 + $0xb58] sm:$0xff]
    %v2632 = vld [vmem:[#allocation3 + $0xb60] sm:$0xff]
    %v2633 = vld [vmem:[#allocation3 + $0xb68] sm:$0xff]
    %v2634 = vld [vmem:[#allocation3 + $0xb70] sm:$0xff]
    %v2635 = vld [vmem:[#allocation3 + $0xb78] sm:$0xff]
    %v2636 = vld [vmem:[#allocation3 + $0xb80] sm:$0xff]
    %v2637 = vld [vmem:[#allocation3 + $0xb88] sm:$0xff]
    %v2638 = vld [vmem:[#allocation3 + $0xb90] sm:$0xff]
    %v2639 = vld [vmem:[#allocation3 + $0xb98] sm:$0xff]
    %v2640 = vld [vmem:[#allocation3 + $0xba0] sm:$0xff]
    %v2641 = vld [vmem:[#allocation3 + $0xba8] sm:$0xff]
    %v2642 = vld [vmem:[#allocation3 + $0xbb0] sm:$0xff]
    %v2643 = vld [vmem:[#allocation3 + $0xbb8] sm:$0xff]
    %v2644 = vld [vmem:[#allocation3 + $0xbc0] sm:$0xff]
    %v2645 = vld [vmem:[#allocation3 + $0xbc8] sm:$0xff]
    %v2646 = vld [vmem:[#allocation3 + $0xbd0] sm:$0xff]
    %v2647 = vld [vmem:[#allocation3 + $0xbd8] sm:$0xff]
    %v2648 = vld [vmem:[#allocation3 + $0xbe0] sm:$0xff]
    %v2649 = vld [vmem:[#allocation3 + $0xbe8] sm:$0xff]
    %v2650 = vld [vmem:[#allocation3 + $0xbf0] sm:$0xff]
    %v2651 = vld [vmem:[#allocation3 + $0xbf8] sm:$0xff]
    %v2652 = vld [vmem:[#allocation3 + $0xc00] sm:$0xff]
    %v2653 = vld [vmem:[#allocation3 + $0xc08] sm:$0xff]
    %v2654 = vld [vmem:[#allocation3 + $0xc10] sm:$0xff]
    %v2655 = vld [vmem:[#allocation3 + $0xc18] sm:$0xff]
    %v2656 = vld [vmem:[#allocation3 + $0xc20] sm:$0xff]
    %v2657 = vld [vmem:[#allocation3 + $0xc28] sm:$0xff]
    %v2658 = vld [vmem:[#allocation3 + $0xc30] sm:$0xff]
    %v2659 = vld [vmem:[#allocation3 + $0xc38] sm:$0xff]
    %v2660 = vld [vmem:[#allocation3 + $0xc40] sm:$0xff]
    %v2661 = vld [vmem:[#allocation3 + $0xc48] sm:$0xff]
    %v2662 = vld [vmem:[#allocation3 + $0xc50] sm:$0xff]
    %v2663 = vld [vmem:[#allocation3 + $0xc58] sm:$0xff]
    %v2664 = vld [vmem:[#allocation3 + $0xc60] sm:$0xff]
    %v2665 = vld [vmem:[#allocation3 + $0xc68] sm:$0xff]
    %v2666 = vld [vmem:[#allocation3 + $0xc70] sm:$0xff]
    %v2667 = vld [vmem:[#allocation3 + $0xc78] sm:$0xff]
    %v2668 = vld [vmem:[#allocation3 + $0xc80] sm:$0xff]
    %v2669 = vld [vmem:[#allocation3 + $0xc88] sm:$0xff]
    %v2670 = vld [vmem:[#allocation3 + $0xc90] sm:$0xff]
    %v2671 = vld [vmem:[#allocation3 + $0xc98] sm:$0xff]
    %v2672 = vld [vmem:[#allocation3 + $0xca0] sm:$0xff]
    %v2673 = vld [vmem:[#allocation3 + $0xca8] sm:$0xff]
    %v2674 = vld [vmem:[#allocation3 + $0xcb0] sm:$0xff]
    %v2675 = vld [vmem:[#allocation3 + $0xcb8] sm:$0xff]
    %v2676 = vld [vmem:[#allocation3 + $0xcc0] sm:$0xff]
    %v2677 = vld [vmem:[#allocation3 + $0xcc8] sm:$0xff]
    %v2678 = vld [vmem:[#allocation3 + $0xcd0] sm:$0xff]
    %v2679 = vld [vmem:[#allocation3 + $0xcd8] sm:$0xff]
    %v2680 = vld [vmem:[#allocation3 + $0xce0] sm:$0xff]
    %v2681 = vld [vmem:[#allocation3 + $0xce8] sm:$0xff]
    %v2682 = vld [vmem:[#allocation3 + $0xcf0] sm:$0xff]
    %v2683 = vld [vmem:[#allocation3 + $0xcf8] sm:$0xff]
    %v2684 = vld [vmem:[#allocation3 + $0xd00] sm:$0xff]
    %v2685 = vld [vmem:[#allocation3 + $0xd08] sm:$0xff]
    %v2686 = vld [vmem:[#allocation3 + $0xd10] sm:$0xff]
    %v2687 = vld [vmem:[#allocation3 + $0xd18] sm:$0xff]
    %v2688 = vld [vmem:[#allocation3 + $0xd20] sm:$0xff]
    %v2689 = vld [vmem:[#allocation3 + $0xd28] sm:$0xff]
    %v2690 = vld [vmem:[#allocation3 + $0xd30] sm:$0xff]
    %v2691 = vld [vmem:[#allocation3 + $0xd38] sm:$0xff]
    %v2692 = vld [vmem:[#allocation3 + $0xd40] sm:$0xff]
    %v2693 = vld [vmem:[#allocation3 + $0xd48] sm:$0xff]
    %v2694 = vld [vmem:[#allocation3 + $0xd50] sm:$0xff]
    %v2695 = vld [vmem:[#allocation3 + $0xd58] sm:$0xff]
    %v2696 = vld [vmem:[#allocation3 + $0xd60] sm:$0xff]
    %v2697 = vld [vmem:[#allocation3 + $0xd68] sm:$0xff]
    %v2698 = vld [vmem:[#allocation3 + $0xd70] sm:$0xff]
    %v2699 = vld [vmem:[#allocation3 + $0xd78] sm:$0xff]
    %v2700 = vld [vmem:[#allocation3 + $0xd80] sm:$0xff]
    %v2701 = vld [vmem:[#allocation3 + $0xd88] sm:$0xff]
    %v2702 = vld [vmem:[#allocation3 + $0xd90] sm:$0xff]
    %v2703 = vld [vmem:[#allocation3 + $0xd98] sm:$0xff]
    %v2704 = vld [vmem:[#allocation3 + $0xda0] sm:$0xff]
    %v2705 = vld [vmem:[#allocation3 + $0xda8] sm:$0xff]
    %v2706 = vld [vmem:[#allocation3 + $0xdb0] sm:$0xff]
    %v2707 = vld [vmem:[#allocation3 + $0xdb8] sm:$0xff]
    %v2708 = vld [vmem:[#allocation3 + $0xdc0] sm:$0xff]
    %v2709 = vld [vmem:[#allocation3 + $0xdc8] sm:$0xff]
    %v2710 = vld [vmem:[#allocation3 + $0xdd0] sm:$0xff]
    %v2711 = vld [vmem:[#allocation3 + $0xdd8] sm:$0xff]
    %v2712 = vld [vmem:[#allocation3 + $0xde0] sm:$0xff]
    %v2713 = vld [vmem:[#allocation3 + $0xde8] sm:$0xff]
    %v2714 = vld [vmem:[#allocation3 + $0xdf0] sm:$0xff]
    %v2715 = vld [vmem:[#allocation3 + $0xdf8] sm:$0xff]
    %v2716 = vld [vmem:[#allocation3 + $0xe00] sm:$0xff]
    %v2717 = vld [vmem:[#allocation3 + $0xe08] sm:$0xff]
    %v2718 = vld [vmem:[#allocation3 + $0xe10] sm:$0xff]
    %v2719 = vld [vmem:[#allocation3 + $0xe18] sm:$0xff]
    %v2720 = vld [vmem:[#allocation3 + $0xe20] sm:$0xff]
    %v2721 = vld [vmem:[#allocation3 + $0xe28] sm:$0xff]
    %v2722 = vld [vmem:[#allocation3 + $0xe30] sm:$0xff]
    %v2723 = vld [vmem:[#allocation3 + $0xe38] sm:$0xff]
    %v2724 = vld [vmem:[#allocation3 + $0xe40] sm:$0xff]
    %v2725 = vld [vmem:[#allocation3 + $0xe48] sm:$0xff]
    %v2726 = vld [vmem:[#allocation3 + $0xe50] sm:$0xff]
    %v2727 = vld [vmem:[#allocation3 + $0xe58] sm:$0xff]
    %v2728 = vld [vmem:[#allocation3 + $0xe60] sm:$0xff]
    %v2729 = vld [vmem:[#allocation3 + $0xe68] sm:$0xff]
    %v2730 = vld [vmem:[#allocation3 + $0xe70] sm:$0xff]
    %v2731 = vld [vmem:[#allocation3 + $0xe78] sm:$0xff]
    %v2732 = vld [vmem:[#allocation3 + $0xe80] sm:$0xff]
    %v2733 = vld [vmem:[#allocation3 + $0xe88] sm:$0xff]
    %v2734 = vld [vmem:[#allocation3 + $0xe90] sm:$0xff]
    %v2735 = vld [vmem:[#allocation3 + $0xe98] sm:$0xff]
    %v2736 = vld [vmem:[#allocation3 + $0xea0] sm:$0xff]
    %v2737 = vld [vmem:[#allocation3 + $0xea8] sm:$0xff]
    %v2738 = vld [vmem:[#allocation3 + $0xeb0] sm:$0xff]
    %v2739 = vld [vmem:[#allocation3 + $0xeb8] sm:$0xff]
    %v2740 = vld [vmem:[#allocation3 + $0xec0] sm:$0xff]
    %v2741 = vld [vmem:[#allocation3 + $0xec8] sm:$0xff]
    %v2742 = vld [vmem:[#allocation3 + $0xed0] sm:$0xff]
    %v2743 = vld [vmem:[#allocation3 + $0xed8] sm:$0xff]
    %v2744 = vld [vmem:[#allocation3 + $0xee0] sm:$0xff]
    %v2745 = vld [vmem:[#allocation3 + $0xee8] sm:$0xff]
    %v2746 = vld [vmem:[#allocation3 + $0xef0] sm:$0xff]
    %v2747 = vld [vmem:[#allocation3 + $0xef8] sm:$0xff]
    %v2748 = vld [vmem:[#allocation3 + $0xf00] sm:$0xff]
    %v2749 = vld [vmem:[#allocation3 + $0xf08] sm:$0xff]
    %v2750 = vld [vmem:[#allocation3 + $0xf10] sm:$0xff]
    %v2751 = vld [vmem:[#allocation3 + $0xf18] sm:$0xff]
    %v2752 = vld [vmem:[#allocation3 + $0xf20] sm:$0xff]
    %v2753 = vld [vmem:[#allocation3 + $0xf28] sm:$0xff]
    %v2754 = vld [vmem:[#allocation3 + $0xf30] sm:$0xff]
    %v2755 = vld [vmem:[#allocation3 + $0xf38] sm:$0xff]
    %v2756 = vld [vmem:[#allocation3 + $0xf40] sm:$0xff]
    %v2757 = vld [vmem:[#allocation3 + $0xf48] sm:$0xff]
    %v2758 = vld [vmem:[#allocation3 + $0xf50] sm:$0xff]
    %v2759 = vld [vmem:[#allocation3 + $0xf58] sm:$0xff]
    %v2760 = vld [vmem:[#allocation3 + $0xf60] sm:$0xff]
    %v2761 = vld [vmem:[#allocation3 + $0xf68] sm:$0xff]
    %v2762 = vld [vmem:[#allocation3 + $0xf70] sm:$0xff]
    %v2763 = vld [vmem:[#allocation3 + $0xf78] sm:$0xff]
    %v2764 = vld [vmem:[#allocation3 + $0xf80] sm:$0xff]
    %v2765 = vld [vmem:[#allocation3 + $0xf88] sm:$0xff]
    %v2766 = vld [vmem:[#allocation3 + $0xf90] sm:$0xff]
    %v2767 = vld [vmem:[#allocation3 + $0xf98] sm:$0xff]
    %v2768 = vld [vmem:[#allocation3 + $0xfa0] sm:$0xff]
    %v2769 = vld [vmem:[#allocation3 + $0xfa8] sm:$0xff]
    %v2770 = vld [vmem:[#allocation3 + $0xfb0] sm:$0xff]
    %v2771 = vld [vmem:[#allocation3 + $0xfb8] sm:$0xff]
    %v2772 = vld [vmem:[#allocation3 + $0xfc0] sm:$0xff]
    %v2773 = vld [vmem:[#allocation3 + $0xfc8] sm:$0xff]
    %v2774 = vld [vmem:[#allocation3 + $0xfd0] sm:$0xff]
    %v2775 = vld [vmem:[#allocation3 + $0xfd8] sm:$0xff]
    %v2776 = vld [vmem:[#allocation3 + $0xfe0] sm:$0xff]
    %v2777 = vld [vmem:[#allocation3 + $0xfe8] sm:$0xff]
    %v2778 = vld [vmem:[#allocation3 + $0xff0] sm:$0xff]
    %v2779 = vld [vmem:[#allocation3 + $0xff8] sm:$0xff]
    %v2780 = vld [vmem:[#allocation3 + $0x1000] sm:$0xff]
    %v2781 = vld [vmem:[#allocation3 + $0x1008] sm:$0xff]
    %v2782 = vld [vmem:[#allocation3 + $0x1010] sm:$0xff]
    %v2783 = vld [vmem:[#allocation3 + $0x1018] sm:$0xff]
    %v2784 = vld [vmem:[#allocation3 + $0x1020] sm:$0xff]
    %v2785 = vld [vmem:[#allocation3 + $0x1028] sm:$0xff]
    %v2786 = vld [vmem:[#allocation3 + $0x1030] sm:$0xff]
    %v2787 = vld [vmem:[#allocation3 + $0x1038] sm:$0xff]
    %v2788 = vld [vmem:[#allocation3 + $0x1040] sm:$0xff]
    %v2789 = vld [vmem:[#allocation3 + $0x1048] sm:$0xff]
    %v2790 = vld [vmem:[#allocation3 + $0x1050] sm:$0xff]
    %v2791 = vld [vmem:[#allocation3 + $0x1058] sm:$0xff]
    %v2792 = vld [vmem:[#allocation3 + $0x1060] sm:$0xff]
    %v2793 = vld [vmem:[#allocation3 + $0x1068] sm:$0xff]
    %v2794 = vld [vmem:[#allocation3 + $0x1070] sm:$0xff]
    %v2795 = vld [vmem:[#allocation3 + $0x1078] sm:$0xff]
    %v2796 = vld [vmem:[#allocation3 + $0x1080] sm:$0xff]
    %v2797 = vld [vmem:[#allocation3 + $0x1088] sm:$0xff]
    %v2798 = vld [vmem:[#allocation3 + $0x1090] sm:$0xff]
    %v2799 = vld [vmem:[#allocation3 + $0x1098] sm:$0xff]
    %v2800 = vld [vmem:[#allocation3 + $0x10a0] sm:$0xff]
    %v2801 = vld [vmem:[#allocation3 + $0x10a8] sm:$0xff]
    %v2802 = vld [vmem:[#allocation3 + $0x10b0] sm:$0xff]
    %v2803 = vld [vmem:[#allocation3 + $0x10b8] sm:$0xff]
    %v2804 = vld [vmem:[#allocation3 + $0x10c0] sm:$0xff]
    %v2805 = vld [vmem:[#allocation3 + $0x10c8] sm:$0xff]
    %v2806 = vld [vmem:[#allocation3 + $0x10d0] sm:$0xff]
    %v2807 = vld [vmem:[#allocation3 + $0x10d8] sm:$0xff]
    %v2808 = vld [vmem:[#allocation3 + $0x10e0] sm:$0xff]
    %v2809 = vld [vmem:[#allocation3 + $0x10e8] sm:$0xff]
    %v2810 = vld [vmem:[#allocation3 + $0x10f0] sm:$0xff]
    %v2811 = vld [vmem:[#allocation3 + $0x10f8] sm:$0xff]
    %v2812 = vld [vmem:[#allocation3 + $0x1100] sm:$0xff]
    %v2813 = vld [vmem:[#allocation3 + $0x1108] sm:$0xff]
    %v2814 = vld [vmem:[#allocation3 + $0x1110] sm:$0xff]
    %v2815 = vld [vmem:[#allocation3 + $0x1118] sm:$0xff]
    %v2816 = vld [vmem:[#allocation3 + $0x1120] sm:$0xff]
    %v2817 = vld [vmem:[#allocation3 + $0x1128] sm:$0xff]
    %v2818 = vld [vmem:[#allocation3 + $0x1130] sm:$0xff]
    %v2819 = vld [vmem:[#allocation3 + $0x1138] sm:$0xff]
    %v2820 = vld [vmem:[#allocation3 + $0x1140] sm:$0xff]
    %v2821 = vld [vmem:[#allocation3 + $0x1148] sm:$0xff]
    %v2822 = vld [vmem:[#allocation3 + $0x1150] sm:$0xff]
    %v2823 = vld [vmem:[#allocation3 + $0x1158] sm:$0xff]
    %v2824 = vld [vmem:[#allocation3 + $0x1160] sm:$0xff]
    %v2825 = vld [vmem:[#allocation3 + $0x1168] sm:$0xff]
    %v2826 = vld [vmem:[#allocation3 + $0x1170] sm:$0xff]
    %v2827 = vld [vmem:[#allocation3 + $0x1178] sm:$0xff]
    %v2828 = vld [vmem:[#allocation3 + $0x1180] sm:$0xff]
    %v2829 = vld [vmem:[#allocation3 + $0x1188] sm:$0xff]
    %v2830 = vld [vmem:[#allocation3 + $0x1190] sm:$0xff]
    %v2831 = vld [vmem:[#allocation3 + $0x1198] sm:$0xff]
    %v2832 = vld [vmem:[#allocation3 + $0x11a0] sm:$0xff]
    %v2833 = vld [vmem:[#allocation3 + $0x11a8] sm:$0xff]
    %v2834 = vld [vmem:[#allocation3 + $0x11b0] sm:$0xff]
    %v2835 = vld [vmem:[#allocation3 + $0x11b8] sm:$0xff]
    %v2836 = vld [vmem:[#allocation3 + $0x11c0] sm:$0xff]
    %v2837 = vld [vmem:[#allocation3 + $0x11c8] sm:$0xff]
    %v2838 = vld [vmem:[#allocation3 + $0x11d0] sm:$0xff]
    %v2839 = vld [vmem:[#allocation3 + $0x11d8] sm:$0xff]
    %v2840 = vld [vmem:[#allocation3 + $0x11e0] sm:$0xff]
    %v2841 = vld [vmem:[#allocation3 + $0x11e8] sm:$0xff]
    %v2842 = vld [vmem:[#allocation3 + $0x11f0] sm:$0xff]
    %v2843 = vld [vmem:[#allocation3 + $0x11f8] sm:$0xff]
    %v2844 = vld [vmem:[#allocation7] sm:$0xff]
    %v2845 = vld [vmem:[#allocation7 + $0x8] sm:$0xff]
    %v2846 = vld [vmem:[#allocation7 + $0x10] sm:$0xff]
    %v2847 = vld [vmem:[#allocation7 + $0x18] sm:$0xff]
    %v2848 = vld [vmem:[#allocation7 + $0x20] sm:$0xff]
    %v2849 = vld [vmem:[#allocation7 + $0x28] sm:$0xff]
    %v2850 = vld [vmem:[#allocation7 + $0x30] sm:$0xff]
    %v2851 = vld [vmem:[#allocation7 + $0x38] sm:$0xff]
    %v2852 = vld [vmem:[#allocation7 + $0x40] sm:$0xff]
    %v2853 = vld [vmem:[#allocation7 + $0x48] sm:$0xff]
    %v2854 = vld [vmem:[#allocation7 + $0x50] sm:$0xff]
    %v2855 = vld [vmem:[#allocation7 + $0x58] sm:$0xff]
    %v2856 = vld [vmem:[#allocation7 + $0x60] sm:$0xff]
    %v2857 = vld [vmem:[#allocation7 + $0x68] sm:$0xff]
    %v2858 = vld [vmem:[#allocation7 + $0x70] sm:$0xff]
    %v2859 = vld [vmem:[#allocation7 + $0x78] sm:$0xff]
    %v2860 = vld [vmem:[#allocation7 + $0x80] sm:$0xff]
    %v2861 = vld [vmem:[#allocation7 + $0x88] sm:$0xff]
    %v2862 = vld [vmem:[#allocation7 + $0x90] sm:$0xff]
    %v2863 = vld [vmem:[#allocation7 + $0x98] sm:$0xff]
    %v2864 = vld [vmem:[#allocation7 + $0xa0] sm:$0xff]
    %v2865 = vld [vmem:[#allocation7 + $0xa8] sm:$0xff]
    %v2866 = vld [vmem:[#allocation7 + $0xb0] sm:$0xff]
    %v2867 = vld [vmem:[#allocation7 + $0xb8] sm:$0xff]
    %v2868 = vld [vmem:[#allocation7 + $0xc0] sm:$0xff]
    %v2869 = vld [vmem:[#allocation7 + $0xc8] sm:$0xff]
    %v2870 = vld [vmem:[#allocation7 + $0xd0] sm:$0xff]
    %v2871 = vld [vmem:[#allocation7 + $0xd8] sm:$0xff]
    %v2872 = vld [vmem:[#allocation7 + $0xe0] sm:$0xff]
    %v2873 = vld [vmem:[#allocation7 + $0xe8] sm:$0xff]
    %v2874 = vld [vmem:[#allocation7 + $0xf0] sm:$0xff]
    %v2875 = vld [vmem:[#allocation7 + $0xf8] sm:$0xff]
    %v2876 = vld [vmem:[#allocation7 + $0x100] sm:$0xff]
    %v2877 = vld [vmem:[#allocation7 + $0x108] sm:$0xff]
    %v2878 = vld [vmem:[#allocation7 + $0x110] sm:$0xff]
    %v2879 = vld [vmem:[#allocation7 + $0x118] sm:$0xff]
    %v2880 = vld [vmem:[#allocation7 + $0x120] sm:$0xff]
    %v2881 = vld [vmem:[#allocation7 + $0x128] sm:$0xff]
    %v2882 = vld [vmem:[#allocation7 + $0x130] sm:$0xff]
    %v2883 = vld [vmem:[#allocation7 + $0x138] sm:$0xff]
    %v2884 = vld [vmem:[#allocation7 + $0x140] sm:$0xff]
    %v2885 = vld [vmem:[#allocation7 + $0x148] sm:$0xff]
    %v2886 = vld [vmem:[#allocation7 + $0x150] sm:$0xff]
    %v2887 = vld [vmem:[#allocation7 + $0x158] sm:$0xff]
    %v2888 = vld [vmem:[#allocation7 + $0x160] sm:$0xff]
    %v2889 = vld [vmem:[#allocation7 + $0x168] sm:$0xff]
    %v2890 = vld [vmem:[#allocation7 + $0x170] sm:$0xff]
    %v2891 = vld [vmem:[#allocation7 + $0x178] sm:$0xff]
    %v2892 = vld [vmem:[#allocation7 + $0x180] sm:$0xff]
    %v2893 = vld [vmem:[#allocation7 + $0x188] sm:$0xff]
    %v2894 = vld [vmem:[#allocation7 + $0x190] sm:$0xff]
    %v2895 = vld [vmem:[#allocation7 + $0x198] sm:$0xff]
    %v2896 = vld [vmem:[#allocation7 + $0x1a0] sm:$0xff]
    %v2897 = vld [vmem:[#allocation7 + $0x1a8] sm:$0xff]
    %v2898 = vld [vmem:[#allocation7 + $0x1b0] sm:$0xff]
    %v2899 = vld [vmem:[#allocation7 + $0x1b8] sm:$0xff]
    %v2900 = vld [vmem:[#allocation7 + $0x1c0] sm:$0xff]
    %v2901 = vld [vmem:[#allocation7 + $0x1c8] sm:$0xff]
    %v2902 = vld [vmem:[#allocation7 + $0x1d0] sm:$0xff]
    %v2903 = vld [vmem:[#allocation7 + $0x1d8] sm:$0xff]
    %v2904 = vld [vmem:[#allocation7 + $0x1e0] sm:$0xff]
    %v2905 = vld [vmem:[#allocation7 + $0x1e8] sm:$0xff]
    %v2906 = vld [vmem:[#allocation7 + $0x1f0] sm:$0xff]
    %v2907 = vld [vmem:[#allocation7 + $0x1f8] sm:$0xff]
    %v2908 = vld [vmem:[#allocation7 + $0x200] sm:$0xff]
    %v2909 = vld [vmem:[#allocation7 + $0x208] sm:$0xff]
    %v2910 = vld [vmem:[#allocation7 + $0x210] sm:$0xff]
    %v2911 = vld [vmem:[#allocation7 + $0x218] sm:$0xff]
    %v2912 = vld [vmem:[#allocation7 + $0x220] sm:$0xff]
    %v2913 = vld [vmem:[#allocation7 + $0x228] sm:$0xff]
    %v2914 = vld [vmem:[#allocation7 + $0x230] sm:$0xff]
    %v2915 = vld [vmem:[#allocation7 + $0x238] sm:$0xff]
    %v2916 = vld [vmem:[#allocation7 + $0x240] sm:$0xff]
    %v2917 = vld [vmem:[#allocation7 + $0x248] sm:$0xff]
    %v2918 = vld [vmem:[#allocation7 + $0x250] sm:$0xff]
    %v2919 = vld [vmem:[#allocation7 + $0x258] sm:$0xff]
    %v2920 = vld [vmem:[#allocation7 + $0x260] sm:$0xff]
    %v2921 = vld [vmem:[#allocation7 + $0x268] sm:$0xff]
    %v2922 = vld [vmem:[#allocation7 + $0x270] sm:$0xff]
    %v2923 = vld [vmem:[#allocation7 + $0x278] sm:$0xff]
    %v2924 = vld [vmem:[#allocation7 + $0x280] sm:$0xff]
    %v2925 = vld [vmem:[#allocation7 + $0x288] sm:$0xff]
    %v2926 = vld [vmem:[#allocation7 + $0x290] sm:$0xff]
    %v2927 = vld [vmem:[#allocation7 + $0x298] sm:$0xff]
    %v2928 = vld [vmem:[#allocation7 + $0x2a0] sm:$0xff]
    %v2929 = vld [vmem:[#allocation7 + $0x2a8] sm:$0xff]
    %v2930 = vld [vmem:[#allocation7 + $0x2b0] sm:$0xff]
    %v2931 = vld [vmem:[#allocation7 + $0x2b8] sm:$0xff]
    %v2932 = vld [vmem:[#allocation7 + $0x2c0] sm:$0xff]
    %v2933 = vld [vmem:[#allocation7 + $0x2c8] sm:$0xff]
    %v2934 = vld [vmem:[#allocation7 + $0x2d0] sm:$0xff]
    %v2935 = vld [vmem:[#allocation7 + $0x2d8] sm:$0xff]
    %v2936 = vld [vmem:[#allocation7 + $0x2e0] sm:$0xff]
    %v2937 = vld [vmem:[#allocation7 + $0x2e8] sm:$0xff]
    %v2938 = vld [vmem:[#allocation7 + $0x2f0] sm:$0xff]
    %v2939 = vld [vmem:[#allocation7 + $0x2f8] sm:$0xff]
    %v2940 = vld [vmem:[#allocation7 + $0x300] sm:$0xff]
    %v2941 = vld [vmem:[#allocation7 + $0x308] sm:$0xff]
    %v2942 = vld [vmem:[#allocation7 + $0x310] sm:$0xff]
    %v2943 = vld [vmem:[#allocation7 + $0x318] sm:$0xff]
    %v2944 = vld [vmem:[#allocation7 + $0x320] sm:$0xff]
    %v2945 = vld [vmem:[#allocation7 + $0x328] sm:$0xff]
    %v2946 = vld [vmem:[#allocation7 + $0x330] sm:$0xff]
    %v2947 = vld [vmem:[#allocation7 + $0x338] sm:$0xff]
    %v2948 = vld [vmem:[#allocation7 + $0x340] sm:$0xff]
    %v2949 = vld [vmem:[#allocation7 + $0x348] sm:$0xff]
    %v2950 = vld [vmem:[#allocation7 + $0x350] sm:$0xff]
    %v2951 = vld [vmem:[#allocation7 + $0x358] sm:$0xff]
    %v2952 = vld [vmem:[#allocation7 + $0x360] sm:$0xff]
    %v2953 = vld [vmem:[#allocation7 + $0x368] sm:$0xff]
    %v2954 = vld [vmem:[#allocation7 + $0x370] sm:$0xff]
    %v2955 = vld [vmem:[#allocation7 + $0x378] sm:$0xff]
    %v2956 = vld [vmem:[#allocation7 + $0x380] sm:$0xff]
    %v2957 = vld [vmem:[#allocation7 + $0x388] sm:$0xff]
    %v2958 = vld [vmem:[#allocation7 + $0x390] sm:$0xff]
    %v2959 = vld [vmem:[#allocation7 + $0x398] sm:$0xff]
    %v2960 = vld [vmem:[#allocation7 + $0x3a0] sm:$0xff]
    %v2961 = vld [vmem:[#allocation7 + $0x3a8] sm:$0xff]
    %v2962 = vld [vmem:[#allocation7 + $0x3b0] sm:$0xff]
    %v2963 = vld [vmem:[#allocation7 + $0x3b8] sm:$0xff]
    %v2964 = vld [vmem:[#allocation7 + $0x3c0] sm:$0xff]
    %v2965 = vld [vmem:[#allocation7 + $0x3c8] sm:$0xff]
    %v2966 = vld [vmem:[#allocation7 + $0x3d0] sm:$0xff]
    %v2967 = vld [vmem:[#allocation7 + $0x3d8] sm:$0xff]
    %v2968 = vld [vmem:[#allocation7 + $0x3e0] sm:$0xff]
    %v2969 = vld [vmem:[#allocation7 + $0x3e8] sm:$0xff]
    %v2970 = vld [vmem:[#allocation7 + $0x3f0] sm:$0xff]
    %v2971 = vld [vmem:[#allocation7 + $0x3f8] sm:$0xff]
    %v2972 = vld [vmem:[#allocation7 + $0x400] sm:$0xff]
    %v2973 = vld [vmem:[#allocation7 + $0x408] sm:$0xff]
    %v2974 = vld [vmem:[#allocation7 + $0x410] sm:$0xff]
    %v2975 = vld [vmem:[#allocation7 + $0x418] sm:$0xff]
    %v2976 = vld [vmem:[#allocation7 + $0x420] sm:$0xff]
    %v2977 = vld [vmem:[#allocation7 + $0x428] sm:$0xff]
    %v2978 = vld [vmem:[#allocation7 + $0x430] sm:$0xff]
    %v2979 = vld [vmem:[#allocation7 + $0x438] sm:$0xff]
    %v2980 = vld [vmem:[#allocation7 + $0x440] sm:$0xff]
    %v2981 = vld [vmem:[#allocation7 + $0x448] sm:$0xff]
    %v2982 = vld [vmem:[#allocation7 + $0x450] sm:$0xff]
    %v2983 = vld [vmem:[#allocation7 + $0x458] sm:$0xff]
    %v2984 = vld [vmem:[#allocation7 + $0x460] sm:$0xff]
    %v2985 = vld [vmem:[#allocation7 + $0x468] sm:$0xff]
    %v2986 = vld [vmem:[#allocation7 + $0x470] sm:$0xff]
    %v2987 = vld [vmem:[#allocation7 + $0x478] sm:$0xff]
    %2988 = vmatprep.subr.mxu0 0.0
    %2989 = vmatpush1.msra.mxu0 %v2859
    %2990 = vmatprep.subr.mxu0 0.0
    %2991 = vmatpush1.msra.mxu0 %v2858
    %2992 = vmatprep.subr.mxu0 0.0
    %2993 = vmatpush1.msra.mxu0 %v2857
    %2994 = vmatprep.subr.mxu0 0.0
    %2995 = vmatpush1.msra.mxu0 %v2856
    %2996 = vmatprep.subr.mxu0 0.0
    %2997 = vmatpush1.msra.mxu0 %v2855
    %2998 = vmatprep.subr.mxu0 0.0
    %2999 = vmatpush1.msra.mxu0 %v2854
    %3000 = vmatprep.subr.mxu0 0.0
    %3001 = vmatpush1.msra.mxu0 %v2853
    %3002 = vmatprep.subr.mxu0 0.0
    %3003 = vmatpush1.msra.mxu0 %v2852
    %3004 = vmatprep.subr.mxu0 0.0
    %3005 = vmatpush1.msra.mxu0 %v2851
    %3006 = vmatprep.subr.mxu0 0.0
    %3007 = vmatpush1.msra.mxu0 %v2850
    %3008 = vmatprep.subr.mxu0 0.0
    %3009 = vmatpush1.msra.mxu0 %v2849
    %3010 = vmatprep.subr.mxu0 0.0
    %3011 = vmatpush1.msra.mxu0 %v2848
    %3012 = vmatprep.subr.mxu0 0.0
    %3013 = vmatpush1.msra.mxu0 %v2847
    %3014 = vmatprep.subr.mxu0 0.0
    %3015 = vmatpush1.msra.mxu0 %v2846
    %3016 = vmatprep.subr.mxu0 0.0
    %3017 = vmatpush1.msra.mxu0 %v2845
    %3018 = vmatprep.subr.mxu0 0.0
    %3019 = vmatpush1.msra.mxu0 %v2844
    %3020 = vmatprep.subr.mxu0 0.0
    %3021 = vmatpush2.msra.mxu0 %v2875
    %3022 = vmatprep.subr.mxu0 0.0
    %3023 = vmatpush2.msra.mxu0 %v2874
    %3024 = vmatprep.subr.mxu0 0.0
    %3025 = vmatpush2.msra.mxu0 %v2873
    %3026 = vmatprep.subr.mxu0 0.0
    %3027 = vmatpush2.msra.mxu0 %v2872
    %3028 = vmatprep.subr.mxu0 0.0
    %3029 = vmatpush2.msra.mxu0 %v2871
    %3030 = vmatprep.subr.mxu0 0.0
    %3031 = vmatpush2.msra.mxu0 %v2870
    %3032 = vmatprep.subr.mxu0 0.0
    %3033 = vmatpush2.msra.mxu0 %v2869
    %3034 = vmatprep.subr.mxu0 0.0
    %3035 = vmatpush2.msra.mxu0 %v2868
    %3036 = vmatprep.subr.mxu0 0.0
    %3037 = vmatpush2.msra.mxu0 %v2867
    %3038 = vmatprep.subr.mxu0 0.0
    %3039 = vmatpush2.msra.mxu0 %v2866
    %3040 = vmatprep.subr.mxu0 0.0
    %3041 = vmatpush2.msra.mxu0 %v2865
    %3042 = vmatprep.subr.mxu0 0.0
    %3043 = vmatpush2.msra.mxu0 %v2864
    %3044 = vmatprep.subr.mxu0 0.0
    %3045 = vmatpush2.msra.mxu0 %v2863
    %3046 = vmatprep.subr.mxu0 0.0
    %3047 = vmatpush2.msra.mxu0 %v2862
    %3048 = vmatprep.subr.mxu0 0.0
    %3049 = vmatpush2.msra.mxu0 %v2861
    %3050 = vmatprep.subr.mxu0 0.0
    %3051 = vmatpush2.msra.mxu0 %v2860
    %3052 = vmatprep.mubr.f32.mxu0 %v2269
    %3053 = vmatmul.mubr.f32.gmra.mxu0 %v2268
    %v3054 = vpop.f32.mrf.mxu0
    %v3055 = vadd.f32 0.0, %v3054
    %v3056 = vpop.f32.mrf.mxu0
    %3057 = vmatprep.mubr.f32.mxu0 %v2278
    %3058 = vmatmul.mubr.f32.gmra.mxu0 %v2277
    %v3059 = vpop.f32.mrf.mxu0
    %v3060 = vadd.f32 0.0, %v3059
    %v3061 = vpop.f32.mrf.mxu0
    %3062 = vmatprep.mubr.f32.mxu0 %v2287
    %3063 = vmatmul.mubr.f32.gmra.mxu0 %v2286
    %v3064 = vpop.f32.mrf.mxu0
    %v3065 = vadd.f32 0.0, %v3064
    %v3066 = vpop.f32.mrf.mxu0
    %3067 = vmatprep.mubr.f32.mxu0 %v2296
    %3068 = vmatmul.mubr.f32.gmra.mxu0 %v2295
    %v3069 = vpop.f32.mrf.mxu0
    %v3070 = vadd.f32 0.0, %v3069
    %v3071 = vpop.f32.mrf.mxu0
    %3072 = vmatprep.mubr.f32.mxu0 %v2305
    %3073 = vmatmul.mubr.f32.gmra.mxu0 %v2304
    %v3074 = vpop.f32.mrf.mxu0
    %v3075 = vadd.f32 0.0, %v3074
    %v3076 = vpop.f32.mrf.mxu0
    %3077 = vmatprep.mubr.f32.mxu0 %v2314
    %3078 = vmatmul.mubr.f32.gmra.mxu0 %v2313
    %v3079 = vpop.f32.mrf.mxu0
    %v3080 = vadd.f32 0.0, %v3079
    %v3081 = vpop.f32.mrf.mxu0
    %3082 = vmatprep.mubr.f32.mxu0 %v2323
    %3083 = vmatmul.mubr.f32.gmra.mxu0 %v2322
    %v3084 = vpop.f32.mrf.mxu0
    %v3085 = vadd.f32 0.0, %v3084
    %v3086 = vpop.f32.mrf.mxu0
    %3087 = vmatprep.mubr.f32.mxu0 %v2332
    %3088 = vmatmul.mubr.f32.gmra.mxu0 %v2331
    %v3089 = vpop.f32.mrf.mxu0
    %v3090 = vadd.f32 0.0, %v3089
    %v3091 = vpop.f32.mrf.mxu0
    %3092 = vmatprep.mubr.f32.mxu0 %v2341
    %3093 = vmatmul.mubr.f32.gmra.mxu0 %v2340
    %v3094 = vpop.f32.mrf.mxu0
    %v3095 = vadd.f32 0.0, %v3094
    %v3096 = vpop.f32.mrf.mxu0
    %3097 = vmatprep.mubr.f32.mxu0 %v2350
    %3098 = vmatmul.mubr.f32.gmra.mxu0 %v2349
    %v3099 = vpop.f32.mrf.mxu0
    %v3100 = vadd.f32 0.0, %v3099
    %v3101 = vpop.f32.mrf.mxu0
    %3102 = vmatprep.mubr.f32.mxu0 %v2359
    %3103 = vmatmul.mubr.f32.gmra.mxu0 %v2358
    %v3104 = vpop.f32.mrf.mxu0
    %v3105 = vadd.f32 0.0, %v3104
    %v3106 = vpop.f32.mrf.mxu0
    %3107 = vmatprep.mubr.f32.mxu0 %v2368
    %3108 = vmatmul.mubr.f32.gmra.mxu0 %v2367
    %v3109 = vpop.f32.mrf.mxu0
    %v3110 = vadd.f32 0.0, %v3109
    %v3111 = vpop.f32.mrf.mxu0
    %3112 = vmatprep.mubr.f32.mxu0 %v2377
    %3113 = vmatmul.mubr.f32.gmra.mxu0 %v2376
    %v3114 = vpop.f32.mrf.mxu0
    %v3115 = vadd.f32 0.0, %v3114
    %v3116 = vpop.f32.mrf.mxu0
    %3117 = vmatprep.mubr.f32.mxu0 %v2386
    %3118 = vmatmul.mubr.f32.gmra.mxu0 %v2385
    %v3119 = vpop.f32.mrf.mxu0
    %v3120 = vadd.f32 0.0, %v3119
    %v3121 = vpop.f32.mrf.mxu0
    %3122 = vmatprep.mubr.f32.mxu0 %v2395
    %3123 = vmatmul.mubr.f32.gmra.mxu0 %v2394
    %v3124 = vpop.f32.mrf.mxu0
    %v3125 = vadd.f32 0.0, %v3124
    %v3126 = vpop.f32.mrf.mxu0
    %3127 = vmatprep.mubr.f32.mxu0 %v2404
    %3128 = vmatmul.mubr.f32.gmra.mxu0 %v2403
    %v3129 = vpop.f32.mrf.mxu0
    %v3130 = vadd.f32 0.0, %v3129
    %v3131 = vpop.f32.mrf.mxu0
    %3132 = vmatprep.mubr.f32.mxu0 %v2413
    %3133 = vmatmul.mubr.f32.gmra.mxu0 %v2412
    %v3134 = vpop.f32.mrf.mxu0
    %v3135 = vadd.f32 0.0, %v3134
    %v3136 = vpop.f32.mrf.mxu0
    %3137 = vmatprep.mubr.f32.mxu0 %v2422
    %3138 = vmatmul.mubr.f32.gmra.mxu0 %v2421
    %v3139 = vpop.f32.mrf.mxu0
    %v3140 = vadd.f32 0.0, %v3139
    %v3141 = vpop.f32.mrf.mxu0
    %3142 = vmatprep.mubr.f32.mxu0 %v2431
    %3143 = vmatmul.mubr.f32.gmra.mxu0 %v2430
    %v3144 = vpop.f32.mrf.mxu0
    %v3145 = vadd.f32 0.0, %v3144
    %v3146 = vpop.f32.mrf.mxu0
    %3147 = vmatprep.mubr.f32.mxu0 %v2440
    %3148 = vmatmul.mubr.f32.gmra.mxu0 %v2439
    %v3149 = vpop.f32.mrf.mxu0
    %v3150 = vadd.f32 0.0, %v3149
    %v3151 = vpop.f32.mrf.mxu0
    %3152 = vmatprep.mubr.f32.mxu0 %v2449
    %3153 = vmatmul.mubr.f32.gmra.mxu0 %v2448
    %v3154 = vpop.f32.mrf.mxu0
    %v3155 = vadd.f32 0.0, %v3154
    %v3156 = vpop.f32.mrf.mxu0
    %3157 = vmatprep.mubr.f32.mxu0 %v2458
    %3158 = vmatmul.mubr.f32.gmra.mxu0 %v2457
    %v3159 = vpop.f32.mrf.mxu0
    %v3160 = vadd.f32 0.0, %v3159
    %v3161 = vpop.f32.mrf.mxu0
    %3162 = vmatprep.mubr.f32.mxu0 %v2467
    %3163 = vmatmul.mubr.f32.gmra.mxu0 %v2466
    %v3164 = vpop.f32.mrf.mxu0
    %v3165 = vadd.f32 0.0, %v3164
    %v3166 = vpop.f32.mrf.mxu0
    %3167 = vmatprep.mubr.f32.mxu0 %v2476
    %3168 = vmatmul.mubr.f32.gmra.mxu0 %v2475
    %v3169 = vpop.f32.mrf.mxu0
    %v3170 = vadd.f32 0.0, %v3169
    %v3171 = vpop.f32.mrf.mxu0
    %3172 = vmatprep.mubr.f32.mxu0 %v2485
    %3173 = vmatmul.mubr.f32.gmra.mxu0 %v2484
    %v3174 = vpop.f32.mrf.mxu0
    %v3175 = vadd.f32 0.0, %v3174
    %v3176 = vpop.f32.mrf.mxu0
    %3177 = vmatprep.mubr.f32.mxu0 %v2494
    %3178 = vmatmul.mubr.f32.gmra.mxu0 %v2493
    %v3179 = vpop.f32.mrf.mxu0
    %v3180 = vadd.f32 0.0, %v3179
    %v3181 = vpop.f32.mrf.mxu0
    %3182 = vmatprep.mubr.f32.mxu0 %v2503
    %3183 = vmatmul.mubr.f32.gmra.mxu0 %v2502
    %v3184 = vpop.f32.mrf.mxu0
    %v3185 = vadd.f32 0.0, %v3184
    %v3186 = vpop.f32.mrf.mxu0
    %3187 = vmatprep.mubr.f32.mxu0 %v2512
    %3188 = vmatmul.mubr.f32.gmra.mxu0 %v2511
    %v3189 = vpop.f32.mrf.mxu0
    %v3190 = vadd.f32 0.0, %v3189
    %v3191 = vpop.f32.mrf.mxu0
    %3192 = vmatprep.mubr.f32.mxu0 %v2521
    %3193 = vmatmul.mubr.f32.gmra.mxu0 %v2520
    %v3194 = vpop.f32.mrf.mxu0
    %v3195 = vadd.f32 0.0, %v3194
    %v3196 = vpop.f32.mrf.mxu0
    %3197 = vmatprep.mubr.f32.mxu0 %v2530
    %3198 = vmatmul.mubr.f32.gmra.mxu0 %v2529
    %v3199 = vpop.f32.mrf.mxu0
    %v3200 = vadd.f32 0.0, %v3199
    %v3201 = vpop.f32.mrf.mxu0
    %3202 = vmatprep.mubr.f32.mxu0 %v2539
    %3203 = vmatmul.mubr.f32.gmra.mxu0 %v2538
    %v3204 = vpop.f32.mrf.mxu0
    %v3205 = vadd.f32 0.0, %v3204
    %v3206 = vpop.f32.mrf.mxu0
    %3207 = vmatprep.mubr.f32.mxu0 %v2548
    %3208 = vmatmul.mubr.f32.gmra.mxu0 %v2547
    %v3209 = vpop.f32.mrf.mxu0
    %v3210 = vadd.f32 0.0, %v3209
    %v3211 = vpop.f32.mrf.mxu0
    %3212 = vmatprep.mubr.f32.mxu0 %v2557
    %3213 = vmatmul.mubr.f32.gmra.mxu0 %v2556
    %v3214 = vpop.f32.mrf.mxu0
    %v3215 = vadd.f32 0.0, %v3214
    %v3216 = vpop.f32.mrf.mxu0
    %3217 = vmatprep.mubr.f32.mxu0 %v2566
    %3218 = vmatmul.mubr.f32.gmra.mxu0 %v2565
    %v3219 = vpop.f32.mrf.mxu0
    %v3220 = vadd.f32 0.0, %v3219
    %v3221 = vpop.f32.mrf.mxu0
    %3222 = vmatprep.mubr.f32.mxu0 %v2575
    %3223 = vmatmul.mubr.f32.gmra.mxu0 %v2574
    %v3224 = vpop.f32.mrf.mxu0
    %v3225 = vadd.f32 0.0, %v3224
    %v3226 = vpop.f32.mrf.mxu0
    %3227 = vmatprep.mubr.f32.mxu0 %v2584
    %3228 = vmatmul.mubr.f32.gmra.mxu0 %v2583
    %v3229 = vpop.f32.mrf.mxu0
    %v3230 = vadd.f32 0.0, %v3229
    %v3231 = vpop.f32.mrf.mxu0
    %3232 = vmatprep.mubr.f32.mxu0 %v2593
    %3233 = vmatmul.mubr.f32.gmra.mxu0 %v2592
    %v3234 = vpop.f32.mrf.mxu0
    %v3235 = vadd.f32 0.0, %v3234
    %v3236 = vpop.f32.mrf.mxu0
    %3237 = vmatprep.mubr.f32.mxu0 %v2602
    %3238 = vmatmul.mubr.f32.gmra.mxu0 %v2601
    %v3239 = vpop.f32.mrf.mxu0
    %v3240 = vadd.f32 0.0, %v3239
    %v3241 = vpop.f32.mrf.mxu0
    %3242 = vmatprep.mubr.f32.mxu0 %v2611
    %3243 = vmatmul.mubr.f32.gmra.mxu0 %v2610
    %v3244 = vpop.f32.mrf.mxu0
    %v3245 = vadd.f32 0.0, %v3244
    %v3246 = vpop.f32.mrf.mxu0
    %3247 = vmatprep.mubr.f32.mxu0 %v2620
    %3248 = vmatmul.mubr.f32.gmra.mxu0 %v2619
    %v3249 = vpop.f32.mrf.mxu0
    %v3250 = vadd.f32 0.0, %v3249
    %v3251 = vpop.f32.mrf.mxu0
    %3252 = vmatprep.mubr.f32.mxu0 %v2629
    %3253 = vmatmul.mubr.f32.gmra.mxu0 %v2628
    %v3254 = vpop.f32.mrf.mxu0
    %v3255 = vadd.f32 0.0, %v3254
    %v3256 = vpop.f32.mrf.mxu0
    %3257 = vmatprep.mubr.f32.mxu0 %v2638
    %3258 = vmatmul.mubr.f32.gmra.mxu0 %v2637
    %v3259 = vpop.f32.mrf.mxu0
    %v3260 = vadd.f32 0.0, %v3259
    %v3261 = vpop.f32.mrf.mxu0
    %3262 = vmatprep.mubr.f32.mxu0 %v2647
    %3263 = vmatmul.mubr.f32.gmra.mxu0 %v2646
    %v3264 = vpop.f32.mrf.mxu0
    %v3265 = vadd.f32 0.0, %v3264
    %v3266 = vpop.f32.mrf.mxu0
    %3267 = vmatprep.mubr.f32.mxu0 %v2656
    %3268 = vmatmul.mubr.f32.gmra.mxu0 %v2655
    %v3269 = vpop.f32.mrf.mxu0
    %v3270 = vadd.f32 0.0, %v3269
    %v3271 = vpop.f32.mrf.mxu0
    %3272 = vmatprep.mubr.f32.mxu0 %v2665
    %3273 = vmatmul.mubr.f32.gmra.mxu0 %v2664
    %v3274 = vpop.f32.mrf.mxu0
    %v3275 = vadd.f32 0.0, %v3274
    %v3276 = vpop.f32.mrf.mxu0
    %3277 = vmatprep.mubr.f32.mxu0 %v2674
    %3278 = vmatmul.mubr.f32.gmra.mxu0 %v2673
    %v3279 = vpop.f32.mrf.mxu0
    %v3280 = vadd.f32 0.0, %v3279
    %v3281 = vpop.f32.mrf.mxu0
    %3282 = vmatprep.mubr.f32.mxu0 %v2683
    %3283 = vmatmul.mubr.f32.gmra.mxu0 %v2682
    %v3284 = vpop.f32.mrf.mxu0
    %v3285 = vadd.f32 0.0, %v3284
    %v3286 = vpop.f32.mrf.mxu0
    %3287 = vmatprep.mubr.f32.mxu0 %v2692
    %3288 = vmatmul.mubr.f32.gmra.mxu0 %v2691
    %v3289 = vpop.f32.mrf.mxu0
    %v3290 = vadd.f32 0.0, %v3289
    %v3291 = vpop.f32.mrf.mxu0
    %3292 = vmatprep.mubr.f32.mxu0 %v2701
    %3293 = vmatmul.mubr.f32.gmra.mxu0 %v2700
    %v3294 = vpop.f32.mrf.mxu0
    %v3295 = vadd.f32 0.0, %v3294
    %v3296 = vpop.f32.mrf.mxu0
    %3297 = vmatprep.mubr.f32.mxu0 %v2710
    %3298 = vmatmul.mubr.f32.gmra.mxu0 %v2709
    %v3299 = vpop.f32.mrf.mxu0
    %v3300 = vadd.f32 0.0, %v3299
    %v3301 = vpop.f32.mrf.mxu0
    %3302 = vmatprep.mubr.f32.mxu0 %v2719
    %3303 = vmatmul.mubr.f32.gmra.mxu0 %v2718
    %v3304 = vpop.f32.mrf.mxu0
    %v3305 = vadd.f32 0.0, %v3304
    %v3306 = vpop.f32.mrf.mxu0
    %3307 = vmatprep.mubr.f32.mxu0 %v2728
    %3308 = vmatmul.mubr.f32.gmra.mxu0 %v2727
    %v3309 = vpop.f32.mrf.mxu0
    %v3310 = vadd.f32 0.0, %v3309
    %v3311 = vpop.f32.mrf.mxu0
    %3312 = vmatprep.mubr.f32.mxu0 %v2737
    %3313 = vmatmul.mubr.f32.gmra.mxu0 %v2736
    %v3314 = vpop.f32.mrf.mxu0
    %v3315 = vadd.f32 0.0, %v3314
    %v3316 = vpop.f32.mrf.mxu0
    %3317 = vmatprep.mubr.f32.mxu0 %v2746
    %3318 = vmatmul.mubr.f32.gmra.mxu0 %v2745
    %v3319 = vpop.f32.mrf.mxu0
    %v3320 = vadd.f32 0.0, %v3319
    %v3321 = vpop.f32.mrf.mxu0
    %3322 = vmatprep.mubr.f32.mxu0 %v2755
    %3323 = vmatmul.mubr.f32.gmra.mxu0 %v2754
    %v3324 = vpop.f32.mrf.mxu0
    %v3325 = vadd.f32 0.0, %v3324
    %v3326 = vpop.f32.mrf.mxu0
    %3327 = vmatprep.mubr.f32.mxu0 %v2764
    %3328 = vmatmul.mubr.f32.gmra.mxu0 %v2763
    %v3329 = vpop.f32.mrf.mxu0
    %v3330 = vadd.f32 0.0, %v3329
    %v3331 = vpop.f32.mrf.mxu0
    %3332 = vmatprep.mubr.f32.mxu0 %v2773
    %3333 = vmatmul.mubr.f32.gmra.mxu0 %v2772
    %v3334 = vpop.f32.mrf.mxu0
    %v3335 = vadd.f32 0.0, %v3334
    %v3336 = vpop.f32.mrf.mxu0
    %3337 = vmatprep.mubr.f32.mxu0 %v2782
    %3338 = vmatmul.mubr.f32.gmra.mxu0 %v2781
    %v3339 = vpop.f32.mrf.mxu0
    %v3340 = vadd.f32 0.0, %v3339
    %v3341 = vpop.f32.mrf.mxu0
    %3342 = vmatprep.mubr.f32.mxu0 %v2791
    %3343 = vmatmul.mubr.f32.gmra.mxu0 %v2790
    %v3344 = vpop.f32.mrf.mxu0
    %v3345 = vadd.f32 0.0, %v3344
    %v3346 = vpop.f32.mrf.mxu0
    %3347 = vmatprep.mubr.f32.mxu0 %v2800
    %3348 = vmatmul.mubr.f32.gmra.mxu0 %v2799
    %v3349 = vpop.f32.mrf.mxu0
    %v3350 = vadd.f32 0.0, %v3349
    %v3351 = vpop.f32.mrf.mxu0
    %3352 = vmatprep.mubr.f32.mxu0 %v2809
    %3353 = vmatmul.mubr.f32.gmra.mxu0 %v2808
    %v3354 = vpop.f32.mrf.mxu0
    %v3355 = vadd.f32 0.0, %v3354
    %v3356 = vpop.f32.mrf.mxu0
    %3357 = vmatprep.mubr.f32.mxu0 %v2818
    %3358 = vmatmul.mubr.f32.gmra.mxu0 %v2817
    %v3359 = vpop.f32.mrf.mxu0
    %v3360 = vadd.f32 0.0, %v3359
    %v3361 = vpop.f32.mrf.mxu0
    %3362 = vmatprep.mubr.f32.mxu0 %v2827
    %3363 = vmatmul.mubr.f32.gmra.mxu0 %v2826
    %v3364 = vpop.f32.mrf.mxu0
    %v3365 = vadd.f32 0.0, %v3364
    %v3366 = vpop.f32.mrf.mxu0
    %3367 = vmatprep.mubr.f32.mxu0 %v2836
    %3368 = vmatmul.mubr.f32.gmra.mxu0 %v2835
    %v3369 = vpop.f32.mrf.mxu0
    %v3370 = vadd.f32 0.0, %v3369
    %v3371 = vpop.f32.mrf.mxu0
    %3372 = vdwg.mxu0
    %3373 = vmatprep.subr.mxu0 0.0
    %3374 = vmatpush1.msra.mxu0 %v2891
    %3375 = vmatprep.subr.mxu0 0.0
    %3376 = vmatpush1.msra.mxu0 %v2890
    %3377 = vmatprep.subr.mxu0 0.0
    %3378 = vmatpush1.msra.mxu0 %v2889
    %3379 = vmatprep.subr.mxu0 0.0
    %3380 = vmatpush1.msra.mxu0 %v2888
    %3381 = vmatprep.subr.mxu0 0.0
    %3382 = vmatpush1.msra.mxu0 %v2887
    %3383 = vmatprep.subr.mxu0 0.0
    %3384 = vmatpush1.msra.mxu0 %v2886
    %3385 = vmatprep.subr.mxu0 0.0
    %3386 = vmatpush1.msra.mxu0 %v2885
    %3387 = vmatprep.subr.mxu0 0.0
    %3388 = vmatpush1.msra.mxu0 %v2884
    %3389 = vmatprep.subr.mxu0 0.0
    %3390 = vmatpush1.msra.mxu0 %v2883
    %3391 = vmatprep.subr.mxu0 0.0
    %3392 = vmatpush1.msra.mxu0 %v2882
    %3393 = vmatprep.subr.mxu0 0.0
    %3394 = vmatpush1.msra.mxu0 %v2881
    %3395 = vmatprep.subr.mxu0 0.0
    %3396 = vmatpush1.msra.mxu0 %v2880
    %3397 = vmatprep.subr.mxu0 0.0
    %3398 = vmatpush1.msra.mxu0 %v2879
    %3399 = vmatprep.subr.mxu0 0.0
    %3400 = vmatpush1.msra.mxu0 %v2878
    %3401 = vmatprep.subr.mxu0 0.0
    %3402 = vmatpush1.msra.mxu0 %v2877
    %3403 = vmatprep.subr.mxu0 0.0
    %3404 = vmatpush1.msra.mxu0 %v2876
    %3405 = vmatprep.subr.mxu0 0.0
    %3406 = vmatpush2.msra.mxu0 %v2907
    %3407 = vmatprep.subr.mxu0 0.0
    %3408 = vmatpush2.msra.mxu0 %v2906
    %3409 = vmatprep.subr.mxu0 0.0
    %3410 = vmatpush2.msra.mxu0 %v2905
    %3411 = vmatprep.subr.mxu0 0.0
    %3412 = vmatpush2.msra.mxu0 %v2904
    %3413 = vmatprep.subr.mxu0 0.0
    %3414 = vmatpush2.msra.mxu0 %v2903
    %3415 = vmatprep.subr.mxu0 0.0
    %3416 = vmatpush2.msra.mxu0 %v2902
    %3417 = vmatprep.subr.mxu0 0.0
    %3418 = vmatpush2.msra.mxu0 %v2901
    %3419 = vmatprep.subr.mxu0 0.0
    %3420 = vmatpush2.msra.mxu0 %v2900
    %3421 = vmatprep.subr.mxu0 0.0
    %3422 = vmatpush2.msra.mxu0 %v2899
    %3423 = vmatprep.subr.mxu0 0.0
    %3424 = vmatpush2.msra.mxu0 %v2898
    %3425 = vmatprep.subr.mxu0 0.0
    %3426 = vmatpush2.msra.mxu0 %v2897
    %3427 = vmatprep.subr.mxu0 0.0
    %3428 = vmatpush2.msra.mxu0 %v2896
    %3429 = vmatprep.subr.mxu0 0.0
    %3430 = vmatpush2.msra.mxu0 %v2895
    %3431 = vmatprep.subr.mxu0 0.0
    %3432 = vmatpush2.msra.mxu0 %v2894
    %3433 = vmatprep.subr.mxu0 0.0
    %3434 = vmatpush2.msra.mxu0 %v2893
    %3435 = vmatprep.subr.mxu0 0.0
    %3436 = vmatpush2.msra.mxu0 %v2892
    %3437 = vmatprep.mubr.f32.mxu0 %v2271
    %3438 = vmatmul.mubr.f32.gmra.mxu0 %v2270
    %v3439 = vpop.f32.mrf.mxu0
    %v3440 = vadd.f32 %v3055, %v3439
    %v3441 = vpop.f32.mrf.mxu0
    %3442 = vmatprep.mubr.f32.mxu0 %v2280
    %3443 = vmatmul.mubr.f32.gmra.mxu0 %v2279
    %v3444 = vpop.f32.mrf.mxu0
    %v3445 = vadd.f32 %v3060, %v3444
    %v3446 = vpop.f32.mrf.mxu0
    %3447 = vmatprep.mubr.f32.mxu0 %v2289
    %3448 = vmatmul.mubr.f32.gmra.mxu0 %v2288
    %v3449 = vpop.f32.mrf.mxu0
    %v3450 = vadd.f32 %v3065, %v3449
    %v3451 = vpop.f32.mrf.mxu0
    %3452 = vmatprep.mubr.f32.mxu0 %v2298
    %3453 = vmatmul.mubr.f32.gmra.mxu0 %v2297
    %v3454 = vpop.f32.mrf.mxu0
    %v3455 = vadd.f32 %v3070, %v3454
    %v3456 = vpop.f32.mrf.mxu0
    %3457 = vmatprep.mubr.f32.mxu0 %v2307
    %3458 = vmatmul.mubr.f32.gmra.mxu0 %v2306
    %v3459 = vpop.f32.mrf.mxu0
    %v3460 = vadd.f32 %v3075, %v3459
    %v3461 = vpop.f32.mrf.mxu0
    %3462 = vmatprep.mubr.f32.mxu0 %v2316
    %3463 = vmatmul.mubr.f32.gmra.mxu0 %v2315
    %v3464 = vpop.f32.mrf.mxu0
    %v3465 = vadd.f32 %v3080, %v3464
    %v3466 = vpop.f32.mrf.mxu0
    %3467 = vmatprep.mubr.f32.mxu0 %v2325
    %3468 = vmatmul.mubr.f32.gmra.mxu0 %v2324
    %v3469 = vpop.f32.mrf.mxu0
    %v3470 = vadd.f32 %v3085, %v3469
    %v3471 = vpop.f32.mrf.mxu0
    %3472 = vmatprep.mubr.f32.mxu0 %v2334
    %3473 = vmatmul.mubr.f32.gmra.mxu0 %v2333
    %v3474 = vpop.f32.mrf.mxu0
    %v3475 = vadd.f32 %v3090, %v3474
    %v3476 = vpop.f32.mrf.mxu0
    %3477 = vmatprep.mubr.f32.mxu0 %v2343
    %3478 = vmatmul.mubr.f32.gmra.mxu0 %v2342
    %v3479 = vpop.f32.mrf.mxu0
    %v3480 = vadd.f32 %v3095, %v3479
    %v3481 = vpop.f32.mrf.mxu0
    %3482 = vmatprep.mubr.f32.mxu0 %v2352
    %3483 = vmatmul.mubr.f32.gmra.mxu0 %v2351
    %v3484 = vpop.f32.mrf.mxu0
    %v3485 = vadd.f32 %v3100, %v3484
    %v3486 = vpop.f32.mrf.mxu0
    %3487 = vmatprep.mubr.f32.mxu0 %v2361
    %3488 = vmatmul.mubr.f32.gmra.mxu0 %v2360
    %v3489 = vpop.f32.mrf.mxu0
    %v3490 = vadd.f32 %v3105, %v3489
    %v3491 = vpop.f32.mrf.mxu0
    %3492 = vmatprep.mubr.f32.mxu0 %v2370
    %3493 = vmatmul.mubr.f32.gmra.mxu0 %v2369
    %v3494 = vpop.f32.mrf.mxu0
    %v3495 = vadd.f32 %v3110, %v3494
    %v3496 = vpop.f32.mrf.mxu0
    %3497 = vmatprep.mubr.f32.mxu0 %v2379
    %3498 = vmatmul.mubr.f32.gmra.mxu0 %v2378
    %v3499 = vpop.f32.mrf.mxu0
    %v3500 = vadd.f32 %v3115, %v3499
    %v3501 = vpop.f32.mrf.mxu0
    %3502 = vmatprep.mubr.f32.mxu0 %v2388
    %3503 = vmatmul.mubr.f32.gmra.mxu0 %v2387
    %v3504 = vpop.f32.mrf.mxu0
    %v3505 = vadd.f32 %v3120, %v3504
    %v3506 = vpop.f32.mrf.mxu0
    %3507 = vmatprep.mubr.f32.mxu0 %v2397
    %3508 = vmatmul.mubr.f32.gmra.mxu0 %v2396
    %v3509 = vpop.f32.mrf.mxu0
    %v3510 = vadd.f32 %v3125, %v3509
    %v3511 = vpop.f32.mrf.mxu0
    %3512 = vmatprep.mubr.f32.mxu0 %v2406
    %3513 = vmatmul.mubr.f32.gmra.mxu0 %v2405
    %v3514 = vpop.f32.mrf.mxu0
    %v3515 = vadd.f32 %v3130, %v3514
    %v3516 = vpop.f32.mrf.mxu0
    %3517 = vmatprep.mubr.f32.mxu0 %v2415
    %3518 = vmatmul.mubr.f32.gmra.mxu0 %v2414
    %v3519 = vpop.f32.mrf.mxu0
    %v3520 = vadd.f32 %v3135, %v3519
    %v3521 = vpop.f32.mrf.mxu0
    %3522 = vmatprep.mubr.f32.mxu0 %v2424
    %3523 = vmatmul.mubr.f32.gmra.mxu0 %v2423
    %v3524 = vpop.f32.mrf.mxu0
    %v3525 = vadd.f32 %v3140, %v3524
    %v3526 = vpop.f32.mrf.mxu0
    %3527 = vmatprep.mubr.f32.mxu0 %v2433
    %3528 = vmatmul.mubr.f32.gmra.mxu0 %v2432
    %v3529 = vpop.f32.mrf.mxu0
    %v3530 = vadd.f32 %v3145, %v3529
    %v3531 = vpop.f32.mrf.mxu0
    %3532 = vmatprep.mubr.f32.mxu0 %v2442
    %3533 = vmatmul.mubr.f32.gmra.mxu0 %v2441
    %v3534 = vpop.f32.mrf.mxu0
    %v3535 = vadd.f32 %v3150, %v3534
    %v3536 = vpop.f32.mrf.mxu0
    %3537 = vmatprep.mubr.f32.mxu0 %v2451
    %3538 = vmatmul.mubr.f32.gmra.mxu0 %v2450
    %v3539 = vpop.f32.mrf.mxu0
    %v3540 = vadd.f32 %v3155, %v3539
    %v3541 = vpop.f32.mrf.mxu0
    %3542 = vmatprep.mubr.f32.mxu0 %v2460
    %3543 = vmatmul.mubr.f32.gmra.mxu0 %v2459
    %v3544 = vpop.f32.mrf.mxu0
    %v3545 = vadd.f32 %v3160, %v3544
    %v3546 = vpop.f32.mrf.mxu0
    %3547 = vmatprep.mubr.f32.mxu0 %v2469
    %3548 = vmatmul.mubr.f32.gmra.mxu0 %v2468
    %v3549 = vpop.f32.mrf.mxu0
    %v3550 = vadd.f32 %v3165, %v3549
    %v3551 = vpop.f32.mrf.mxu0
    %3552 = vmatprep.mubr.f32.mxu0 %v2478
    %3553 = vmatmul.mubr.f32.gmra.mxu0 %v2477
    %v3554 = vpop.f32.mrf.mxu0
    %v3555 = vadd.f32 %v3170, %v3554
    %v3556 = vpop.f32.mrf.mxu0
    %3557 = vmatprep.mubr.f32.mxu0 %v2487
    %3558 = vmatmul.mubr.f32.gmra.mxu0 %v2486
    %v3559 = vpop.f32.mrf.mxu0
    %v3560 = vadd.f32 %v3175, %v3559
    %v3561 = vpop.f32.mrf.mxu0
    %3562 = vmatprep.mubr.f32.mxu0 %v2496
    %3563 = vmatmul.mubr.f32.gmra.mxu0 %v2495
    %v3564 = vpop.f32.mrf.mxu0
    %v3565 = vadd.f32 %v3180, %v3564
    %v3566 = vpop.f32.mrf.mxu0
    %3567 = vmatprep.mubr.f32.mxu0 %v2505
    %3568 = vmatmul.mubr.f32.gmra.mxu0 %v2504
    %v3569 = vpop.f32.mrf.mxu0
    %v3570 = vadd.f32 %v3185, %v3569
    %v3571 = vpop.f32.mrf.mxu0
    %3572 = vmatprep.mubr.f32.mxu0 %v2514
    %3573 = vmatmul.mubr.f32.gmra.mxu0 %v2513
    %v3574 = vpop.f32.mrf.mxu0
    %v3575 = vadd.f32 %v3190, %v3574
    %v3576 = vpop.f32.mrf.mxu0
    %3577 = vmatprep.mubr.f32.mxu0 %v2523
    %3578 = vmatmul.mubr.f32.gmra.mxu0 %v2522
    %v3579 = vpop.f32.mrf.mxu0
    %v3580 = vadd.f32 %v3195, %v3579
    %v3581 = vpop.f32.mrf.mxu0
    %3582 = vmatprep.mubr.f32.mxu0 %v2532
    %3583 = vmatmul.mubr.f32.gmra.mxu0 %v2531
    %v3584 = vpop.f32.mrf.mxu0
    %v3585 = vadd.f32 %v3200, %v3584
    %v3586 = vpop.f32.mrf.mxu0
    %3587 = vmatprep.mubr.f32.mxu0 %v2541
    %3588 = vmatmul.mubr.f32.gmra.mxu0 %v2540
    %v3589 = vpop.f32.mrf.mxu0
    %v3590 = vadd.f32 %v3205, %v3589
    %v3591 = vpop.f32.mrf.mxu0
    %3592 = vmatprep.mubr.f32.mxu0 %v2550
    %3593 = vmatmul.mubr.f32.gmra.mxu0 %v2549
    %v3594 = vpop.f32.mrf.mxu0
    %v3595 = vadd.f32 %v3210, %v3594
    %v3596 = vpop.f32.mrf.mxu0
    %3597 = vmatprep.mubr.f32.mxu0 %v2559
    %3598 = vmatmul.mubr.f32.gmra.mxu0 %v2558
    %v3599 = vpop.f32.mrf.mxu0
    %v3600 = vadd.f32 %v3215, %v3599
    %v3601 = vpop.f32.mrf.mxu0
    %3602 = vmatprep.mubr.f32.mxu0 %v2568
    %3603 = vmatmul.mubr.f32.gmra.mxu0 %v2567
    %v3604 = vpop.f32.mrf.mxu0
    %v3605 = vadd.f32 %v3220, %v3604
    %v3606 = vpop.f32.mrf.mxu0
    %3607 = vmatprep.mubr.f32.mxu0 %v2577
    %3608 = vmatmul.mubr.f32.gmra.mxu0 %v2576
    %v3609 = vpop.f32.mrf.mxu0
    %v3610 = vadd.f32 %v3225, %v3609
    %v3611 = vpop.f32.mrf.mxu0
    %3612 = vmatprep.mubr.f32.mxu0 %v2586
    %3613 = vmatmul.mubr.f32.gmra.mxu0 %v2585
    %v3614 = vpop.f32.mrf.mxu0
    %v3615 = vadd.f32 %v3230, %v3614
    %v3616 = vpop.f32.mrf.mxu0
    %3617 = vmatprep.mubr.f32.mxu0 %v2595
    %3618 = vmatmul.mubr.f32.gmra.mxu0 %v2594
    %v3619 = vpop.f32.mrf.mxu0
    %v3620 = vadd.f32 %v3235, %v3619
    %v3621 = vpop.f32.mrf.mxu0
    %3622 = vmatprep.mubr.f32.mxu0 %v2604
    %3623 = vmatmul.mubr.f32.gmra.mxu0 %v2603
    %v3624 = vpop.f32.mrf.mxu0
    %v3625 = vadd.f32 %v3240, %v3624
    %v3626 = vpop.f32.mrf.mxu0
    %3627 = vmatprep.mubr.f32.mxu0 %v2613
    %3628 = vmatmul.mubr.f32.gmra.mxu0 %v2612
    %v3629 = vpop.f32.mrf.mxu0
    %v3630 = vadd.f32 %v3245, %v3629
    %v3631 = vpop.f32.mrf.mxu0
    %3632 = vmatprep.mubr.f32.mxu0 %v2622
    %3633 = vmatmul.mubr.f32.gmra.mxu0 %v2621
    %v3634 = vpop.f32.mrf.mxu0
    %v3635 = vadd.f32 %v3250, %v3634
    %v3636 = vpop.f32.mrf.mxu0
    %3637 = vmatprep.mubr.f32.mxu0 %v2631
    %3638 = vmatmul.mubr.f32.gmra.mxu0 %v2630
    %v3639 = vpop.f32.mrf.mxu0
    %v3640 = vadd.f32 %v3255, %v3639
    %v3641 = vpop.f32.mrf.mxu0
    %3642 = vmatprep.mubr.f32.mxu0 %v2640
    %3643 = vmatmul.mubr.f32.gmra.mxu0 %v2639
    %v3644 = vpop.f32.mrf.mxu0
    %v3645 = vadd.f32 %v3260, %v3644
    %v3646 = vpop.f32.mrf.mxu0
    %3647 = vmatprep.mubr.f32.mxu0 %v2649
    %3648 = vmatmul.mubr.f32.gmra.mxu0 %v2648
    %v3649 = vpop.f32.mrf.mxu0
    %v3650 = vadd.f32 %v3265, %v3649
    %v3651 = vpop.f32.mrf.mxu0
    %3652 = vmatprep.mubr.f32.mxu0 %v2658
    %3653 = vmatmul.mubr.f32.gmra.mxu0 %v2657
    %v3654 = vpop.f32.mrf.mxu0
    %v3655 = vadd.f32 %v3270, %v3654
    %v3656 = vpop.f32.mrf.mxu0
    %3657 = vmatprep.mubr.f32.mxu0 %v2667
    %3658 = vmatmul.mubr.f32.gmra.mxu0 %v2666
    %v3659 = vpop.f32.mrf.mxu0
    %v3660 = vadd.f32 %v3275, %v3659
    %v3661 = vpop.f32.mrf.mxu0
    %3662 = vmatprep.mubr.f32.mxu0 %v2676
    %3663 = vmatmul.mubr.f32.gmra.mxu0 %v2675
    %v3664 = vpop.f32.mrf.mxu0
    %v3665 = vadd.f32 %v3280, %v3664
    %v3666 = vpop.f32.mrf.mxu0
    %3667 = vmatprep.mubr.f32.mxu0 %v2685
    %3668 = vmatmul.mubr.f32.gmra.mxu0 %v2684
    %v3669 = vpop.f32.mrf.mxu0
    %v3670 = vadd.f32 %v3285, %v3669
    %v3671 = vpop.f32.mrf.mxu0
    %3672 = vmatprep.mubr.f32.mxu0 %v2694
    %3673 = vmatmul.mubr.f32.gmra.mxu0 %v2693
    %v3674 = vpop.f32.mrf.mxu0
    %v3675 = vadd.f32 %v3290, %v3674
    %v3676 = vpop.f32.mrf.mxu0
    %3677 = vmatprep.mubr.f32.mxu0 %v2703
    %3678 = vmatmul.mubr.f32.gmra.mxu0 %v2702
    %v3679 = vpop.f32.mrf.mxu0
    %v3680 = vadd.f32 %v3295, %v3679
    %v3681 = vpop.f32.mrf.mxu0
    %3682 = vmatprep.mubr.f32.mxu0 %v2712
    %3683 = vmatmul.mubr.f32.gmra.mxu0 %v2711
    %v3684 = vpop.f32.mrf.mxu0
    %v3685 = vadd.f32 %v3300, %v3684
    %v3686 = vpop.f32.mrf.mxu0
    %3687 = vmatprep.mubr.f32.mxu0 %v2721
    %3688 = vmatmul.mubr.f32.gmra.mxu0 %v2720
    %v3689 = vpop.f32.mrf.mxu0
    %v3690 = vadd.f32 %v3305, %v3689
    %v3691 = vpop.f32.mrf.mxu0
    %3692 = vmatprep.mubr.f32.mxu0 %v2730
    %3693 = vmatmul.mubr.f32.gmra.mxu0 %v2729
    %v3694 = vpop.f32.mrf.mxu0
    %v3695 = vadd.f32 %v3310, %v3694
    %v3696 = vpop.f32.mrf.mxu0
    %3697 = vmatprep.mubr.f32.mxu0 %v2739
    %3698 = vmatmul.mubr.f32.gmra.mxu0 %v2738
    %v3699 = vpop.f32.mrf.mxu0
    %v3700 = vadd.f32 %v3315, %v3699
    %v3701 = vpop.f32.mrf.mxu0
    %3702 = vmatprep.mubr.f32.mxu0 %v2748
    %3703 = vmatmul.mubr.f32.gmra.mxu0 %v2747
    %v3704 = vpop.f32.mrf.mxu0
    %v3705 = vadd.f32 %v3320, %v3704
    %v3706 = vpop.f32.mrf.mxu0
    %3707 = vmatprep.mubr.f32.mxu0 %v2757
    %3708 = vmatmul.mubr.f32.gmra.mxu0 %v2756
    %v3709 = vpop.f32.mrf.mxu0
    %v3710 = vadd.f32 %v3325, %v3709
    %v3711 = vpop.f32.mrf.mxu0
    %3712 = vmatprep.mubr.f32.mxu0 %v2766
    %3713 = vmatmul.mubr.f32.gmra.mxu0 %v2765
    %v3714 = vpop.f32.mrf.mxu0
    %v3715 = vadd.f32 %v3330, %v3714
    %v3716 = vpop.f32.mrf.mxu0
    %3717 = vmatprep.mubr.f32.mxu0 %v2775
    %3718 = vmatmul.mubr.f32.gmra.mxu0 %v2774
    %v3719 = vpop.f32.mrf.mxu0
    %v3720 = vadd.f32 %v3335, %v3719
    %v3721 = vpop.f32.mrf.mxu0
    %3722 = vmatprep.mubr.f32.mxu0 %v2784
    %3723 = vmatmul.mubr.f32.gmra.mxu0 %v2783
    %v3724 = vpop.f32.mrf.mxu0
    %v3725 = vadd.f32 %v3340, %v3724
    %v3726 = vpop.f32.mrf.mxu0
    %3727 = vmatprep.mubr.f32.mxu0 %v2793
    %3728 = vmatmul.mubr.f32.gmra.mxu0 %v2792
    %v3729 = vpop.f32.mrf.mxu0
    %v3730 = vadd.f32 %v3345, %v3729
    %v3731 = vpop.f32.mrf.mxu0
    %3732 = vmatprep.mubr.f32.mxu0 %v2802
    %3733 = vmatmul.mubr.f32.gmra.mxu0 %v2801
    %v3734 = vpop.f32.mrf.mxu0
    %v3735 = vadd.f32 %v3350, %v3734
    %v3736 = vpop.f32.mrf.mxu0
    %3737 = vmatprep.mubr.f32.mxu0 %v2811
    %3738 = vmatmul.mubr.f32.gmra.mxu0 %v2810
    %v3739 = vpop.f32.mrf.mxu0
    %v3740 = vadd.f32 %v3355, %v3739
    %v3741 = vpop.f32.mrf.mxu0
    %3742 = vmatprep.mubr.f32.mxu0 %v2820
    %3743 = vmatmul.mubr.f32.gmra.mxu0 %v2819
    %v3744 = vpop.f32.mrf.mxu0
    %v3745 = vadd.f32 %v3360, %v3744
    %v3746 = vpop.f32.mrf.mxu0
    %3747 = vmatprep.mubr.f32.mxu0 %v2829
    %3748 = vmatmul.mubr.f32.gmra.mxu0 %v2828
    %v3749 = vpop.f32.mrf.mxu0
    %v3750 = vadd.f32 %v3365, %v3749
    %v3751 = vpop.f32.mrf.mxu0
    %3752 = vmatprep.mubr.f32.mxu0 %v2838
    %3753 = vmatmul.mubr.f32.gmra.mxu0 %v2837
    %v3754 = vpop.f32.mrf.mxu0
    %v3755 = vadd.f32 %v3370, %v3754
    %v3756 = vpop.f32.mrf.mxu0
    %3757 = vdwg.mxu0
    %3758 = vmatprep.subr.mxu0 0.0
    %3759 = vmatpush1.msra.mxu0 %v2923
    %3760 = vmatprep.subr.mxu0 0.0
    %3761 = vmatpush1.msra.mxu0 %v2922
    %3762 = vmatprep.subr.mxu0 0.0
    %3763 = vmatpush1.msra.mxu0 %v2921
    %3764 = vmatprep.subr.mxu0 0.0
    %3765 = vmatpush1.msra.mxu0 %v2920
    %3766 = vmatprep.subr.mxu0 0.0
    %3767 = vmatpush1.msra.mxu0 %v2919
    %3768 = vmatprep.subr.mxu0 0.0
    %3769 = vmatpush1.msra.mxu0 %v2918
    %3770 = vmatprep.subr.mxu0 0.0
    %3771 = vmatpush1.msra.mxu0 %v2917
    %3772 = vmatprep.subr.mxu0 0.0
    %3773 = vmatpush1.msra.mxu0 %v2916
    %3774 = vmatprep.subr.mxu0 0.0
    %3775 = vmatpush1.msra.mxu0 %v2915
    %3776 = vmatprep.subr.mxu0 0.0
    %3777 = vmatpush1.msra.mxu0 %v2914
    %3778 = vmatprep.subr.mxu0 0.0
    %3779 = vmatpush1.msra.mxu0 %v2913
    %3780 = vmatprep.subr.mxu0 0.0
    %3781 = vmatpush1.msra.mxu0 %v2912
    %3782 = vmatprep.subr.mxu0 0.0
    %3783 = vmatpush1.msra.mxu0 %v2911
    %3784 = vmatprep.subr.mxu0 0.0
    %3785 = vmatpush1.msra.mxu0 %v2910
    %3786 = vmatprep.subr.mxu0 0.0
    %3787 = vmatpush1.msra.mxu0 %v2909
    %3788 = vmatprep.subr.mxu0 0.0
    %3789 = vmatpush1.msra.mxu0 %v2908
    %3790 = vmatprep.subr.mxu0 0.0
    %3791 = vmatpush2.msra.mxu0 %v2939
    %3792 = vmatprep.subr.mxu0 0.0
    %3793 = vmatpush2.msra.mxu0 %v2938
    %3794 = vmatprep.subr.mxu0 0.0
    %3795 = vmatpush2.msra.mxu0 %v2937
    %3796 = vmatprep.subr.mxu0 0.0
    %3797 = vmatpush2.msra.mxu0 %v2936
    %3798 = vmatprep.subr.mxu0 0.0
    %3799 = vmatpush2.msra.mxu0 %v2935
    %3800 = vmatprep.subr.mxu0 0.0
    %3801 = vmatpush2.msra.mxu0 %v2934
    %3802 = vmatprep.subr.mxu0 0.0
    %3803 = vmatpush2.msra.mxu0 %v2933
    %3804 = vmatprep.subr.mxu0 0.0
    %3805 = vmatpush2.msra.mxu0 %v2932
    %3806 = vmatprep.subr.mxu0 0.0
    %3807 = vmatpush2.msra.mxu0 %v2931
    %3808 = vmatprep.subr.mxu0 0.0
    %3809 = vmatpush2.msra.mxu0 %v2930
    %3810 = vmatprep.subr.mxu0 0.0
    %3811 = vmatpush2.msra.mxu0 %v2929
    %3812 = vmatprep.subr.mxu0 0.0
    %3813 = vmatpush2.msra.mxu0 %v2928
    %3814 = vmatprep.subr.mxu0 0.0
    %3815 = vmatpush2.msra.mxu0 %v2927
    %3816 = vmatprep.subr.mxu0 0.0
    %3817 = vmatpush2.msra.mxu0 %v2926
    %3818 = vmatprep.subr.mxu0 0.0
    %3819 = vmatpush2.msra.mxu0 %v2925
    %3820 = vmatprep.subr.mxu0 0.0
    %3821 = vmatpush2.msra.mxu0 %v2924
    %3822 = vmatprep.mubr.f32.mxu0 %v2273
    %3823 = vmatmul.mubr.f32.gmra.mxu0 %v2272
    %v3824 = vpop.f32.mrf.mxu0
    %v3825 = vadd.f32 %v3440, %v3824
    %v3826 = vpop.f32.mrf.mxu0
    %3827 = vmatprep.mubr.f32.mxu0 %v2282
    %3828 = vmatmul.mubr.f32.gmra.mxu0 %v2281
    %v3829 = vpop.f32.mrf.mxu0
    %v3830 = vadd.f32 %v3445, %v3829
    %v3831 = vpop.f32.mrf.mxu0
    %3832 = vmatprep.mubr.f32.mxu0 %v2291
    %3833 = vmatmul.mubr.f32.gmra.mxu0 %v2290
    %v3834 = vpop.f32.mrf.mxu0
    %v3835 = vadd.f32 %v3450, %v3834
    %v3836 = vpop.f32.mrf.mxu0
    %3837 = vmatprep.mubr.f32.mxu0 %v2300
    %3838 = vmatmul.mubr.f32.gmra.mxu0 %v2299
    %v3839 = vpop.f32.mrf.mxu0
    %v3840 = vadd.f32 %v3455, %v3839
    %v3841 = vpop.f32.mrf.mxu0
    %3842 = vmatprep.mubr.f32.mxu0 %v2309
    %3843 = vmatmul.mubr.f32.gmra.mxu0 %v2308
    %v3844 = vpop.f32.mrf.mxu0
    %v3845 = vadd.f32 %v3460, %v3844
    %v3846 = vpop.f32.mrf.mxu0
    %3847 = vmatprep.mubr.f32.mxu0 %v2318
    %3848 = vmatmul.mubr.f32.gmra.mxu0 %v2317
    %v3849 = vpop.f32.mrf.mxu0
    %v3850 = vadd.f32 %v3465, %v3849
    %v3851 = vpop.f32.mrf.mxu0
    %3852 = vmatprep.mubr.f32.mxu0 %v2327
    %3853 = vmatmul.mubr.f32.gmra.mxu0 %v2326
    %v3854 = vpop.f32.mrf.mxu0
    %v3855 = vadd.f32 %v3470, %v3854
    %v3856 = vpop.f32.mrf.mxu0
    %3857 = vmatprep.mubr.f32.mxu0 %v2336
    %3858 = vmatmul.mubr.f32.gmra.mxu0 %v2335
    %v3859 = vpop.f32.mrf.mxu0
    %v3860 = vadd.f32 %v3475, %v3859
    %v3861 = vpop.f32.mrf.mxu0
    %3862 = vmatprep.mubr.f32.mxu0 %v2345
    %3863 = vmatmul.mubr.f32.gmra.mxu0 %v2344
    %v3864 = vpop.f32.mrf.mxu0
    %v3865 = vadd.f32 %v3480, %v3864
    %v3866 = vpop.f32.mrf.mxu0
    %3867 = vmatprep.mubr.f32.mxu0 %v2354
    %3868 = vmatmul.mubr.f32.gmra.mxu0 %v2353
    %v3869 = vpop.f32.mrf.mxu0
    %v3870 = vadd.f32 %v3485, %v3869
    %v3871 = vpop.f32.mrf.mxu0
    %3872 = vmatprep.mubr.f32.mxu0 %v2363
    %3873 = vmatmul.mubr.f32.gmra.mxu0 %v2362
    %v3874 = vpop.f32.mrf.mxu0
    %v3875 = vadd.f32 %v3490, %v3874
    %v3876 = vpop.f32.mrf.mxu0
    %3877 = vmatprep.mubr.f32.mxu0 %v2372
    %3878 = vmatmul.mubr.f32.gmra.mxu0 %v2371
    %v3879 = vpop.f32.mrf.mxu0
    %v3880 = vadd.f32 %v3495, %v3879
    %v3881 = vpop.f32.mrf.mxu0
    %3882 = vmatprep.mubr.f32.mxu0 %v2381
    %3883 = vmatmul.mubr.f32.gmra.mxu0 %v2380
    %v3884 = vpop.f32.mrf.mxu0
    %v3885 = vadd.f32 %v3500, %v3884
    %v3886 = vpop.f32.mrf.mxu0
    %3887 = vmatprep.mubr.f32.mxu0 %v2390
    %3888 = vmatmul.mubr.f32.gmra.mxu0 %v2389
    %v3889 = vpop.f32.mrf.mxu0
    %v3890 = vadd.f32 %v3505, %v3889
    %v3891 = vpop.f32.mrf.mxu0
    %3892 = vmatprep.mubr.f32.mxu0 %v2399
    %3893 = vmatmul.mubr.f32.gmra.mxu0 %v2398
    %v3894 = vpop.f32.mrf.mxu0
    %v3895 = vadd.f32 %v3510, %v3894
    %v3896 = vpop.f32.mrf.mxu0
    %3897 = vmatprep.mubr.f32.mxu0 %v2408
    %3898 = vmatmul.mubr.f32.gmra.mxu0 %v2407
    %v3899 = vpop.f32.mrf.mxu0
    %v3900 = vadd.f32 %v3515, %v3899
    %v3901 = vpop.f32.mrf.mxu0
    %3902 = vmatprep.mubr.f32.mxu0 %v2417
    %3903 = vmatmul.mubr.f32.gmra.mxu0 %v2416
    %v3904 = vpop.f32.mrf.mxu0
    %v3905 = vadd.f32 %v3520, %v3904
    %v3906 = vpop.f32.mrf.mxu0
    %3907 = vmatprep.mubr.f32.mxu0 %v2426
    %3908 = vmatmul.mubr.f32.gmra.mxu0 %v2425
    %v3909 = vpop.f32.mrf.mxu0
    %v3910 = vadd.f32 %v3525, %v3909
    %v3911 = vpop.f32.mrf.mxu0
    %3912 = vmatprep.mubr.f32.mxu0 %v2435
    %3913 = vmatmul.mubr.f32.gmra.mxu0 %v2434
    %v3914 = vpop.f32.mrf.mxu0
    %v3915 = vadd.f32 %v3530, %v3914
    %v3916 = vpop.f32.mrf.mxu0
    %3917 = vmatprep.mubr.f32.mxu0 %v2444
    %3918 = vmatmul.mubr.f32.gmra.mxu0 %v2443
    %v3919 = vpop.f32.mrf.mxu0
    %v3920 = vadd.f32 %v3535, %v3919
    %v3921 = vpop.f32.mrf.mxu0
    %3922 = vmatprep.mubr.f32.mxu0 %v2453
    %3923 = vmatmul.mubr.f32.gmra.mxu0 %v2452
    %v3924 = vpop.f32.mrf.mxu0
    %v3925 = vadd.f32 %v3540, %v3924
    %v3926 = vpop.f32.mrf.mxu0
    %3927 = vmatprep.mubr.f32.mxu0 %v2462
    %3928 = vmatmul.mubr.f32.gmra.mxu0 %v2461
    %v3929 = vpop.f32.mrf.mxu0
    %v3930 = vadd.f32 %v3545, %v3929
    %v3931 = vpop.f32.mrf.mxu0
    %3932 = vmatprep.mubr.f32.mxu0 %v2471
    %3933 = vmatmul.mubr.f32.gmra.mxu0 %v2470
    %v3934 = vpop.f32.mrf.mxu0
    %v3935 = vadd.f32 %v3550, %v3934
    %v3936 = vpop.f32.mrf.mxu0
    %3937 = vmatprep.mubr.f32.mxu0 %v2480
    %3938 = vmatmul.mubr.f32.gmra.mxu0 %v2479
    %v3939 = vpop.f32.mrf.mxu0
    %v3940 = vadd.f32 %v3555, %v3939
    %v3941 = vpop.f32.mrf.mxu0
    %3942 = vmatprep.mubr.f32.mxu0 %v2489
    %3943 = vmatmul.mubr.f32.gmra.mxu0 %v2488
    %v3944 = vpop.f32.mrf.mxu0
    %v3945 = vadd.f32 %v3560, %v3944
    %v3946 = vpop.f32.mrf.mxu0
    %3947 = vmatprep.mubr.f32.mxu0 %v2498
    %3948 = vmatmul.mubr.f32.gmra.mxu0 %v2497
    %v3949 = vpop.f32.mrf.mxu0
    %v3950 = vadd.f32 %v3565, %v3949
    %v3951 = vpop.f32.mrf.mxu0
    %3952 = vmatprep.mubr.f32.mxu0 %v2507
    %3953 = vmatmul.mubr.f32.gmra.mxu0 %v2506
    %v3954 = vpop.f32.mrf.mxu0
    %v3955 = vadd.f32 %v3570, %v3954
    %v3956 = vpop.f32.mrf.mxu0
    %3957 = vmatprep.mubr.f32.mxu0 %v2516
    %3958 = vmatmul.mubr.f32.gmra.mxu0 %v2515
    %v3959 = vpop.f32.mrf.mxu0
    %v3960 = vadd.f32 %v3575, %v3959
    %v3961 = vpop.f32.mrf.mxu0
    %3962 = vmatprep.mubr.f32.mxu0 %v2525
    %3963 = vmatmul.mubr.f32.gmra.mxu0 %v2524
    %v3964 = vpop.f32.mrf.mxu0
    %v3965 = vadd.f32 %v3580, %v3964
    %v3966 = vpop.f32.mrf.mxu0
    %3967 = vmatprep.mubr.f32.mxu0 %v2534
    %3968 = vmatmul.mubr.f32.gmra.mxu0 %v2533
    %v3969 = vpop.f32.mrf.mxu0
    %v3970 = vadd.f32 %v3585, %v3969
    %v3971 = vpop.f32.mrf.mxu0
    %3972 = vmatprep.mubr.f32.mxu0 %v2543
    %3973 = vmatmul.mubr.f32.gmra.mxu0 %v2542
    %v3974 = vpop.f32.mrf.mxu0
    %v3975 = vadd.f32 %v3590, %v3974
    %v3976 = vpop.f32.mrf.mxu0
    %3977 = vmatprep.mubr.f32.mxu0 %v2552
    %3978 = vmatmul.mubr.f32.gmra.mxu0 %v2551
    %v3979 = vpop.f32.mrf.mxu0
    %v3980 = vadd.f32 %v3595, %v3979
    %v3981 = vpop.f32.mrf.mxu0
    %3982 = vmatprep.mubr.f32.mxu0 %v2561
    %3983 = vmatmul.mubr.f32.gmra.mxu0 %v2560
    %v3984 = vpop.f32.mrf.mxu0
    %v3985 = vadd.f32 %v3600, %v3984
    %v3986 = vpop.f32.mrf.mxu0
    %3987 = vmatprep.mubr.f32.mxu0 %v2570
    %3988 = vmatmul.mubr.f32.gmra.mxu0 %v2569
    %v3989 = vpop.f32.mrf.mxu0
    %v3990 = vadd.f32 %v3605, %v3989
    %v3991 = vpop.f32.mrf.mxu0
    %3992 = vmatprep.mubr.f32.mxu0 %v2579
    %3993 = vmatmul.mubr.f32.gmra.mxu0 %v2578
    %v3994 = vpop.f32.mrf.mxu0
    %v3995 = vadd.f32 %v3610, %v3994
    %v3996 = vpop.f32.mrf.mxu0
    %3997 = vmatprep.mubr.f32.mxu0 %v2588
    %3998 = vmatmul.mubr.f32.gmra.mxu0 %v2587
    %v3999 = vpop.f32.mrf.mxu0
    %v4000 = vadd.f32 %v3615, %v3999
    %v4001 = vpop.f32.mrf.mxu0
    %4002 = vmatprep.mubr.f32.mxu0 %v2597
    %4003 = vmatmul.mubr.f32.gmra.mxu0 %v2596
    %v4004 = vpop.f32.mrf.mxu0
    %v4005 = vadd.f32 %v3620, %v4004
    %v4006 = vpop.f32.mrf.mxu0
    %4007 = vmatprep.mubr.f32.mxu0 %v2606
    %4008 = vmatmul.mubr.f32.gmra.mxu0 %v2605
    %v4009 = vpop.f32.mrf.mxu0
    %v4010 = vadd.f32 %v3625, %v4009
    %v4011 = vpop.f32.mrf.mxu0
    %4012 = vmatprep.mubr.f32.mxu0 %v2615
    %4013 = vmatmul.mubr.f32.gmra.mxu0 %v2614
    %v4014 = vpop.f32.mrf.mxu0
    %v4015 = vadd.f32 %v3630, %v4014
    %v4016 = vpop.f32.mrf.mxu0
    %4017 = vmatprep.mubr.f32.mxu0 %v2624
    %4018 = vmatmul.mubr.f32.gmra.mxu0 %v2623
    %v4019 = vpop.f32.mrf.mxu0
    %v4020 = vadd.f32 %v3635, %v4019
    %v4021 = vpop.f32.mrf.mxu0
    %4022 = vmatprep.mubr.f32.mxu0 %v2633
    %4023 = vmatmul.mubr.f32.gmra.mxu0 %v2632
    %v4024 = vpop.f32.mrf.mxu0
    %v4025 = vadd.f32 %v3640, %v4024
    %v4026 = vpop.f32.mrf.mxu0
    %4027 = vmatprep.mubr.f32.mxu0 %v2642
    %4028 = vmatmul.mubr.f32.gmra.mxu0 %v2641
    %v4029 = vpop.f32.mrf.mxu0
    %v4030 = vadd.f32 %v3645, %v4029
    %v4031 = vpop.f32.mrf.mxu0
    %4032 = vmatprep.mubr.f32.mxu0 %v2651
    %4033 = vmatmul.mubr.f32.gmra.mxu0 %v2650
    %v4034 = vpop.f32.mrf.mxu0
    %v4035 = vadd.f32 %v3650, %v4034
    %v4036 = vpop.f32.mrf.mxu0
    %4037 = vmatprep.mubr.f32.mxu0 %v2660
    %4038 = vmatmul.mubr.f32.gmra.mxu0 %v2659
    %v4039 = vpop.f32.mrf.mxu0
    %v4040 = vadd.f32 %v3655, %v4039
    %v4041 = vpop.f32.mrf.mxu0
    %4042 = vmatprep.mubr.f32.mxu0 %v2669
    %4043 = vmatmul.mubr.f32.gmra.mxu0 %v2668
    %v4044 = vpop.f32.mrf.mxu0
    %v4045 = vadd.f32 %v3660, %v4044
    %v4046 = vpop.f32.mrf.mxu0
    %4047 = vmatprep.mubr.f32.mxu0 %v2678
    %4048 = vmatmul.mubr.f32.gmra.mxu0 %v2677
    %v4049 = vpop.f32.mrf.mxu0
    %v4050 = vadd.f32 %v3665, %v4049
    %v4051 = vpop.f32.mrf.mxu0
    %4052 = vmatprep.mubr.f32.mxu0 %v2687
    %4053 = vmatmul.mubr.f32.gmra.mxu0 %v2686
    %v4054 = vpop.f32.mrf.mxu0
    %v4055 = vadd.f32 %v3670, %v4054
    %v4056 = vpop.f32.mrf.mxu0
    %4057 = vmatprep.mubr.f32.mxu0 %v2696
    %4058 = vmatmul.mubr.f32.gmra.mxu0 %v2695
    %v4059 = vpop.f32.mrf.mxu0
    %v4060 = vadd.f32 %v3675, %v4059
    %v4061 = vpop.f32.mrf.mxu0
    %4062 = vmatprep.mubr.f32.mxu0 %v2705
    %4063 = vmatmul.mubr.f32.gmra.mxu0 %v2704
    %v4064 = vpop.f32.mrf.mxu0
    %v4065 = vadd.f32 %v3680, %v4064
    %v4066 = vpop.f32.mrf.mxu0
    %4067 = vmatprep.mubr.f32.mxu0 %v2714
    %4068 = vmatmul.mubr.f32.gmra.mxu0 %v2713
    %v4069 = vpop.f32.mrf.mxu0
    %v4070 = vadd.f32 %v3685, %v4069
    %v4071 = vpop.f32.mrf.mxu0
    %4072 = vmatprep.mubr.f32.mxu0 %v2723
    %4073 = vmatmul.mubr.f32.gmra.mxu0 %v2722
    %v4074 = vpop.f32.mrf.mxu0
    %v4075 = vadd.f32 %v3690, %v4074
    %v4076 = vpop.f32.mrf.mxu0
    %4077 = vmatprep.mubr.f32.mxu0 %v2732
    %4078 = vmatmul.mubr.f32.gmra.mxu0 %v2731
    %v4079 = vpop.f32.mrf.mxu0
    %v4080 = vadd.f32 %v3695, %v4079
    %v4081 = vpop.f32.mrf.mxu0
    %4082 = vmatprep.mubr.f32.mxu0 %v2741
    %4083 = vmatmul.mubr.f32.gmra.mxu0 %v2740
    %v4084 = vpop.f32.mrf.mxu0
    %v4085 = vadd.f32 %v3700, %v4084
    %v4086 = vpop.f32.mrf.mxu0
    %4087 = vmatprep.mubr.f32.mxu0 %v2750
    %4088 = vmatmul.mubr.f32.gmra.mxu0 %v2749
    %v4089 = vpop.f32.mrf.mxu0
    %v4090 = vadd.f32 %v3705, %v4089
    %v4091 = vpop.f32.mrf.mxu0
    %4092 = vmatprep.mubr.f32.mxu0 %v2759
    %4093 = vmatmul.mubr.f32.gmra.mxu0 %v2758
    %v4094 = vpop.f32.mrf.mxu0
    %v4095 = vadd.f32 %v3710, %v4094
    %v4096 = vpop.f32.mrf.mxu0
    %4097 = vmatprep.mubr.f32.mxu0 %v2768
    %4098 = vmatmul.mubr.f32.gmra.mxu0 %v2767
    %v4099 = vpop.f32.mrf.mxu0
    %v4100 = vadd.f32 %v3715, %v4099
    %v4101 = vpop.f32.mrf.mxu0
    %4102 = vmatprep.mubr.f32.mxu0 %v2777
    %4103 = vmatmul.mubr.f32.gmra.mxu0 %v2776
    %v4104 = vpop.f32.mrf.mxu0
    %v4105 = vadd.f32 %v3720, %v4104
    %v4106 = vpop.f32.mrf.mxu0
    %4107 = vmatprep.mubr.f32.mxu0 %v2786
    %4108 = vmatmul.mubr.f32.gmra.mxu0 %v2785
    %v4109 = vpop.f32.mrf.mxu0
    %v4110 = vadd.f32 %v3725, %v4109
    %v4111 = vpop.f32.mrf.mxu0
    %4112 = vmatprep.mubr.f32.mxu0 %v2795
    %4113 = vmatmul.mubr.f32.gmra.mxu0 %v2794
    %v4114 = vpop.f32.mrf.mxu0
    %v4115 = vadd.f32 %v3730, %v4114
    %v4116 = vpop.f32.mrf.mxu0
    %4117 = vmatprep.mubr.f32.mxu0 %v2804
    %4118 = vmatmul.mubr.f32.gmra.mxu0 %v2803
    %v4119 = vpop.f32.mrf.mxu0
    %v4120 = vadd.f32 %v3735, %v4119
    %v4121 = vpop.f32.mrf.mxu0
    %4122 = vmatprep.mubr.f32.mxu0 %v2813
    %4123 = vmatmul.mubr.f32.gmra.mxu0 %v2812
    %v4124 = vpop.f32.mrf.mxu0
    %v4125 = vadd.f32 %v3740, %v4124
    %v4126 = vpop.f32.mrf.mxu0
    %4127 = vmatprep.mubr.f32.mxu0 %v2822
    %4128 = vmatmul.mubr.f32.gmra.mxu0 %v2821
    %v4129 = vpop.f32.mrf.mxu0
    %v4130 = vadd.f32 %v3745, %v4129
    %v4131 = vpop.f32.mrf.mxu0
    %4132 = vmatprep.mubr.f32.mxu0 %v2831
    %4133 = vmatmul.mubr.f32.gmra.mxu0 %v2830
    %v4134 = vpop.f32.mrf.mxu0
    %v4135 = vadd.f32 %v3750, %v4134
    %v4136 = vpop.f32.mrf.mxu0
    %4137 = vmatprep.mubr.f32.mxu0 %v2840
    %4138 = vmatmul.mubr.f32.gmra.mxu0 %v2839
    %v4139 = vpop.f32.mrf.mxu0
    %v4140 = vadd.f32 %v3755, %v4139
    %v4141 = vpop.f32.mrf.mxu0
    %4142 = vdwg.mxu0
    %4143 = vmatprep.subr.mxu0 0.0
    %4144 = vmatpush1.msra.mxu0 %v2955
    %4145 = vmatprep.subr.mxu0 0.0
    %4146 = vmatpush1.msra.mxu0 %v2954
    %4147 = vmatprep.subr.mxu0 0.0
    %4148 = vmatpush1.msra.mxu0 %v2953
    %4149 = vmatprep.subr.mxu0 0.0
    %4150 = vmatpush1.msra.mxu0 %v2952
    %4151 = vmatprep.subr.mxu0 0.0
    %4152 = vmatpush1.msra.mxu0 %v2951
    %4153 = vmatprep.subr.mxu0 0.0
    %4154 = vmatpush1.msra.mxu0 %v2950
    %4155 = vmatprep.subr.mxu0 0.0
    %4156 = vmatpush1.msra.mxu0 %v2949
    %4157 = vmatprep.subr.mxu0 0.0
    %4158 = vmatpush1.msra.mxu0 %v2948
    %4159 = vmatprep.subr.mxu0 0.0
    %4160 = vmatpush1.msra.mxu0 %v2947
    %4161 = vmatprep.subr.mxu0 0.0
    %4162 = vmatpush1.msra.mxu0 %v2946
    %4163 = vmatprep.subr.mxu0 0.0
    %4164 = vmatpush1.msra.mxu0 %v2945
    %4165 = vmatprep.subr.mxu0 0.0
    %4166 = vmatpush1.msra.mxu0 %v2944
    %4167 = vmatprep.subr.mxu0 0.0
    %4168 = vmatpush1.msra.mxu0 %v2943
    %4169 = vmatprep.subr.mxu0 0.0
    %4170 = vmatpush1.msra.mxu0 %v2942
    %4171 = vmatprep.subr.mxu0 0.0
    %4172 = vmatpush1.msra.mxu0 %v2941
    %4173 = vmatprep.subr.mxu0 0.0
    %4174 = vmatpush1.msra.mxu0 %v2940
    %4175 = vmatprep.subr.mxu0 0.0
    %4176 = vmatpush2.msra.mxu0 %v2971
    %4177 = vmatprep.subr.mxu0 0.0
    %4178 = vmatpush2.msra.mxu0 %v2970
    %4179 = vmatprep.subr.mxu0 0.0
    %4180 = vmatpush2.msra.mxu0 %v2969
    %4181 = vmatprep.subr.mxu0 0.0
    %4182 = vmatpush2.msra.mxu0 %v2968
    %4183 = vmatprep.subr.mxu0 0.0
    %4184 = vmatpush2.msra.mxu0 %v2967
    %4185 = vmatprep.subr.mxu0 0.0
    %4186 = vmatpush2.msra.mxu0 %v2966
    %4187 = vmatprep.subr.mxu0 0.0
    %4188 = vmatpush2.msra.mxu0 %v2965
    %4189 = vmatprep.subr.mxu0 0.0
    %4190 = vmatpush2.msra.mxu0 %v2964
    %4191 = vmatprep.subr.mxu0 0.0
    %4192 = vmatpush2.msra.mxu0 %v2963
    %4193 = vmatprep.subr.mxu0 0.0
    %4194 = vmatpush2.msra.mxu0 %v2962
    %4195 = vmatprep.subr.mxu0 0.0
    %4196 = vmatpush2.msra.mxu0 %v2961
    %4197 = vmatprep.subr.mxu0 0.0
    %4198 = vmatpush2.msra.mxu0 %v2960
    %4199 = vmatprep.subr.mxu0 0.0
    %4200 = vmatpush2.msra.mxu0 %v2959
    %4201 = vmatprep.subr.mxu0 0.0
    %4202 = vmatpush2.msra.mxu0 %v2958
    %4203 = vmatprep.subr.mxu0 0.0
    %4204 = vmatpush2.msra.mxu0 %v2957
    %4205 = vmatprep.subr.mxu0 0.0
    %4206 = vmatpush2.msra.mxu0 %v2956
    %4207 = vmatprep.mubr.f32.mxu0 %v2275
    %4208 = vmatmul.mubr.f32.gmra.mxu0 %v2274
    %v4209 = vpop.f32.mrf.mxu0
    %v4210 = vadd.f32 %v3825, %v4209
    %v4211 = vpop.f32.mrf.mxu0
    %4212 = vmatprep.mubr.f32.mxu0 %v2284
    %4213 = vmatmul.mubr.f32.gmra.mxu0 %v2283
    %v4214 = vpop.f32.mrf.mxu0
    %v4215 = vadd.f32 %v3830, %v4214
    %v4216 = vpop.f32.mrf.mxu0
    %4217 = vmatprep.mubr.f32.mxu0 %v2293
    %4218 = vmatmul.mubr.f32.gmra.mxu0 %v2292
    %v4219 = vpop.f32.mrf.mxu0
    %v4220 = vadd.f32 %v3835, %v4219
    %v4221 = vpop.f32.mrf.mxu0
    %4222 = vmatprep.mubr.f32.mxu0 %v2302
    %4223 = vmatmul.mubr.f32.gmra.mxu0 %v2301
    %v4224 = vpop.f32.mrf.mxu0
    %v4225 = vadd.f32 %v3840, %v4224
    %v4226 = vpop.f32.mrf.mxu0
    %4227 = vmatprep.mubr.f32.mxu0 %v2311
    %4228 = vmatmul.mubr.f32.gmra.mxu0 %v2310
    %v4229 = vpop.f32.mrf.mxu0
    %v4230 = vadd.f32 %v3845, %v4229
    %v4231 = vpop.f32.mrf.mxu0
    %4232 = vmatprep.mubr.f32.mxu0 %v2320
    %4233 = vmatmul.mubr.f32.gmra.mxu0 %v2319
    %v4234 = vpop.f32.mrf.mxu0
    %v4235 = vadd.f32 %v3850, %v4234
    %v4236 = vpop.f32.mrf.mxu0
    %4237 = vmatprep.mubr.f32.mxu0 %v2329
    %4238 = vmatmul.mubr.f32.gmra.mxu0 %v2328
    %v4239 = vpop.f32.mrf.mxu0
    %v4240 = vadd.f32 %v3855, %v4239
    %v4241 = vpop.f32.mrf.mxu0
    %4242 = vmatprep.mubr.f32.mxu0 %v2338
    %4243 = vmatmul.mubr.f32.gmra.mxu0 %v2337
    %v4244 = vpop.f32.mrf.mxu0
    %v4245 = vadd.f32 %v3860, %v4244
    %v4246 = vpop.f32.mrf.mxu0
    %4247 = vmatprep.mubr.f32.mxu0 %v2347
    %4248 = vmatmul.mubr.f32.gmra.mxu0 %v2346
    %v4249 = vpop.f32.mrf.mxu0
    %v4250 = vadd.f32 %v3865, %v4249
    %v4251 = vpop.f32.mrf.mxu0
    %4252 = vmatprep.mubr.f32.mxu0 %v2356
    %4253 = vmatmul.mubr.f32.gmra.mxu0 %v2355
    %v4254 = vpop.f32.mrf.mxu0
    %v4255 = vadd.f32 %v3870, %v4254
    %v4256 = vpop.f32.mrf.mxu0
    %4257 = vmatprep.mubr.f32.mxu0 %v2365
    %4258 = vmatmul.mubr.f32.gmra.mxu0 %v2364
    %v4259 = vpop.f32.mrf.mxu0
    %v4260 = vadd.f32 %v3875, %v4259
    %v4261 = vpop.f32.mrf.mxu0
    %4262 = vmatprep.mubr.f32.mxu0 %v2374
    %4263 = vmatmul.mubr.f32.gmra.mxu0 %v2373
    %v4264 = vpop.f32.mrf.mxu0
    %v4265 = vadd.f32 %v3880, %v4264
    %v4266 = vpop.f32.mrf.mxu0
    %4267 = vmatprep.mubr.f32.mxu0 %v2383
    %4268 = vmatmul.mubr.f32.gmra.mxu0 %v2382
    %v4269 = vpop.f32.mrf.mxu0
    %v4270 = vadd.f32 %v3885, %v4269
    %v4271 = vpop.f32.mrf.mxu0
    %4272 = vmatprep.mubr.f32.mxu0 %v2392
    %4273 = vmatmul.mubr.f32.gmra.mxu0 %v2391
    %v4274 = vpop.f32.mrf.mxu0
    %v4275 = vadd.f32 %v3890, %v4274
    %v4276 = vpop.f32.mrf.mxu0
    %4277 = vmatprep.mubr.f32.mxu0 %v2401
    %4278 = vmatmul.mubr.f32.gmra.mxu0 %v2400
    %v4279 = vpop.f32.mrf.mxu0
    %v4280 = vadd.f32 %v3895, %v4279
    %v4281 = vpop.f32.mrf.mxu0
    %4282 = vmatprep.mubr.f32.mxu0 %v2410
    %4283 = vmatmul.mubr.f32.gmra.mxu0 %v2409
    %v4284 = vpop.f32.mrf.mxu0
    %v4285 = vadd.f32 %v3900, %v4284
    %v4286 = vpop.f32.mrf.mxu0
    %4287 = vmatprep.mubr.f32.mxu0 %v2419
    %4288 = vmatmul.mubr.f32.gmra.mxu0 %v2418
    %v4289 = vpop.f32.mrf.mxu0
    %v4290 = vadd.f32 %v3905, %v4289
    %v4291 = vpop.f32.mrf.mxu0
    %4292 = vmatprep.mubr.f32.mxu0 %v2428
    %4293 = vmatmul.mubr.f32.gmra.mxu0 %v2427
    %v4294 = vpop.f32.mrf.mxu0
    %v4295 = vadd.f32 %v3910, %v4294
    %v4296 = vpop.f32.mrf.mxu0
    %4297 = vmatprep.mubr.f32.mxu0 %v2437
    %4298 = vmatmul.mubr.f32.gmra.mxu0 %v2436
    %v4299 = vpop.f32.mrf.mxu0
    %v4300 = vadd.f32 %v3915, %v4299
    %v4301 = vpop.f32.mrf.mxu0
    %4302 = vmatprep.mubr.f32.mxu0 %v2446
    %4303 = vmatmul.mubr.f32.gmra.mxu0 %v2445
    %v4304 = vpop.f32.mrf.mxu0
    %v4305 = vadd.f32 %v3920, %v4304
    %v4306 = vpop.f32.mrf.mxu0
    %4307 = vmatprep.mubr.f32.mxu0 %v2455
    %4308 = vmatmul.mubr.f32.gmra.mxu0 %v2454
    %v4309 = vpop.f32.mrf.mxu0
    %v4310 = vadd.f32 %v3925, %v4309
    %v4311 = vpop.f32.mrf.mxu0
    %4312 = vmatprep.mubr.f32.mxu0 %v2464
    %4313 = vmatmul.mubr.f32.gmra.mxu0 %v2463
    %v4314 = vpop.f32.mrf.mxu0
    %v4315 = vadd.f32 %v3930, %v4314
    %v4316 = vpop.f32.mrf.mxu0
    %4317 = vmatprep.mubr.f32.mxu0 %v2473
    %4318 = vmatmul.mubr.f32.gmra.mxu0 %v2472
    %v4319 = vpop.f32.mrf.mxu0
    %v4320 = vadd.f32 %v3935, %v4319
    %v4321 = vpop.f32.mrf.mxu0
    %4322 = vmatprep.mubr.f32.mxu0 %v2482
    %4323 = vmatmul.mubr.f32.gmra.mxu0 %v2481
    %v4324 = vpop.f32.mrf.mxu0
    %v4325 = vadd.f32 %v3940, %v4324
    %v4326 = vpop.f32.mrf.mxu0
    %4327 = vmatprep.mubr.f32.mxu0 %v2491
    %4328 = vmatmul.mubr.f32.gmra.mxu0 %v2490
    %v4329 = vpop.f32.mrf.mxu0
    %v4330 = vadd.f32 %v3945, %v4329
    %v4331 = vpop.f32.mrf.mxu0
    %4332 = vmatprep.mubr.f32.mxu0 %v2500
    %4333 = vmatmul.mubr.f32.gmra.mxu0 %v2499
    %v4334 = vpop.f32.mrf.mxu0
    %v4335 = vadd.f32 %v3950, %v4334
    %v4336 = vpop.f32.mrf.mxu0
    %4337 = vmatprep.mubr.f32.mxu0 %v2509
    %4338 = vmatmul.mubr.f32.gmra.mxu0 %v2508
    %v4339 = vpop.f32.mrf.mxu0
    %v4340 = vadd.f32 %v3955, %v4339
    %v4341 = vpop.f32.mrf.mxu0
    %4342 = vmatprep.mubr.f32.mxu0 %v2518
    %4343 = vmatmul.mubr.f32.gmra.mxu0 %v2517
    %v4344 = vpop.f32.mrf.mxu0
    %v4345 = vadd.f32 %v3960, %v4344
    %v4346 = vpop.f32.mrf.mxu0
    %4347 = vmatprep.mubr.f32.mxu0 %v2527
    %4348 = vmatmul.mubr.f32.gmra.mxu0 %v2526
    %v4349 = vpop.f32.mrf.mxu0
    %v4350 = vadd.f32 %v3965, %v4349
    %v4351 = vpop.f32.mrf.mxu0
    %4352 = vmatprep.mubr.f32.mxu0 %v2536
    %4353 = vmatmul.mubr.f32.gmra.mxu0 %v2535
    %v4354 = vpop.f32.mrf.mxu0
    %v4355 = vadd.f32 %v3970, %v4354
    %v4356 = vpop.f32.mrf.mxu0
    %4357 = vmatprep.mubr.f32.mxu0 %v2545
    %4358 = vmatmul.mubr.f32.gmra.mxu0 %v2544
    %v4359 = vpop.f32.mrf.mxu0
    %v4360 = vadd.f32 %v3975, %v4359
    %v4361 = vpop.f32.mrf.mxu0
    %4362 = vmatprep.mubr.f32.mxu0 %v2554
    %4363 = vmatmul.mubr.f32.gmra.mxu0 %v2553
    %v4364 = vpop.f32.mrf.mxu0
    %v4365 = vadd.f32 %v3980, %v4364
    %v4366 = vpop.f32.mrf.mxu0
    %4367 = vmatprep.mubr.f32.mxu0 %v2563
    %4368 = vmatmul.mubr.f32.gmra.mxu0 %v2562
    %v4369 = vpop.f32.mrf.mxu0
    %v4370 = vadd.f32 %v3985, %v4369
    %v4371 = vpop.f32.mrf.mxu0
    %4372 = vmatprep.mubr.f32.mxu0 %v2572
    %4373 = vmatmul.mubr.f32.gmra.mxu0 %v2571
    %v4374 = vpop.f32.mrf.mxu0
    %v4375 = vadd.f32 %v3990, %v4374
    %v4376 = vpop.f32.mrf.mxu0
    %4377 = vmatprep.mubr.f32.mxu0 %v2581
    %4378 = vmatmul.mubr.f32.gmra.mxu0 %v2580
    %v4379 = vpop.f32.mrf.mxu0
    %v4380 = vadd.f32 %v3995, %v4379
    %v4381 = vpop.f32.mrf.mxu0
    %4382 = vmatprep.mubr.f32.mxu0 %v2590
    %4383 = vmatmul.mubr.f32.gmra.mxu0 %v2589
    %v4384 = vpop.f32.mrf.mxu0
    %v4385 = vadd.f32 %v4000, %v4384
    %v4386 = vpop.f32.mrf.mxu0
    %4387 = vmatprep.mubr.f32.mxu0 %v2599
    %4388 = vmatmul.mubr.f32.gmra.mxu0 %v2598
    %v4389 = vpop.f32.mrf.mxu0
    %v4390 = vadd.f32 %v4005, %v4389
    %v4391 = vpop.f32.mrf.mxu0
    %4392 = vmatprep.mubr.f32.mxu0 %v2608
    %4393 = vmatmul.mubr.f32.gmra.mxu0 %v2607
    %v4394 = vpop.f32.mrf.mxu0
    %v4395 = vadd.f32 %v4010, %v4394
    %v4396 = vpop.f32.mrf.mxu0
    %4397 = vmatprep.mubr.f32.mxu0 %v2617
    %4398 = vmatmul.mubr.f32.gmra.mxu0 %v2616
    %v4399 = vpop.f32.mrf.mxu0
    %v4400 = vadd.f32 %v4015, %v4399
    %v4401 = vpop.f32.mrf.mxu0
    %4402 = vmatprep.mubr.f32.mxu0 %v2626
    %4403 = vmatmul.mubr.f32.gmra.mxu0 %v2625
    %v4404 = vpop.f32.mrf.mxu0
    %v4405 = vadd.f32 %v4020, %v4404
    %v4406 = vpop.f32.mrf.mxu0
    %4407 = vmatprep.mubr.f32.mxu0 %v2635
    %4408 = vmatmul.mubr.f32.gmra.mxu0 %v2634
    %v4409 = vpop.f32.mrf.mxu0
    %v4410 = vadd.f32 %v4025, %v4409
    %v4411 = vpop.f32.mrf.mxu0
    %4412 = vmatprep.mubr.f32.mxu0 %v2644
    %4413 = vmatmul.mubr.f32.gmra.mxu0 %v2643
    %v4414 = vpop.f32.mrf.mxu0
    %v4415 = vadd.f32 %v4030, %v4414
    %v4416 = vpop.f32.mrf.mxu0
    %4417 = vmatprep.mubr.f32.mxu0 %v2653
    %4418 = vmatmul.mubr.f32.gmra.mxu0 %v2652
    %v4419 = vpop.f32.mrf.mxu0
    %v4420 = vadd.f32 %v4035, %v4419
    %v4421 = vpop.f32.mrf.mxu0
    %4422 = vmatprep.mubr.f32.mxu0 %v2662
    %4423 = vmatmul.mubr.f32.gmra.mxu0 %v2661
    %v4424 = vpop.f32.mrf.mxu0
    %v4425 = vadd.f32 %v4040, %v4424
    %v4426 = vpop.f32.mrf.mxu0
    %4427 = vmatprep.mubr.f32.mxu0 %v2671
    %4428 = vmatmul.mubr.f32.gmra.mxu0 %v2670
    %v4429 = vpop.f32.mrf.mxu0
    %v4430 = vadd.f32 %v4045, %v4429
    %v4431 = vpop.f32.mrf.mxu0
    %4432 = vmatprep.mubr.f32.mxu0 %v2680
    %4433 = vmatmul.mubr.f32.gmra.mxu0 %v2679
    %v4434 = vpop.f32.mrf.mxu0
    %v4435 = vadd.f32 %v4050, %v4434
    %v4436 = vpop.f32.mrf.mxu0
    %4437 = vmatprep.mubr.f32.mxu0 %v2689
    %4438 = vmatmul.mubr.f32.gmra.mxu0 %v2688
    %v4439 = vpop.f32.mrf.mxu0
    %v4440 = vadd.f32 %v4055, %v4439
    %v4441 = vpop.f32.mrf.mxu0
    %4442 = vmatprep.mubr.f32.mxu0 %v2698
    %4443 = vmatmul.mubr.f32.gmra.mxu0 %v2697
    %v4444 = vpop.f32.mrf.mxu0
    %v4445 = vadd.f32 %v4060, %v4444
    %v4446 = vpop.f32.mrf.mxu0
    %4447 = vmatprep.mubr.f32.mxu0 %v2707
    %4448 = vmatmul.mubr.f32.gmra.mxu0 %v2706
    %v4449 = vpop.f32.mrf.mxu0
    %v4450 = vadd.f32 %v4065, %v4449
    %v4451 = vpop.f32.mrf.mxu0
    %4452 = vmatprep.mubr.f32.mxu0 %v2716
    %4453 = vmatmul.mubr.f32.gmra.mxu0 %v2715
    %v4454 = vpop.f32.mrf.mxu0
    %v4455 = vadd.f32 %v4070, %v4454
    %v4456 = vpop.f32.mrf.mxu0
    %4457 = vmatprep.mubr.f32.mxu0 %v2725
    %4458 = vmatmul.mubr.f32.gmra.mxu0 %v2724
    %v4459 = vpop.f32.mrf.mxu0
    %v4460 = vadd.f32 %v4075, %v4459
    %v4461 = vpop.f32.mrf.mxu0
    %4462 = vmatprep.mubr.f32.mxu0 %v2734
    %4463 = vmatmul.mubr.f32.gmra.mxu0 %v2733
    %v4464 = vpop.f32.mrf.mxu0
    %v4465 = vadd.f32 %v4080, %v4464
    %v4466 = vpop.f32.mrf.mxu0
    %4467 = vmatprep.mubr.f32.mxu0 %v2743
    %4468 = vmatmul.mubr.f32.gmra.mxu0 %v2742
    %v4469 = vpop.f32.mrf.mxu0
    %v4470 = vadd.f32 %v4085, %v4469
    %v4471 = vpop.f32.mrf.mxu0
    %4472 = vmatprep.mubr.f32.mxu0 %v2752
    %4473 = vmatmul.mubr.f32.gmra.mxu0 %v2751
    %v4474 = vpop.f32.mrf.mxu0
    %v4475 = vadd.f32 %v4090, %v4474
    %v4476 = vpop.f32.mrf.mxu0
    %4477 = vmatprep.mubr.f32.mxu0 %v2761
    %4478 = vmatmul.mubr.f32.gmra.mxu0 %v2760
    %v4479 = vpop.f32.mrf.mxu0
    %v4480 = vadd.f32 %v4095, %v4479
    %v4481 = vpop.f32.mrf.mxu0
    %4482 = vmatprep.mubr.f32.mxu0 %v2770
    %4483 = vmatmul.mubr.f32.gmra.mxu0 %v2769
    %v4484 = vpop.f32.mrf.mxu0
    %v4485 = vadd.f32 %v4100, %v4484
    %v4486 = vpop.f32.mrf.mxu0
    %4487 = vmatprep.mubr.f32.mxu0 %v2779
    %4488 = vmatmul.mubr.f32.gmra.mxu0 %v2778
    %v4489 = vpop.f32.mrf.mxu0
    %v4490 = vadd.f32 %v4105, %v4489
    %v4491 = vpop.f32.mrf.mxu0
    %4492 = vmatprep.mubr.f32.mxu0 %v2788
    %4493 = vmatmul.mubr.f32.gmra.mxu0 %v2787
    %v4494 = vpop.f32.mrf.mxu0
    %v4495 = vadd.f32 %v4110, %v4494
    %v4496 = vpop.f32.mrf.mxu0
    %4497 = vmatprep.mubr.f32.mxu0 %v2797
    %4498 = vmatmul.mubr.f32.gmra.mxu0 %v2796
    %v4499 = vpop.f32.mrf.mxu0
    %v4500 = vadd.f32 %v4115, %v4499
    %v4501 = vpop.f32.mrf.mxu0
    %4502 = vmatprep.mubr.f32.mxu0 %v2806
    %4503 = vmatmul.mubr.f32.gmra.mxu0 %v2805
    %v4504 = vpop.f32.mrf.mxu0
    %v4505 = vadd.f32 %v4120, %v4504
    %v4506 = vpop.f32.mrf.mxu0
    %4507 = vmatprep.mubr.f32.mxu0 %v2815
    %4508 = vmatmul.mubr.f32.gmra.mxu0 %v2814
    %v4509 = vpop.f32.mrf.mxu0
    %v4510 = vadd.f32 %v4125, %v4509
    %v4511 = vpop.f32.mrf.mxu0
    %4512 = vmatprep.mubr.f32.mxu0 %v2824
    %4513 = vmatmul.mubr.f32.gmra.mxu0 %v2823
    %v4514 = vpop.f32.mrf.mxu0
    %v4515 = vadd.f32 %v4130, %v4514
    %v4516 = vpop.f32.mrf.mxu0
    %4517 = vmatprep.mubr.f32.mxu0 %v2833
    %4518 = vmatmul.mubr.f32.gmra.mxu0 %v2832
    %v4519 = vpop.f32.mrf.mxu0
    %v4520 = vadd.f32 %v4135, %v4519
    %v4521 = vpop.f32.mrf.mxu0
    %4522 = vmatprep.mubr.f32.mxu0 %v2842
    %4523 = vmatmul.mubr.f32.gmra.mxu0 %v2841
    %v4524 = vpop.f32.mrf.mxu0
    %v4525 = vadd.f32 %v4140, %v4524
    %v4526 = vpop.f32.mrf.mxu0
    %4527 = vdwg.mxu0
    %4528 = vmatprep.subr.mxu0 0.0
    %4529 = vmatpush1.msra.mxu0 %v2987
    %4530 = vmatprep.subr.mxu0 0.0
    %4531 = vmatpush1.msra.mxu0 %v2986
    %4532 = vmatprep.subr.mxu0 0.0
    %4533 = vmatpush1.msra.mxu0 %v2985
    %4534 = vmatprep.subr.mxu0 0.0
    %4535 = vmatpush1.msra.mxu0 %v2984
    %4536 = vmatprep.subr.mxu0 0.0
    %4537 = vmatpush1.msra.mxu0 %v2983
    %4538 = vmatprep.subr.mxu0 0.0
    %4539 = vmatpush1.msra.mxu0 %v2982
    %4540 = vmatprep.subr.mxu0 0.0
    %4541 = vmatpush1.msra.mxu0 %v2981
    %4542 = vmatprep.subr.mxu0 0.0
    %4543 = vmatpush1.msra.mxu0 %v2980
    %4544 = vmatprep.subr.mxu0 0.0
    %4545 = vmatpush1.msra.mxu0 %v2979
    %4546 = vmatprep.subr.mxu0 0.0
    %4547 = vmatpush1.msra.mxu0 %v2978
    %4548 = vmatprep.subr.mxu0 0.0
    %4549 = vmatpush1.msra.mxu0 %v2977
    %4550 = vmatprep.subr.mxu0 0.0
    %4551 = vmatpush1.msra.mxu0 %v2976
    %4552 = vmatprep.subr.mxu0 0.0
    %4553 = vmatpush1.msra.mxu0 %v2975
    %4554 = vmatprep.subr.mxu0 0.0
    %4555 = vmatpush1.msra.mxu0 %v2974
    %4556 = vmatprep.subr.mxu0 0.0
    %4557 = vmatpush1.msra.mxu0 %v2973
    %4558 = vmatprep.subr.mxu0 0.0
    %4559 = vmatpush1.msra.mxu0 %v2972
    %4560 = vmatprep.subr.mxu0 0.0
    %4561 = vmatpush2.msra.mxu0 0.0
    %4562 = vmatprep.subr.mxu0 0.0
    %4563 = vmatpush2.msra.mxu0 0.0
    %4564 = vmatprep.subr.mxu0 0.0
    %4565 = vmatpush2.msra.mxu0 0.0
    %4566 = vmatprep.subr.mxu0 0.0
    %4567 = vmatpush2.msra.mxu0 0.0
    %4568 = vmatprep.subr.mxu0 0.0
    %4569 = vmatpush2.msra.mxu0 0.0
    %4570 = vmatprep.subr.mxu0 0.0
    %4571 = vmatpush2.msra.mxu0 0.0
    %4572 = vmatprep.subr.mxu0 0.0
    %4573 = vmatpush2.msra.mxu0 0.0
    %4574 = vmatprep.subr.mxu0 0.0
    %4575 = vmatpush2.msra.mxu0 0.0
    %4576 = vmatprep.subr.mxu0 0.0
    %4577 = vmatpush2.msra.mxu0 0.0
    %4578 = vmatprep.subr.mxu0 0.0
    %4579 = vmatpush2.msra.mxu0 0.0
    %4580 = vmatprep.subr.mxu0 0.0
    %4581 = vmatpush2.msra.mxu0 0.0
    %4582 = vmatprep.subr.mxu0 0.0
    %4583 = vmatpush2.msra.mxu0 0.0
    %4584 = vmatprep.subr.mxu0 0.0
    %4585 = vmatpush2.msra.mxu0 0.0
    %4586 = vmatprep.subr.mxu0 0.0
    %4587 = vmatpush2.msra.mxu0 0.0
    %4588 = vmatprep.subr.mxu0 0.0
    %4589 = vmatpush2.msra.mxu0 0.0
    %4590 = vmatprep.subr.mxu0 0.0
    %4591 = vmatpush2.msra.mxu0 0.0
    %4592 = vmatprep.mubr.f32.mxu0 0.0
    %4593 = vmatmul.mubr.f32.gmra.mxu0 %v2276
    %v4594 = vpop.f32.mrf.mxu0
    %v4595 = vadd.f32 %v4210, %v4594
    %v4596 = vpop.f32.mrf.mxu0
    %4597 = vmatprep.mubr.f32.mxu0 0.0
    %4598 = vmatmul.mubr.f32.gmra.mxu0 %v2285
    %v4599 = vpop.f32.mrf.mxu0
    %v4600 = vadd.f32 %v4215, %v4599
    %v4601 = vpop.f32.mrf.mxu0
    %4602 = vmatprep.mubr.f32.mxu0 0.0
    %4603 = vmatmul.mubr.f32.gmra.mxu0 %v2294
    %v4604 = vpop.f32.mrf.mxu0
    %v4605 = vadd.f32 %v4220, %v4604
    %v4606 = vpop.f32.mrf.mxu0
    %4607 = vmatprep.mubr.f32.mxu0 0.0
    %4608 = vmatmul.mubr.f32.gmra.mxu0 %v2303
    %v4609 = vpop.f32.mrf.mxu0
    %v4610 = vadd.f32 %v4225, %v4609
    %v4611 = vpop.f32.mrf.mxu0
    %4612 = vmatprep.mubr.f32.mxu0 0.0
    %4613 = vmatmul.mubr.f32.gmra.mxu0 %v2312
    %v4614 = vpop.f32.mrf.mxu0
    %v4615 = vadd.f32 %v4230, %v4614
    %v4616 = vpop.f32.mrf.mxu0
    %4617 = vmatprep.mubr.f32.mxu0 0.0
    %4618 = vmatmul.mubr.f32.gmra.mxu0 %v2321
    %v4619 = vpop.f32.mrf.mxu0
    %v4620 = vadd.f32 %v4235, %v4619
    %v4621 = vpop.f32.mrf.mxu0
    %4622 = vmatprep.mubr.f32.mxu0 0.0
    %4623 = vmatmul.mubr.f32.gmra.mxu0 %v2330
    %v4624 = vpop.f32.mrf.mxu0
    %v4625 = vadd.f32 %v4240, %v4624
    %v4626 = vpop.f32.mrf.mxu0
    %4627 = vmatprep.mubr.f32.mxu0 0.0
    %4628 = vmatmul.mubr.f32.gmra.mxu0 %v2339
    %v4629 = vpop.f32.mrf.mxu0
    %v4630 = vadd.f32 %v4245, %v4629
    %v4631 = vpop.f32.mrf.mxu0
    %4632 = vmatprep.mubr.f32.mxu0 0.0
    %4633 = vmatmul.mubr.f32.gmra.mxu0 %v2348
    %v4634 = vpop.f32.mrf.mxu0
    %v4635 = vadd.f32 %v4250, %v4634
    %v4636 = vpop.f32.mrf.mxu0
    %4637 = vmatprep.mubr.f32.mxu0 0.0
    %4638 = vmatmul.mubr.f32.gmra.mxu0 %v2357
    %v4639 = vpop.f32.mrf.mxu0
    %v4640 = vadd.f32 %v4255, %v4639
    %v4641 = vpop.f32.mrf.mxu0
    %4642 = vmatprep.mubr.f32.mxu0 0.0
    %4643 = vmatmul.mubr.f32.gmra.mxu0 %v2366
    %v4644 = vpop.f32.mrf.mxu0
    %v4645 = vadd.f32 %v4260, %v4644
    %v4646 = vpop.f32.mrf.mxu0
    %4647 = vmatprep.mubr.f32.mxu0 0.0
    %4648 = vmatmul.mubr.f32.gmra.mxu0 %v2375
    %v4649 = vpop.f32.mrf.mxu0
    %v4650 = vadd.f32 %v4265, %v4649
    %v4651 = vpop.f32.mrf.mxu0
    %4652 = vmatprep.mubr.f32.mxu0 0.0
    %4653 = vmatmul.mubr.f32.gmra.mxu0 %v2384
    %v4654 = vpop.f32.mrf.mxu0
    %v4655 = vadd.f32 %v4270, %v4654
    %v4656 = vpop.f32.mrf.mxu0
    %4657 = vmatprep.mubr.f32.mxu0 0.0
    %4658 = vmatmul.mubr.f32.gmra.mxu0 %v2393
    %v4659 = vpop.f32.mrf.mxu0
    %v4660 = vadd.f32 %v4275, %v4659
    %v4661 = vpop.f32.mrf.mxu0
    %4662 = vmatprep.mubr.f32.mxu0 0.0
    %4663 = vmatmul.mubr.f32.gmra.mxu0 %v2402
    %v4664 = vpop.f32.mrf.mxu0
    %v4665 = vadd.f32 %v4280, %v4664
    %v4666 = vpop.f32.mrf.mxu0
    %4667 = vmatprep.mubr.f32.mxu0 0.0
    %4668 = vmatmul.mubr.f32.gmra.mxu0 %v2411
    %v4669 = vpop.f32.mrf.mxu0
    %v4670 = vadd.f32 %v4285, %v4669
    %v4671 = vpop.f32.mrf.mxu0
    %4672 = vmatprep.mubr.f32.mxu0 0.0
    %4673 = vmatmul.mubr.f32.gmra.mxu0 %v2420
    %v4674 = vpop.f32.mrf.mxu0
    %v4675 = vadd.f32 %v4290, %v4674
    %v4676 = vpop.f32.mrf.mxu0
    %4677 = vmatprep.mubr.f32.mxu0 0.0
    %4678 = vmatmul.mubr.f32.gmra.mxu0 %v2429
    %v4679 = vpop.f32.mrf.mxu0
    %v4680 = vadd.f32 %v4295, %v4679
    %v4681 = vpop.f32.mrf.mxu0
    %4682 = vmatprep.mubr.f32.mxu0 0.0
    %4683 = vmatmul.mubr.f32.gmra.mxu0 %v2438
    %v4684 = vpop.f32.mrf.mxu0
    %v4685 = vadd.f32 %v4300, %v4684
    %v4686 = vpop.f32.mrf.mxu0
    %4687 = vmatprep.mubr.f32.mxu0 0.0
    %4688 = vmatmul.mubr.f32.gmra.mxu0 %v2447
    %v4689 = vpop.f32.mrf.mxu0
    %v4690 = vadd.f32 %v4305, %v4689
    %v4691 = vpop.f32.mrf.mxu0
    %4692 = vmatprep.mubr.f32.mxu0 0.0
    %4693 = vmatmul.mubr.f32.gmra.mxu0 %v2456
    %v4694 = vpop.f32.mrf.mxu0
    %v4695 = vadd.f32 %v4310, %v4694
    %v4696 = vpop.f32.mrf.mxu0
    %4697 = vmatprep.mubr.f32.mxu0 0.0
    %4698 = vmatmul.mubr.f32.gmra.mxu0 %v2465
    %v4699 = vpop.f32.mrf.mxu0
    %v4700 = vadd.f32 %v4315, %v4699
    %v4701 = vpop.f32.mrf.mxu0
    %4702 = vmatprep.mubr.f32.mxu0 0.0
    %4703 = vmatmul.mubr.f32.gmra.mxu0 %v2474
    %v4704 = vpop.f32.mrf.mxu0
    %v4705 = vadd.f32 %v4320, %v4704
    %v4706 = vpop.f32.mrf.mxu0
    %4707 = vmatprep.mubr.f32.mxu0 0.0
    %4708 = vmatmul.mubr.f32.gmra.mxu0 %v2483
    %v4709 = vpop.f32.mrf.mxu0
    %v4710 = vadd.f32 %v4325, %v4709
    %v4711 = vpop.f32.mrf.mxu0
    %4712 = vmatprep.mubr.f32.mxu0 0.0
    %4713 = vmatmul.mubr.f32.gmra.mxu0 %v2492
    %v4714 = vpop.f32.mrf.mxu0
    %v4715 = vadd.f32 %v4330, %v4714
    %v4716 = vpop.f32.mrf.mxu0
    %4717 = vmatprep.mubr.f32.mxu0 0.0
    %4718 = vmatmul.mubr.f32.gmra.mxu0 %v2501
    %v4719 = vpop.f32.mrf.mxu0
    %v4720 = vadd.f32 %v4335, %v4719
    %v4721 = vpop.f32.mrf.mxu0
    %4722 = vmatprep.mubr.f32.mxu0 0.0
    %4723 = vmatmul.mubr.f32.gmra.mxu0 %v2510
    %v4724 = vpop.f32.mrf.mxu0
    %v4725 = vadd.f32 %v4340, %v4724
    %v4726 = vpop.f32.mrf.mxu0
    %4727 = vmatprep.mubr.f32.mxu0 0.0
    %4728 = vmatmul.mubr.f32.gmra.mxu0 %v2519
    %v4729 = vpop.f32.mrf.mxu0
    %v4730 = vadd.f32 %v4345, %v4729
    %v4731 = vpop.f32.mrf.mxu0
    %4732 = vmatprep.mubr.f32.mxu0 0.0
    %4733 = vmatmul.mubr.f32.gmra.mxu0 %v2528
    %v4734 = vpop.f32.mrf.mxu0
    %v4735 = vadd.f32 %v4350, %v4734
    %v4736 = vpop.f32.mrf.mxu0
    %4737 = vmatprep.mubr.f32.mxu0 0.0
    %4738 = vmatmul.mubr.f32.gmra.mxu0 %v2537
    %v4739 = vpop.f32.mrf.mxu0
    %v4740 = vadd.f32 %v4355, %v4739
    %v4741 = vpop.f32.mrf.mxu0
    %4742 = vmatprep.mubr.f32.mxu0 0.0
    %4743 = vmatmul.mubr.f32.gmra.mxu0 %v2546
    %v4744 = vpop.f32.mrf.mxu0
    %v4745 = vadd.f32 %v4360, %v4744
    %v4746 = vpop.f32.mrf.mxu0
    %4747 = vmatprep.mubr.f32.mxu0 0.0
    %4748 = vmatmul.mubr.f32.gmra.mxu0 %v2555
    %v4749 = vpop.f32.mrf.mxu0
    %v4750 = vadd.f32 %v4365, %v4749
    %v4751 = vpop.f32.mrf.mxu0
    %4752 = vmatprep.mubr.f32.mxu0 0.0
    %4753 = vmatmul.mubr.f32.gmra.mxu0 %v2564
    %v4754 = vpop.f32.mrf.mxu0
    %v4755 = vadd.f32 %v4370, %v4754
    %v4756 = vpop.f32.mrf.mxu0
    %4757 = vmatprep.mubr.f32.mxu0 0.0
    %4758 = vmatmul.mubr.f32.gmra.mxu0 %v2573
    %v4759 = vpop.f32.mrf.mxu0
    %v4760 = vadd.f32 %v4375, %v4759
    %v4761 = vpop.f32.mrf.mxu0
    %4762 = vmatprep.mubr.f32.mxu0 0.0
    %4763 = vmatmul.mubr.f32.gmra.mxu0 %v2582
    %v4764 = vpop.f32.mrf.mxu0
    %v4765 = vadd.f32 %v4380, %v4764
    %v4766 = vpop.f32.mrf.mxu0
    %4767 = vmatprep.mubr.f32.mxu0 0.0
    %4768 = vmatmul.mubr.f32.gmra.mxu0 %v2591
    %v4769 = vpop.f32.mrf.mxu0
    %v4770 = vadd.f32 %v4385, %v4769
    %v4771 = vpop.f32.mrf.mxu0
    %4772 = vmatprep.mubr.f32.mxu0 0.0
    %4773 = vmatmul.mubr.f32.gmra.mxu0 %v2600
    %v4774 = vpop.f32.mrf.mxu0
    %v4775 = vadd.f32 %v4390, %v4774
    %v4776 = vpop.f32.mrf.mxu0
    %4777 = vmatprep.mubr.f32.mxu0 0.0
    %4778 = vmatmul.mubr.f32.gmra.mxu0 %v2609
    %v4779 = vpop.f32.mrf.mxu0
    %v4780 = vadd.f32 %v4395, %v4779
    %v4781 = vpop.f32.mrf.mxu0
    %4782 = vmatprep.mubr.f32.mxu0 0.0
    %4783 = vmatmul.mubr.f32.gmra.mxu0 %v2618
    %v4784 = vpop.f32.mrf.mxu0
    %v4785 = vadd.f32 %v4400, %v4784
    %v4786 = vpop.f32.mrf.mxu0
    %4787 = vmatprep.mubr.f32.mxu0 0.0
    %4788 = vmatmul.mubr.f32.gmra.mxu0 %v2627
    %v4789 = vpop.f32.mrf.mxu0
    %v4790 = vadd.f32 %v4405, %v4789
    %v4791 = vpop.f32.mrf.mxu0
    %4792 = vmatprep.mubr.f32.mxu0 0.0
    %4793 = vmatmul.mubr.f32.gmra.mxu0 %v2636
    %v4794 = vpop.f32.mrf.mxu0
    %v4795 = vadd.f32 %v4410, %v4794
    %v4796 = vpop.f32.mrf.mxu0
    %4797 = vmatprep.mubr.f32.mxu0 0.0
    %4798 = vmatmul.mubr.f32.gmra.mxu0 %v2645
    %v4799 = vpop.f32.mrf.mxu0
    %v4800 = vadd.f32 %v4415, %v4799
    %v4801 = vpop.f32.mrf.mxu0
    %4802 = vmatprep.mubr.f32.mxu0 0.0
    %4803 = vmatmul.mubr.f32.gmra.mxu0 %v2654
    %v4804 = vpop.f32.mrf.mxu0
    %v4805 = vadd.f32 %v4420, %v4804
    %v4806 = vpop.f32.mrf.mxu0
    %4807 = vmatprep.mubr.f32.mxu0 0.0
    %4808 = vmatmul.mubr.f32.gmra.mxu0 %v2663
    %v4809 = vpop.f32.mrf.mxu0
    %v4810 = vadd.f32 %v4425, %v4809
    %v4811 = vpop.f32.mrf.mxu0
    %4812 = vmatprep.mubr.f32.mxu0 0.0
    %4813 = vmatmul.mubr.f32.gmra.mxu0 %v2672
    %v4814 = vpop.f32.mrf.mxu0
    %v4815 = vadd.f32 %v4430, %v4814
    %v4816 = vpop.f32.mrf.mxu0
    %4817 = vmatprep.mubr.f32.mxu0 0.0
    %4818 = vmatmul.mubr.f32.gmra.mxu0 %v2681
    %v4819 = vpop.f32.mrf.mxu0
    %v4820 = vadd.f32 %v4435, %v4819
    %v4821 = vpop.f32.mrf.mxu0
    %4822 = vmatprep.mubr.f32.mxu0 0.0
    %4823 = vmatmul.mubr.f32.gmra.mxu0 %v2690
    %v4824 = vpop.f32.mrf.mxu0
    %v4825 = vadd.f32 %v4440, %v4824
    %v4826 = vpop.f32.mrf.mxu0
    %4827 = vmatprep.mubr.f32.mxu0 0.0
    %4828 = vmatmul.mubr.f32.gmra.mxu0 %v2699
    %v4829 = vpop.f32.mrf.mxu0
    %v4830 = vadd.f32 %v4445, %v4829
    %v4831 = vpop.f32.mrf.mxu0
    %4832 = vmatprep.mubr.f32.mxu0 0.0
    %4833 = vmatmul.mubr.f32.gmra.mxu0 %v2708
    %v4834 = vpop.f32.mrf.mxu0
    %v4835 = vadd.f32 %v4450, %v4834
    %v4836 = vpop.f32.mrf.mxu0
    %4837 = vmatprep.mubr.f32.mxu0 0.0
    %4838 = vmatmul.mubr.f32.gmra.mxu0 %v2717
    %v4839 = vpop.f32.mrf.mxu0
    %v4840 = vadd.f32 %v4455, %v4839
    %v4841 = vpop.f32.mrf.mxu0
    %4842 = vmatprep.mubr.f32.mxu0 0.0
    %4843 = vmatmul.mubr.f32.gmra.mxu0 %v2726
    %v4844 = vpop.f32.mrf.mxu0
    %v4845 = vadd.f32 %v4460, %v4844
    %v4846 = vpop.f32.mrf.mxu0
    %4847 = vmatprep.mubr.f32.mxu0 0.0
    %4848 = vmatmul.mubr.f32.gmra.mxu0 %v2735
    %v4849 = vpop.f32.mrf.mxu0
    %v4850 = vadd.f32 %v4465, %v4849
    %v4851 = vpop.f32.mrf.mxu0
    %4852 = vmatprep.mubr.f32.mxu0 0.0
    %4853 = vmatmul.mubr.f32.gmra.mxu0 %v2744
    %v4854 = vpop.f32.mrf.mxu0
    %v4855 = vadd.f32 %v4470, %v4854
    %v4856 = vpop.f32.mrf.mxu0
    %4857 = vmatprep.mubr.f32.mxu0 0.0
    %4858 = vmatmul.mubr.f32.gmra.mxu0 %v2753
    %v4859 = vpop.f32.mrf.mxu0
    %v4860 = vadd.f32 %v4475, %v4859
    %v4861 = vpop.f32.mrf.mxu0
    %4862 = vmatprep.mubr.f32.mxu0 0.0
    %4863 = vmatmul.mubr.f32.gmra.mxu0 %v2762
    %v4864 = vpop.f32.mrf.mxu0
    %v4865 = vadd.f32 %v4480, %v4864
    %v4866 = vpop.f32.mrf.mxu0
    %4867 = vmatprep.mubr.f32.mxu0 0.0
    %4868 = vmatmul.mubr.f32.gmra.mxu0 %v2771
    %v4869 = vpop.f32.mrf.mxu0
    %v4870 = vadd.f32 %v4485, %v4869
    %v4871 = vpop.f32.mrf.mxu0
    %4872 = vmatprep.mubr.f32.mxu0 0.0
    %4873 = vmatmul.mubr.f32.gmra.mxu0 %v2780
    %v4874 = vpop.f32.mrf.mxu0
    %v4875 = vadd.f32 %v4490, %v4874
    %v4876 = vpop.f32.mrf.mxu0
    %4877 = vmatprep.mubr.f32.mxu0 0.0
    %4878 = vmatmul.mubr.f32.gmra.mxu0 %v2789
    %v4879 = vpop.f32.mrf.mxu0
    %v4880 = vadd.f32 %v4495, %v4879
    %v4881 = vpop.f32.mrf.mxu0
    %4882 = vmatprep.mubr.f32.mxu0 0.0
    %4883 = vmatmul.mubr.f32.gmra.mxu0 %v2798
    %v4884 = vpop.f32.mrf.mxu0
    %v4885 = vadd.f32 %v4500, %v4884
    %v4886 = vpop.f32.mrf.mxu0
    %4887 = vmatprep.mubr.f32.mxu0 0.0
    %4888 = vmatmul.mubr.f32.gmra.mxu0 %v2807
    %v4889 = vpop.f32.mrf.mxu0
    %v4890 = vadd.f32 %v4505, %v4889
    %v4891 = vpop.f32.mrf.mxu0
    %4892 = vmatprep.mubr.f32.mxu0 0.0
    %4893 = vmatmul.mubr.f32.gmra.mxu0 %v2816
    %v4894 = vpop.f32.mrf.mxu0
    %v4895 = vadd.f32 %v4510, %v4894
    %v4896 = vpop.f32.mrf.mxu0
    %4897 = vmatprep.mubr.f32.mxu0 0.0
    %4898 = vmatmul.mubr.f32.gmra.mxu0 %v2825
    %v4899 = vpop.f32.mrf.mxu0
    %v4900 = vadd.f32 %v4515, %v4899
    %v4901 = vpop.f32.mrf.mxu0
    %4902 = vmatprep.mubr.f32.mxu0 0.0
    %4903 = vmatmul.mubr.f32.gmra.mxu0 %v2834
    %v4904 = vpop.f32.mrf.mxu0
    %v4905 = vadd.f32 %v4520, %v4904
    %v4906 = vpop.f32.mrf.mxu0
    %4907 = vmatprep.mubr.f32.mxu0 0.0
    %4908 = vmatmul.mubr.f32.gmra.mxu0 %v2843
    %v4909 = vpop.f32.mrf.mxu0
    %v4910 = vadd.f32 %v4525, %v4909
    %v4911 = vpop.f32.mrf.mxu0
    %4912 = vdwg.mxu0
    %v4913 = vld [vmem:[%s6] sm:$0x1]
    %v4914 = vld [vmem:[%s7] sm:$0x1]
    %v4915 = vadd.f32 %v4595, %v4600
    %v4916 = vadd.f32 %v4915, %v4605
    %v4917 = vadd.f32 %v4916, %v4610
    %v4918 = vadd.f32 %v4917, %v4615
    %v4919 = vadd.f32 %v4918, %v4620
    %v4920 = vadd.f32 %v4919, %v4625
    %v4921 = vadd.f32 %v4920, %v4630
    %v4922 = vadd.f32 %v4921, %v4635
    %v4923 = vadd.f32 %v4922, %v4640
    %v4924 = vadd.f32 %v4923, %v4645
    %v4925 = vadd.f32 %v4924, %v4650
    %v4926 = vadd.f32 %v4925, %v4655
    %v4927 = vadd.f32 %v4926, %v4660
    %v4928 = vadd.f32 %v4927, %v4665
    %v4929 = vadd.f32 %v4928, %v4670
    %v4930 = vadd.f32 %v4929, %v4675
    %v4931 = vadd.f32 %v4930, %v4680
    %v4932 = vadd.f32 %v4931, %v4685
    %v4933 = vadd.f32 %v4932, %v4690
    %v4934 = vadd.f32 %v4933, %v4695
    %v4935 = vadd.f32 %v4934, %v4700
    %v4936 = vadd.f32 %v4935, %v4705
    %v4937 = vadd.f32 %v4936, %v4710
    %v4938 = vadd.f32 %v4937, %v4715
    %v4939 = vadd.f32 %v4938, %v4720
    %v4940 = vadd.f32 %v4939, %v4725
    %v4941 = vadd.f32 %v4940, %v4730
    %v4942 = vadd.f32 %v4941, %v4735
    %v4943 = vadd.f32 %v4942, %v4740
    %v4944 = vadd.f32 %v4943, %v4745
    %v4945 = vadd.f32 %v4944, %v4750
    %v4946 = vadd.f32 %v4945, %v4755
    %v4947 = vadd.f32 %v4946, %v4760
    %v4948 = vadd.f32 %v4947, %v4765
    %v4949 = vadd.f32 %v4948, %v4770
    %v4950 = vadd.f32 %v4949, %v4775
    %v4951 = vadd.f32 %v4950, %v4780
    %v4952 = vadd.f32 %v4951, %v4785
    %v4953 = vadd.f32 %v4952, %v4790
    %v4954 = vadd.f32 %v4953, %v4795
    %v4955 = vadd.f32 %v4954, %v4800
    %v4956 = vadd.f32 %v4955, %v4805
    %v4957 = vadd.f32 %v4956, %v4810
    %v4958 = vadd.f32 %v4957, %v4815
    %v4959 = vadd.f32 %v4958, %v4820
    %v4960 = vadd.f32 %v4959, %v4825
    %v4961 = vadd.f32 %v4960, %v4830
    %v4962 = vadd.f32 %v4961, %v4835
    %v4963 = vadd.f32 %v4962, %v4840
    %v4964 = vadd.f32 %v4963, %v4845
    %v4965 = vadd.f32 %v4964, %v4850
    %v4966 = vadd.f32 %v4965, %v4855
    %v4967 = vadd.f32 %v4966, %v4860
    %v4968 = vadd.f32 %v4967, %v4865
    %v4969 = vadd.f32 %v4968, %v4870
    %v4970 = vadd.f32 %v4969, %v4875
    %v4971 = vadd.f32 %v4970, %v4880
    %v4972 = vadd.f32 %v4971, %v4885
    %v4973 = vadd.f32 %v4972, %v4890
    %v4974 = vadd.f32 %v4973, %v4895
    %v4975 = vadd.f32 %v4974, %v4900
    %v4976 = vadd.f32 %v4975, %v4905
    %v4977 = vadd.f32 %v4976, %v4910
    %v4978 = vrot.slane %v4977, 4
    %v4979 = vadd.f32 %v4977, %v4978
    %v4980 = vrot.slane %v4979, 2
    %v4981 = vadd.f32 %v4979, %v4980
    %v4982 = vrot.slane %v4981, 1
    %v4983 = vadd.f32 %v4981, %v4982
    %v4984 = vmul.f32 %v4595, %v4595
    %v4985 = vmul.f32 %v4600, %v4600
    %v4986 = vmul.f32 %v4605, %v4605
    %v4987 = vmul.f32 %v4610, %v4610
    %v4988 = vmul.f32 %v4615, %v4615
    %v4989 = vmul.f32 %v4620, %v4620
    %v4990 = vmul.f32 %v4625, %v4625
    %v4991 = vmul.f32 %v4630, %v4630
    %v4992 = vmul.f32 %v4635, %v4635
    %v4993 = vmul.f32 %v4640, %v4640
    %v4994 = vmul.f32 %v4645, %v4645
    %v4995 = vmul.f32 %v4650, %v4650
    %v4996 = vmul.f32 %v4655, %v4655
    %v4997 = vmul.f32 %v4660, %v4660
    %v4998 = vmul.f32 %v4665, %v4665
    %v4999 = vmul.f32 %v4670, %v4670
    %v5000 = vmul.f32 %v4675, %v4675
    %v5001 = vmul.f32 %v4680, %v4680
    %v5002 = vmul.f32 %v4685, %v4685
    %v5003 = vmul.f32 %v4690, %v4690
    %v5004 = vmul.f32 %v4695, %v4695
    %v5005 = vmul.f32 %v4700, %v4700
    %v5006 = vmul.f32 %v4705, %v4705
    %v5007 = vmul.f32 %v4710, %v4710
    %v5008 = vmul.f32 %v4715, %v4715
    %v5009 = vmul.f32 %v4720, %v4720
    %v5010 = vmul.f32 %v4725, %v4725
    %v5011 = vmul.f32 %v4730, %v4730
    %v5012 = vmul.f32 %v4735, %v4735
    %v5013 = vmul.f32 %v4740, %v4740
    %v5014 = vmul.f32 %v4745, %v4745
    %v5015 = vmul.f32 %v4750, %v4750
    %v5016 = vmul.f32 %v4755, %v4755
    %v5017 = vmul.f32 %v4760, %v4760
    %v5018 = vmul.f32 %v4765, %v4765
    %v5019 = vmul.f32 %v4770, %v4770
    %v5020 = vmul.f32 %v4775, %v4775
    %v5021 = vmul.f32 %v4780, %v4780
    %v5022 = vmul.f32 %v4785, %v4785
    %v5023 = vmul.f32 %v4790, %v4790
    %v5024 = vmul.f32 %v4795, %v4795
    %v5025 = vmul.f32 %v4800, %v4800
    %v5026 = vmul.f32 %v4805, %v4805
    %v5027 = vmul.f32 %v4810, %v4810
    %v5028 = vmul.f32 %v4815, %v4815
    %v5029 = vmul.f32 %v4820, %v4820
    %v5030 = vmul.f32 %v4825, %v4825
    %v5031 = vmul.f32 %v4830, %v4830
    %v5032 = vmul.f32 %v4835, %v4835
    %v5033 = vmul.f32 %v4840, %v4840
    %v5034 = vmul.f32 %v4845, %v4845
    %v5035 = vmul.f32 %v4850, %v4850
    %v5036 = vmul.f32 %v4855, %v4855
    %v5037 = vmul.f32 %v4860, %v4860
    %v5038 = vmul.f32 %v4865, %v4865
    %v5039 = vmul.f32 %v4870, %v4870
    %v5040 = vmul.f32 %v4875, %v4875
    %v5041 = vmul.f32 %v4880, %v4880
    %v5042 = vmul.f32 %v4885, %v4885
    %v5043 = vmul.f32 %v4890, %v4890
    %v5044 = vmul.f32 %v4895, %v4895
    %v5045 = vmul.f32 %v4900, %v4900
    %v5046 = vmul.f32 %v4905, %v4905
    %v5047 = vmul.f32 %v4910, %v4910
    %v5048 = vadd.f32 %v4984, %v4985
    %v5049 = vadd.f32 %v5048, %v4986
    %v5050 = vadd.f32 %v5049, %v4987
    %v5051 = vadd.f32 %v5050, %v4988
    %v5052 = vadd.f32 %v5051, %v4989
    %v5053 = vadd.f32 %v5052, %v4990
    %v5054 = vadd.f32 %v5053, %v4991
    %v5055 = vadd.f32 %v5054, %v4992
    %v5056 = vadd.f32 %v5055, %v4993
    %v5057 = vadd.f32 %v5056, %v4994
    %v5058 = vadd.f32 %v5057, %v4995
    %v5059 = vadd.f32 %v5058, %v4996
    %v5060 = vadd.f32 %v5059, %v4997
    %v5061 = vadd.f32 %v5060, %v4998
    %v5062 = vadd.f32 %v5061, %v4999
    %v5063 = vadd.f32 %v5062, %v5000
    %v5064 = vadd.f32 %v5063, %v5001
    %v5065 = vadd.f32 %v5064, %v5002
    %v5066 = vadd.f32 %v5065, %v5003
    %v5067 = vadd.f32 %v5066, %v5004
    %v5068 = vadd.f32 %v5067, %v5005
    %v5069 = vadd.f32 %v5068, %v5006
    %v5070 = vadd.f32 %v5069, %v5007
    %v5071 = vadd.f32 %v5070, %v5008
    %v5072 = vadd.f32 %v5071, %v5009
    %v5073 = vadd.f32 %v5072, %v5010
    %v5074 = vadd.f32 %v5073, %v5011
    %v5075 = vadd.f32 %v5074, %v5012
    %v5076 = vadd.f32 %v5075, %v5013
    %v5077 = vadd.f32 %v5076, %v5014
    %v5078 = vadd.f32 %v5077, %v5015
    %v5079 = vadd.f32 %v5078, %v5016
    %v5080 = vadd.f32 %v5079, %v5017
    %v5081 = vadd.f32 %v5080, %v5018
    %v5082 = vadd.f32 %v5081, %v5019
    %v5083 = vadd.f32 %v5082, %v5020
    %v5084 = vadd.f32 %v5083, %v5021
    %v5085 = vadd.f32 %v5084, %v5022
    %v5086 = vadd.f32 %v5085, %v5023
    %v5087 = vadd.f32 %v5086, %v5024
    %v5088 = vadd.f32 %v5087, %v5025
    %v5089 = vadd.f32 %v5088, %v5026
    %v5090 = vadd.f32 %v5089, %v5027
    %v5091 = vadd.f32 %v5090, %v5028
    %v5092 = vadd.f32 %v5091, %v5029
    %v5093 = vadd.f32 %v5092, %v5030
    %v5094 = vadd.f32 %v5093, %v5031
    %v5095 = vadd.f32 %v5094, %v5032
    %v5096 = vadd.f32 %v5095, %v5033
    %v5097 = vadd.f32 %v5096, %v5034
    %v5098 = vadd.f32 %v5097, %v5035
    %v5099 = vadd.f32 %v5098, %v5036
    %v5100 = vadd.f32 %v5099, %v5037
    %v5101 = vadd.f32 %v5100, %v5038
    %v5102 = vadd.f32 %v5101, %v5039
    %v5103 = vadd.f32 %v5102, %v5040
    %v5104 = vadd.f32 %v5103, %v5041
    %v5105 = vadd.f32 %v5104, %v5042
    %v5106 = vadd.f32 %v5105, %v5043
    %v5107 = vadd.f32 %v5106, %v5044
    %v5108 = vadd.f32 %v5107, %v5045
    %v5109 = vadd.f32 %v5108, %v5046
    %v5110 = vadd.f32 %v5109, %v5047
    %v5111 = vrot.slane %v5110, 4
    %v5112 = vadd.f32 %v5110, %v5111
    %v5113 = vrot.slane %v5112, 2
    %v5114 = vadd.f32 %v5112, %v5113
    %v5115 = vrot.slane %v5114, 1
    %v5116 = vadd.f32 %v5114, %v5115
    %v5117 = vmul.f32 %v4983, 0.001953125
    %v5118 = vmul.f32 %v5116, 0.001953125
    %v5119 = vmul.f32 %v5117, %v5117
    %v5120 = vsub.f32 %v5118, %v5119
    %v5121 = vadd.f32 %v5120, 1e-05
    %v5122 = vrsqrt.pop %v5121
    %v5123 = vmul.f32 %v5122, %v4913
    %v5124 = vmul.f32 %v5117, %v5123
    %v5125 = vsub.f32 %v4914, %v5124
    %v5126 = vlaneseq
    %v5127 = vshrl.u32 %v5126, 7
    %v5128 = vsub.s32 0, %v5127
    %v5129 = vrot.slane %v5123, %v5128
    %v5130 = vmul.f32 %v4595, %v5129
    %v5131 = vmul.f32 %v4600, %v5129
    %v5132 = vmul.f32 %v4605, %v5129
    %v5133 = vmul.f32 %v4610, %v5129
    %v5134 = vmul.f32 %v4615, %v5129
    %v5135 = vmul.f32 %v4620, %v5129
    %v5136 = vmul.f32 %v4625, %v5129
    %v5137 = vmul.f32 %v4630, %v5129
    %v5138 = vmul.f32 %v4635, %v5129
    %v5139 = vmul.f32 %v4640, %v5129
    %v5140 = vmul.f32 %v4645, %v5129
    %v5141 = vmul.f32 %v4650, %v5129
    %v5142 = vmul.f32 %v4655, %v5129
    %v5143 = vmul.f32 %v4660, %v5129
    %v5144 = vmul.f32 %v4665, %v5129
    %v5145 = vmul.f32 %v4670, %v5129
    %v5146 = vmul.f32 %v4675, %v5129
    %v5147 = vmul.f32 %v4680, %v5129
    %v5148 = vmul.f32 %v4685, %v5129
    %v5149 = vmul.f32 %v4690, %v5129
    %v5150 = vmul.f32 %v4695, %v5129
    %v5151 = vmul.f32 %v4700, %v5129
    %v5152 = vmul.f32 %v4705, %v5129
    %v5153 = vmul.f32 %v4710, %v5129
    %v5154 = vmul.f32 %v4715, %v5129
    %v5155 = vmul.f32 %v4720, %v5129
    %v5156 = vmul.f32 %v4725, %v5129
    %v5157 = vmul.f32 %v4730, %v5129
    %v5158 = vmul.f32 %v4735, %v5129
    %v5159 = vmul.f32 %v4740, %v5129
    %v5160 = vmul.f32 %v4745, %v5129
    %v5161 = vmul.f32 %v4750, %v5129
    %v5162 = vmul.f32 %v4755, %v5129
    %v5163 = vmul.f32 %v4760, %v5129
    %v5164 = vmul.f32 %v4765, %v5129
    %v5165 = vmul.f32 %v4770, %v5129
    %v5166 = vmul.f32 %v4775, %v5129
    %v5167 = vmul.f32 %v4780, %v5129
    %v5168 = vmul.f32 %v4785, %v5129
    %v5169 = vmul.f32 %v4790, %v5129
    %v5170 = vmul.f32 %v4795, %v5129
    %v5171 = vmul.f32 %v4800, %v5129
    %v5172 = vmul.f32 %v4805, %v5129
    %v5173 = vmul.f32 %v4810, %v5129
    %v5174 = vmul.f32 %v4815, %v5129
    %v5175 = vmul.f32 %v4820, %v5129
    %v5176 = vmul.f32 %v4825, %v5129
    %v5177 = vmul.f32 %v4830, %v5129
    %v5178 = vmul.f32 %v4835, %v5129
    %v5179 = vmul.f32 %v4840, %v5129
    %v5180 = vmul.f32 %v4845, %v5129
    %v5181 = vmul.f32 %v4850, %v5129
    %v5182 = vmul.f32 %v4855, %v5129
    %v5183 = vmul.f32 %v4860, %v5129
    %v5184 = vmul.f32 %v4865, %v5129
    %v5185 = vmul.f32 %v4870, %v5129
    %v5186 = vmul.f32 %v4875, %v5129
    %v5187 = vmul.f32 %v4880, %v5129
    %v5188 = vmul.f32 %v4885, %v5129
    %v5189 = vmul.f32 %v4890, %v5129
    %v5190 = vmul.f32 %v4895, %v5129
    %v5191 = vmul.f32 %v4900, %v5129
    %v5192 = vmul.f32 %v4905, %v5129
    %v5193 = vmul.f32 %v4910, %v5129
    %v5195 = vlaneseq
    %v5196 = vshrl.u32 %v5195, 7
    %v5197 = vsub.s32 0, %v5196
    %v5198 = vrot.slane %v5125, %v5197
    %v5200 = vadd.f32 %v5130, %v5198
    %v5201 = vadd.f32 %v5131, %v5198
    %v5202 = vadd.f32 %v5132, %v5198
    %v5203 = vadd.f32 %v5133, %v5198
    %v5204 = vadd.f32 %v5134, %v5198
    %v5205 = vadd.f32 %v5135, %v5198
    %v5206 = vadd.f32 %v5136, %v5198
    %v5207 = vadd.f32 %v5137, %v5198
    %v5208 = vadd.f32 %v5138, %v5198
    %v5209 = vadd.f32 %v5139, %v5198
    %v5210 = vadd.f32 %v5140, %v5198
    %v5211 = vadd.f32 %v5141, %v5198
    %v5212 = vadd.f32 %v5142, %v5198
    %v5213 = vadd.f32 %v5143, %v5198
    %v5214 = vadd.f32 %v5144, %v5198
    %v5215 = vadd.f32 %v5145, %v5198
    %v5216 = vadd.f32 %v5146, %v5198
    %v5217 = vadd.f32 %v5147, %v5198
    %v5218 = vadd.f32 %v5148, %v5198
    %v5219 = vadd.f32 %v5149, %v5198
    %v5220 = vadd.f32 %v5150, %v5198
    %v5221 = vadd.f32 %v5151, %v5198
    %v5222 = vadd.f32 %v5152, %v5198
    %v5223 = vadd.f32 %v5153, %v5198
    %v5224 = vadd.f32 %v5154, %v5198
    %v5225 = vadd.f32 %v5155, %v5198
    %v5226 = vadd.f32 %v5156, %v5198
    %v5227 = vadd.f32 %v5157, %v5198
    %v5228 = vadd.f32 %v5158, %v5198
    %v5229 = vadd.f32 %v5159, %v5198
    %v5230 = vadd.f32 %v5160, %v5198
    %v5231 = vadd.f32 %v5161, %v5198
    %v5232 = vadd.f32 %v5162, %v5198
    %v5233 = vadd.f32 %v5163, %v5198
    %v5234 = vadd.f32 %v5164, %v5198
    %v5235 = vadd.f32 %v5165, %v5198
    %v5236 = vadd.f32 %v5166, %v5198
    %v5237 = vadd.f32 %v5167, %v5198
    %v5238 = vadd.f32 %v5168, %v5198
    %v5239 = vadd.f32 %v5169, %v5198
    %v5240 = vadd.f32 %v5170, %v5198
    %v5241 = vadd.f32 %v5171, %v5198
    %v5242 = vadd.f32 %v5172, %v5198
    %v5243 = vadd.f32 %v5173, %v5198
    %v5244 = vadd.f32 %v5174, %v5198
    %v5245 = vadd.f32 %v5175, %v5198
    %v5246 = vadd.f32 %v5176, %v5198
    %v5247 = vadd.f32 %v5177, %v5198
    %v5248 = vadd.f32 %v5178, %v5198
    %v5249 = vadd.f32 %v5179, %v5198
    %v5250 = vadd.f32 %v5180, %v5198
    %v5251 = vadd.f32 %v5181, %v5198
    %v5252 = vadd.f32 %v5182, %v5198
    %v5253 = vadd.f32 %v5183, %v5198
    %v5254 = vadd.f32 %v5184, %v5198
    %v5255 = vadd.f32 %v5185, %v5198
    %v5256 = vadd.f32 %v5186, %v5198
    %v5257 = vadd.f32 %v5187, %v5198
    %v5258 = vadd.f32 %v5188, %v5198
    %v5259 = vadd.f32 %v5189, %v5198
    %v5260 = vadd.f32 %v5190, %v5198
    %v5261 = vadd.f32 %v5191, %v5198
    %v5262 = vadd.f32 %v5192, %v5198
    %v5263 = vadd.f32 %v5193, %v5198
    %v5264 = vmax.f32 %v5200, 0.0
    %v5265 = vmax.f32 %v5201, 0.0
    %v5266 = vmax.f32 %v5202, 0.0
    %v5267 = vmax.f32 %v5203, 0.0
    %v5268 = vmax.f32 %v5204, 0.0
    %v5269 = vmax.f32 %v5205, 0.0
    %v5270 = vmax.f32 %v5206, 0.0
    %v5271 = vmax.f32 %v5207, 0.0
    %v5272 = vmax.f32 %v5208, 0.0
    %v5273 = vmax.f32 %v5209, 0.0
    %v5274 = vmax.f32 %v5210, 0.0
    %v5275 = vmax.f32 %v5211, 0.0
    %v5276 = vmax.f32 %v5212, 0.0
    %v5277 = vmax.f32 %v5213, 0.0
    %v5278 = vmax.f32 %v5214, 0.0
    %v5279 = vmax.f32 %v5215, 0.0
    %v5280 = vmax.f32 %v5216, 0.0
    %v5281 = vmax.f32 %v5217, 0.0
    %v5282 = vmax.f32 %v5218, 0.0
    %v5283 = vmax.f32 %v5219, 0.0
    %v5284 = vmax.f32 %v5220, 0.0
    %v5285 = vmax.f32 %v5221, 0.0
    %v5286 = vmax.f32 %v5222, 0.0
    %v5287 = vmax.f32 %v5223, 0.0
    %v5288 = vmax.f32 %v5224, 0.0
    %v5289 = vmax.f32 %v5225, 0.0
    %v5290 = vmax.f32 %v5226, 0.0
    %v5291 = vmax.f32 %v5227, 0.0
    %v5292 = vmax.f32 %v5228, 0.0
    %v5293 = vmax.f32 %v5229, 0.0
    %v5294 = vmax.f32 %v5230, 0.0
    %v5295 = vmax.f32 %v5231, 0.0
    %v5296 = vmax.f32 %v5232, 0.0
    %v5297 = vmax.f32 %v5233, 0.0
    %v5298 = vmax.f32 %v5234, 0.0
    %v5299 = vmax.f32 %v5235, 0.0
    %v5300 = vmax.f32 %v5236, 0.0
    %v5301 = vmax.f32 %v5237, 0.0
    %v5302 = vmax.f32 %v5238, 0.0
    %v5303 = vmax.f32 %v5239, 0.0
    %v5304 = vmax.f32 %v5240, 0.0
    %v5305 = vmax.f32 %v5241, 0.0
    %v5306 = vmax.f32 %v5242, 0.0
    %v5307 = vmax.f32 %v5243, 0.0
    %v5308 = vmax.f32 %v5244, 0.0
    %v5309 = vmax.f32 %v5245, 0.0
    %v5310 = vmax.f32 %v5246, 0.0
    %v5311 = vmax.f32 %v5247, 0.0
    %v5312 = vmax.f32 %v5248, 0.0
    %v5313 = vmax.f32 %v5249, 0.0
    %v5314 = vmax.f32 %v5250, 0.0
    %v5315 = vmax.f32 %v5251, 0.0
    %v5316 = vmax.f32 %v5252, 0.0
    %v5317 = vmax.f32 %v5253, 0.0
    %v5318 = vmax.f32 %v5254, 0.0
    %v5319 = vmax.f32 %v5255, 0.0
    %v5320 = vmax.f32 %v5256, 0.0
    %v5321 = vmax.f32 %v5257, 0.0
    %v5322 = vmax.f32 %v5258, 0.0
    %v5323 = vmax.f32 %v5259, 0.0
    %v5324 = vmax.f32 %v5260, 0.0
    %v5325 = vmax.f32 %v5261, 0.0
    %v5326 = vmax.f32 %v5262, 0.0
    %v5327 = vmax.f32 %v5263, 0.0
    %5328 = vst [vmem:[%s1050 + $0x1] sm:$0xff] %v5264
    %5329 = vst [vmem:[%s1050 + $0x9] sm:$0xff] %v5265
    %5330 = vst [vmem:[%s1050 + $0x19] sm:$0xff] %v5266
    %5331 = vst [vmem:[%s1050 + $0x21] sm:$0xff] %v5267
    %5332 = vst [vmem:[%s1050 + $0x31] sm:$0xff] %v5268
    %5333 = vst [vmem:[%s1050 + $0x39] sm:$0xff] %v5269
    %5334 = vst [vmem:[%s1050 + $0x49] sm:$0xff] %v5270
    %5335 = vst [vmem:[%s1050 + $0x51] sm:$0xff] %v5271
    %5336 = vst [vmem:[%s1050 + $0x61] sm:$0xff] %v5272
    %5337 = vst [vmem:[%s1050 + $0x69] sm:$0xff] %v5273
    %5338 = vst [vmem:[%s1050 + $0x79] sm:$0xff] %v5274
    %5339 = vst [vmem:[%s1050 + $0x81] sm:$0xff] %v5275
    %5340 = vst [vmem:[%s1050 + $0x91] sm:$0xff] %v5276
    %5341 = vst [vmem:[%s1050 + $0x99] sm:$0xff] %v5277
    %5342 = vst [vmem:[%s1050 + $0xa9] sm:$0xff] %v5278
    %5343 = vst [vmem:[%s1050 + $0xb1] sm:$0xff] %v5279
    %5344 = vst [vmem:[%s1050 + $0xc1] sm:$0xff] %v5280
    %5345 = vst [vmem:[%s1050 + $0xc9] sm:$0xff] %v5281
    %5346 = vst [vmem:[%s1050 + $0xd9] sm:$0xff] %v5282
    %5347 = vst [vmem:[%s1050 + $0xe1] sm:$0xff] %v5283
    %5348 = vst [vmem:[%s1050 + $0xf1] sm:$0xff] %v5284
    %5349 = vst [vmem:[%s1050 + $0xf9] sm:$0xff] %v5285
    %5350 = vst [vmem:[%s1050 + $0x109] sm:$0xff] %v5286
    %5351 = vst [vmem:[%s1050 + $0x111] sm:$0xff] %v5287
    %5352 = vst [vmem:[%s1050 + $0x121] sm:$0xff] %v5288
    %5353 = vst [vmem:[%s1050 + $0x129] sm:$0xff] %v5289
    %5354 = vst [vmem:[%s1050 + $0x139] sm:$0xff] %v5290
    %5355 = vst [vmem:[%s1050 + $0x141] sm:$0xff] %v5291
    %5356 = vst [vmem:[%s1050 + $0x151] sm:$0xff] %v5292
    %5357 = vst [vmem:[%s1050 + $0x159] sm:$0xff] %v5293
    %5358 = vst [vmem:[%s1050 + $0x169] sm:$0xff] %v5294
    %5359 = vst [vmem:[%s1050 + $0x171] sm:$0xff] %v5295
    %5360 = vst [vmem:[%s1050 + $0x1b1] sm:$0xff] %v5296
    %5361 = vst [vmem:[%s1050 + $0x1b9] sm:$0xff] %v5297
    %5362 = vst [vmem:[%s1050 + $0x1c9] sm:$0xff] %v5298
    %5363 = vst [vmem:[%s1050 + $0x1d1] sm:$0xff] %v5299
    %5364 = vst [vmem:[%s1050 + $0x1e1] sm:$0xff] %v5300
    %5365 = vst [vmem:[%s1050 + $0x1e9] sm:$0xff] %v5301
    %5366 = vst [vmem:[%s1050 + $0x1f9] sm:$0xff] %v5302
    %5367 = vst [vmem:[%s1050 + $0x201] sm:$0xff] %v5303
    %5368 = vst [vmem:[%s1050 + $0x211] sm:$0xff] %v5304
    %5369 = vst [vmem:[%s1050 + $0x219] sm:$0xff] %v5305
    %5370 = vst [vmem:[%s1050 + $0x229] sm:$0xff] %v5306
    %5371 = vst [vmem:[%s1050 + $0x231] sm:$0xff] %v5307
    %5372 = vst [vmem:[%s1050 + $0x241] sm:$0xff] %v5308
    %5373 = vst [vmem:[%s1050 + $0x249] sm:$0xff] %v5309
    %5374 = vst [vmem:[%s1050 + $0x259] sm:$0xff] %v5310
    %5375 = vst [vmem:[%s1050 + $0x261] sm:$0xff] %v5311
    %5376 = vst [vmem:[%s1050 + $0x271] sm:$0xff] %v5312
    %5377 = vst [vmem:[%s1050 + $0x279] sm:$0xff] %v5313
    %5378 = vst [vmem:[%s1050 + $0x289] sm:$0xff] %v5314
    %5379 = vst [vmem:[%s1050 + $0x291] sm:$0xff] %v5315
    %5380 = vst [vmem:[%s1050 + $0x2a1] sm:$0xff] %v5316
    %5381 = vst [vmem:[%s1050 + $0x2a9] sm:$0xff] %v5317
    %5382 = vst [vmem:[%s1050 + $0x2b9] sm:$0xff] %v5318
    %5383 = vst [vmem:[%s1050 + $0x2c1] sm:$0xff] %v5319
    %5384 = vst [vmem:[%s1050 + $0x2d1] sm:$0xff] %v5320
    %5385 = vst [vmem:[%s1050 + $0x2d9] sm:$0xff] %v5321
    %5386 = vst [vmem:[%s1050 + $0x2e9] sm:$0xff] %v5322
    %5387 = vst [vmem:[%s1050 + $0x2f1] sm:$0xff] %v5323
    %5388 = vst [vmem:[%s1050 + $0x301] sm:$0xff] %v5324
    %5389 = vst [vmem:[%s1050 + $0x309] sm:$0xff] %v5325
    %5390 = vst [vmem:[%s1050 + $0x319] sm:$0xff] %v5326
    %5391 = vst [vmem:[%s1050 + $0x321] sm:$0xff] %v5327
    %v5392 = vld [vmem:[#allocation2] sm:$0xff]
    %v5393 = vld [vmem:[#allocation2 + $0x8] sm:$0xff]
    %v5394 = vld [vmem:[#allocation2 + $0x18] sm:$0xff]
    %v5395 = vld [vmem:[#allocation2 + $0x20] sm:$0xff]
    %v5396 = vld [vmem:[#allocation2 + $0x30] sm:$0xff]
    %v5397 = vld [vmem:[#allocation2 + $0x38] sm:$0xff]
    %v5398 = vld [vmem:[#allocation2 + $0x48] sm:$0xff]
    %v5399 = vld [vmem:[#allocation2 + $0x50] sm:$0xff]
    %v5400 = vld [vmem:[#allocation2 + $0x60] sm:$0xff]
    %v5401 = vld [vmem:[#allocation2 + $0x68] sm:$0xff]
    %v5402 = vld [vmem:[#allocation2 + $0x78] sm:$0xff]
    %v5403 = vld [vmem:[#allocation2 + $0x80] sm:$0xff]
    %v5404 = vld [vmem:[#allocation2 + $0x90] sm:$0xff]
    %v5405 = vld [vmem:[#allocation2 + $0x98] sm:$0xff]
    %v5406 = vld [vmem:[#allocation2 + $0xa8] sm:$0xff]
    %v5407 = vld [vmem:[#allocation2 + $0xb0] sm:$0xff]
    %v5408 = vld [vmem:[#allocation2 + $0xc0] sm:$0xff]
    %v5409 = vld [vmem:[#allocation2 + $0xc8] sm:$0xff]
    %v5410 = vld [vmem:[#allocation2 + $0xd8] sm:$0xff]
    %v5411 = vld [vmem:[#allocation2 + $0xe0] sm:$0xff]
    %v5412 = vld [vmem:[#allocation2 + $0xf0] sm:$0xff]
    %v5413 = vld [vmem:[#allocation2 + $0xf8] sm:$0xff]
    %v5414 = vld [vmem:[#allocation2 + $0x108] sm:$0xff]
    %v5415 = vld [vmem:[#allocation2 + $0x110] sm:$0xff]
    %v5416 = vld [vmem:[#allocation2 + $0x120] sm:$0xff]
    %v5417 = vld [vmem:[#allocation2 + $0x128] sm:$0xff]
    %v5418 = vld [vmem:[#allocation2 + $0x138] sm:$0xff]
    %v5419 = vld [vmem:[#allocation2 + $0x140] sm:$0xff]
    %v5420 = vld [vmem:[#allocation2 + $0x150] sm:$0xff]
    %v5421 = vld [vmem:[#allocation2 + $0x158] sm:$0xff]
    %v5422 = vld [vmem:[#allocation2 + $0x168] sm:$0xff]
    %v5423 = vld [vmem:[#allocation2 + $0x170] sm:$0xff]
    %v5424 = vld [vmem:[#allocation2 + $0x1b0] sm:$0xff]
    %v5425 = vld [vmem:[#allocation2 + $0x1b8] sm:$0xff]
    %v5426 = vld [vmem:[#allocation2 + $0x1c8] sm:$0xff]
    %v5427 = vld [vmem:[#allocation2 + $0x1d0] sm:$0xff]
    %v5428 = vld [vmem:[#allocation2 + $0x1e0] sm:$0xff]
    %v5429 = vld [vmem:[#allocation2 + $0x1e8] sm:$0xff]
    %v5430 = vld [vmem:[#allocation2 + $0x1f8] sm:$0xff]
    %v5431 = vld [vmem:[#allocation2 + $0x200] sm:$0xff]
    %v5432 = vld [vmem:[#allocation2 + $0x210] sm:$0xff]
    %v5433 = vld [vmem:[#allocation2 + $0x218] sm:$0xff]
    %v5434 = vld [vmem:[#allocation2 + $0x228] sm:$0xff]
    %v5435 = vld [vmem:[#allocation2 + $0x230] sm:$0xff]
    %v5436 = vld [vmem:[#allocation2 + $0x240] sm:$0xff]
    %v5437 = vld [vmem:[#allocation2 + $0x248] sm:$0xff]
    %v5438 = vld [vmem:[#allocation2 + $0x258] sm:$0xff]
    %v5439 = vld [vmem:[#allocation2 + $0x260] sm:$0xff]
    %v5440 = vld [vmem:[#allocation2 + $0x270] sm:$0xff]
    %v5441 = vld [vmem:[#allocation2 + $0x278] sm:$0xff]
    %v5442 = vld [vmem:[#allocation2 + $0x288] sm:$0xff]
    %v5443 = vld [vmem:[#allocation2 + $0x290] sm:$0xff]
    %v5444 = vld [vmem:[#allocation2 + $0x2a0] sm:$0xff]
    %v5445 = vld [vmem:[#allocation2 + $0x2a8] sm:$0xff]
    %v5446 = vld [vmem:[#allocation2 + $0x2b8] sm:$0xff]
    %v5447 = vld [vmem:[#allocation2 + $0x2c0] sm:$0xff]
    %v5448 = vld [vmem:[#allocation2 + $0x2d0] sm:$0xff]
    %v5449 = vld [vmem:[#allocation2 + $0x2d8] sm:$0xff]
    %v5450 = vld [vmem:[#allocation2 + $0x2e8] sm:$0xff]
    %v5451 = vld [vmem:[#allocation2 + $0x2f0] sm:$0xff]
    %v5452 = vld [vmem:[#allocation2 + $0x300] sm:$0xff]
    %v5453 = vld [vmem:[#allocation2 + $0x308] sm:$0xff]
    %v5454 = vld [vmem:[#allocation2 + $0x318] sm:$0xff]
    %v5455 = vld [vmem:[#allocation2 + $0x320] sm:$0xff]
    %5456 = vst [vmem:[#allocation3] sm:$0xff] %v5392
    %5457 = vst [vmem:[#allocation3 + $0x48] sm:$0xff] %v5393
    %5458 = vst [vmem:[#allocation3 + $0x90] sm:$0xff] %v5394
    %5459 = vst [vmem:[#allocation3 + $0xd8] sm:$0xff] %v5395
    %5460 = vst [vmem:[#allocation3 + $0x120] sm:$0xff] %v5396
    %5461 = vst [vmem:[#allocation3 + $0x168] sm:$0xff] %v5397
    %5462 = vst [vmem:[#allocation3 + $0x1b0] sm:$0xff] %v5398
    %5463 = vst [vmem:[#allocation3 + $0x1f8] sm:$0xff] %v5399
    %5464 = vst [vmem:[#allocation3 + $0x240] sm:$0xff] %v5400
    %5465 = vst [vmem:[#allocation3 + $0x288] sm:$0xff] %v5401
    %5466 = vst [vmem:[#allocation3 + $0x2d0] sm:$0xff] %v5402
    %5467 = vst [vmem:[#allocation3 + $0x318] sm:$0xff] %v5403
    %5468 = vst [vmem:[#allocation3 + $0x360] sm:$0xff] %v5404
    %5469 = vst [vmem:[#allocation3 + $0x3a8] sm:$0xff] %v5405
    %5470 = vst [vmem:[#allocation3 + $0x3f0] sm:$0xff] %v5406
    %5471 = vst [vmem:[#allocation3 + $0x438] sm:$0xff] %v5407
    %5472 = vst [vmem:[#allocation3 + $0x480] sm:$0xff] %v5408
    %5473 = vst [vmem:[#allocation3 + $0x4c8] sm:$0xff] %v5409
    %5474 = vst [vmem:[#allocation3 + $0x510] sm:$0xff] %v5410
    %5475 = vst [vmem:[#allocation3 + $0x558] sm:$0xff] %v5411
    %5476 = vst [vmem:[#allocation3 + $0x5a0] sm:$0xff] %v5412
    %5477 = vst [vmem:[#allocation3 + $0x5e8] sm:$0xff] %v5413
    %5478 = vst [vmem:[#allocation3 + $0x630] sm:$0xff] %v5414
    %5479 = vst [vmem:[#allocation3 + $0x678] sm:$0xff] %v5415
    %5480 = vst [vmem:[#allocation3 + $0x6c0] sm:$0xff] %v5416
    %5481 = vst [vmem:[#allocation3 + $0x708] sm:$0xff] %v5417
    %5482 = vst [vmem:[#allocation3 + $0x750] sm:$0xff] %v5418
    %5483 = vst [vmem:[#allocation3 + $0x798] sm:$0xff] %v5419
    %5484 = vst [vmem:[#allocation3 + $0x7e0] sm:$0xff] %v5420
    %5485 = vst [vmem:[#allocation3 + $0x828] sm:$0xff] %v5421
    %5486 = vst [vmem:[#allocation3 + $0x870] sm:$0xff] %v5422
    %5487 = vst [vmem:[#allocation3 + $0x8b8] sm:$0xff] %v5423
    %5488 = vst [vmem:[#allocation3 + $0x900] sm:$0xff] %v5424
    %5489 = vst [vmem:[#allocation3 + $0x948] sm:$0xff] %v5425
    %5490 = vst [vmem:[#allocation3 + $0x990] sm:$0xff] %v5426
    %5491 = vst [vmem:[#allocation3 + $0x9d8] sm:$0xff] %v5427
    %5492 = vst [vmem:[#allocation3 + $0xa20] sm:$0xff] %v5428
    %5493 = vst [vmem:[#allocation3 + $0xa68] sm:$0xff] %v5429
    %5494 = vst [vmem:[#allocation3 + $0xab0] sm:$0xff] %v5430
    %5495 = vst [vmem:[#allocation3 + $0xaf8] sm:$0xff] %v5431
    %5496 = vst [vmem:[#allocation3 + $0xb40] sm:$0xff] %v5432
    %5497 = vst [vmem:[#allocation3 + $0xb88] sm:$0xff] %v5433
    %5498 = vst [vmem:[#allocation3 + $0xbd0] sm:$0xff] %v5434
    %5499 = vst [vmem:[#allocation3 + $0xc18] sm:$0xff] %v5435
    %5500 = vst [vmem:[#allocation3 + $0xc60] sm:$0xff] %v5436
    %5501 = vst [vmem:[#allocation3 + $0xca8] sm:$0xff] %v5437
    %5502 = vst [vmem:[#allocation3 + $0xcf0] sm:$0xff] %v5438
    %5503 = vst [vmem:[#allocation3 + $0xd38] sm:$0xff] %v5439
    %5504 = vst [vmem:[#allocation3 + $0xd80] sm:$0xff] %v5440
    %5505 = vst [vmem:[#allocation3 + $0xdc8] sm:$0xff] %v5441
    %5506 = vst [vmem:[#allocation3 + $0xe10] sm:$0xff] %v5442
    %5507 = vst [vmem:[#allocation3 + $0xe58] sm:$0xff] %v5443
    %5508 = vst [vmem:[#allocation3 + $0xea0] sm:$0xff] %v5444
    %5509 = vst [vmem:[#allocation3 + $0xee8] sm:$0xff] %v5445
    %5510 = vst [vmem:[#allocation3 + $0xf30] sm:$0xff] %v5446
    %5511 = vst [vmem:[#allocation3 + $0xf78] sm:$0xff] %v5447
    %5512 = vst [vmem:[#allocation3 + $0xfc0] sm:$0xff] %v5448
    %5513 = vst [vmem:[#allocation3 + $0x1008] sm:$0xff] %v5449
    %5514 = vst [vmem:[#allocation3 + $0x1050] sm:$0xff] %v5450
    %5515 = vst [vmem:[#allocation3 + $0x1098] sm:$0xff] %v5451
    %5516 = vst [vmem:[#allocation3 + $0x10e0] sm:$0xff] %v5452
    %5517 = vst [vmem:[#allocation3 + $0x1128] sm:$0xff] %v5453
    %5518 = vst [vmem:[#allocation3 + $0x1170] sm:$0xff] %v5454
    %5519 = vst [vmem:[#allocation3 + $0x11b8] sm:$0xff] %v5455
    %v5520 = vld [vmem:[#allocation2 + $0x1] sm:$0xff]
    %v5521 = vld [vmem:[#allocation2 + $0x9] sm:$0xff]
    %v5522 = vld [vmem:[#allocation2 + $0x19] sm:$0xff]
    %v5523 = vld [vmem:[#allocation2 + $0x21] sm:$0xff]
    %v5524 = vld [vmem:[#allocation2 + $0x31] sm:$0xff]
    %v5525 = vld [vmem:[#allocation2 + $0x39] sm:$0xff]
    %v5526 = vld [vmem:[#allocation2 + $0x49] sm:$0xff]
    %v5527 = vld [vmem:[#allocation2 + $0x51] sm:$0xff]
    %v5528 = vld [vmem:[#allocation2 + $0x61] sm:$0xff]
    %v5529 = vld [vmem:[#allocation2 + $0x69] sm:$0xff]
    %v5530 = vld [vmem:[#allocation2 + $0x79] sm:$0xff]
    %v5531 = vld [vmem:[#allocation2 + $0x81] sm:$0xff]
    %v5532 = vld [vmem:[#allocation2 + $0x91] sm:$0xff]
    %v5533 = vld [vmem:[#allocation2 + $0x99] sm:$0xff]
    %v5534 = vld [vmem:[#allocation2 + $0xa9] sm:$0xff]
    %v5535 = vld [vmem:[#allocation2 + $0xb1] sm:$0xff]
    %v5536 = vld [vmem:[#allocation2 + $0xc1] sm:$0xff]
    %v5537 = vld [vmem:[#allocation2 + $0xc9] sm:$0xff]
    %v5538 = vld [vmem:[#allocation2 + $0xd9] sm:$0xff]
    %v5539 = vld [vmem:[#allocation2 + $0xe1] sm:$0xff]
    %v5540 = vld [vmem:[#allocation2 + $0xf1] sm:$0xff]
    %v5541 = vld [vmem:[#allocation2 + $0xf9] sm:$0xff]
    %v5542 = vld [vmem:[#allocation2 + $0x109] sm:$0xff]
    %v5543 = vld [vmem:[#allocation2 + $0x111] sm:$0xff]
    %v5544 = vld [vmem:[#allocation2 + $0x121] sm:$0xff]
    %v5545 = vld [vmem:[#allocation2 + $0x129] sm:$0xff]
    %v5546 = vld [vmem:[#allocation2 + $0x139] sm:$0xff]
    %v5547 = vld [vmem:[#allocation2 + $0x141] sm:$0xff]
    %v5548 = vld [vmem:[#allocation2 + $0x151] sm:$0xff]
    %v5549 = vld [vmem:[#allocation2 + $0x159] sm:$0xff]
    %v5550 = vld [vmem:[#allocation2 + $0x169] sm:$0xff]
    %v5551 = vld [vmem:[#allocation2 + $0x171] sm:$0xff]
    %v5552 = vld [vmem:[#allocation2 + $0x1b1] sm:$0xff]
    %v5553 = vld [vmem:[#allocation2 + $0x1b9] sm:$0xff]
    %v5554 = vld [vmem:[#allocation2 + $0x1c9] sm:$0xff]
    %v5555 = vld [vmem:[#allocation2 + $0x1d1] sm:$0xff]
    %v5556 = vld [vmem:[#allocation2 + $0x1e1] sm:$0xff]
    %v5557 = vld [vmem:[#allocation2 + $0x1e9] sm:$0xff]
    %v5558 = vld [vmem:[#allocation2 + $0x1f9] sm:$0xff]
    %v5559 = vld [vmem:[#allocation2 + $0x201] sm:$0xff]
    %v5560 = vld [vmem:[#allocation2 + $0x211] sm:$0xff]
    %v5561 = vld [vmem:[#allocation2 + $0x219] sm:$0xff]
    %v5562 = vld [vmem:[#allocation2 + $0x229] sm:$0xff]
    %v5563 = vld [vmem:[#allocation2 + $0x231] sm:$0xff]
    %v5564 = vld [vmem:[#allocation2 + $0x241] sm:$0xff]
    %v5565 = vld [vmem:[#allocation2 + $0x249] sm:$0xff]
    %v5566 = vld [vmem:[#allocation2 + $0x259] sm:$0xff]
    %v5567 = vld [vmem:[#allocation2 + $0x261] sm:$0xff]
    %v5568 = vld [vmem:[#allocation2 + $0x271] sm:$0xff]
    %v5569 = vld [vmem:[#allocation2 + $0x279] sm:$0xff]
    %v5570 = vld [vmem:[#allocation2 + $0x289] sm:$0xff]
    %v5571 = vld [vmem:[#allocation2 + $0x291] sm:$0xff]
    %v5572 = vld [vmem:[#allocation2 + $0x2a1] sm:$0xff]
    %v5573 = vld [vmem:[#allocation2 + $0x2a9] sm:$0xff]
    %v5574 = vld [vmem:[#allocation2 + $0x2b9] sm:$0xff]
    %v5575 = vld [vmem:[#allocation2 + $0x2c1] sm:$0xff]
    %v5576 = vld [vmem:[#allocation2 + $0x2d1] sm:$0xff]
    %v5577 = vld [vmem:[#allocation2 + $0x2d9] sm:$0xff]
    %v5578 = vld [vmem:[#allocation2 + $0x2e9] sm:$0xff]
    %v5579 = vld [vmem:[#allocation2 + $0x2f1] sm:$0xff]
    %v5580 = vld [vmem:[#allocation2 + $0x301] sm:$0xff]
    %v5581 = vld [vmem:[#allocation2 + $0x309] sm:$0xff]
    %v5582 = vld [vmem:[#allocation2 + $0x319] sm:$0xff]
    %v5583 = vld [vmem:[#allocation2 + $0x321] sm:$0xff]
    %5584 = vst [vmem:[#allocation3 + $0x8] sm:$0xff] %v5520
    %5585 = vst [vmem:[#allocation3 + $0x50] sm:$0xff] %v5521
    %5586 = vst [vmem:[#allocation3 + $0x98] sm:$0xff] %v5522
    %5587 = vst [vmem:[#allocation3 + $0xe0] sm:$0xff] %v5523
    %5588 = vst [vmem:[#allocation3 + $0x128] sm:$0xff] %v5524
    %5589 = vst [vmem:[#allocation3 + $0x170] sm:$0xff] %v5525
    %5590 = vst [vmem:[#allocation3 + $0x1b8] sm:$0xff] %v5526
    %5591 = vst [vmem:[#allocation3 + $0x200] sm:$0xff] %v5527
    %5592 = vst [vmem:[#allocation3 + $0x248] sm:$0xff] %v5528
    %5593 = vst [vmem:[#allocation3 + $0x290] sm:$0xff] %v5529
    %5594 = vst [vmem:[#allocation3 + $0x2d8] sm:$0xff] %v5530
    %5595 = vst [vmem:[#allocation3 + $0x320] sm:$0xff] %v5531
    %5596 = vst [vmem:[#allocation3 + $0x368] sm:$0xff] %v5532
    %5597 = vst [vmem:[#allocation3 + $0x3b0] sm:$0xff] %v5533
    %5598 = vst [vmem:[#allocation3 + $0x3f8] sm:$0xff] %v5534
    %5599 = vst [vmem:[#allocation3 + $0x440] sm:$0xff] %v5535
    %5600 = vst [vmem:[#allocation3 + $0x488] sm:$0xff] %v5536
    %5601 = vst [vmem:[#allocation3 + $0x4d0] sm:$0xff] %v5537
    %5602 = vst [vmem:[#allocation3 + $0x518] sm:$0xff] %v5538
    %5603 = vst [vmem:[#allocation3 + $0x560] sm:$0xff] %v5539
    %5604 = vst [vmem:[#allocation3 + $0x5a8] sm:$0xff] %v5540
    %5605 = vst [vmem:[#allocation3 + $0x5f0] sm:$0xff] %v5541
    %5606 = vst [vmem:[#allocation3 + $0x638] sm:$0xff] %v5542
    %5607 = vst [vmem:[#allocation3 + $0x680] sm:$0xff] %v5543
    %5608 = vst [vmem:[#allocation3 + $0x6c8] sm:$0xff] %v5544
    %5609 = vst [vmem:[#allocation3 + $0x710] sm:$0xff] %v5545
    %5610 = vst [vmem:[#allocation3 + $0x758] sm:$0xff] %v5546
    %5611 = vst [vmem:[#allocation3 + $0x7a0] sm:$0xff] %v5547
    %5612 = vst [vmem:[#allocation3 + $0x7e8] sm:$0xff] %v5548
    %5613 = vst [vmem:[#allocation3 + $0x830] sm:$0xff] %v5549
    %5614 = vst [vmem:[#allocation3 + $0x878] sm:$0xff] %v5550
    %5615 = vst [vmem:[#allocation3 + $0x8c0] sm:$0xff] %v5551
    %5616 = vst [vmem:[#allocation3 + $0x908] sm:$0xff] %v5552
    %5617 = vst [vmem:[#allocation3 + $0x950] sm:$0xff] %v5553
    %5618 = vst [vmem:[#allocation3 + $0x998] sm:$0xff] %v5554
    %5619 = vst [vmem:[#allocation3 + $0x9e0] sm:$0xff] %v5555
    %5620 = vst [vmem:[#allocation3 + $0xa28] sm:$0xff] %v5556
    %5621 = vst [vmem:[#allocation3 + $0xa70] sm:$0xff] %v5557
    %5622 = vst [vmem:[#allocation3 + $0xab8] sm:$0xff] %v5558
    %5623 = vst [vmem:[#allocation3 + $0xb00] sm:$0xff] %v5559
    %5624 = vst [vmem:[#allocation3 + $0xb48] sm:$0xff] %v5560
    %5625 = vst [vmem:[#allocation3 + $0xb90] sm:$0xff] %v5561
    %5626 = vst [vmem:[#allocation3 + $0xbd8] sm:$0xff] %v5562
    %5627 = vst [vmem:[#allocation3 + $0xc20] sm:$0xff] %v5563
    %5628 = vst [vmem:[#allocation3 + $0xc68] sm:$0xff] %v5564
    %5629 = vst [vmem:[#allocation3 + $0xcb0] sm:$0xff] %v5565
    %5630 = vst [vmem:[#allocation3 + $0xcf8] sm:$0xff] %v5566
    %5631 = vst [vmem:[#allocation3 + $0xd40] sm:$0xff] %v5567
    %5632 = vst [vmem:[#allocation3 + $0xd88] sm:$0xff] %v5568
    %5633 = vst [vmem:[#allocation3 + $0xdd0] sm:$0xff] %v5569
    %5634 = vst [vmem:[#allocation3 + $0xe18] sm:$0xff] %v5570
    %5635 = vst [vmem:[#allocation3 + $0xe60] sm:$0xff] %v5571
    %5636 = vst [vmem:[#allocation3 + $0xea8] sm:$0xff] %v5572
    %5637 = vst [vmem:[#allocation3 + $0xef0] sm:$0xff] %v5573
    %5638 = vst [vmem:[#allocation3 + $0xf38] sm:$0xff] %v5574
    %5639 = vst [vmem:[#allocation3 + $0xf80] sm:$0xff] %v5575
    %5640 = vst [vmem:[#allocation3 + $0xfc8] sm:$0xff] %v5576
    %5641 = vst [vmem:[#allocation3 + $0x1010] sm:$0xff] %v5577
    %5642 = vst [vmem:[#allocation3 + $0x1058] sm:$0xff] %v5578
    %5643 = vst [vmem:[#allocation3 + $0x10a0] sm:$0xff] %v5579
    %5644 = vst [vmem:[#allocation3 + $0x10e8] sm:$0xff] %v5580
    %5645 = vst [vmem:[#allocation3 + $0x1130] sm:$0xff] %v5581
    %5646 = vst [vmem:[#allocation3 + $0x1178] sm:$0xff] %v5582
    %5647 = vst [vmem:[#allocation3 + $0x11c0] sm:$0xff] %v5583
    %v5648 = vld [vmem:[#allocation2 + $0x2] sm:$0xff]
    %v5649 = vld [vmem:[#allocation2 + $0xa] sm:$0xff]
    %v5650 = vld [vmem:[#allocation2 + $0x1a] sm:$0xff]
    %v5651 = vld [vmem:[#allocation2 + $0x22] sm:$0xff]
    %v5652 = vld [vmem:[#allocation2 + $0x32] sm:$0xff]
    %v5653 = vld [vmem:[#allocation2 + $0x3a] sm:$0xff]
    %v5654 = vld [vmem:[#allocation2 + $0x4a] sm:$0xff]
    %v5655 = vld [vmem:[#allocation2 + $0x52] sm:$0xff]
    %v5656 = vld [vmem:[#allocation2 + $0x62] sm:$0xff]
    %v5657 = vld [vmem:[#allocation2 + $0x6a] sm:$0xff]
    %v5658 = vld [vmem:[#allocation2 + $0x7a] sm:$0xff]
    %v5659 = vld [vmem:[#allocation2 + $0x82] sm:$0xff]
    %v5660 = vld [vmem:[#allocation2 + $0x92] sm:$0xff]
    %v5661 = vld [vmem:[#allocation2 + $0x9a] sm:$0xff]
    %v5662 = vld [vmem:[#allocation2 + $0xaa] sm:$0xff]
    %v5663 = vld [vmem:[#allocation2 + $0xb2] sm:$0xff]
    %v5664 = vld [vmem:[#allocation2 + $0xc2] sm:$0xff]
    %v5665 = vld [vmem:[#allocation2 + $0xca] sm:$0xff]
    %v5666 = vld [vmem:[#allocation2 + $0xda] sm:$0xff]
    %v5667 = vld [vmem:[#allocation2 + $0xe2] sm:$0xff]
    %v5668 = vld [vmem:[#allocation2 + $0xf2] sm:$0xff]
    %v5669 = vld [vmem:[#allocation2 + $0xfa] sm:$0xff]
    %v5670 = vld [vmem:[#allocation2 + $0x10a] sm:$0xff]
    %v5671 = vld [vmem:[#allocation2 + $0x112] sm:$0xff]
    %v5672 = vld [vmem:[#allocation2 + $0x122] sm:$0xff]
    %v5673 = vld [vmem:[#allocation2 + $0x12a] sm:$0xff]
    %v5674 = vld [vmem:[#allocation2 + $0x13a] sm:$0xff]
    %v5675 = vld [vmem:[#allocation2 + $0x142] sm:$0xff]
    %v5676 = vld [vmem:[#allocation2 + $0x152] sm:$0xff]
    %v5677 = vld [vmem:[#allocation2 + $0x15a] sm:$0xff]
    %v5678 = vld [vmem:[#allocation2 + $0x16a] sm:$0xff]
    %v5679 = vld [vmem:[#allocation2 + $0x172] sm:$0xff]
    %v5680 = vld [vmem:[#allocation2 + $0x1b2] sm:$0xff]
    %v5681 = vld [vmem:[#allocation2 + $0x1ba] sm:$0xff]
    %v5682 = vld [vmem:[#allocation2 + $0x1ca] sm:$0xff]
    %v5683 = vld [vmem:[#allocation2 + $0x1d2] sm:$0xff]
    %v5684 = vld [vmem:[#allocation2 + $0x1e2] sm:$0xff]
    %v5685 = vld [vmem:[#allocation2 + $0x1ea] sm:$0xff]
    %v5686 = vld [vmem:[#allocation2 + $0x1fa] sm:$0xff]
    %v5687 = vld [vmem:[#allocation2 + $0x202] sm:$0xff]
    %v5688 = vld [vmem:[#allocation2 + $0x212] sm:$0xff]
    %v5689 = vld [vmem:[#allocation2 + $0x21a] sm:$0xff]
    %v5690 = vld [vmem:[#allocation2 + $0x22a] sm:$0xff]
    %v5691 = vld [vmem:[#allocation2 + $0x232] sm:$0xff]
    %v5692 = vld [vmem:[#allocation2 + $0x242] sm:$0xff]
    %v5693 = vld [vmem:[#allocation2 + $0x24a] sm:$0xff]
    %v5694 = vld [vmem:[#allocation2 + $0x25a] sm:$0xff]
    %v5695 = vld [vmem:[#allocation2 + $0x262] sm:$0xff]
    %v5696 = vld [vmem:[#allocation2 + $0x272] sm:$0xff]
    %v5697 = vld [vmem:[#allocation2 + $0x27a] sm:$0xff]
    %v5698 = vld [vmem:[#allocation2 + $0x28a] sm:$0xff]
    %v5699 = vld [vmem:[#allocation2 + $0x292] sm:$0xff]
    %v5700 = vld [vmem:[#allocation2 + $0x2a2] sm:$0xff]
    %v5701 = vld [vmem:[#allocation2 + $0x2aa] sm:$0xff]
    %v5702 = vld [vmem:[#allocation2 + $0x2ba] sm:$0xff]
    %v5703 = vld [vmem:[#allocation2 + $0x2c2] sm:$0xff]
    %v5704 = vld [vmem:[#allocation2 + $0x2d2] sm:$0xff]
    %v5705 = vld [vmem:[#allocation2 + $0x2da] sm:$0xff]
    %v5706 = vld [vmem:[#allocation2 + $0x2ea] sm:$0xff]
    %v5707 = vld [vmem:[#allocation2 + $0x2f2] sm:$0xff]
    %v5708 = vld [vmem:[#allocation2 + $0x302] sm:$0xff]
    %v5709 = vld [vmem:[#allocation2 + $0x30a] sm:$0xff]
    %v5710 = vld [vmem:[#allocation2 + $0x31a] sm:$0xff]
    %v5711 = vld [vmem:[#allocation2 + $0x322] sm:$0xff]
    %5712 = vst [vmem:[#allocation3 + $0x10] sm:$0xff] %v5648
    %5713 = vst [vmem:[#allocation3 + $0x58] sm:$0xff] %v5649
    %5714 = vst [vmem:[#allocation3 + $0xa0] sm:$0xff] %v5650
    %5715 = vst [vmem:[#allocation3 + $0xe8] sm:$0xff] %v5651
    %5716 = vst [vmem:[#allocation3 + $0x130] sm:$0xff] %v5652
    %5717 = vst [vmem:[#allocation3 + $0x178] sm:$0xff] %v5653
    %5718 = vst [vmem:[#allocation3 + $0x1c0] sm:$0xff] %v5654
    %5719 = vst [vmem:[#allocation3 + $0x208] sm:$0xff] %v5655
    %5720 = vst [vmem:[#allocation3 + $0x250] sm:$0xff] %v5656
    %5721 = vst [vmem:[#allocation3 + $0x298] sm:$0xff] %v5657
    %5722 = vst [vmem:[#allocation3 + $0x2e0] sm:$0xff] %v5658
    %5723 = vst [vmem:[#allocation3 + $0x328] sm:$0xff] %v5659
    %5724 = vst [vmem:[#allocation3 + $0x370] sm:$0xff] %v5660
    %5725 = vst [vmem:[#allocation3 + $0x3b8] sm:$0xff] %v5661
    %5726 = vst [vmem:[#allocation3 + $0x400] sm:$0xff] %v5662
    %5727 = vst [vmem:[#allocation3 + $0x448] sm:$0xff] %v5663
    %5728 = vst [vmem:[#allocation3 + $0x490] sm:$0xff] %v5664
    %5729 = vst [vmem:[#allocation3 + $0x4d8] sm:$0xff] %v5665
    %5730 = vst [vmem:[#allocation3 + $0x520] sm:$0xff] %v5666
    %5731 = vst [vmem:[#allocation3 + $0x568] sm:$0xff] %v5667
    %5732 = vst [vmem:[#allocation3 + $0x5b0] sm:$0xff] %v5668
    %5733 = vst [vmem:[#allocation3 + $0x5f8] sm:$0xff] %v5669
    %5734 = vst [vmem:[#allocation3 + $0x640] sm:$0xff] %v5670
    %5735 = vst [vmem:[#allocation3 + $0x688] sm:$0xff] %v5671
    %5736 = vst [vmem:[#allocation3 + $0x6d0] sm:$0xff] %v5672
    %5737 = vst [vmem:[#allocation3 + $0x718] sm:$0xff] %v5673
    %5738 = vst [vmem:[#allocation3 + $0x760] sm:$0xff] %v5674
    %5739 = vst [vmem:[#allocation3 + $0x7a8] sm:$0xff] %v5675
    %5740 = vst [vmem:[#allocation3 + $0x7f0] sm:$0xff] %v5676
    %5741 = vst [vmem:[#allocation3 + $0x838] sm:$0xff] %v5677
    %5742 = vst [vmem:[#allocation3 + $0x880] sm:$0xff] %v5678
    %5743 = vst [vmem:[#allocation3 + $0x8c8] sm:$0xff] %v5679
    %5744 = vst [vmem:[#allocation3 + $0x910] sm:$0xff] %v5680
    %5745 = vst [vmem:[#allocation3 + $0x958] sm:$0xff] %v5681
    %5746 = vst [vmem:[#allocation3 + $0x9a0] sm:$0xff] %v5682
    %5747 = vst [vmem:[#allocation3 + $0x9e8] sm:$0xff] %v5683
    %5748 = vst [vmem:[#allocation3 + $0xa30] sm:$0xff] %v5684
    %5749 = vst [vmem:[#allocation3 + $0xa78] sm:$0xff] %v5685
    %5750 = vst [vmem:[#allocation3 + $0xac0] sm:$0xff] %v5686
    %5751 = vst [vmem:[#allocation3 + $0xb08] sm:$0xff] %v5687
    %5752 = vst [vmem:[#allocation3 + $0xb50] sm:$0xff] %v5688
    %5753 = vst [vmem:[#allocation3 + $0xb98] sm:$0xff] %v5689
    %5754 = vst [vmem:[#allocation3 + $0xbe0] sm:$0xff] %v5690
    %5755 = vst [vmem:[#allocation3 + $0xc28] sm:$0xff] %v5691
    %5756 = vst [vmem:[#allocation3 + $0xc70] sm:$0xff] %v5692
    %5757 = vst [vmem:[#allocation3 + $0xcb8] sm:$0xff] %v5693
    %5758 = vst [vmem:[#allocation3 + $0xd00] sm:$0xff] %v5694
    %5759 = vst [vmem:[#allocation3 + $0xd48] sm:$0xff] %v5695
    %5760 = vst [vmem:[#allocation3 + $0xd90] sm:$0xff] %v5696
    %5761 = vst [vmem:[#allocation3 + $0xdd8] sm:$0xff] %v5697
    %5762 = vst [vmem:[#allocation3 + $0xe20] sm:$0xff] %v5698
    %5763 = vst [vmem:[#allocation3 + $0xe68] sm:$0xff] %v5699
    %5764 = vst [vmem:[#allocation3 + $0xeb0] sm:$0xff] %v5700
    %5765 = vst [vmem:[#allocation3 + $0xef8] sm:$0xff] %v5701
    %5766 = vst [vmem:[#allocation3 + $0xf40] sm:$0xff] %v5702
    %5767 = vst [vmem:[#allocation3 + $0xf88] sm:$0xff] %v5703
    %5768 = vst [vmem:[#allocation3 + $0xfd0] sm:$0xff] %v5704
    %5769 = vst [vmem:[#allocation3 + $0x1018] sm:$0xff] %v5705
    %5770 = vst [vmem:[#allocation3 + $0x1060] sm:$0xff] %v5706
    %5771 = vst [vmem:[#allocation3 + $0x10a8] sm:$0xff] %v5707
    %5772 = vst [vmem:[#allocation3 + $0x10f0] sm:$0xff] %v5708
    %5773 = vst [vmem:[#allocation3 + $0x1138] sm:$0xff] %v5709
    %5774 = vst [vmem:[#allocation3 + $0x1180] sm:$0xff] %v5710
    %5775 = vst [vmem:[#allocation3 + $0x11c8] sm:$0xff] %v5711
    %v5776 = vld [vmem:[%s1050] sm:$0xff]
    %v5777 = vld [vmem:[%s1050 + $0x8] sm:$0xff]
    %v5778 = vld [vmem:[%s1050 + $0x18] sm:$0xff]
    %v5779 = vld [vmem:[%s1050 + $0x20] sm:$0xff]
    %v5780 = vld [vmem:[%s1050 + $0x30] sm:$0xff]
    %v5781 = vld [vmem:[%s1050 + $0x38] sm:$0xff]
    %v5782 = vld [vmem:[%s1050 + $0x48] sm:$0xff]
    %v5783 = vld [vmem:[%s1050 + $0x50] sm:$0xff]
    %v5784 = vld [vmem:[%s1050 + $0x60] sm:$0xff]
    %v5785 = vld [vmem:[%s1050 + $0x68] sm:$0xff]
    %v5786 = vld [vmem:[%s1050 + $0x78] sm:$0xff]
    %v5787 = vld [vmem:[%s1050 + $0x80] sm:$0xff]
    %v5788 = vld [vmem:[%s1050 + $0x90] sm:$0xff]
    %v5789 = vld [vmem:[%s1050 + $0x98] sm:$0xff]
    %v5790 = vld [vmem:[%s1050 + $0xa8] sm:$0xff]
    %v5791 = vld [vmem:[%s1050 + $0xb0] sm:$0xff]
    %v5792 = vld [vmem:[%s1050 + $0xc0] sm:$0xff]
    %v5793 = vld [vmem:[%s1050 + $0xc8] sm:$0xff]
    %v5794 = vld [vmem:[%s1050 + $0xd8] sm:$0xff]
    %v5795 = vld [vmem:[%s1050 + $0xe0] sm:$0xff]
    %v5796 = vld [vmem:[%s1050 + $0xf0] sm:$0xff]
    %v5797 = vld [vmem:[%s1050 + $0xf8] sm:$0xff]
    %v5798 = vld [vmem:[%s1050 + $0x108] sm:$0xff]
    %v5799 = vld [vmem:[%s1050 + $0x110] sm:$0xff]
    %v5800 = vld [vmem:[%s1050 + $0x120] sm:$0xff]
    %v5801 = vld [vmem:[%s1050 + $0x128] sm:$0xff]
    %v5802 = vld [vmem:[%s1050 + $0x138] sm:$0xff]
    %v5803 = vld [vmem:[%s1050 + $0x140] sm:$0xff]
    %v5804 = vld [vmem:[%s1050 + $0x150] sm:$0xff]
    %v5805 = vld [vmem:[%s1050 + $0x158] sm:$0xff]
    %v5806 = vld [vmem:[%s1050 + $0x168] sm:$0xff]
    %v5807 = vld [vmem:[%s1050 + $0x170] sm:$0xff]
    %v5808 = vld [vmem:[%s1050 + $0x1b0] sm:$0xff]
    %v5809 = vld [vmem:[%s1050 + $0x1b8] sm:$0xff]
    %v5810 = vld [vmem:[%s1050 + $0x1c8] sm:$0xff]
    %v5811 = vld [vmem:[%s1050 + $0x1d0] sm:$0xff]
    %v5812 = vld [vmem:[%s1050 + $0x1e0] sm:$0xff]
    %v5813 = vld [vmem:[%s1050 + $0x1e8] sm:$0xff]
    %v5814 = vld [vmem:[%s1050 + $0x1f8] sm:$0xff]
    %v5815 = vld [vmem:[%s1050 + $0x200] sm:$0xff]
    %v5816 = vld [vmem:[%s1050 + $0x210] sm:$0xff]
    %v5817 = vld [vmem:[%s1050 + $0x218] sm:$0xff]
    %v5818 = vld [vmem:[%s1050 + $0x228] sm:$0xff]
    %v5819 = vld [vmem:[%s1050 + $0x230] sm:$0xff]
    %v5820 = vld [vmem:[%s1050 + $0x240] sm:$0xff]
    %v5821 = vld [vmem:[%s1050 + $0x248] sm:$0xff]
    %v5822 = vld [vmem:[%s1050 + $0x258] sm:$0xff]
    %v5823 = vld [vmem:[%s1050 + $0x260] sm:$0xff]
    %v5824 = vld [vmem:[%s1050 + $0x270] sm:$0xff]
    %v5825 = vld [vmem:[%s1050 + $0x278] sm:$0xff]
    %v5826 = vld [vmem:[%s1050 + $0x288] sm:$0xff]
    %v5827 = vld [vmem:[%s1050 + $0x290] sm:$0xff]
    %v5828 = vld [vmem:[%s1050 + $0x2a0] sm:$0xff]
    %v5829 = vld [vmem:[%s1050 + $0x2a8] sm:$0xff]
    %v5830 = vld [vmem:[%s1050 + $0x2b8] sm:$0xff]
    %v5831 = vld [vmem:[%s1050 + $0x2c0] sm:$0xff]
    %v5832 = vld [vmem:[%s1050 + $0x2d0] sm:$0xff]
    %v5833 = vld [vmem:[%s1050 + $0x2d8] sm:$0xff]
    %v5834 = vld [vmem:[%s1050 + $0x2e8] sm:$0xff]
    %v5835 = vld [vmem:[%s1050 + $0x2f0] sm:$0xff]
    %v5836 = vld [vmem:[%s1050 + $0x300] sm:$0xff]
    %v5837 = vld [vmem:[%s1050 + $0x308] sm:$0xff]
    %v5838 = vld [vmem:[%s1050 + $0x318] sm:$0xff]
    %v5839 = vld [vmem:[%s1050 + $0x320] sm:$0xff]
    %5840 = vst [vmem:[#allocation3 + $0x18] sm:$0xff] %v5776
    %5841 = vst [vmem:[#allocation3 + $0x60] sm:$0xff] %v5777
    %5842 = vst [vmem:[#allocation3 + $0xa8] sm:$0xff] %v5778
    %5843 = vst [vmem:[#allocation3 + $0xf0] sm:$0xff] %v5779
    %5844 = vst [vmem:[#allocation3 + $0x138] sm:$0xff] %v5780
    %5845 = vst [vmem:[#allocation3 + $0x180] sm:$0xff] %v5781
    %5846 = vst [vmem:[#allocation3 + $0x1c8] sm:$0xff] %v5782
    %5847 = vst [vmem:[#allocation3 + $0x210] sm:$0xff] %v5783
    %5848 = vst [vmem:[#allocation3 + $0x258] sm:$0xff] %v5784
    %5849 = vst [vmem:[#allocation3 + $0x2a0] sm:$0xff] %v5785
    %5850 = vst [vmem:[#allocation3 + $0x2e8] sm:$0xff] %v5786
    %5851 = vst [vmem:[#allocation3 + $0x330] sm:$0xff] %v5787
    %5852 = vst [vmem:[#allocation3 + $0x378] sm:$0xff] %v5788
    %5853 = vst [vmem:[#allocation3 + $0x3c0] sm:$0xff] %v5789
    %5854 = vst [vmem:[#allocation3 + $0x408] sm:$0xff] %v5790
    %5855 = vst [vmem:[#allocation3 + $0x450] sm:$0xff] %v5791
    %5856 = vst [vmem:[#allocation3 + $0x498] sm:$0xff] %v5792
    %5857 = vst [vmem:[#allocation3 + $0x4e0] sm:$0xff] %v5793
    %5858 = vst [vmem:[#allocation3 + $0x528] sm:$0xff] %v5794
    %5859 = vst [vmem:[#allocation3 + $0x570] sm:$0xff] %v5795
    %5860 = vst [vmem:[#allocation3 + $0x5b8] sm:$0xff] %v5796
    %5861 = vst [vmem:[#allocation3 + $0x600] sm:$0xff] %v5797
    %5862 = vst [vmem:[#allocation3 + $0x648] sm:$0xff] %v5798
    %5863 = vst [vmem:[#allocation3 + $0x690] sm:$0xff] %v5799
    %5864 = vst [vmem:[#allocation3 + $0x6d8] sm:$0xff] %v5800
    %5865 = vst [vmem:[#allocation3 + $0x720] sm:$0xff] %v5801
    %5866 = vst [vmem:[#allocation3 + $0x768] sm:$0xff] %v5802
    %5867 = vst [vmem:[#allocation3 + $0x7b0] sm:$0xff] %v5803
    %5868 = vst [vmem:[#allocation3 + $0x7f8] sm:$0xff] %v5804
    %5869 = vst [vmem:[#allocation3 + $0x840] sm:$0xff] %v5805
    %5870 = vst [vmem:[#allocation3 + $0x888] sm:$0xff] %v5806
    %5871 = vst [vmem:[#allocation3 + $0x8d0] sm:$0xff] %v5807
    %5872 = vst [vmem:[#allocation3 + $0x918] sm:$0xff] %v5808
    %5873 = vst [vmem:[#allocation3 + $0x960] sm:$0xff] %v5809
    %5874 = vst [vmem:[#allocation3 + $0x9a8] sm:$0xff] %v5810
    %5875 = vst [vmem:[#allocation3 + $0x9f0] sm:$0xff] %v5811
    %5876 = vst [vmem:[#allocation3 + $0xa38] sm:$0xff] %v5812
    %5877 = vst [vmem:[#allocation3 + $0xa80] sm:$0xff] %v5813
    %5878 = vst [vmem:[#allocation3 + $0xac8] sm:$0xff] %v5814
    %5879 = vst [vmem:[#allocation3 + $0xb10] sm:$0xff] %v5815
    %5880 = vst [vmem:[#allocation3 + $0xb58] sm:$0xff] %v5816
    %5881 = vst [vmem:[#allocation3 + $0xba0] sm:$0xff] %v5817
    %5882 = vst [vmem:[#allocation3 + $0xbe8] sm:$0xff] %v5818
    %5883 = vst [vmem:[#allocation3 + $0xc30] sm:$0xff] %v5819
    %5884 = vst [vmem:[#allocation3 + $0xc78] sm:$0xff] %v5820
    %5885 = vst [vmem:[#allocation3 + $0xcc0] sm:$0xff] %v5821
    %5886 = vst [vmem:[#allocation3 + $0xd08] sm:$0xff] %v5822
    %5887 = vst [vmem:[#allocation3 + $0xd50] sm:$0xff] %v5823
    %5888 = vst [vmem:[#allocation3 + $0xd98] sm:$0xff] %v5824
    %5889 = vst [vmem:[#allocation3 + $0xde0] sm:$0xff] %v5825
    %5890 = vst [vmem:[#allocation3 + $0xe28] sm:$0xff] %v5826
    %5891 = vst [vmem:[#allocation3 + $0xe70] sm:$0xff] %v5827
    %5892 = vst [vmem:[#allocation3 + $0xeb8] sm:$0xff] %v5828
    %5893 = vst [vmem:[#allocation3 + $0xf00] sm:$0xff] %v5829
    %5894 = vst [vmem:[#allocation3 + $0xf48] sm:$0xff] %v5830
    %5895 = vst [vmem:[#allocation3 + $0xf90] sm:$0xff] %v5831
    %5896 = vst [vmem:[#allocation3 + $0xfd8] sm:$0xff] %v5832
    %5897 = vst [vmem:[#allocation3 + $0x1020] sm:$0xff] %v5833
    %5898 = vst [vmem:[#allocation3 + $0x1068] sm:$0xff] %v5834
    %5899 = vst [vmem:[#allocation3 + $0x10b0] sm:$0xff] %v5835
    %5900 = vst [vmem:[#allocation3 + $0x10f8] sm:$0xff] %v5836
    %5901 = vst [vmem:[#allocation3 + $0x1140] sm:$0xff] %v5837
    %5902 = vst [vmem:[#allocation3 + $0x1188] sm:$0xff] %v5838
    %5903 = vst [vmem:[#allocation3 + $0x11d0] sm:$0xff] %v5839
    %v5904 = vld [vmem:[%s1050 + $0x1] sm:$0xff]
    %v5905 = vld [vmem:[%s1050 + $0x9] sm:$0xff]
    %v5906 = vld [vmem:[%s1050 + $0x19] sm:$0xff]
    %v5907 = vld [vmem:[%s1050 + $0x21] sm:$0xff]
    %v5908 = vld [vmem:[%s1050 + $0x31] sm:$0xff]
    %v5909 = vld [vmem:[%s1050 + $0x39] sm:$0xff]
    %v5910 = vld [vmem:[%s1050 + $0x49] sm:$0xff]
    %v5911 = vld [vmem:[%s1050 + $0x51] sm:$0xff]
    %v5912 = vld [vmem:[%s1050 + $0x61] sm:$0xff]
    %v5913 = vld [vmem:[%s1050 + $0x69] sm:$0xff]
    %v5914 = vld [vmem:[%s1050 + $0x79] sm:$0xff]
    %v5915 = vld [vmem:[%s1050 + $0x81] sm:$0xff]
    %v5916 = vld [vmem:[%s1050 + $0x91] sm:$0xff]
    %v5917 = vld [vmem:[%s1050 + $0x99] sm:$0xff]
    %v5918 = vld [vmem:[%s1050 + $0xa9] sm:$0xff]
    %v5919 = vld [vmem:[%s1050 + $0xb1] sm:$0xff]
    %v5920 = vld [vmem:[%s1050 + $0xc1] sm:$0xff]
    %v5921 = vld [vmem:[%s1050 + $0xc9] sm:$0xff]
    %v5922 = vld [vmem:[%s1050 + $0xd9] sm:$0xff]
    %v5923 = vld [vmem:[%s1050 + $0xe1] sm:$0xff]
    %v5924 = vld [vmem:[%s1050 + $0xf1] sm:$0xff]
    %v5925 = vld [vmem:[%s1050 + $0xf9] sm:$0xff]
    %v5926 = vld [vmem:[%s1050 + $0x109] sm:$0xff]
    %v5927 = vld [vmem:[%s1050 + $0x111] sm:$0xff]
    %v5928 = vld [vmem:[%s1050 + $0x121] sm:$0xff]
    %v5929 = vld [vmem:[%s1050 + $0x129] sm:$0xff]
    %v5930 = vld [vmem:[%s1050 + $0x139] sm:$0xff]
    %v5931 = vld [vmem:[%s1050 + $0x141] sm:$0xff]
    %v5932 = vld [vmem:[%s1050 + $0x151] sm:$0xff]
    %v5933 = vld [vmem:[%s1050 + $0x159] sm:$0xff]
    %v5934 = vld [vmem:[%s1050 + $0x169] sm:$0xff]
    %v5935 = vld [vmem:[%s1050 + $0x171] sm:$0xff]
    %v5936 = vld [vmem:[%s1050 + $0x1b1] sm:$0xff]
    %v5937 = vld [vmem:[%s1050 + $0x1b9] sm:$0xff]
    %v5938 = vld [vmem:[%s1050 + $0x1c9] sm:$0xff]
    %v5939 = vld [vmem:[%s1050 + $0x1d1] sm:$0xff]
    %v5940 = vld [vmem:[%s1050 + $0x1e1] sm:$0xff]
    %v5941 = vld [vmem:[%s1050 + $0x1e9] sm:$0xff]
    %v5942 = vld [vmem:[%s1050 + $0x1f9] sm:$0xff]
    %v5943 = vld [vmem:[%s1050 + $0x201] sm:$0xff]
    %v5944 = vld [vmem:[%s1050 + $0x211] sm:$0xff]
    %v5945 = vld [vmem:[%s1050 + $0x219] sm:$0xff]
    %v5946 = vld [vmem:[%s1050 + $0x229] sm:$0xff]
    %v5947 = vld [vmem:[%s1050 + $0x231] sm:$0xff]
    %v5948 = vld [vmem:[%s1050 + $0x241] sm:$0xff]
    %v5949 = vld [vmem:[%s1050 + $0x249] sm:$0xff]
    %v5950 = vld [vmem:[%s1050 + $0x259] sm:$0xff]
    %v5951 = vld [vmem:[%s1050 + $0x261] sm:$0xff]
    %v5952 = vld [vmem:[%s1050 + $0x271] sm:$0xff]
    %v5953 = vld [vmem:[%s1050 + $0x279] sm:$0xff]
    %v5954 = vld [vmem:[%s1050 + $0x289] sm:$0xff]
    %v5955 = vld [vmem:[%s1050 + $0x291] sm:$0xff]
    %v5956 = vld [vmem:[%s1050 + $0x2a1] sm:$0xff]
    %v5957 = vld [vmem:[%s1050 + $0x2a9] sm:$0xff]
    %v5958 = vld [vmem:[%s1050 + $0x2b9] sm:$0xff]
    %v5959 = vld [vmem:[%s1050 + $0x2c1] sm:$0xff]
    %v5960 = vld [vmem:[%s1050 + $0x2d1] sm:$0xff]
    %v5961 = vld [vmem:[%s1050 + $0x2d9] sm:$0xff]
    %v5962 = vld [vmem:[%s1050 + $0x2e9] sm:$0xff]
    %v5963 = vld [vmem:[%s1050 + $0x2f1] sm:$0xff]
    %v5964 = vld [vmem:[%s1050 + $0x301] sm:$0xff]
    %v5965 = vld [vmem:[%s1050 + $0x309] sm:$0xff]
    %v5966 = vld [vmem:[%s1050 + $0x319] sm:$0xff]
    %v5967 = vld [vmem:[%s1050 + $0x321] sm:$0xff]
    %5968 = vst [vmem:[#allocation3 + $0x20] sm:$0xff] %v5904
    %5969 = vst [vmem:[#allocation3 + $0x68] sm:$0xff] %v5905
    %5970 = vst [vmem:[#allocation3 + $0xb0] sm:$0xff] %v5906
    %5971 = vst [vmem:[#allocation3 + $0xf8] sm:$0xff] %v5907
    %5972 = vst [vmem:[#allocation3 + $0x140] sm:$0xff] %v5908
    %5973 = vst [vmem:[#allocation3 + $0x188] sm:$0xff] %v5909
    %5974 = vst [vmem:[#allocation3 + $0x1d0] sm:$0xff] %v5910
    %5975 = vst [vmem:[#allocation3 + $0x218] sm:$0xff] %v5911
    %5976 = vst [vmem:[#allocation3 + $0x260] sm:$0xff] %v5912
    %5977 = vst [vmem:[#allocation3 + $0x2a8] sm:$0xff] %v5913
    %5978 = vst [vmem:[#allocation3 + $0x2f0] sm:$0xff] %v5914
    %5979 = vst [vmem:[#allocation3 + $0x338] sm:$0xff] %v5915
    %5980 = vst [vmem:[#allocation3 + $0x380] sm:$0xff] %v5916
    %5981 = vst [vmem:[#allocation3 + $0x3c8] sm:$0xff] %v5917
    %5982 = vst [vmem:[#allocation3 + $0x410] sm:$0xff] %v5918
    %5983 = vst [vmem:[#allocation3 + $0x458] sm:$0xff] %v5919
    %5984 = vst [vmem:[#allocation3 + $0x4a0] sm:$0xff] %v5920
    %5985 = vst [vmem:[#allocation3 + $0x4e8] sm:$0xff] %v5921
    %5986 = vst [vmem:[#allocation3 + $0x530] sm:$0xff] %v5922
    %5987 = vst [vmem:[#allocation3 + $0x578] sm:$0xff] %v5923
    %5988 = vst [vmem:[#allocation3 + $0x5c0] sm:$0xff] %v5924
    %5989 = vst [vmem:[#allocation3 + $0x608] sm:$0xff] %v5925
    %5990 = vst [vmem:[#allocation3 + $0x650] sm:$0xff] %v5926
    %5991 = vst [vmem:[#allocation3 + $0x698] sm:$0xff] %v5927
    %5992 = vst [vmem:[#allocation3 + $0x6e0] sm:$0xff] %v5928
    %5993 = vst [vmem:[#allocation3 + $0x728] sm:$0xff] %v5929
    %5994 = vst [vmem:[#allocation3 + $0x770] sm:$0xff] %v5930
    %5995 = vst [vmem:[#allocation3 + $0x7b8] sm:$0xff] %v5931
    %5996 = vst [vmem:[#allocation3 + $0x800] sm:$0xff] %v5932
    %5997 = vst [vmem:[#allocation3 + $0x848] sm:$0xff] %v5933
    %5998 = vst [vmem:[#allocation3 + $0x890] sm:$0xff] %v5934
    %5999 = vst [vmem:[#allocation3 + $0x8d8] sm:$0xff] %v5935
    %6000 = vst [vmem:[#allocation3 + $0x920] sm:$0xff] %v5936
    %6001 = vst [vmem:[#allocation3 + $0x968] sm:$0xff] %v5937
    %6002 = vst [vmem:[#allocation3 + $0x9b0] sm:$0xff] %v5938
    %6003 = vst [vmem:[#allocation3 + $0x9f8] sm:$0xff] %v5939
    %6004 = vst [vmem:[#allocation3 + $0xa40] sm:$0xff] %v5940
    %6005 = vst [vmem:[#allocation3 + $0xa88] sm:$0xff] %v5941
    %6006 = vst [vmem:[#allocation3 + $0xad0] sm:$0xff] %v5942
    %6007 = vst [vmem:[#allocation3 + $0xb18] sm:$0xff] %v5943
    %6008 = vst [vmem:[#allocation3 + $0xb60] sm:$0xff] %v5944
    %6009 = vst [vmem:[#allocation3 + $0xba8] sm:$0xff] %v5945
    %6010 = vst [vmem:[#allocation3 + $0xbf0] sm:$0xff] %v5946
    %6011 = vst [vmem:[#allocation3 + $0xc38] sm:$0xff] %v5947
    %6012 = vst [vmem:[#allocation3 + $0xc80] sm:$0xff] %v5948
    %6013 = vst [vmem:[#allocation3 + $0xcc8] sm:$0xff] %v5949
    %6014 = vst [vmem:[#allocation3 + $0xd10] sm:$0xff] %v5950
    %6015 = vst [vmem:[#allocation3 + $0xd58] sm:$0xff] %v5951
    %6016 = vst [vmem:[#allocation3 + $0xda0] sm:$0xff] %v5952
    %6017 = vst [vmem:[#allocation3 + $0xde8] sm:$0xff] %v5953
    %6018 = vst [vmem:[#allocation3 + $0xe30] sm:$0xff] %v5954
    %6019 = vst [vmem:[#allocation3 + $0xe78] sm:$0xff] %v5955
    %6020 = vst [vmem:[#allocation3 + $0xec0] sm:$0xff] %v5956
    %6021 = vst [vmem:[#allocation3 + $0xf08] sm:$0xff] %v5957
    %6022 = vst [vmem:[#allocation3 + $0xf50] sm:$0xff] %v5958
    %6023 = vst [vmem:[#allocation3 + $0xf98] sm:$0xff] %v5959
    %6024 = vst [vmem:[#allocation3 + $0xfe0] sm:$0xff] %v5960
    %6025 = vst [vmem:[#allocation3 + $0x1028] sm:$0xff] %v5961
    %6026 = vst [vmem:[#allocation3 + $0x1070] sm:$0xff] %v5962
    %6027 = vst [vmem:[#allocation3 + $0x10b8] sm:$0xff] %v5963
    %6028 = vst [vmem:[#allocation3 + $0x1100] sm:$0xff] %v5964
    %6029 = vst [vmem:[#allocation3 + $0x1148] sm:$0xff] %v5965
    %6030 = vst [vmem:[#allocation3 + $0x1190] sm:$0xff] %v5966
    %6031 = vst [vmem:[#allocation3 + $0x11d8] sm:$0xff] %v5967
    %v6032 = vld [vmem:[%s1050 + $0x2] sm:$0xff]
    %v6033 = vld [vmem:[%s1050 + $0xa] sm:$0xff]
    %v6034 = vld [vmem:[%s1050 + $0x1a] sm:$0xff]
    %v6035 = vld [vmem:[%s1050 + $0x22] sm:$0xff]
    %v6036 = vld [vmem:[%s1050 + $0x32] sm:$0xff]
    %v6037 = vld [vmem:[%s1050 + $0x3a] sm:$0xff]
    %v6038 = vld [vmem:[%s1050 + $0x4a] sm:$0xff]
    %v6039 = vld [vmem:[%s1050 + $0x52] sm:$0xff]
    %v6040 = vld [vmem:[%s1050 + $0x62] sm:$0xff]
    %v6041 = vld [vmem:[%s1050 + $0x6a] sm:$0xff]
    %v6042 = vld [vmem:[%s1050 + $0x7a] sm:$0xff]
    %v6043 = vld [vmem:[%s1050 + $0x82] sm:$0xff]
    %v6044 = vld [vmem:[%s1050 + $0x92] sm:$0xff]
    %v6045 = vld [vmem:[%s1050 + $0x9a] sm:$0xff]
    %v6046 = vld [vmem:[%s1050 + $0xaa] sm:$0xff]
    %v6047 = vld [vmem:[%s1050 + $0xb2] sm:$0xff]
    %v6048 = vld [vmem:[%s1050 + $0xc2] sm:$0xff]
    %v6049 = vld [vmem:[%s1050 + $0xca] sm:$0xff]
    %v6050 = vld [vmem:[%s1050 + $0xda] sm:$0xff]
    %v6051 = vld [vmem:[%s1050 + $0xe2] sm:$0xff]
    %v6052 = vld [vmem:[%s1050 + $0xf2] sm:$0xff]
    %v6053 = vld [vmem:[%s1050 + $0xfa] sm:$0xff]
    %v6054 = vld [vmem:[%s1050 + $0x10a] sm:$0xff]
    %v6055 = vld [vmem:[%s1050 + $0x112] sm:$0xff]
    %v6056 = vld [vmem:[%s1050 + $0x122] sm:$0xff]
    %v6057 = vld [vmem:[%s1050 + $0x12a] sm:$0xff]
    %v6058 = vld [vmem:[%s1050 + $0x13a] sm:$0xff]
    %v6059 = vld [vmem:[%s1050 + $0x142] sm:$0xff]
    %v6060 = vld [vmem:[%s1050 + $0x152] sm:$0xff]
    %v6061 = vld [vmem:[%s1050 + $0x15a] sm:$0xff]
    %v6062 = vld [vmem:[%s1050 + $0x16a] sm:$0xff]
    %v6063 = vld [vmem:[%s1050 + $0x172] sm:$0xff]
    %v6064 = vld [vmem:[%s1050 + $0x1b2] sm:$0xff]
    %v6065 = vld [vmem:[%s1050 + $0x1ba] sm:$0xff]
    %v6066 = vld [vmem:[%s1050 + $0x1ca] sm:$0xff]
    %v6067 = vld [vmem:[%s1050 + $0x1d2] sm:$0xff]
    %v6068 = vld [vmem:[%s1050 + $0x1e2] sm:$0xff]
    %v6069 = vld [vmem:[%s1050 + $0x1ea] sm:$0xff]
    %v6070 = vld [vmem:[%s1050 + $0x1fa] sm:$0xff]
    %v6071 = vld [vmem:[%s1050 + $0x202] sm:$0xff]
    %v6072 = vld [vmem:[%s1050 + $0x212] sm:$0xff]
    %v6073 = vld [vmem:[%s1050 + $0x21a] sm:$0xff]
    %v6074 = vld [vmem:[%s1050 + $0x22a] sm:$0xff]
    %v6075 = vld [vmem:[%s1050 + $0x232] sm:$0xff]
    %v6076 = vld [vmem:[%s1050 + $0x242] sm:$0xff]
    %v6077 = vld [vmem:[%s1050 + $0x24a] sm:$0xff]
    %v6078 = vld [vmem:[%s1050 + $0x25a] sm:$0xff]
    %v6079 = vld [vmem:[%s1050 + $0x262] sm:$0xff]
    %v6080 = vld [vmem:[%s1050 + $0x272] sm:$0xff]
    %v6081 = vld [vmem:[%s1050 + $0x27a] sm:$0xff]
    %v6082 = vld [vmem:[%s1050 + $0x28a] sm:$0xff]
    %v6083 = vld [vmem:[%s1050 + $0x292] sm:$0xff]
    %v6084 = vld [vmem:[%s1050 + $0x2a2] sm:$0xff]
    %v6085 = vld [vmem:[%s1050 + $0x2aa] sm:$0xff]
    %v6086 = vld [vmem:[%s1050 + $0x2ba] sm:$0xff]
    %v6087 = vld [vmem:[%s1050 + $0x2c2] sm:$0xff]
    %v6088 = vld [vmem:[%s1050 + $0x2d2] sm:$0xff]
    %v6089 = vld [vmem:[%s1050 + $0x2da] sm:$0xff]
    %v6090 = vld [vmem:[%s1050 + $0x2ea] sm:$0xff]
    %v6091 = vld [vmem:[%s1050 + $0x2f2] sm:$0xff]
    %v6092 = vld [vmem:[%s1050 + $0x302] sm:$0xff]
    %v6093 = vld [vmem:[%s1050 + $0x30a] sm:$0xff]
    %v6094 = vld [vmem:[%s1050 + $0x31a] sm:$0xff]
    %v6095 = vld [vmem:[%s1050 + $0x322] sm:$0xff]
    %6096 = vst [vmem:[#allocation3 + $0x28] sm:$0xff] %v6032
    %6097 = vst [vmem:[#allocation3 + $0x70] sm:$0xff] %v6033
    %6098 = vst [vmem:[#allocation3 + $0xb8] sm:$0xff] %v6034
    %6099 = vst [vmem:[#allocation3 + $0x100] sm:$0xff] %v6035
    %6100 = vst [vmem:[#allocation3 + $0x148] sm:$0xff] %v6036
    %6101 = vst [vmem:[#allocation3 + $0x190] sm:$0xff] %v6037
    %6102 = vst [vmem:[#allocation3 + $0x1d8] sm:$0xff] %v6038
    %6103 = vst [vmem:[#allocation3 + $0x220] sm:$0xff] %v6039
    %6104 = vst [vmem:[#allocation3 + $0x268] sm:$0xff] %v6040
    %6105 = vst [vmem:[#allocation3 + $0x2b0] sm:$0xff] %v6041
    %6106 = vst [vmem:[#allocation3 + $0x2f8] sm:$0xff] %v6042
    %6107 = vst [vmem:[#allocation3 + $0x340] sm:$0xff] %v6043
    %6108 = vst [vmem:[#allocation3 + $0x388] sm:$0xff] %v6044
    %6109 = vst [vmem:[#allocation3 + $0x3d0] sm:$0xff] %v6045
    %6110 = vst [vmem:[#allocation3 + $0x418] sm:$0xff] %v6046
    %6111 = vst [vmem:[#allocation3 + $0x460] sm:$0xff] %v6047
    %6112 = vst [vmem:[#allocation3 + $0x4a8] sm:$0xff] %v6048
    %6113 = vst [vmem:[#allocation3 + $0x4f0] sm:$0xff] %v6049
    %6114 = vst [vmem:[#allocation3 + $0x538] sm:$0xff] %v6050
    %6115 = vst [vmem:[#allocation3 + $0x580] sm:$0xff] %v6051
    %6116 = vst [vmem:[#allocation3 + $0x5c8] sm:$0xff] %v6052
    %6117 = vst [vmem:[#allocation3 + $0x610] sm:$0xff] %v6053
    %6118 = vst [vmem:[#allocation3 + $0x658] sm:$0xff] %v6054
    %6119 = vst [vmem:[#allocation3 + $0x6a0] sm:$0xff] %v6055
    %6120 = vst [vmem:[#allocation3 + $0x6e8] sm:$0xff] %v6056
    %6121 = vst [vmem:[#allocation3 + $0x730] sm:$0xff] %v6057
    %6122 = vst [vmem:[#allocation3 + $0x778] sm:$0xff] %v6058
    %6123 = vst [vmem:[#allocation3 + $0x7c0] sm:$0xff] %v6059
    %6124 = vst [vmem:[#allocation3 + $0x808] sm:$0xff] %v6060
    %6125 = vst [vmem:[#allocation3 + $0x850] sm:$0xff] %v6061
    %6126 = vst [vmem:[#allocation3 + $0x898] sm:$0xff] %v6062
    %6127 = vst [vmem:[#allocation3 + $0x8e0] sm:$0xff] %v6063
    %6128 = vst [vmem:[#allocation3 + $0x928] sm:$0xff] %v6064
    %6129 = vst [vmem:[#allocation3 + $0x970] sm:$0xff] %v6065
    %6130 = vst [vmem:[#allocation3 + $0x9b8] sm:$0xff] %v6066
    %6131 = vst [vmem:[#allocation3 + $0xa00] sm:$0xff] %v6067
    %6132 = vst [vmem:[#allocation3 + $0xa48] sm:$0xff] %v6068
    %6133 = vst [vmem:[#allocation3 + $0xa90] sm:$0xff] %v6069
    %6134 = vst [vmem:[#allocation3 + $0xad8] sm:$0xff] %v6070
    %6135 = vst [vmem:[#allocation3 + $0xb20] sm:$0xff] %v6071
    %6136 = vst [vmem:[#allocation3 + $0xb68] sm:$0xff] %v6072
    %6137 = vst [vmem:[#allocation3 + $0xbb0] sm:$0xff] %v6073
    %6138 = vst [vmem:[#allocation3 + $0xbf8] sm:$0xff] %v6074
    %6139 = vst [vmem:[#allocation3 + $0xc40] sm:$0xff] %v6075
    %6140 = vst [vmem:[#allocation3 + $0xc88] sm:$0xff] %v6076
    %6141 = vst [vmem:[#allocation3 + $0xcd0] sm:$0xff] %v6077
    %6142 = vst [vmem:[#allocation3 + $0xd18] sm:$0xff] %v6078
    %6143 = vst [vmem:[#allocation3 + $0xd60] sm:$0xff] %v6079
    %6144 = vst [vmem:[#allocation3 + $0xda8] sm:$0xff] %v6080
    %6145 = vst [vmem:[#allocation3 + $0xdf0] sm:$0xff] %v6081
    %6146 = vst [vmem:[#allocation3 + $0xe38] sm:$0xff] %v6082
    %6147 = vst [vmem:[#allocation3 + $0xe80] sm:$0xff] %v6083
    %6148 = vst [vmem:[#allocation3 + $0xec8] sm:$0xff] %v6084
    %6149 = vst [vmem:[#allocation3 + $0xf10] sm:$0xff] %v6085
    %6150 = vst [vmem:[#allocation3 + $0xf58] sm:$0xff] %v6086
    %6151 = vst [vmem:[#allocation3 + $0xfa0] sm:$0xff] %v6087
    %6152 = vst [vmem:[#allocation3 + $0xfe8] sm:$0xff] %v6088
    %6153 = vst [vmem:[#allocation3 + $0x1030] sm:$0xff] %v6089
    %6154 = vst [vmem:[#allocation3 + $0x1078] sm:$0xff] %v6090
    %6155 = vst [vmem:[#allocation3 + $0x10c0] sm:$0xff] %v6091
    %6156 = vst [vmem:[#allocation3 + $0x1108] sm:$0xff] %v6092
    %6157 = vst [vmem:[#allocation3 + $0x1150] sm:$0xff] %v6093
    %6158 = vst [vmem:[#allocation3 + $0x1198] sm:$0xff] %v6094
    %6159 = vst [vmem:[#allocation3 + $0x11e0] sm:$0xff] %v6095
    %v6160 = vld [vmem:[%s1883] sm:$0xff]
    %v6161 = vld [vmem:[%s1883 + $0x8] sm:$0xff]
    %v6162 = vld [vmem:[%s1883 + $0x18] sm:$0xff]
    %v6163 = vld [vmem:[%s1883 + $0x20] sm:$0xff]
    %v6164 = vld [vmem:[%s1883 + $0x30] sm:$0xff]
    %v6165 = vld [vmem:[%s1883 + $0x38] sm:$0xff]
    %v6166 = vld [vmem:[%s1883 + $0x48] sm:$0xff]
    %v6167 = vld [vmem:[%s1883 + $0x50] sm:$0xff]
    %v6168 = vld [vmem:[%s1883 + $0x60] sm:$0xff]
    %v6169 = vld [vmem:[%s1883 + $0x68] sm:$0xff]
    %v6170 = vld [vmem:[%s1883 + $0x78] sm:$0xff]
    %v6171 = vld [vmem:[%s1883 + $0x80] sm:$0xff]
    %v6172 = vld [vmem:[%s1883 + $0x90] sm:$0xff]
    %v6173 = vld [vmem:[%s1883 + $0x98] sm:$0xff]
    %v6174 = vld [vmem:[%s1883 + $0xa8] sm:$0xff]
    %v6175 = vld [vmem:[%s1883 + $0xb0] sm:$0xff]
    %v6176 = vld [vmem:[%s1883 + $0xc0] sm:$0xff]
    %v6177 = vld [vmem:[%s1883 + $0xc8] sm:$0xff]
    %v6178 = vld [vmem:[%s1883 + $0xd8] sm:$0xff]
    %v6179 = vld [vmem:[%s1883 + $0xe0] sm:$0xff]
    %v6180 = vld [vmem:[%s1883 + $0xf0] sm:$0xff]
    %v6181 = vld [vmem:[%s1883 + $0xf8] sm:$0xff]
    %v6182 = vld [vmem:[%s1883 + $0x108] sm:$0xff]
    %v6183 = vld [vmem:[%s1883 + $0x110] sm:$0xff]
    %v6184 = vld [vmem:[%s1883 + $0x120] sm:$0xff]
    %v6185 = vld [vmem:[%s1883 + $0x128] sm:$0xff]
    %v6186 = vld [vmem:[%s1883 + $0x138] sm:$0xff]
    %v6187 = vld [vmem:[%s1883 + $0x140] sm:$0xff]
    %v6188 = vld [vmem:[%s1883 + $0x150] sm:$0xff]
    %v6189 = vld [vmem:[%s1883 + $0x158] sm:$0xff]
    %v6190 = vld [vmem:[%s1883 + $0x168] sm:$0xff]
    %v6191 = vld [vmem:[%s1883 + $0x170] sm:$0xff]
    %v6192 = vld [vmem:[%s1883 + $0x1b0] sm:$0xff]
    %v6193 = vld [vmem:[%s1883 + $0x1b8] sm:$0xff]
    %v6194 = vld [vmem:[%s1883 + $0x1c8] sm:$0xff]
    %v6195 = vld [vmem:[%s1883 + $0x1d0] sm:$0xff]
    %v6196 = vld [vmem:[%s1883 + $0x1e0] sm:$0xff]
    %v6197 = vld [vmem:[%s1883 + $0x1e8] sm:$0xff]
    %v6198 = vld [vmem:[%s1883 + $0x1f8] sm:$0xff]
    %v6199 = vld [vmem:[%s1883 + $0x200] sm:$0xff]
    %v6200 = vld [vmem:[%s1883 + $0x210] sm:$0xff]
    %v6201 = vld [vmem:[%s1883 + $0x218] sm:$0xff]
    %v6202 = vld [vmem:[%s1883 + $0x228] sm:$0xff]
    %v6203 = vld [vmem:[%s1883 + $0x230] sm:$0xff]
    %v6204 = vld [vmem:[%s1883 + $0x240] sm:$0xff]
    %v6205 = vld [vmem:[%s1883 + $0x248] sm:$0xff]
    %v6206 = vld [vmem:[%s1883 + $0x258] sm:$0xff]
    %v6207 = vld [vmem:[%s1883 + $0x260] sm:$0xff]
    %v6208 = vld [vmem:[%s1883 + $0x270] sm:$0xff]
    %v6209 = vld [vmem:[%s1883 + $0x278] sm:$0xff]
    %v6210 = vld [vmem:[%s1883 + $0x288] sm:$0xff]
    %v6211 = vld [vmem:[%s1883 + $0x290] sm:$0xff]
    %v6212 = vld [vmem:[%s1883 + $0x2a0] sm:$0xff]
    %v6213 = vld [vmem:[%s1883 + $0x2a8] sm:$0xff]
    %v6214 = vld [vmem:[%s1883 + $0x2b8] sm:$0xff]
    %v6215 = vld [vmem:[%s1883 + $0x2c0] sm:$0xff]
    %v6216 = vld [vmem:[%s1883 + $0x2d0] sm:$0xff]
    %v6217 = vld [vmem:[%s1883 + $0x2d8] sm:$0xff]
    %v6218 = vld [vmem:[%s1883 + $0x2e8] sm:$0xff]
    %v6219 = vld [vmem:[%s1883 + $0x2f0] sm:$0xff]
    %v6220 = vld [vmem:[%s1883 + $0x300] sm:$0xff]
    %v6221 = vld [vmem:[%s1883 + $0x308] sm:$0xff]
    %v6222 = vld [vmem:[%s1883 + $0x318] sm:$0xff]
    %v6223 = vld [vmem:[%s1883 + $0x320] sm:$0xff]
    %6224 = vst [vmem:[#allocation3 + $0x30] sm:$0xff] %v6160
    %6225 = vst [vmem:[#allocation3 + $0x78] sm:$0xff] %v6161
    %6226 = vst [vmem:[#allocation3 + $0xc0] sm:$0xff] %v6162
    %6227 = vst [vmem:[#allocation3 + $0x108] sm:$0xff] %v6163
    %6228 = vst [vmem:[#allocation3 + $0x150] sm:$0xff] %v6164
    %6229 = vst [vmem:[#allocation3 + $0x198] sm:$0xff] %v6165
    %6230 = vst [vmem:[#allocation3 + $0x1e0] sm:$0xff] %v6166
    %6231 = vst [vmem:[#allocation3 + $0x228] sm:$0xff] %v6167
    %6232 = vst [vmem:[#allocation3 + $0x270] sm:$0xff] %v6168
    %6233 = vst [vmem:[#allocation3 + $0x2b8] sm:$0xff] %v6169
    %6234 = vst [vmem:[#allocation3 + $0x300] sm:$0xff] %v6170
    %6235 = vst [vmem:[#allocation3 + $0x348] sm:$0xff] %v6171
    %6236 = vst [vmem:[#allocation3 + $0x390] sm:$0xff] %v6172
    %6237 = vst [vmem:[#allocation3 + $0x3d8] sm:$0xff] %v6173
    %6238 = vst [vmem:[#allocation3 + $0x420] sm:$0xff] %v6174
    %6239 = vst [vmem:[#allocation3 + $0x468] sm:$0xff] %v6175
    %6240 = vst [vmem:[#allocation3 + $0x4b0] sm:$0xff] %v6176
    %6241 = vst [vmem:[#allocation3 + $0x4f8] sm:$0xff] %v6177
    %6242 = vst [vmem:[#allocation3 + $0x540] sm:$0xff] %v6178
    %6243 = vst [vmem:[#allocation3 + $0x588] sm:$0xff] %v6179
    %6244 = vst [vmem:[#allocation3 + $0x5d0] sm:$0xff] %v6180
    %6245 = vst [vmem:[#allocation3 + $0x618] sm:$0xff] %v6181
    %6246 = vst [vmem:[#allocation3 + $0x660] sm:$0xff] %v6182
    %6247 = vst [vmem:[#allocation3 + $0x6a8] sm:$0xff] %v6183
    %6248 = vst [vmem:[#allocation3 + $0x6f0] sm:$0xff] %v6184
    %6249 = vst [vmem:[#allocation3 + $0x738] sm:$0xff] %v6185
    %6250 = vst [vmem:[#allocation3 + $0x780] sm:$0xff] %v6186
    %6251 = vst [vmem:[#allocation3 + $0x7c8] sm:$0xff] %v6187
    %6252 = vst [vmem:[#allocation3 + $0x810] sm:$0xff] %v6188
    %6253 = vst [vmem:[#allocation3 + $0x858] sm:$0xff] %v6189
    %6254 = vst [vmem:[#allocation3 + $0x8a0] sm:$0xff] %v6190
    %6255 = vst [vmem:[#allocation3 + $0x8e8] sm:$0xff] %v6191
    %6256 = vst [vmem:[#allocation3 + $0x930] sm:$0xff] %v6192
    %6257 = vst [vmem:[#allocation3 + $0x978] sm:$0xff] %v6193
    %6258 = vst [vmem:[#allocation3 + $0x9c0] sm:$0xff] %v6194
    %6259 = vst [vmem:[#allocation3 + $0xa08] sm:$0xff] %v6195
    %6260 = vst [vmem:[#allocation3 + $0xa50] sm:$0xff] %v6196
    %6261 = vst [vmem:[#allocation3 + $0xa98] sm:$0xff] %v6197
    %6262 = vst [vmem:[#allocation3 + $0xae0] sm:$0xff] %v6198
    %6263 = vst [vmem:[#allocation3 + $0xb28] sm:$0xff] %v6199
    %6264 = vst [vmem:[#allocation3 + $0xb70] sm:$0xff] %v6200
    %6265 = vst [vmem:[#allocation3 + $0xbb8] sm:$0xff] %v6201
    %6266 = vst [vmem:[#allocation3 + $0xc00] sm:$0xff] %v6202
    %6267 = vst [vmem:[#allocation3 + $0xc48] sm:$0xff] %v6203
    %6268 = vst [vmem:[#allocation3 + $0xc90] sm:$0xff] %v6204
    %6269 = vst [vmem:[#allocation3 + $0xcd8] sm:$0xff] %v6205
    %6270 = vst [vmem:[#allocation3 + $0xd20] sm:$0xff] %v6206
    %6271 = vst [vmem:[#allocation3 + $0xd68] sm:$0xff] %v6207
    %6272 = vst [vmem:[#allocation3 + $0xdb0] sm:$0xff] %v6208
    %6273 = vst [vmem:[#allocation3 + $0xdf8] sm:$0xff] %v6209
    %6274 = vst [vmem:[#allocation3 + $0xe40] sm:$0xff] %v6210
    %6275 = vst [vmem:[#allocation3 + $0xe88] sm:$0xff] %v6211
    %6276 = vst [vmem:[#allocation3 + $0xed0] sm:$0xff] %v6212
    %6277 = vst [vmem:[#allocation3 + $0xf18] sm:$0xff] %v6213
    %6278 = vst [vmem:[#allocation3 + $0xf60] sm:$0xff] %v6214
    %6279 = vst [vmem:[#allocation3 + $0xfa8] sm:$0xff] %v6215
    %6280 = vst [vmem:[#allocation3 + $0xff0] sm:$0xff] %v6216
    %6281 = vst [vmem:[#allocation3 + $0x1038] sm:$0xff] %v6217
    %6282 = vst [vmem:[#allocation3 + $0x1080] sm:$0xff] %v6218
    %6283 = vst [vmem:[#allocation3 + $0x10c8] sm:$0xff] %v6219
    %6284 = vst [vmem:[#allocation3 + $0x1110] sm:$0xff] %v6220
    %6285 = vst [vmem:[#allocation3 + $0x1158] sm:$0xff] %v6221
    %6286 = vst [vmem:[#allocation3 + $0x11a0] sm:$0xff] %v6222
    %6287 = vst [vmem:[#allocation3 + $0x11e8] sm:$0xff] %v6223
    %v6288 = vld [vmem:[%s1883 + $0x1] sm:$0xff]
    %v6289 = vld [vmem:[%s1883 + $0x9] sm:$0xff]
    %v6290 = vld [vmem:[%s1883 + $0x19] sm:$0xff]
    %v6291 = vld [vmem:[%s1883 + $0x21] sm:$0xff]
    %v6292 = vld [vmem:[%s1883 + $0x31] sm:$0xff]
    %v6293 = vld [vmem:[%s1883 + $0x39] sm:$0xff]
    %v6294 = vld [vmem:[%s1883 + $0x49] sm:$0xff]
    %v6295 = vld [vmem:[%s1883 + $0x51] sm:$0xff]
    %v6296 = vld [vmem:[%s1883 + $0x61] sm:$0xff]
    %v6297 = vld [vmem:[%s1883 + $0x69] sm:$0xff]
    %v6298 = vld [vmem:[%s1883 + $0x79] sm:$0xff]
    %v6299 = vld [vmem:[%s1883 + $0x81] sm:$0xff]
    %v6300 = vld [vmem:[%s1883 + $0x91] sm:$0xff]
    %v6301 = vld [vmem:[%s1883 + $0x99] sm:$0xff]
    %v6302 = vld [vmem:[%s1883 + $0xa9] sm:$0xff]
    %v6303 = vld [vmem:[%s1883 + $0xb1] sm:$0xff]
    %v6304 = vld [vmem:[%s1883 + $0xc1] sm:$0xff]
    %v6305 = vld [vmem:[%s1883 + $0xc9] sm:$0xff]
    %v6306 = vld [vmem:[%s1883 + $0xd9] sm:$0xff]
    %v6307 = vld [vmem:[%s1883 + $0xe1] sm:$0xff]
    %v6308 = vld [vmem:[%s1883 + $0xf1] sm:$0xff]
    %v6309 = vld [vmem:[%s1883 + $0xf9] sm:$0xff]
    %v6310 = vld [vmem:[%s1883 + $0x109] sm:$0xff]
    %v6311 = vld [vmem:[%s1883 + $0x111] sm:$0xff]
    %v6312 = vld [vmem:[%s1883 + $0x121] sm:$0xff]
    %v6313 = vld [vmem:[%s1883 + $0x129] sm:$0xff]
    %v6314 = vld [vmem:[%s1883 + $0x139] sm:$0xff]
    %v6315 = vld [vmem:[%s1883 + $0x141] sm:$0xff]
    %v6316 = vld [vmem:[%s1883 + $0x151] sm:$0xff]
    %v6317 = vld [vmem:[%s1883 + $0x159] sm:$0xff]
    %v6318 = vld [vmem:[%s1883 + $0x169] sm:$0xff]
    %v6319 = vld [vmem:[%s1883 + $0x171] sm:$0xff]
    %v6320 = vld [vmem:[%s1883 + $0x1b1] sm:$0xff]
    %v6321 = vld [vmem:[%s1883 + $0x1b9] sm:$0xff]
    %v6322 = vld [vmem:[%s1883 + $0x1c9] sm:$0xff]
    %v6323 = vld [vmem:[%s1883 + $0x1d1] sm:$0xff]
    %v6324 = vld [vmem:[%s1883 + $0x1e1] sm:$0xff]
    %v6325 = vld [vmem:[%s1883 + $0x1e9] sm:$0xff]
    %v6326 = vld [vmem:[%s1883 + $0x1f9] sm:$0xff]
    %v6327 = vld [vmem:[%s1883 + $0x201] sm:$0xff]
    %v6328 = vld [vmem:[%s1883 + $0x211] sm:$0xff]
    %v6329 = vld [vmem:[%s1883 + $0x219] sm:$0xff]
    %v6330 = vld [vmem:[%s1883 + $0x229] sm:$0xff]
    %v6331 = vld [vmem:[%s1883 + $0x231] sm:$0xff]
    %v6332 = vld [vmem:[%s1883 + $0x241] sm:$0xff]
    %v6333 = vld [vmem:[%s1883 + $0x249] sm:$0xff]
    %v6334 = vld [vmem:[%s1883 + $0x259] sm:$0xff]
    %v6335 = vld [vmem:[%s1883 + $0x261] sm:$0xff]
    %v6336 = vld [vmem:[%s1883 + $0x271] sm:$0xff]
    %v6337 = vld [vmem:[%s1883 + $0x279] sm:$0xff]
    %v6338 = vld [vmem:[%s1883 + $0x289] sm:$0xff]
    %v6339 = vld [vmem:[%s1883 + $0x291] sm:$0xff]
    %v6340 = vld [vmem:[%s1883 + $0x2a1] sm:$0xff]
    %v6341 = vld [vmem:[%s1883 + $0x2a9] sm:$0xff]
    %v6342 = vld [vmem:[%s1883 + $0x2b9] sm:$0xff]
    %v6343 = vld [vmem:[%s1883 + $0x2c1] sm:$0xff]
    %v6344 = vld [vmem:[%s1883 + $0x2d1] sm:$0xff]
    %v6345 = vld [vmem:[%s1883 + $0x2d9] sm:$0xff]
    %v6346 = vld [vmem:[%s1883 + $0x2e9] sm:$0xff]
    %v6347 = vld [vmem:[%s1883 + $0x2f1] sm:$0xff]
    %v6348 = vld [vmem:[%s1883 + $0x301] sm:$0xff]
    %v6349 = vld [vmem:[%s1883 + $0x309] sm:$0xff]
    %v6350 = vld [vmem:[%s1883 + $0x319] sm:$0xff]
    %v6351 = vld [vmem:[%s1883 + $0x321] sm:$0xff]
    %6352 = vst [vmem:[#allocation3 + $0x38] sm:$0xff] %v6288
    %6353 = vst [vmem:[#allocation3 + $0x80] sm:$0xff] %v6289
    %6354 = vst [vmem:[#allocation3 + $0xc8] sm:$0xff] %v6290
    %6355 = vst [vmem:[#allocation3 + $0x110] sm:$0xff] %v6291
    %6356 = vst [vmem:[#allocation3 + $0x158] sm:$0xff] %v6292
    %6357 = vst [vmem:[#allocation3 + $0x1a0] sm:$0xff] %v6293
    %6358 = vst [vmem:[#allocation3 + $0x1e8] sm:$0xff] %v6294
    %6359 = vst [vmem:[#allocation3 + $0x230] sm:$0xff] %v6295
    %6360 = vst [vmem:[#allocation3 + $0x278] sm:$0xff] %v6296
    %6361 = vst [vmem:[#allocation3 + $0x2c0] sm:$0xff] %v6297
    %6362 = vst [vmem:[#allocation3 + $0x308] sm:$0xff] %v6298
    %6363 = vst [vmem:[#allocation3 + $0x350] sm:$0xff] %v6299
    %6364 = vst [vmem:[#allocation3 + $0x398] sm:$0xff] %v6300
    %6365 = vst [vmem:[#allocation3 + $0x3e0] sm:$0xff] %v6301
    %6366 = vst [vmem:[#allocation3 + $0x428] sm:$0xff] %v6302
    %6367 = vst [vmem:[#allocation3 + $0x470] sm:$0xff] %v6303
    %6368 = vst [vmem:[#allocation3 + $0x4b8] sm:$0xff] %v6304
    %6369 = vst [vmem:[#allocation3 + $0x500] sm:$0xff] %v6305
    %6370 = vst [vmem:[#allocation3 + $0x548] sm:$0xff] %v6306
    %6371 = vst [vmem:[#allocation3 + $0x590] sm:$0xff] %v6307
    %6372 = vst [vmem:[#allocation3 + $0x5d8] sm:$0xff] %v6308
    %6373 = vst [vmem:[#allocation3 + $0x620] sm:$0xff] %v6309
    %6374 = vst [vmem:[#allocation3 + $0x668] sm:$0xff] %v6310
    %6375 = vst [vmem:[#allocation3 + $0x6b0] sm:$0xff] %v6311
    %6376 = vst [vmem:[#allocation3 + $0x6f8] sm:$0xff] %v6312
    %6377 = vst [vmem:[#allocation3 + $0x740] sm:$0xff] %v6313
    %6378 = vst [vmem:[#allocation3 + $0x788] sm:$0xff] %v6314
    %6379 = vst [vmem:[#allocation3 + $0x7d0] sm:$0xff] %v6315
    %6380 = vst [vmem:[#allocation3 + $0x818] sm:$0xff] %v6316
    %6381 = vst [vmem:[#allocation3 + $0x860] sm:$0xff] %v6317
    %6382 = vst [vmem:[#allocation3 + $0x8a8] sm:$0xff] %v6318
    %6383 = vst [vmem:[#allocation3 + $0x8f0] sm:$0xff] %v6319
    %6384 = vst [vmem:[#allocation3 + $0x938] sm:$0xff] %v6320
    %6385 = vst [vmem:[#allocation3 + $0x980] sm:$0xff] %v6321
    %6386 = vst [vmem:[#allocation3 + $0x9c8] sm:$0xff] %v6322
    %6387 = vst [vmem:[#allocation3 + $0xa10] sm:$0xff] %v6323
    %6388 = vst [vmem:[#allocation3 + $0xa58] sm:$0xff] %v6324
    %6389 = vst [vmem:[#allocation3 + $0xaa0] sm:$0xff] %v6325
    %6390 = vst [vmem:[#allocation3 + $0xae8] sm:$0xff] %v6326
    %6391 = vst [vmem:[#allocation3 + $0xb30] sm:$0xff] %v6327
    %6392 = vst [vmem:[#allocation3 + $0xb78] sm:$0xff] %v6328
    %6393 = vst [vmem:[#allocation3 + $0xbc0] sm:$0xff] %v6329
    %6394 = vst [vmem:[#allocation3 + $0xc08] sm:$0xff] %v6330
    %6395 = vst [vmem:[#allocation3 + $0xc50] sm:$0xff] %v6331
    %6396 = vst [vmem:[#allocation3 + $0xc98] sm:$0xff] %v6332
    %6397 = vst [vmem:[#allocation3 + $0xce0] sm:$0xff] %v6333
    %6398 = vst [vmem:[#allocation3 + $0xd28] sm:$0xff] %v6334
    %6399 = vst [vmem:[#allocation3 + $0xd70] sm:$0xff] %v6335
    %6400 = vst [vmem:[#allocation3 + $0xdb8] sm:$0xff] %v6336
    %6401 = vst [vmem:[#allocation3 + $0xe00] sm:$0xff] %v6337
    %6402 = vst [vmem:[#allocation3 + $0xe48] sm:$0xff] %v6338
    %6403 = vst [vmem:[#allocation3 + $0xe90] sm:$0xff] %v6339
    %6404 = vst [vmem:[#allocation3 + $0xed8] sm:$0xff] %v6340
    %6405 = vst [vmem:[#allocation3 + $0xf20] sm:$0xff] %v6341
    %6406 = vst [vmem:[#allocation3 + $0xf68] sm:$0xff] %v6342
    %6407 = vst [vmem:[#allocation3 + $0xfb0] sm:$0xff] %v6343
    %6408 = vst [vmem:[#allocation3 + $0xff8] sm:$0xff] %v6344
    %6409 = vst [vmem:[#allocation3 + $0x1040] sm:$0xff] %v6345
    %6410 = vst [vmem:[#allocation3 + $0x1088] sm:$0xff] %v6346
    %6411 = vst [vmem:[#allocation3 + $0x10d0] sm:$0xff] %v6347
    %6412 = vst [vmem:[#allocation3 + $0x1118] sm:$0xff] %v6348
    %6413 = vst [vmem:[#allocation3 + $0x1160] sm:$0xff] %v6349
    %6414 = vst [vmem:[#allocation3 + $0x11a8] sm:$0xff] %v6350
    %6415 = vst [vmem:[#allocation3 + $0x11f0] sm:$0xff] %v6351
    %v6416 = vld [vmem:[%s1883 + $0x2] sm:$0xff]
    %v6417 = vld [vmem:[%s1883 + $0xa] sm:$0xff]
    %v6418 = vld [vmem:[%s1883 + $0x1a] sm:$0xff]
    %v6419 = vld [vmem:[%s1883 + $0x22] sm:$0xff]
    %v6420 = vld [vmem:[%s1883 + $0x32] sm:$0xff]
    %v6421 = vld [vmem:[%s1883 + $0x3a] sm:$0xff]
    %v6422 = vld [vmem:[%s1883 + $0x4a] sm:$0xff]
    %v6423 = vld [vmem:[%s1883 + $0x52] sm:$0xff]
    %v6424 = vld [vmem:[%s1883 + $0x62] sm:$0xff]
    %v6425 = vld [vmem:[%s1883 + $0x6a] sm:$0xff]
    %v6426 = vld [vmem:[%s1883 + $0x7a] sm:$0xff]
    %v6427 = vld [vmem:[%s1883 + $0x82] sm:$0xff]
    %v6428 = vld [vmem:[%s1883 + $0x92] sm:$0xff]
    %v6429 = vld [vmem:[%s1883 + $0x9a] sm:$0xff]
    %v6430 = vld [vmem:[%s1883 + $0xaa] sm:$0xff]
    %v6431 = vld [vmem:[%s1883 + $0xb2] sm:$0xff]
    %v6432 = vld [vmem:[%s1883 + $0xc2] sm:$0xff]
    %v6433 = vld [vmem:[%s1883 + $0xca] sm:$0xff]
    %v6434 = vld [vmem:[%s1883 + $0xda] sm:$0xff]
    %v6435 = vld [vmem:[%s1883 + $0xe2] sm:$0xff]
    %v6436 = vld [vmem:[%s1883 + $0xf2] sm:$0xff]
    %v6437 = vld [vmem:[%s1883 + $0xfa] sm:$0xff]
    %v6438 = vld [vmem:[%s1883 + $0x10a] sm:$0xff]
    %v6439 = vld [vmem:[%s1883 + $0x112] sm:$0xff]
    %v6440 = vld [vmem:[%s1883 + $0x122] sm:$0xff]
    %v6441 = vld [vmem:[%s1883 + $0x12a] sm:$0xff]
    %v6442 = vld [vmem:[%s1883 + $0x13a] sm:$0xff]
    %v6443 = vld [vmem:[%s1883 + $0x142] sm:$0xff]
    %v6444 = vld [vmem:[%s1883 + $0x152] sm:$0xff]
    %v6445 = vld [vmem:[%s1883 + $0x15a] sm:$0xff]
    %v6446 = vld [vmem:[%s1883 + $0x16a] sm:$0xff]
    %v6447 = vld [vmem:[%s1883 + $0x172] sm:$0xff]
    %v6448 = vld [vmem:[%s1883 + $0x1b2] sm:$0xff]
    %v6449 = vld [vmem:[%s1883 + $0x1ba] sm:$0xff]
    %v6450 = vld [vmem:[%s1883 + $0x1ca] sm:$0xff]
    %v6451 = vld [vmem:[%s1883 + $0x1d2] sm:$0xff]
    %v6452 = vld [vmem:[%s1883 + $0x1e2] sm:$0xff]
    %v6453 = vld [vmem:[%s1883 + $0x1ea] sm:$0xff]
    %v6454 = vld [vmem:[%s1883 + $0x1fa] sm:$0xff]
    %v6455 = vld [vmem:[%s1883 + $0x202] sm:$0xff]
    %v6456 = vld [vmem:[%s1883 + $0x212] sm:$0xff]
    %v6457 = vld [vmem:[%s1883 + $0x21a] sm:$0xff]
    %v6458 = vld [vmem:[%s1883 + $0x22a] sm:$0xff]
    %v6459 = vld [vmem:[%s1883 + $0x232] sm:$0xff]
    %v6460 = vld [vmem:[%s1883 + $0x242] sm:$0xff]
    %v6461 = vld [vmem:[%s1883 + $0x24a] sm:$0xff]
    %v6462 = vld [vmem:[%s1883 + $0x25a] sm:$0xff]
    %v6463 = vld [vmem:[%s1883 + $0x262] sm:$0xff]
    %v6464 = vld [vmem:[%s1883 + $0x272] sm:$0xff]
    %v6465 = vld [vmem:[%s1883 + $0x27a] sm:$0xff]
    %v6466 = vld [vmem:[%s1883 + $0x28a] sm:$0xff]
    %v6467 = vld [vmem:[%s1883 + $0x292] sm:$0xff]
    %v6468 = vld [vmem:[%s1883 + $0x2a2] sm:$0xff]
    %v6469 = vld [vmem:[%s1883 + $0x2aa] sm:$0xff]
    %v6470 = vld [vmem:[%s1883 + $0x2ba] sm:$0xff]
    %v6471 = vld [vmem:[%s1883 + $0x2c2] sm:$0xff]
    %v6472 = vld [vmem:[%s1883 + $0x2d2] sm:$0xff]
    %v6473 = vld [vmem:[%s1883 + $0x2da] sm:$0xff]
    %v6474 = vld [vmem:[%s1883 + $0x2ea] sm:$0xff]
    %v6475 = vld [vmem:[%s1883 + $0x2f2] sm:$0xff]
    %v6476 = vld [vmem:[%s1883 + $0x302] sm:$0xff]
    %v6477 = vld [vmem:[%s1883 + $0x30a] sm:$0xff]
    %v6478 = vld [vmem:[%s1883 + $0x31a] sm:$0xff]
    %v6479 = vld [vmem:[%s1883 + $0x322] sm:$0xff]
    %6480 = vst [vmem:[#allocation3 + $0x40] sm:$0xff] %v6416
    %6481 = vst [vmem:[#allocation3 + $0x88] sm:$0xff] %v6417
    %6482 = vst [vmem:[#allocation3 + $0xd0] sm:$0xff] %v6418
    %6483 = vst [vmem:[#allocation3 + $0x118] sm:$0xff] %v6419
    %6484 = vst [vmem:[#allocation3 + $0x160] sm:$0xff] %v6420
    %6485 = vst [vmem:[#allocation3 + $0x1a8] sm:$0xff] %v6421
    %6486 = vst [vmem:[#allocation3 + $0x1f0] sm:$0xff] %v6422
    %6487 = vst [vmem:[#allocation3 + $0x238] sm:$0xff] %v6423
    %6488 = vst [vmem:[#allocation3 + $0x280] sm:$0xff] %v6424
    %6489 = vst [vmem:[#allocation3 + $0x2c8] sm:$0xff] %v6425
    %6490 = vst [vmem:[#allocation3 + $0x310] sm:$0xff] %v6426
    %6491 = vst [vmem:[#allocation3 + $0x358] sm:$0xff] %v6427
    %6492 = vst [vmem:[#allocation3 + $0x3a0] sm:$0xff] %v6428
    %6493 = vst [vmem:[#allocation3 + $0x3e8] sm:$0xff] %v6429
    %6494 = vst [vmem:[#allocation3 + $0x430] sm:$0xff] %v6430
    %6495 = vst [vmem:[#allocation3 + $0x478] sm:$0xff] %v6431
    %6496 = vst [vmem:[#allocation3 + $0x4c0] sm:$0xff] %v6432
    %6497 = vst [vmem:[#allocation3 + $0x508] sm:$0xff] %v6433
    %6498 = vst [vmem:[#allocation3 + $0x550] sm:$0xff] %v6434
    %6499 = vst [vmem:[#allocation3 + $0x598] sm:$0xff] %v6435
    %6500 = vst [vmem:[#allocation3 + $0x5e0] sm:$0xff] %v6436
    %6501 = vst [vmem:[#allocation3 + $0x628] sm:$0xff] %v6437
    %6502 = vst [vmem:[#allocation3 + $0x670] sm:$0xff] %v6438
    %6503 = vst [vmem:[#allocation3 + $0x6b8] sm:$0xff] %v6439
    %6504 = vst [vmem:[#allocation3 + $0x700] sm:$0xff] %v6440
    %6505 = vst [vmem:[#allocation3 + $0x748] sm:$0xff] %v6441
    %6506 = vst [vmem:[#allocation3 + $0x790] sm:$0xff] %v6442
    %6507 = vst [vmem:[#allocation3 + $0x7d8] sm:$0xff] %v6443
    %6508 = vst [vmem:[#allocation3 + $0x820] sm:$0xff] %v6444
    %6509 = vst [vmem:[#allocation3 + $0x868] sm:$0xff] %v6445
    %6510 = vst [vmem:[#allocation3 + $0x8b0] sm:$0xff] %v6446
    %6511 = vst [vmem:[#allocation3 + $0x8f8] sm:$0xff] %v6447
    %6512 = vst [vmem:[#allocation3 + $0x940] sm:$0xff] %v6448
    %6513 = vst [vmem:[#allocation3 + $0x988] sm:$0xff] %v6449
    %6514 = vst [vmem:[#allocation3 + $0x9d0] sm:$0xff] %v6450
    %6515 = vst [vmem:[#allocation3 + $0xa18] sm:$0xff] %v6451
    %6516 = vst [vmem:[#allocation3 + $0xa60] sm:$0xff] %v6452
    %6517 = vst [vmem:[#allocation3 + $0xaa8] sm:$0xff] %v6453
    %6518 = vst [vmem:[#allocation3 + $0xaf0] sm:$0xff] %v6454
    %6519 = vst [vmem:[#allocation3 + $0xb38] sm:$0xff] %v6455
    %6520 = vst [vmem:[#allocation3 + $0xb80] sm:$0xff] %v6456
    %6521 = vst [vmem:[#allocation3 + $0xbc8] sm:$0xff] %v6457
    %6522 = vst [vmem:[#allocation3 + $0xc10] sm:$0xff] %v6458
    %6523 = vst [vmem:[#allocation3 + $0xc58] sm:$0xff] %v6459
    %6524 = vst [vmem:[#allocation3 + $0xca0] sm:$0xff] %v6460
    %6525 = vst [vmem:[#allocation3 + $0xce8] sm:$0xff] %v6461
    %6526 = vst [vmem:[#allocation3 + $0xd30] sm:$0xff] %v6462
    %6527 = vst [vmem:[#allocation3 + $0xd78] sm:$0xff] %v6463
    %6528 = vst [vmem:[#allocation3 + $0xdc0] sm:$0xff] %v6464
    %6529 = vst [vmem:[#allocation3 + $0xe08] sm:$0xff] %v6465
    %6530 = vst [vmem:[#allocation3 + $0xe50] sm:$0xff] %v6466
    %6531 = vst [vmem:[#allocation3 + $0xe98] sm:$0xff] %v6467
    %6532 = vst [vmem:[#allocation3 + $0xee0] sm:$0xff] %v6468
    %6533 = vst [vmem:[#allocation3 + $0xf28] sm:$0xff] %v6469
    %6534 = vst [vmem:[#allocation3 + $0xf70] sm:$0xff] %v6470
    %6535 = vst [vmem:[#allocation3 + $0xfb8] sm:$0xff] %v6471
    %6536 = vst [vmem:[#allocation3 + $0x1000] sm:$0xff] %v6472
    %6537 = vst [vmem:[#allocation3 + $0x1048] sm:$0xff] %v6473
    %6538 = vst [vmem:[#allocation3 + $0x1090] sm:$0xff] %v6474
    %6539 = vst [vmem:[#allocation3 + $0x10d8] sm:$0xff] %v6475
    %6540 = vst [vmem:[#allocation3 + $0x1120] sm:$0xff] %v6476
    %6541 = vst [vmem:[#allocation3 + $0x1168] sm:$0xff] %v6477
    %6542 = vst [vmem:[#allocation3 + $0x11b0] sm:$0xff] %v6478
    %6543 = vst [vmem:[#allocation3 + $0x11f8] sm:$0xff] %v6479
    %v6544 = vld [vmem:[#allocation3] sm:$0xff]
    %v6545 = vld [vmem:[#allocation3 + $0x8] sm:$0xff]
    %v6546 = vld [vmem:[#allocation3 + $0x10] sm:$0xff]
    %v6547 = vld [vmem:[#allocation3 + $0x18] sm:$0xff]
    %v6548 = vld [vmem:[#allocation3 + $0x20] sm:$0xff]
    %v6549 = vld [vmem:[#allocation3 + $0x28] sm:$0xff]
    %v6550 = vld [vmem:[#allocation3 + $0x30] sm:$0xff]
    %v6551 = vld [vmem:[#allocation3 + $0x38] sm:$0xff]
    %v6552 = vld [vmem:[#allocation3 + $0x40] sm:$0xff]
    %v6553 = vld [vmem:[#allocation3 + $0x48] sm:$0xff]
    %v6554 = vld [vmem:[#allocation3 + $0x50] sm:$0xff]
    %v6555 = vld [vmem:[#allocation3 + $0x58] sm:$0xff]
    %v6556 = vld [vmem:[#allocation3 + $0x60] sm:$0xff]
    %v6557 = vld [vmem:[#allocation3 + $0x68] sm:$0xff]
    %v6558 = vld [vmem:[#allocation3 + $0x70] sm:$0xff]
    %v6559 = vld [vmem:[#allocation3 + $0x78] sm:$0xff]
    %v6560 = vld [vmem:[#allocation3 + $0x80] sm:$0xff]
    %v6561 = vld [vmem:[#allocation3 + $0x88] sm:$0xff]
    %v6562 = vld [vmem:[#allocation3 + $0x90] sm:$0xff]
    %v6563 = vld [vmem:[#allocation3 + $0x98] sm:$0xff]
    %v6564 = vld [vmem:[#allocation3 + $0xa0] sm:$0xff]
    %v6565 = vld [vmem:[#allocation3 + $0xa8] sm:$0xff]
    %v6566 = vld [vmem:[#allocation3 + $0xb0] sm:$0xff]
    %v6567 = vld [vmem:[#allocation3 + $0xb8] sm:$0xff]
    %v6568 = vld [vmem:[#allocation3 + $0xc0] sm:$0xff]
    %v6569 = vld [vmem:[#allocation3 + $0xc8] sm:$0xff]
    %v6570 = vld [vmem:[#allocation3 + $0xd0] sm:$0xff]
    %v6571 = vld [vmem:[#allocation3 + $0xd8] sm:$0xff]
    %v6572 = vld [vmem:[#allocation3 + $0xe0] sm:$0xff]
    %v6573 = vld [vmem:[#allocation3 + $0xe8] sm:$0xff]
    %v6574 = vld [vmem:[#allocation3 + $0xf0] sm:$0xff]
    %v6575 = vld [vmem:[#allocation3 + $0xf8] sm:$0xff]
    %v6576 = vld [vmem:[#allocation3 + $0x100] sm:$0xff]
    %v6577 = vld [vmem:[#allocation3 + $0x108] sm:$0xff]
    %v6578 = vld [vmem:[#allocation3 + $0x110] sm:$0xff]
    %v6579 = vld [vmem:[#allocation3 + $0x118] sm:$0xff]
    %v6580 = vld [vmem:[#allocation3 + $0x120] sm:$0xff]
    %v6581 = vld [vmem:[#allocation3 + $0x128] sm:$0xff]
    %v6582 = vld [vmem:[#allocation3 + $0x130] sm:$0xff]
    %v6583 = vld [vmem:[#allocation3 + $0x138] sm:$0xff]
    %v6584 = vld [vmem:[#allocation3 + $0x140] sm:$0xff]
    %v6585 = vld [vmem:[#allocation3 + $0x148] sm:$0xff]
    %v6586 = vld [vmem:[#allocation3 + $0x150] sm:$0xff]
    %v6587 = vld [vmem:[#allocation3 + $0x158] sm:$0xff]
    %v6588 = vld [vmem:[#allocation3 + $0x160] sm:$0xff]
    %v6589 = vld [vmem:[#allocation3 + $0x168] sm:$0xff]
    %v6590 = vld [vmem:[#allocation3 + $0x170] sm:$0xff]
    %v6591 = vld [vmem:[#allocation3 + $0x178] sm:$0xff]
    %v6592 = vld [vmem:[#allocation3 + $0x180] sm:$0xff]
    %v6593 = vld [vmem:[#allocation3 + $0x188] sm:$0xff]
    %v6594 = vld [vmem:[#allocation3 + $0x190] sm:$0xff]
    %v6595 = vld [vmem:[#allocation3 + $0x198] sm:$0xff]
    %v6596 = vld [vmem:[#allocation3 + $0x1a0] sm:$0xff]
    %v6597 = vld [vmem:[#allocation3 + $0x1a8] sm:$0xff]
    %v6598 = vld [vmem:[#allocation3 + $0x1b0] sm:$0xff]
    %v6599 = vld [vmem:[#allocation3 + $0x1b8] sm:$0xff]
    %v6600 = vld [vmem:[#allocation3 + $0x1c0] sm:$0xff]
    %v6601 = vld [vmem:[#allocation3 + $0x1c8] sm:$0xff]
    %v6602 = vld [vmem:[#allocation3 + $0x1d0] sm:$0xff]
    %v6603 = vld [vmem:[#allocation3 + $0x1d8] sm:$0xff]
    %v6604 = vld [vmem:[#allocation3 + $0x1e0] sm:$0xff]
    %v6605 = vld [vmem:[#allocation3 + $0x1e8] sm:$0xff]
    %v6606 = vld [vmem:[#allocation3 + $0x1f0] sm:$0xff]
    %v6607 = vld [vmem:[#allocation3 + $0x1f8] sm:$0xff]
    %v6608 = vld [vmem:[#allocation3 + $0x200] sm:$0xff]
    %v6609 = vld [vmem:[#allocation3 + $0x208] sm:$0xff]
    %v6610 = vld [vmem:[#allocation3 + $0x210] sm:$0xff]
    %v6611 = vld [vmem:[#allocation3 + $0x218] sm:$0xff]
    %v6612 = vld [vmem:[#allocation3 + $0x220] sm:$0xff]
    %v6613 = vld [vmem:[#allocation3 + $0x228] sm:$0xff]
    %v6614 = vld [vmem:[#allocation3 + $0x230] sm:$0xff]
    %v6615 = vld [vmem:[#allocation3 + $0x238] sm:$0xff]
    %v6616 = vld [vmem:[#allocation3 + $0x240] sm:$0xff]
    %v6617 = vld [vmem:[#allocation3 + $0x248] sm:$0xff]
    %v6618 = vld [vmem:[#allocation3 + $0x250] sm:$0xff]
    %v6619 = vld [vmem:[#allocation3 + $0x258] sm:$0xff]
    %v6620 = vld [vmem:[#allocation3 + $0x260] sm:$0xff]
    %v6621 = vld [vmem:[#allocation3 + $0x268] sm:$0xff]
    %v6622 = vld [vmem:[#allocation3 + $0x270] sm:$0xff]
    %v6623 = vld [vmem:[#allocation3 + $0x278] sm:$0xff]
    %v6624 = vld [vmem:[#allocation3 + $0x280] sm:$0xff]
    %v6625 = vld [vmem:[#allocation3 + $0x288] sm:$0xff]
    %v6626 = vld [vmem:[#allocation3 + $0x290] sm:$0xff]
    %v6627 = vld [vmem:[#allocation3 + $0x298] sm:$0xff]
    %v6628 = vld [vmem:[#allocation3 + $0x2a0] sm:$0xff]
    %v6629 = vld [vmem:[#allocation3 + $0x2a8] sm:$0xff]
    %v6630 = vld [vmem:[#allocation3 + $0x2b0] sm:$0xff]
    %v6631 = vld [vmem:[#allocation3 + $0x2b8] sm:$0xff]
    %v6632 = vld [vmem:[#allocation3 + $0x2c0] sm:$0xff]
    %v6633 = vld [vmem:[#allocation3 + $0x2c8] sm:$0xff]
    %v6634 = vld [vmem:[#allocation3 + $0x2d0] sm:$0xff]
    %v6635 = vld [vmem:[#allocation3 + $0x2d8] sm:$0xff]
    %v6636 = vld [vmem:[#allocation3 + $0x2e0] sm:$0xff]
    %v6637 = vld [vmem:[#allocation3 + $0x2e8] sm:$0xff]
    %v6638 = vld [vmem:[#allocation3 + $0x2f0] sm:$0xff]
    %v6639 = vld [vmem:[#allocation3 + $0x2f8] sm:$0xff]
    %v6640 = vld [vmem:[#allocation3 + $0x300] sm:$0xff]
    %v6641 = vld [vmem:[#allocation3 + $0x308] sm:$0xff]
    %v6642 = vld [vmem:[#allocation3 + $0x310] sm:$0xff]
    %v6643 = vld [vmem:[#allocation3 + $0x318] sm:$0xff]
    %v6644 = vld [vmem:[#allocation3 + $0x320] sm:$0xff]
    %v6645 = vld [vmem:[#allocation3 + $0x328] sm:$0xff]
    %v6646 = vld [vmem:[#allocation3 + $0x330] sm:$0xff]
    %v6647 = vld [vmem:[#allocation3 + $0x338] sm:$0xff]
    %v6648 = vld [vmem:[#allocation3 + $0x340] sm:$0xff]
    %v6649 = vld [vmem:[#allocation3 + $0x348] sm:$0xff]
    %v6650 = vld [vmem:[#allocation3 + $0x350] sm:$0xff]
    %v6651 = vld [vmem:[#allocation3 + $0x358] sm:$0xff]
    %v6652 = vld [vmem:[#allocation3 + $0x360] sm:$0xff]
    %v6653 = vld [vmem:[#allocation3 + $0x368] sm:$0xff]
    %v6654 = vld [vmem:[#allocation3 + $0x370] sm:$0xff]
    %v6655 = vld [vmem:[#allocation3 + $0x378] sm:$0xff]
    %v6656 = vld [vmem:[#allocation3 + $0x380] sm:$0xff]
    %v6657 = vld [vmem:[#allocation3 + $0x388] sm:$0xff]
    %v6658 = vld [vmem:[#allocation3 + $0x390] sm:$0xff]
    %v6659 = vld [vmem:[#allocation3 + $0x398] sm:$0xff]
    %v6660 = vld [vmem:[#allocation3 + $0x3a0] sm:$0xff]
    %v6661 = vld [vmem:[#allocation3 + $0x3a8] sm:$0xff]
    %v6662 = vld [vmem:[#allocation3 + $0x3b0] sm:$0xff]
    %v6663 = vld [vmem:[#allocation3 + $0x3b8] sm:$0xff]
    %v6664 = vld [vmem:[#allocation3 + $0x3c0] sm:$0xff]
    %v6665 = vld [vmem:[#allocation3 + $0x3c8] sm:$0xff]
    %v6666 = vld [vmem:[#allocation3 + $0x3d0] sm:$0xff]
    %v6667 = vld [vmem:[#allocation3 + $0x3d8] sm:$0xff]
    %v6668 = vld [vmem:[#allocation3 + $0x3e0] sm:$0xff]
    %v6669 = vld [vmem:[#allocation3 + $0x3e8] sm:$0xff]
    %v6670 = vld [vmem:[#allocation3 + $0x3f0] sm:$0xff]
    %v6671 = vld [vmem:[#allocation3 + $0x3f8] sm:$0xff]
    %v6672 = vld [vmem:[#allocation3 + $0x400] sm:$0xff]
    %v6673 = vld [vmem:[#allocation3 + $0x408] sm:$0xff]
    %v6674 = vld [vmem:[#allocation3 + $0x410] sm:$0xff]
    %v6675 = vld [vmem:[#allocation3 + $0x418] sm:$0xff]
    %v6676 = vld [vmem:[#allocation3 + $0x420] sm:$0xff]
    %v6677 = vld [vmem:[#allocation3 + $0x428] sm:$0xff]
    %v6678 = vld [vmem:[#allocation3 + $0x430] sm:$0xff]
    %v6679 = vld [vmem:[#allocation3 + $0x438] sm:$0xff]
    %v6680 = vld [vmem:[#allocation3 + $0x440] sm:$0xff]
    %v6681 = vld [vmem:[#allocation3 + $0x448] sm:$0xff]
    %v6682 = vld [vmem:[#allocation3 + $0x450] sm:$0xff]
    %v6683 = vld [vmem:[#allocation3 + $0x458] sm:$0xff]
    %v6684 = vld [vmem:[#allocation3 + $0x460] sm:$0xff]
    %v6685 = vld [vmem:[#allocation3 + $0x468] sm:$0xff]
    %v6686 = vld [vmem:[#allocation3 + $0x470] sm:$0xff]
    %v6687 = vld [vmem:[#allocation3 + $0x478] sm:$0xff]
    %v6688 = vld [vmem:[#allocation3 + $0x480] sm:$0xff]
    %v6689 = vld [vmem:[#allocation3 + $0x488] sm:$0xff]
    %v6690 = vld [vmem:[#allocation3 + $0x490] sm:$0xff]
    %v6691 = vld [vmem:[#allocation3 + $0x498] sm:$0xff]
    %v6692 = vld [vmem:[#allocation3 + $0x4a0] sm:$0xff]
    %v6693 = vld [vmem:[#allocation3 + $0x4a8] sm:$0xff]
    %v6694 = vld [vmem:[#allocation3 + $0x4b0] sm:$0xff]
    %v6695 = vld [vmem:[#allocation3 + $0x4b8] sm:$0xff]
    %v6696 = vld [vmem:[#allocation3 + $0x4c0] sm:$0xff]
    %v6697 = vld [vmem:[#allocation3 + $0x4c8] sm:$0xff]
    %v6698 = vld [vmem:[#allocation3 + $0x4d0] sm:$0xff]
    %v6699 = vld [vmem:[#allocation3 + $0x4d8] sm:$0xff]
    %v6700 = vld [vmem:[#allocation3 + $0x4e0] sm:$0xff]
    %v6701 = vld [vmem:[#allocation3 + $0x4e8] sm:$0xff]
    %v6702 = vld [vmem:[#allocation3 + $0x4f0] sm:$0xff]
    %v6703 = vld [vmem:[#allocation3 + $0x4f8] sm:$0xff]
    %v6704 = vld [vmem:[#allocation3 + $0x500] sm:$0xff]
    %v6705 = vld [vmem:[#allocation3 + $0x508] sm:$0xff]
    %v6706 = vld [vmem:[#allocation3 + $0x510] sm:$0xff]
    %v6707 = vld [vmem:[#allocation3 + $0x518] sm:$0xff]
    %v6708 = vld [vmem:[#allocation3 + $0x520] sm:$0xff]
    %v6709 = vld [vmem:[#allocation3 + $0x528] sm:$0xff]
    %v6710 = vld [vmem:[#allocation3 + $0x530] sm:$0xff]
    %v6711 = vld [vmem:[#allocation3 + $0x538] sm:$0xff]
    %v6712 = vld [vmem:[#allocation3 + $0x540] sm:$0xff]
    %v6713 = vld [vmem:[#allocation3 + $0x548] sm:$0xff]
    %v6714 = vld [vmem:[#allocation3 + $0x550] sm:$0xff]
    %v6715 = vld [vmem:[#allocation3 + $0x558] sm:$0xff]
    %v6716 = vld [vmem:[#allocation3 + $0x560] sm:$0xff]
    %v6717 = vld [vmem:[#allocation3 + $0x568] sm:$0xff]
    %v6718 = vld [vmem:[#allocation3 + $0x570] sm:$0xff]
    %v6719 = vld [vmem:[#allocation3 + $0x578] sm:$0xff]
    %v6720 = vld [vmem:[#allocation3 + $0x580] sm:$0xff]
    %v6721 = vld [vmem:[#allocation3 + $0x588] sm:$0xff]
    %v6722 = vld [vmem:[#allocation3 + $0x590] sm:$0xff]
    %v6723 = vld [vmem:[#allocation3 + $0x598] sm:$0xff]
    %v6724 = vld [vmem:[#allocation3 + $0x5a0] sm:$0xff]
    %v6725 = vld [vmem:[#allocation3 + $0x5a8] sm:$0xff]
    %v6726 = vld [vmem:[#allocation3 + $0x5b0] sm:$0xff]
    %v6727 = vld [vmem:[#allocation3 + $0x5b8] sm:$0xff]
    %v6728 = vld [vmem:[#allocation3 + $0x5c0] sm:$0xff]
    %v6729 = vld [vmem:[#allocation3 + $0x5c8] sm:$0xff]
    %v6730 = vld [vmem:[#allocation3 + $0x5d0] sm:$0xff]
    %v6731 = vld [vmem:[#allocation3 + $0x5d8] sm:$0xff]
    %v6732 = vld [vmem:[#allocation3 + $0x5e0] sm:$0xff]
    %v6733 = vld [vmem:[#allocation3 + $0x5e8] sm:$0xff]
    %v6734 = vld [vmem:[#allocation3 + $0x5f0] sm:$0xff]
    %v6735 = vld [vmem:[#allocation3 + $0x5f8] sm:$0xff]
    %v6736 = vld [vmem:[#allocation3 + $0x600] sm:$0xff]
    %v6737 = vld [vmem:[#allocation3 + $0x608] sm:$0xff]
    %v6738 = vld [vmem:[#allocation3 + $0x610] sm:$0xff]
    %v6739 = vld [vmem:[#allocation3 + $0x618] sm:$0xff]
    %v6740 = vld [vmem:[#allocation3 + $0x620] sm:$0xff]
    %v6741 = vld [vmem:[#allocation3 + $0x628] sm:$0xff]
    %v6742 = vld [vmem:[#allocation3 + $0x630] sm:$0xff]
    %v6743 = vld [vmem:[#allocation3 + $0x638] sm:$0xff]
    %v6744 = vld [vmem:[#allocation3 + $0x640] sm:$0xff]
    %v6745 = vld [vmem:[#allocation3 + $0x648] sm:$0xff]
    %v6746 = vld [vmem:[#allocation3 + $0x650] sm:$0xff]
    %v6747 = vld [vmem:[#allocation3 + $0x658] sm:$0xff]
    %v6748 = vld [vmem:[#allocation3 + $0x660] sm:$0xff]
    %v6749 = vld [vmem:[#allocation3 + $0x668] sm:$0xff]
    %v6750 = vld [vmem:[#allocation3 + $0x670] sm:$0xff]
    %v6751 = vld [vmem:[#allocation3 + $0x678] sm:$0xff]
    %v6752 = vld [vmem:[#allocation3 + $0x680] sm:$0xff]
    %v6753 = vld [vmem:[#allocation3 + $0x688] sm:$0xff]
    %v6754 = vld [vmem:[#allocation3 + $0x690] sm:$0xff]
    %v6755 = vld [vmem:[#allocation3 + $0x698] sm:$0xff]
    %v6756 = vld [vmem:[#allocation3 + $0x6a0] sm:$0xff]
    %v6757 = vld [vmem:[#allocation3 + $0x6a8] sm:$0xff]
    %v6758 = vld [vmem:[#allocation3 + $0x6b0] sm:$0xff]
    %v6759 = vld [vmem:[#allocation3 + $0x6b8] sm:$0xff]
    %v6760 = vld [vmem:[#allocation3 + $0x6c0] sm:$0xff]
    %v6761 = vld [vmem:[#allocation3 + $0x6c8] sm:$0xff]
    %v6762 = vld [vmem:[#allocation3 + $0x6d0] sm:$0xff]
    %v6763 = vld [vmem:[#allocation3 + $0x6d8] sm:$0xff]
    %v6764 = vld [vmem:[#allocation3 + $0x6e0] sm:$0xff]
    %v6765 = vld [vmem:[#allocation3 + $0x6e8] sm:$0xff]
    %v6766 = vld [vmem:[#allocation3 + $0x6f0] sm:$0xff]
    %v6767 = vld [vmem:[#allocation3 + $0x6f8] sm:$0xff]
    %v6768 = vld [vmem:[#allocation3 + $0x700] sm:$0xff]
    %v6769 = vld [vmem:[#allocation3 + $0x708] sm:$0xff]
    %v6770 = vld [vmem:[#allocation3 + $0x710] sm:$0xff]
    %v6771 = vld [vmem:[#allocation3 + $0x718] sm:$0xff]
    %v6772 = vld [vmem:[#allocation3 + $0x720] sm:$0xff]
    %v6773 = vld [vmem:[#allocation3 + $0x728] sm:$0xff]
    %v6774 = vld [vmem:[#allocation3 + $0x730] sm:$0xff]
    %v6775 = vld [vmem:[#allocation3 + $0x738] sm:$0xff]
    %v6776 = vld [vmem:[#allocation3 + $0x740] sm:$0xff]
    %v6777 = vld [vmem:[#allocation3 + $0x748] sm:$0xff]
    %v6778 = vld [vmem:[#allocation3 + $0x750] sm:$0xff]
    %v6779 = vld [vmem:[#allocation3 + $0x758] sm:$0xff]
    %v6780 = vld [vmem:[#allocation3 + $0x760] sm:$0xff]
    %v6781 = vld [vmem:[#allocation3 + $0x768] sm:$0xff]
    %v6782 = vld [vmem:[#allocation3 + $0x770] sm:$0xff]
    %v6783 = vld [vmem:[#allocation3 + $0x778] sm:$0xff]
    %v6784 = vld [vmem:[#allocation3 + $0x780] sm:$0xff]
    %v6785 = vld [vmem:[#allocation3 + $0x788] sm:$0xff]
    %v6786 = vld [vmem:[#allocation3 + $0x790] sm:$0xff]
    %v6787 = vld [vmem:[#allocation3 + $0x798] sm:$0xff]
    %v6788 = vld [vmem:[#allocation3 + $0x7a0] sm:$0xff]
    %v6789 = vld [vmem:[#allocation3 + $0x7a8] sm:$0xff]
    %v6790 = vld [vmem:[#allocation3 + $0x7b0] sm:$0xff]
    %v6791 = vld [vmem:[#allocation3 + $0x7b8] sm:$0xff]
    %v6792 = vld [vmem:[#allocation3 + $0x7c0] sm:$0xff]
    %v6793 = vld [vmem:[#allocation3 + $0x7c8] sm:$0xff]
    %v6794 = vld [vmem:[#allocation3 + $0x7d0] sm:$0xff]
    %v6795 = vld [vmem:[#allocation3 + $0x7d8] sm:$0xff]
    %v6796 = vld [vmem:[#allocation3 + $0x7e0] sm:$0xff]
    %v6797 = vld [vmem:[#allocation3 + $0x7e8] sm:$0xff]
    %v6798 = vld [vmem:[#allocation3 + $0x7f0] sm:$0xff]
    %v6799 = vld [vmem:[#allocation3 + $0x7f8] sm:$0xff]
    %v6800 = vld [vmem:[#allocation3 + $0x800] sm:$0xff]
    %v6801 = vld [vmem:[#allocation3 + $0x808] sm:$0xff]
    %v6802 = vld [vmem:[#allocation3 + $0x810] sm:$0xff]
    %v6803 = vld [vmem:[#allocation3 + $0x818] sm:$0xff]
    %v6804 = vld [vmem:[#allocation3 + $0x820] sm:$0xff]
    %v6805 = vld [vmem:[#allocation3 + $0x828] sm:$0xff]
    %v6806 = vld [vmem:[#allocation3 + $0x830] sm:$0xff]
    %v6807 = vld [vmem:[#allocation3 + $0x838] sm:$0xff]
    %v6808 = vld [vmem:[#allocation3 + $0x840] sm:$0xff]
    %v6809 = vld [vmem:[#allocation3 + $0x848] sm:$0xff]
    %v6810 = vld [vmem:[#allocation3 + $0x850] sm:$0xff]
    %v6811 = vld [vmem:[#allocation3 + $0x858] sm:$0xff]
    %v6812 = vld [vmem:[#allocation3 + $0x860] sm:$0xff]
    %v6813 = vld [vmem:[#allocation3 + $0x868] sm:$0xff]
    %v6814 = vld [vmem:[#allocation3 + $0x870] sm:$0xff]
    %v6815 = vld [vmem:[#allocation3 + $0x878] sm:$0xff]
    %v6816 = vld [vmem:[#allocation3 + $0x880] sm:$0xff]
    %v6817 = vld [vmem:[#allocation3 + $0x888] sm:$0xff]
    %v6818 = vld [vmem:[#allocation3 + $0x890] sm:$0xff]
    %v6819 = vld [vmem:[#allocation3 + $0x898] sm:$0xff]
    %v6820 = vld [vmem:[#allocation3 + $0x8a0] sm:$0xff]
    %v6821 = vld [vmem:[#allocation3 + $0x8a8] sm:$0xff]
    %v6822 = vld [vmem:[#allocation3 + $0x8b0] sm:$0xff]
    %v6823 = vld [vmem:[#allocation3 + $0x8b8] sm:$0xff]
    %v6824 = vld [vmem:[#allocation3 + $0x8c0] sm:$0xff]
    %v6825 = vld [vmem:[#allocation3 + $0x8c8] sm:$0xff]
    %v6826 = vld [vmem:[#allocation3 + $0x8d0] sm:$0xff]
    %v6827 = vld [vmem:[#allocation3 + $0x8d8] sm:$0xff]
    %v6828 = vld [vmem:[#allocation3 + $0x8e0] sm:$0xff]
    %v6829 = vld [vmem:[#allocation3 + $0x8e8] sm:$0xff]
    %v6830 = vld [vmem:[#allocation3 + $0x8f0] sm:$0xff]
    %v6831 = vld [vmem:[#allocation3 + $0x8f8] sm:$0xff]
    %v6832 = vld [vmem:[#allocation3 + $0x900] sm:$0xff]
    %v6833 = vld [vmem:[#allocation3 + $0x908] sm:$0xff]
    %v6834 = vld [vmem:[#allocation3 + $0x910] sm:$0xff]
    %v6835 = vld [vmem:[#allocation3 + $0x918] sm:$0xff]
    %v6836 = vld [vmem:[#allocation3 + $0x920] sm:$0xff]
    %v6837 = vld [vmem:[#allocation3 + $0x928] sm:$0xff]
    %v6838 = vld [vmem:[#allocation3 + $0x930] sm:$0xff]
    %v6839 = vld [vmem:[#allocation3 + $0x938] sm:$0xff]
    %v6840 = vld [vmem:[#allocation3 + $0x940] sm:$0xff]
    %v6841 = vld [vmem:[#allocation3 + $0x948] sm:$0xff]
    %v6842 = vld [vmem:[#allocation3 + $0x950] sm:$0xff]
    %v6843 = vld [vmem:[#allocation3 + $0x958] sm:$0xff]
    %v6844 = vld [vmem:[#allocation3 + $0x960] sm:$0xff]
    %v6845 = vld [vmem:[#allocation3 + $0x968] sm:$0xff]
    %v6846 = vld [vmem:[#allocation3 + $0x970] sm:$0xff]
    %v6847 = vld [vmem:[#allocation3 + $0x978] sm:$0xff]
    %v6848 = vld [vmem:[#allocation3 + $0x980] sm:$0xff]
    %v6849 = vld [vmem:[#allocation3 + $0x988] sm:$0xff]
    %v6850 = vld [vmem:[#allocation3 + $0x990] sm:$0xff]
    %v6851 = vld [vmem:[#allocation3 + $0x998] sm:$0xff]
    %v6852 = vld [vmem:[#allocation3 + $0x9a0] sm:$0xff]
    %v6853 = vld [vmem:[#allocation3 + $0x9a8] sm:$0xff]
    %v6854 = vld [vmem:[#allocation3 + $0x9b0] sm:$0xff]
    %v6855 = vld [vmem:[#allocation3 + $0x9b8] sm:$0xff]
    %v6856 = vld [vmem:[#allocation3 + $0x9c0] sm:$0xff]
    %v6857 = vld [vmem:[#allocation3 + $0x9c8] sm:$0xff]
    %v6858 = vld [vmem:[#allocation3 + $0x9d0] sm:$0xff]
    %v6859 = vld [vmem:[#allocation3 + $0x9d8] sm:$0xff]
    %v6860 = vld [vmem:[#allocation3 + $0x9e0] sm:$0xff]
    %v6861 = vld [vmem:[#allocation3 + $0x9e8] sm:$0xff]
    %v6862 = vld [vmem:[#allocation3 + $0x9f0] sm:$0xff]
    %v6863 = vld [vmem:[#allocation3 + $0x9f8] sm:$0xff]
    %v6864 = vld [vmem:[#allocation3 + $0xa00] sm:$0xff]
    %v6865 = vld [vmem:[#allocation3 + $0xa08] sm:$0xff]
    %v6866 = vld [vmem:[#allocation3 + $0xa10] sm:$0xff]
    %v6867 = vld [vmem:[#allocation3 + $0xa18] sm:$0xff]
    %v6868 = vld [vmem:[#allocation3 + $0xa20] sm:$0xff]
    %v6869 = vld [vmem:[#allocation3 + $0xa28] sm:$0xff]
    %v6870 = vld [vmem:[#allocation3 + $0xa30] sm:$0xff]
    %v6871 = vld [vmem:[#allocation3 + $0xa38] sm:$0xff]
    %v6872 = vld [vmem:[#allocation3 + $0xa40] sm:$0xff]
    %v6873 = vld [vmem:[#allocation3 + $0xa48] sm:$0xff]
    %v6874 = vld [vmem:[#allocation3 + $0xa50] sm:$0xff]
    %v6875 = vld [vmem:[#allocation3 + $0xa58] sm:$0xff]
    %v6876 = vld [vmem:[#allocation3 + $0xa60] sm:$0xff]
    %v6877 = vld [vmem:[#allocation3 + $0xa68] sm:$0xff]
    %v6878 = vld [vmem:[#allocation3 + $0xa70] sm:$0xff]
    %v6879 = vld [vmem:[#allocation3 + $0xa78] sm:$0xff]
    %v6880 = vld [vmem:[#allocation3 + $0xa80] sm:$0xff]
    %v6881 = vld [vmem:[#allocation3 + $0xa88] sm:$0xff]
    %v6882 = vld [vmem:[#allocation3 + $0xa90] sm:$0xff]
    %v6883 = vld [vmem:[#allocation3 + $0xa98] sm:$0xff]
    %v6884 = vld [vmem:[#allocation3 + $0xaa0] sm:$0xff]
    %v6885 = vld [vmem:[#allocation3 + $0xaa8] sm:$0xff]
    %v6886 = vld [vmem:[#allocation3 + $0xab0] sm:$0xff]
    %v6887 = vld [vmem:[#allocation3 + $0xab8] sm:$0xff]
    %v6888 = vld [vmem:[#allocation3 + $0xac0] sm:$0xff]
    %v6889 = vld [vmem:[#allocation3 + $0xac8] sm:$0xff]
    %v6890 = vld [vmem:[#allocation3 + $0xad0] sm:$0xff]
    %v6891 = vld [vmem:[#allocation3 + $0xad8] sm:$0xff]
    %v6892 = vld [vmem:[#allocation3 + $0xae0] sm:$0xff]
    %v6893 = vld [vmem:[#allocation3 + $0xae8] sm:$0xff]
    %v6894 = vld [vmem:[#allocation3 + $0xaf0] sm:$0xff]
    %v6895 = vld [vmem:[#allocation3 + $0xaf8] sm:$0xff]
    %v6896 = vld [vmem:[#allocation3 + $0xb00] sm:$0xff]
    %v6897 = vld [vmem:[#allocation3 + $0xb08] sm:$0xff]
    %v6898 = vld [vmem:[#allocation3 + $0xb10] sm:$0xff]
    %v6899 = vld [vmem:[#allocation3 + $0xb18] sm:$0xff]
    %v6900 = vld [vmem:[#allocation3 + $0xb20] sm:$0xff]
    %v6901 = vld [vmem:[#allocation3 + $0xb28] sm:$0xff]
    %v6902 = vld [vmem:[#allocation3 + $0xb30] sm:$0xff]
    %v6903 = vld [vmem:[#allocation3 + $0xb38] sm:$0xff]
    %v6904 = vld [vmem:[#allocation3 + $0xb40] sm:$0xff]
    %v6905 = vld [vmem:[#allocation3 + $0xb48] sm:$0xff]
    %v6906 = vld [vmem:[#allocation3 + $0xb50] sm:$0xff]
    %v6907 = vld [vmem:[#allocation3 + $0xb58] sm:$0xff]
    %v6908 = vld [vmem:[#allocation3 + $0xb60] sm:$0xff]
    %v6909 = vld [vmem:[#allocation3 + $0xb68] sm:$0xff]
    %v6910 = vld [vmem:[#allocation3 + $0xb70] sm:$0xff]
    %v6911 = vld [vmem:[#allocation3 + $0xb78] sm:$0xff]
    %v6912 = vld [vmem:[#allocation3 + $0xb80] sm:$0xff]
    %v6913 = vld [vmem:[#allocation3 + $0xb88] sm:$0xff]
    %v6914 = vld [vmem:[#allocation3 + $0xb90] sm:$0xff]
    %v6915 = vld [vmem:[#allocation3 + $0xb98] sm:$0xff]
    %v6916 = vld [vmem:[#allocation3 + $0xba0] sm:$0xff]
    %v6917 = vld [vmem:[#allocation3 + $0xba8] sm:$0xff]
    %v6918 = vld [vmem:[#allocation3 + $0xbb0] sm:$0xff]
    %v6919 = vld [vmem:[#allocation3 + $0xbb8] sm:$0xff]
    %v6920 = vld [vmem:[#allocation3 + $0xbc0] sm:$0xff]
    %v6921 = vld [vmem:[#allocation3 + $0xbc8] sm:$0xff]
    %v6922 = vld [vmem:[#allocation3 + $0xbd0] sm:$0xff]
    %v6923 = vld [vmem:[#allocation3 + $0xbd8] sm:$0xff]
    %v6924 = vld [vmem:[#allocation3 + $0xbe0] sm:$0xff]
    %v6925 = vld [vmem:[#allocation3 + $0xbe8] sm:$0xff]
    %v6926 = vld [vmem:[#allocation3 + $0xbf0] sm:$0xff]
    %v6927 = vld [vmem:[#allocation3 + $0xbf8] sm:$0xff]
    %v6928 = vld [vmem:[#allocation3 + $0xc00] sm:$0xff]
    %v6929 = vld [vmem:[#allocation3 + $0xc08] sm:$0xff]
    %v6930 = vld [vmem:[#allocation3 + $0xc10] sm:$0xff]
    %v6931 = vld [vmem:[#allocation3 + $0xc18] sm:$0xff]
    %v6932 = vld [vmem:[#allocation3 + $0xc20] sm:$0xff]
    %v6933 = vld [vmem:[#allocation3 + $0xc28] sm:$0xff]
    %v6934 = vld [vmem:[#allocation3 + $0xc30] sm:$0xff]
    %v6935 = vld [vmem:[#allocation3 + $0xc38] sm:$0xff]
    %v6936 = vld [vmem:[#allocation3 + $0xc40] sm:$0xff]
    %v6937 = vld [vmem:[#allocation3 + $0xc48] sm:$0xff]
    %v6938 = vld [vmem:[#allocation3 + $0xc50] sm:$0xff]
    %v6939 = vld [vmem:[#allocation3 + $0xc58] sm:$0xff]
    %v6940 = vld [vmem:[#allocation3 + $0xc60] sm:$0xff]
    %v6941 = vld [vmem:[#allocation3 + $0xc68] sm:$0xff]
    %v6942 = vld [vmem:[#allocation3 + $0xc70] sm:$0xff]
    %v6943 = vld [vmem:[#allocation3 + $0xc78] sm:$0xff]
    %v6944 = vld [vmem:[#allocation3 + $0xc80] sm:$0xff]
    %v6945 = vld [vmem:[#allocation3 + $0xc88] sm:$0xff]
    %v6946 = vld [vmem:[#allocation3 + $0xc90] sm:$0xff]
    %v6947 = vld [vmem:[#allocation3 + $0xc98] sm:$0xff]
    %v6948 = vld [vmem:[#allocation3 + $0xca0] sm:$0xff]
    %v6949 = vld [vmem:[#allocation3 + $0xca8] sm:$0xff]
    %v6950 = vld [vmem:[#allocation3 + $0xcb0] sm:$0xff]
    %v6951 = vld [vmem:[#allocation3 + $0xcb8] sm:$0xff]
    %v6952 = vld [vmem:[#allocation3 + $0xcc0] sm:$0xff]
    %v6953 = vld [vmem:[#allocation3 + $0xcc8] sm:$0xff]
    %v6954 = vld [vmem:[#allocation3 + $0xcd0] sm:$0xff]
    %v6955 = vld [vmem:[#allocation3 + $0xcd8] sm:$0xff]
    %v6956 = vld [vmem:[#allocation3 + $0xce0] sm:$0xff]
    %v6957 = vld [vmem:[#allocation3 + $0xce8] sm:$0xff]
    %v6958 = vld [vmem:[#allocation3 + $0xcf0] sm:$0xff]
    %v6959 = vld [vmem:[#allocation3 + $0xcf8] sm:$0xff]
    %v6960 = vld [vmem:[#allocation3 + $0xd00] sm:$0xff]
    %v6961 = vld [vmem:[#allocation3 + $0xd08] sm:$0xff]
    %v6962 = vld [vmem:[#allocation3 + $0xd10] sm:$0xff]
    %v6963 = vld [vmem:[#allocation3 + $0xd18] sm:$0xff]
    %v6964 = vld [vmem:[#allocation3 + $0xd20] sm:$0xff]
    %v6965 = vld [vmem:[#allocation3 + $0xd28] sm:$0xff]
    %v6966 = vld [vmem:[#allocation3 + $0xd30] sm:$0xff]
    %v6967 = vld [vmem:[#allocation3 + $0xd38] sm:$0xff]
    %v6968 = vld [vmem:[#allocation3 + $0xd40] sm:$0xff]
    %v6969 = vld [vmem:[#allocation3 + $0xd48] sm:$0xff]
    %v6970 = vld [vmem:[#allocation3 + $0xd50] sm:$0xff]
    %v6971 = vld [vmem:[#allocation3 + $0xd58] sm:$0xff]
    %v6972 = vld [vmem:[#allocation3 + $0xd60] sm:$0xff]
    %v6973 = vld [vmem:[#allocation3 + $0xd68] sm:$0xff]
    %v6974 = vld [vmem:[#allocation3 + $0xd70] sm:$0xff]
    %v6975 = vld [vmem:[#allocation3 + $0xd78] sm:$0xff]
    %v6976 = vld [vmem:[#allocation3 + $0xd80] sm:$0xff]
    %v6977 = vld [vmem:[#allocation3 + $0xd88] sm:$0xff]
    %v6978 = vld [vmem:[#allocation3 + $0xd90] sm:$0xff]
    %v6979 = vld [vmem:[#allocation3 + $0xd98] sm:$0xff]
    %v6980 = vld [vmem:[#allocation3 + $0xda0] sm:$0xff]
    %v6981 = vld [vmem:[#allocation3 + $0xda8] sm:$0xff]
    %v6982 = vld [vmem:[#allocation3 + $0xdb0] sm:$0xff]
    %v6983 = vld [vmem:[#allocation3 + $0xdb8] sm:$0xff]
    %v6984 = vld [vmem:[#allocation3 + $0xdc0] sm:$0xff]
    %v6985 = vld [vmem:[#allocation3 + $0xdc8] sm:$0xff]
    %v6986 = vld [vmem:[#allocation3 + $0xdd0] sm:$0xff]
    %v6987 = vld [vmem:[#allocation3 + $0xdd8] sm:$0xff]
    %v6988 = vld [vmem:[#allocation3 + $0xde0] sm:$0xff]
    %v6989 = vld [vmem:[#allocation3 + $0xde8] sm:$0xff]
    %v6990 = vld [vmem:[#allocation3 + $0xdf0] sm:$0xff]
    %v6991 = vld [vmem:[#allocation3 + $0xdf8] sm:$0xff]
    %v6992 = vld [vmem:[#allocation3 + $0xe00] sm:$0xff]
    %v6993 = vld [vmem:[#allocation3 + $0xe08] sm:$0xff]
    %v6994 = vld [vmem:[#allocation3 + $0xe10] sm:$0xff]
    %v6995 = vld [vmem:[#allocation3 + $0xe18] sm:$0xff]
    %v6996 = vld [vmem:[#allocation3 + $0xe20] sm:$0xff]
    %v6997 = vld [vmem:[#allocation3 + $0xe28] sm:$0xff]
    %v6998 = vld [vmem:[#allocation3 + $0xe30] sm:$0xff]
    %v6999 = vld [vmem:[#allocation3 + $0xe38] sm:$0xff]
    %v7000 = vld [vmem:[#allocation3 + $0xe40] sm:$0xff]
    %v7001 = vld [vmem:[#allocation3 + $0xe48] sm:$0xff]
    %v7002 = vld [vmem:[#allocation3 + $0xe50] sm:$0xff]
    %v7003 = vld [vmem:[#allocation3 + $0xe58] sm:$0xff]
    %v7004 = vld [vmem:[#allocation3 + $0xe60] sm:$0xff]
    %v7005 = vld [vmem:[#allocation3 + $0xe68] sm:$0xff]
    %v7006 = vld [vmem:[#allocation3 + $0xe70] sm:$0xff]
    %v7007 = vld [vmem:[#allocation3 + $0xe78] sm:$0xff]
    %v7008 = vld [vmem:[#allocation3 + $0xe80] sm:$0xff]
    %v7009 = vld [vmem:[#allocation3 + $0xe88] sm:$0xff]
    %v7010 = vld [vmem:[#allocation3 + $0xe90] sm:$0xff]
    %v7011 = vld [vmem:[#allocation3 + $0xe98] sm:$0xff]
    %v7012 = vld [vmem:[#allocation3 + $0xea0] sm:$0xff]
    %v7013 = vld [vmem:[#allocation3 + $0xea8] sm:$0xff]
    %v7014 = vld [vmem:[#allocation3 + $0xeb0] sm:$0xff]
    %v7015 = vld [vmem:[#allocation3 + $0xeb8] sm:$0xff]
    %v7016 = vld [vmem:[#allocation3 + $0xec0] sm:$0xff]
    %v7017 = vld [vmem:[#allocation3 + $0xec8] sm:$0xff]
    %v7018 = vld [vmem:[#allocation3 + $0xed0] sm:$0xff]
    %v7019 = vld [vmem:[#allocation3 + $0xed8] sm:$0xff]
    %v7020 = vld [vmem:[#allocation3 + $0xee0] sm:$0xff]
    %v7021 = vld [vmem:[#allocation3 + $0xee8] sm:$0xff]
    %v7022 = vld [vmem:[#allocation3 + $0xef0] sm:$0xff]
    %v7023 = vld [vmem:[#allocation3 + $0xef8] sm:$0xff]
    %v7024 = vld [vmem:[#allocation3 + $0xf00] sm:$0xff]
    %v7025 = vld [vmem:[#allocation3 + $0xf08] sm:$0xff]
    %v7026 = vld [vmem:[#allocation3 + $0xf10] sm:$0xff]
    %v7027 = vld [vmem:[#allocation3 + $0xf18] sm:$0xff]
    %v7028 = vld [vmem:[#allocation3 + $0xf20] sm:$0xff]
    %v7029 = vld [vmem:[#allocation3 + $0xf28] sm:$0xff]
    %v7030 = vld [vmem:[#allocation3 + $0xf30] sm:$0xff]
    %v7031 = vld [vmem:[#allocation3 + $0xf38] sm:$0xff]
    %v7032 = vld [vmem:[#allocation3 + $0xf40] sm:$0xff]
    %v7033 = vld [vmem:[#allocation3 + $0xf48] sm:$0xff]
    %v7034 = vld [vmem:[#allocation3 + $0xf50] sm:$0xff]
    %v7035 = vld [vmem:[#allocation3 + $0xf58] sm:$0xff]
    %v7036 = vld [vmem:[#allocation3 + $0xf60] sm:$0xff]
    %v7037 = vld [vmem:[#allocation3 + $0xf68] sm:$0xff]
    %v7038 = vld [vmem:[#allocation3 + $0xf70] sm:$0xff]
    %v7039 = vld [vmem:[#allocation3 + $0xf78] sm:$0xff]
    %v7040 = vld [vmem:[#allocation3 + $0xf80] sm:$0xff]
    %v7041 = vld [vmem:[#allocation3 + $0xf88] sm:$0xff]
    %v7042 = vld [vmem:[#allocation3 + $0xf90] sm:$0xff]
    %v7043 = vld [vmem:[#allocation3 + $0xf98] sm:$0xff]
    %v7044 = vld [vmem:[#allocation3 + $0xfa0] sm:$0xff]
    %v7045 = vld [vmem:[#allocation3 + $0xfa8] sm:$0xff]
    %v7046 = vld [vmem:[#allocation3 + $0xfb0] sm:$0xff]
    %v7047 = vld [vmem:[#allocation3 + $0xfb8] sm:$0xff]
    %v7048 = vld [vmem:[#allocation3 + $0xfc0] sm:$0xff]
    %v7049 = vld [vmem:[#allocation3 + $0xfc8] sm:$0xff]
    %v7050 = vld [vmem:[#allocation3 + $0xfd0] sm:$0xff]
    %v7051 = vld [vmem:[#allocation3 + $0xfd8] sm:$0xff]
    %v7052 = vld [vmem:[#allocation3 + $0xfe0] sm:$0xff]
    %v7053 = vld [vmem:[#allocation3 + $0xfe8] sm:$0xff]
    %v7054 = vld [vmem:[#allocation3 + $0xff0] sm:$0xff]
    %v7055 = vld [vmem:[#allocation3 + $0xff8] sm:$0xff]
    %v7056 = vld [vmem:[#allocation3 + $0x1000] sm:$0xff]
    %v7057 = vld [vmem:[#allocation3 + $0x1008] sm:$0xff]
    %v7058 = vld [vmem:[#allocation3 + $0x1010] sm:$0xff]
    %v7059 = vld [vmem:[#allocation3 + $0x1018] sm:$0xff]
    %v7060 = vld [vmem:[#allocation3 + $0x1020] sm:$0xff]
    %v7061 = vld [vmem:[#allocation3 + $0x1028] sm:$0xff]
    %v7062 = vld [vmem:[#allocation3 + $0x1030] sm:$0xff]
    %v7063 = vld [vmem:[#allocation3 + $0x1038] sm:$0xff]
    %v7064 = vld [vmem:[#allocation3 + $0x1040] sm:$0xff]
    %v7065 = vld [vmem:[#allocation3 + $0x1048] sm:$0xff]
    %v7066 = vld [vmem:[#allocation3 + $0x1050] sm:$0xff]
    %v7067 = vld [vmem:[#allocation3 + $0x1058] sm:$0xff]
    %v7068 = vld [vmem:[#allocation3 + $0x1060] sm:$0xff]
    %v7069 = vld [vmem:[#allocation3 + $0x1068] sm:$0xff]
    %v7070 = vld [vmem:[#allocation3 + $0x1070] sm:$0xff]
    %v7071 = vld [vmem:[#allocation3 + $0x1078] sm:$0xff]
    %v7072 = vld [vmem:[#allocation3 + $0x1080] sm:$0xff]
    %v7073 = vld [vmem:[#allocation3 + $0x1088] sm:$0xff]
    %v7074 = vld [vmem:[#allocation3 + $0x1090] sm:$0xff]
    %v7075 = vld [vmem:[#allocation3 + $0x1098] sm:$0xff]
    %v7076 = vld [vmem:[#allocation3 + $0x10a0] sm:$0xff]
    %v7077 = vld [vmem:[#allocation3 + $0x10a8] sm:$0xff]
    %v7078 = vld [vmem:[#allocation3 + $0x10b0] sm:$0xff]
    %v7079 = vld [vmem:[#allocation3 + $0x10b8] sm:$0xff]
    %v7080 = vld [vmem:[#allocation3 + $0x10c0] sm:$0xff]
    %v7081 = vld [vmem:[#allocation3 + $0x10c8] sm:$0xff]
    %v7082 = vld [vmem:[#allocation3 + $0x10d0] sm:$0xff]
    %v7083 = vld [vmem:[#allocation3 + $0x10d8] sm:$0xff]
    %v7084 = vld [vmem:[#allocation3 + $0x10e0] sm:$0xff]
    %v7085 = vld [vmem:[#allocation3 + $0x10e8] sm:$0xff]
    %v7086 = vld [vmem:[#allocation3 + $0x10f0] sm:$0xff]
    %v7087 = vld [vmem:[#allocation3 + $0x10f8] sm:$0xff]
    %v7088 = vld [vmem:[#allocation3 + $0x1100] sm:$0xff]
    %v7089 = vld [vmem:[#allocation3 + $0x1108] sm:$0xff]
    %v7090 = vld [vmem:[#allocation3 + $0x1110] sm:$0xff]
    %v7091 = vld [vmem:[#allocation3 + $0x1118] sm:$0xff]
    %v7092 = vld [vmem:[#allocation3 + $0x1120] sm:$0xff]
    %v7093 = vld [vmem:[#allocation3 + $0x1128] sm:$0xff]
    %v7094 = vld [vmem:[#allocation3 + $0x1130] sm:$0xff]
    %v7095 = vld [vmem:[#allocation3 + $0x1138] sm:$0xff]
    %v7096 = vld [vmem:[#allocation3 + $0x1140] sm:$0xff]
    %v7097 = vld [vmem:[#allocation3 + $0x1148] sm:$0xff]
    %v7098 = vld [vmem:[#allocation3 + $0x1150] sm:$0xff]
    %v7099 = vld [vmem:[#allocation3 + $0x1158] sm:$0xff]
    %v7100 = vld [vmem:[#allocation3 + $0x1160] sm:$0xff]
    %v7101 = vld [vmem:[#allocation3 + $0x1168] sm:$0xff]
    %v7102 = vld [vmem:[#allocation3 + $0x1170] sm:$0xff]
    %v7103 = vld [vmem:[#allocation3 + $0x1178] sm:$0xff]
    %v7104 = vld [vmem:[#allocation3 + $0x1180] sm:$0xff]
    %v7105 = vld [vmem:[#allocation3 + $0x1188] sm:$0xff]
    %v7106 = vld [vmem:[#allocation3 + $0x1190] sm:$0xff]
    %v7107 = vld [vmem:[#allocation3 + $0x1198] sm:$0xff]
    %v7108 = vld [vmem:[#allocation3 + $0x11a0] sm:$0xff]
    %v7109 = vld [vmem:[#allocation3 + $0x11a8] sm:$0xff]
    %v7110 = vld [vmem:[#allocation3 + $0x11b0] sm:$0xff]
    %v7111 = vld [vmem:[#allocation3 + $0x11b8] sm:$0xff]
    %v7112 = vld [vmem:[#allocation3 + $0x11c0] sm:$0xff]
    %v7113 = vld [vmem:[#allocation3 + $0x11c8] sm:$0xff]
    %v7114 = vld [vmem:[#allocation3 + $0x11d0] sm:$0xff]
    %v7115 = vld [vmem:[#allocation3 + $0x11d8] sm:$0xff]
    %v7116 = vld [vmem:[#allocation3 + $0x11e0] sm:$0xff]
    %v7117 = vld [vmem:[#allocation3 + $0x11e8] sm:$0xff]
    %v7118 = vld [vmem:[#allocation3 + $0x11f0] sm:$0xff]
    %v7119 = vld [vmem:[#allocation3 + $0x11f8] sm:$0xff]
    %v7120 = vld [vmem:[#allocation9] sm:$0xff]
    %v7121 = vld [vmem:[#allocation9 + $0x8] sm:$0xff]
    %v7122 = vld [vmem:[#allocation9 + $0x10] sm:$0xff]
    %v7123 = vld [vmem:[#allocation9 + $0x18] sm:$0xff]
    %v7124 = vld [vmem:[#allocation9 + $0x20] sm:$0xff]
    %v7125 = vld [vmem:[#allocation9 + $0x28] sm:$0xff]
    %v7126 = vld [vmem:[#allocation9 + $0x30] sm:$0xff]
    %v7127 = vld [vmem:[#allocation9 + $0x38] sm:$0xff]
    %v7128 = vld [vmem:[#allocation9 + $0x40] sm:$0xff]
    %v7129 = vld [vmem:[#allocation9 + $0x48] sm:$0xff]
    %v7130 = vld [vmem:[#allocation9 + $0x50] sm:$0xff]
    %v7131 = vld [vmem:[#allocation9 + $0x58] sm:$0xff]
    %v7132 = vld [vmem:[#allocation9 + $0x60] sm:$0xff]
    %v7133 = vld [vmem:[#allocation9 + $0x68] sm:$0xff]
    %v7134 = vld [vmem:[#allocation9 + $0x70] sm:$0xff]
    %v7135 = vld [vmem:[#allocation9 + $0x78] sm:$0xff]
    %v7136 = vld [vmem:[#allocation9 + $0x80] sm:$0xff]
    %v7137 = vld [vmem:[#allocation9 + $0x88] sm:$0xff]
    %v7138 = vld [vmem:[#allocation9 + $0x90] sm:$0xff]
    %v7139 = vld [vmem:[#allocation9 + $0x98] sm:$0xff]
    %v7140 = vld [vmem:[#allocation9 + $0xa0] sm:$0xff]
    %v7141 = vld [vmem:[#allocation9 + $0xa8] sm:$0xff]
    %v7142 = vld [vmem:[#allocation9 + $0xb0] sm:$0xff]
    %v7143 = vld [vmem:[#allocation9 + $0xb8] sm:$0xff]
    %v7144 = vld [vmem:[#allocation9 + $0xc0] sm:$0xff]
    %v7145 = vld [vmem:[#allocation9 + $0xc8] sm:$0xff]
    %v7146 = vld [vmem:[#allocation9 + $0xd0] sm:$0xff]
    %v7147 = vld [vmem:[#allocation9 + $0xd8] sm:$0xff]
    %v7148 = vld [vmem:[#allocation9 + $0xe0] sm:$0xff]
    %v7149 = vld [vmem:[#allocation9 + $0xe8] sm:$0xff]
    %v7150 = vld [vmem:[#allocation9 + $0xf0] sm:$0xff]
    %v7151 = vld [vmem:[#allocation9 + $0xf8] sm:$0xff]
    %v7152 = vld [vmem:[#allocation9 + $0x100] sm:$0xff]
    %v7153 = vld [vmem:[#allocation9 + $0x108] sm:$0xff]
    %v7154 = vld [vmem:[#allocation9 + $0x110] sm:$0xff]
    %v7155 = vld [vmem:[#allocation9 + $0x118] sm:$0xff]
    %v7156 = vld [vmem:[#allocation9 + $0x120] sm:$0xff]
    %v7157 = vld [vmem:[#allocation9 + $0x128] sm:$0xff]
    %v7158 = vld [vmem:[#allocation9 + $0x130] sm:$0xff]
    %v7159 = vld [vmem:[#allocation9 + $0x138] sm:$0xff]
    %v7160 = vld [vmem:[#allocation9 + $0x140] sm:$0xff]
    %v7161 = vld [vmem:[#allocation9 + $0x148] sm:$0xff]
    %v7162 = vld [vmem:[#allocation9 + $0x150] sm:$0xff]
    %v7163 = vld [vmem:[#allocation9 + $0x158] sm:$0xff]
    %v7164 = vld [vmem:[#allocation9 + $0x160] sm:$0xff]
    %v7165 = vld [vmem:[#allocation9 + $0x168] sm:$0xff]
    %v7166 = vld [vmem:[#allocation9 + $0x170] sm:$0xff]
    %v7167 = vld [vmem:[#allocation9 + $0x178] sm:$0xff]
    %v7168 = vld [vmem:[#allocation9 + $0x180] sm:$0xff]
    %v7169 = vld [vmem:[#allocation9 + $0x188] sm:$0xff]
    %v7170 = vld [vmem:[#allocation9 + $0x190] sm:$0xff]
    %v7171 = vld [vmem:[#allocation9 + $0x198] sm:$0xff]
    %v7172 = vld [vmem:[#allocation9 + $0x1a0] sm:$0xff]
    %v7173 = vld [vmem:[#allocation9 + $0x1a8] sm:$0xff]
    %v7174 = vld [vmem:[#allocation9 + $0x1b0] sm:$0xff]
    %v7175 = vld [vmem:[#allocation9 + $0x1b8] sm:$0xff]
    %v7176 = vld [vmem:[#allocation9 + $0x1c0] sm:$0xff]
    %v7177 = vld [vmem:[#allocation9 + $0x1c8] sm:$0xff]
    %v7178 = vld [vmem:[#allocation9 + $0x1d0] sm:$0xff]
    %v7179 = vld [vmem:[#allocation9 + $0x1d8] sm:$0xff]
    %v7180 = vld [vmem:[#allocation9 + $0x1e0] sm:$0xff]
    %v7181 = vld [vmem:[#allocation9 + $0x1e8] sm:$0xff]
    %v7182 = vld [vmem:[#allocation9 + $0x1f0] sm:$0xff]
    %v7183 = vld [vmem:[#allocation9 + $0x1f8] sm:$0xff]
    %v7184 = vld [vmem:[#allocation9 + $0x200] sm:$0xff]
    %v7185 = vld [vmem:[#allocation9 + $0x208] sm:$0xff]
    %v7186 = vld [vmem:[#allocation9 + $0x210] sm:$0xff]
    %v7187 = vld [vmem:[#allocation9 + $0x218] sm:$0xff]
    %v7188 = vld [vmem:[#allocation9 + $0x220] sm:$0xff]
    %v7189 = vld [vmem:[#allocation9 + $0x228] sm:$0xff]
    %v7190 = vld [vmem:[#allocation9 + $0x230] sm:$0xff]
    %v7191 = vld [vmem:[#allocation9 + $0x238] sm:$0xff]
    %v7192 = vld [vmem:[#allocation9 + $0x240] sm:$0xff]
    %v7193 = vld [vmem:[#allocation9 + $0x248] sm:$0xff]
    %v7194 = vld [vmem:[#allocation9 + $0x250] sm:$0xff]
    %v7195 = vld [vmem:[#allocation9 + $0x258] sm:$0xff]
    %v7196 = vld [vmem:[#allocation9 + $0x260] sm:$0xff]
    %v7197 = vld [vmem:[#allocation9 + $0x268] sm:$0xff]
    %v7198 = vld [vmem:[#allocation9 + $0x270] sm:$0xff]
    %v7199 = vld [vmem:[#allocation9 + $0x278] sm:$0xff]
    %v7200 = vld [vmem:[#allocation9 + $0x280] sm:$0xff]
    %v7201 = vld [vmem:[#allocation9 + $0x288] sm:$0xff]
    %v7202 = vld [vmem:[#allocation9 + $0x290] sm:$0xff]
    %v7203 = vld [vmem:[#allocation9 + $0x298] sm:$0xff]
    %v7204 = vld [vmem:[#allocation9 + $0x2a0] sm:$0xff]
    %v7205 = vld [vmem:[#allocation9 + $0x2a8] sm:$0xff]
    %v7206 = vld [vmem:[#allocation9 + $0x2b0] sm:$0xff]
    %v7207 = vld [vmem:[#allocation9 + $0x2b8] sm:$0xff]
    %v7208 = vld [vmem:[#allocation9 + $0x2c0] sm:$0xff]
    %v7209 = vld [vmem:[#allocation9 + $0x2c8] sm:$0xff]
    %v7210 = vld [vmem:[#allocation9 + $0x2d0] sm:$0xff]
    %v7211 = vld [vmem:[#allocation9 + $0x2d8] sm:$0xff]
    %v7212 = vld [vmem:[#allocation9 + $0x2e0] sm:$0xff]
    %v7213 = vld [vmem:[#allocation9 + $0x2e8] sm:$0xff]
    %v7214 = vld [vmem:[#allocation9 + $0x2f0] sm:$0xff]
    %v7215 = vld [vmem:[#allocation9 + $0x2f8] sm:$0xff]
    %v7216 = vld [vmem:[#allocation9 + $0x300] sm:$0xff]
    %v7217 = vld [vmem:[#allocation9 + $0x308] sm:$0xff]
    %v7218 = vld [vmem:[#allocation9 + $0x310] sm:$0xff]
    %v7219 = vld [vmem:[#allocation9 + $0x318] sm:$0xff]
    %v7220 = vld [vmem:[#allocation9 + $0x320] sm:$0xff]
    %v7221 = vld [vmem:[#allocation9 + $0x328] sm:$0xff]
    %v7222 = vld [vmem:[#allocation9 + $0x330] sm:$0xff]
    %v7223 = vld [vmem:[#allocation9 + $0x338] sm:$0xff]
    %v7224 = vld [vmem:[#allocation9 + $0x340] sm:$0xff]
    %v7225 = vld [vmem:[#allocation9 + $0x348] sm:$0xff]
    %v7226 = vld [vmem:[#allocation9 + $0x350] sm:$0xff]
    %v7227 = vld [vmem:[#allocation9 + $0x358] sm:$0xff]
    %v7228 = vld [vmem:[#allocation9 + $0x360] sm:$0xff]
    %v7229 = vld [vmem:[#allocation9 + $0x368] sm:$0xff]
    %v7230 = vld [vmem:[#allocation9 + $0x370] sm:$0xff]
    %v7231 = vld [vmem:[#allocation9 + $0x378] sm:$0xff]
    %v7232 = vld [vmem:[#allocation9 + $0x380] sm:$0xff]
    %v7233 = vld [vmem:[#allocation9 + $0x388] sm:$0xff]
    %v7234 = vld [vmem:[#allocation9 + $0x390] sm:$0xff]
    %v7235 = vld [vmem:[#allocation9 + $0x398] sm:$0xff]
    %v7236 = vld [vmem:[#allocation9 + $0x3a0] sm:$0xff]
    %v7237 = vld [vmem:[#allocation9 + $0x3a8] sm:$0xff]
    %v7238 = vld [vmem:[#allocation9 + $0x3b0] sm:$0xff]
    %v7239 = vld [vmem:[#allocation9 + $0x3b8] sm:$0xff]
    %v7240 = vld [vmem:[#allocation9 + $0x3c0] sm:$0xff]
    %v7241 = vld [vmem:[#allocation9 + $0x3c8] sm:$0xff]
    %v7242 = vld [vmem:[#allocation9 + $0x3d0] sm:$0xff]
    %v7243 = vld [vmem:[#allocation9 + $0x3d8] sm:$0xff]
    %v7244 = vld [vmem:[#allocation9 + $0x3e0] sm:$0xff]
    %v7245 = vld [vmem:[#allocation9 + $0x3e8] sm:$0xff]
    %v7246 = vld [vmem:[#allocation9 + $0x3f0] sm:$0xff]
    %v7247 = vld [vmem:[#allocation9 + $0x3f8] sm:$0xff]
    %v7248 = vld [vmem:[#allocation9 + $0x400] sm:$0xff]
    %v7249 = vld [vmem:[#allocation9 + $0x408] sm:$0xff]
    %v7250 = vld [vmem:[#allocation9 + $0x410] sm:$0xff]
    %v7251 = vld [vmem:[#allocation9 + $0x418] sm:$0xff]
    %v7252 = vld [vmem:[#allocation9 + $0x420] sm:$0xff]
    %v7253 = vld [vmem:[#allocation9 + $0x428] sm:$0xff]
    %v7254 = vld [vmem:[#allocation9 + $0x430] sm:$0xff]
    %v7255 = vld [vmem:[#allocation9 + $0x438] sm:$0xff]
    %v7256 = vld [vmem:[#allocation9 + $0x440] sm:$0xff]
    %v7257 = vld [vmem:[#allocation9 + $0x448] sm:$0xff]
    %v7258 = vld [vmem:[#allocation9 + $0x450] sm:$0xff]
    %v7259 = vld [vmem:[#allocation9 + $0x458] sm:$0xff]
    %v7260 = vld [vmem:[#allocation9 + $0x460] sm:$0xff]
    %v7261 = vld [vmem:[#allocation9 + $0x468] sm:$0xff]
    %v7262 = vld [vmem:[#allocation9 + $0x470] sm:$0xff]
    %v7263 = vld [vmem:[#allocation9 + $0x478] sm:$0xff]
    %7264 = vmatprep.subr.mxu0 0.0
    %7265 = vmatpush1.msra.mxu0 %v7135
    %7266 = vmatprep.subr.mxu0 0.0
    %7267 = vmatpush1.msra.mxu0 %v7134
    %7268 = vmatprep.subr.mxu0 0.0
    %7269 = vmatpush1.msra.mxu0 %v7133
    %7270 = vmatprep.subr.mxu0 0.0
    %7271 = vmatpush1.msra.mxu0 %v7132
    %7272 = vmatprep.subr.mxu0 0.0
    %7273 = vmatpush1.msra.mxu0 %v7131
    %7274 = vmatprep.subr.mxu0 0.0
    %7275 = vmatpush1.msra.mxu0 %v7130
    %7276 = vmatprep.subr.mxu0 0.0
    %7277 = vmatpush1.msra.mxu0 %v7129
    %7278 = vmatprep.subr.mxu0 0.0
    %7279 = vmatpush1.msra.mxu0 %v7128
    %7280 = vmatprep.subr.mxu0 0.0
    %7281 = vmatpush1.msra.mxu0 %v7127
    %7282 = vmatprep.subr.mxu0 0.0
    %7283 = vmatpush1.msra.mxu0 %v7126
    %7284 = vmatprep.subr.mxu0 0.0
    %7285 = vmatpush1.msra.mxu0 %v7125
    %7286 = vmatprep.subr.mxu0 0.0
    %7287 = vmatpush1.msra.mxu0 %v7124
    %7288 = vmatprep.subr.mxu0 0.0
    %7289 = vmatpush1.msra.mxu0 %v7123
    %7290 = vmatprep.subr.mxu0 0.0
    %7291 = vmatpush1.msra.mxu0 %v7122
    %7292 = vmatprep.subr.mxu0 0.0
    %7293 = vmatpush1.msra.mxu0 %v7121
    %7294 = vmatprep.subr.mxu0 0.0
    %7295 = vmatpush1.msra.mxu0 %v7120
    %7296 = vmatprep.subr.mxu0 0.0
    %7297 = vmatpush2.msra.mxu0 %v7151
    %7298 = vmatprep.subr.mxu0 0.0
    %7299 = vmatpush2.msra.mxu0 %v7150
    %7300 = vmatprep.subr.mxu0 0.0
    %7301 = vmatpush2.msra.mxu0 %v7149
    %7302 = vmatprep.subr.mxu0 0.0
    %7303 = vmatpush2.msra.mxu0 %v7148
    %7304 = vmatprep.subr.mxu0 0.0
    %7305 = vmatpush2.msra.mxu0 %v7147
    %7306 = vmatprep.subr.mxu0 0.0
    %7307 = vmatpush2.msra.mxu0 %v7146
    %7308 = vmatprep.subr.mxu0 0.0
    %7309 = vmatpush2.msra.mxu0 %v7145
    %7310 = vmatprep.subr.mxu0 0.0
    %7311 = vmatpush2.msra.mxu0 %v7144
    %7312 = vmatprep.subr.mxu0 0.0
    %7313 = vmatpush2.msra.mxu0 %v7143
    %7314 = vmatprep.subr.mxu0 0.0
    %7315 = vmatpush2.msra.mxu0 %v7142
    %7316 = vmatprep.subr.mxu0 0.0
    %7317 = vmatpush2.msra.mxu0 %v7141
    %7318 = vmatprep.subr.mxu0 0.0
    %7319 = vmatpush2.msra.mxu0 %v7140
    %7320 = vmatprep.subr.mxu0 0.0
    %7321 = vmatpush2.msra.mxu0 %v7139
    %7322 = vmatprep.subr.mxu0 0.0
    %7323 = vmatpush2.msra.mxu0 %v7138
    %7324 = vmatprep.subr.mxu0 0.0
    %7325 = vmatpush2.msra.mxu0 %v7137
    %7326 = vmatprep.subr.mxu0 0.0
    %7327 = vmatpush2.msra.mxu0 %v7136
    %7328 = vmatprep.mubr.f32.mxu0 %v6545
    %7329 = vmatmul.mubr.f32.gmra.mxu0 %v6544
    %v7330 = vpop.f32.mrf.mxu0
    %v7331 = vadd.f32 %v732, %v7330
    %v7332 = vpop.f32.mrf.mxu0
    %7333 = vmatprep.mubr.f32.mxu0 %v6554
    %7334 = vmatmul.mubr.f32.gmra.mxu0 %v6553
    %v7335 = vpop.f32.mrf.mxu0
    %v7336 = vadd.f32 %v737, %v7335
    %v7337 = vpop.f32.mrf.mxu0
    %7338 = vmatprep.mubr.f32.mxu0 %v6563
    %7339 = vmatmul.mubr.f32.gmra.mxu0 %v6562
    %v7340 = vpop.f32.mrf.mxu0
    %v7341 = vadd.f32 %v742, %v7340
    %v7342 = vpop.f32.mrf.mxu0
    %7343 = vmatprep.mubr.f32.mxu0 %v6572
    %7344 = vmatmul.mubr.f32.gmra.mxu0 %v6571
    %v7345 = vpop.f32.mrf.mxu0
    %v7346 = vadd.f32 %v747, %v7345
    %v7347 = vpop.f32.mrf.mxu0
    %7348 = vmatprep.mubr.f32.mxu0 %v6581
    %7349 = vmatmul.mubr.f32.gmra.mxu0 %v6580
    %v7350 = vpop.f32.mrf.mxu0
    %v7351 = vadd.f32 %v752, %v7350
    %v7352 = vpop.f32.mrf.mxu0
    %7353 = vmatprep.mubr.f32.mxu0 %v6590
    %7354 = vmatmul.mubr.f32.gmra.mxu0 %v6589
    %v7355 = vpop.f32.mrf.mxu0
    %v7356 = vadd.f32 %v757, %v7355
    %v7357 = vpop.f32.mrf.mxu0
    %7358 = vmatprep.mubr.f32.mxu0 %v6599
    %7359 = vmatmul.mubr.f32.gmra.mxu0 %v6598
    %v7360 = vpop.f32.mrf.mxu0
    %v7361 = vadd.f32 %v762, %v7360
    %v7362 = vpop.f32.mrf.mxu0
    %7363 = vmatprep.mubr.f32.mxu0 %v6608
    %7364 = vmatmul.mubr.f32.gmra.mxu0 %v6607
    %v7365 = vpop.f32.mrf.mxu0
    %v7366 = vadd.f32 %v767, %v7365
    %v7367 = vpop.f32.mrf.mxu0
    %7368 = vmatprep.mubr.f32.mxu0 %v6617
    %7369 = vmatmul.mubr.f32.gmra.mxu0 %v6616
    %v7370 = vpop.f32.mrf.mxu0
    %v7371 = vadd.f32 %v772, %v7370
    %v7372 = vpop.f32.mrf.mxu0
    %7373 = vmatprep.mubr.f32.mxu0 %v6626
    %7374 = vmatmul.mubr.f32.gmra.mxu0 %v6625
    %v7375 = vpop.f32.mrf.mxu0
    %v7376 = vadd.f32 %v777, %v7375
    %v7377 = vpop.f32.mrf.mxu0
    %7378 = vmatprep.mubr.f32.mxu0 %v6635
    %7379 = vmatmul.mubr.f32.gmra.mxu0 %v6634
    %v7380 = vpop.f32.mrf.mxu0
    %v7381 = vadd.f32 %v782, %v7380
    %v7382 = vpop.f32.mrf.mxu0
    %7383 = vmatprep.mubr.f32.mxu0 %v6644
    %7384 = vmatmul.mubr.f32.gmra.mxu0 %v6643
    %v7385 = vpop.f32.mrf.mxu0
    %v7386 = vadd.f32 %v787, %v7385
    %v7387 = vpop.f32.mrf.mxu0
    %7388 = vmatprep.mubr.f32.mxu0 %v6653
    %7389 = vmatmul.mubr.f32.gmra.mxu0 %v6652
    %v7390 = vpop.f32.mrf.mxu0
    %v7391 = vadd.f32 %v792, %v7390
    %v7392 = vpop.f32.mrf.mxu0
    %7393 = vmatprep.mubr.f32.mxu0 %v6662
    %7394 = vmatmul.mubr.f32.gmra.mxu0 %v6661
    %v7395 = vpop.f32.mrf.mxu0
    %v7396 = vadd.f32 %v797, %v7395
    %v7397 = vpop.f32.mrf.mxu0
    %7398 = vmatprep.mubr.f32.mxu0 %v6671
    %7399 = vmatmul.mubr.f32.gmra.mxu0 %v6670
    %v7400 = vpop.f32.mrf.mxu0
    %v7401 = vadd.f32 %v802, %v7400
    %v7402 = vpop.f32.mrf.mxu0
    %7403 = vmatprep.mubr.f32.mxu0 %v6680
    %7404 = vmatmul.mubr.f32.gmra.mxu0 %v6679
    %v7405 = vpop.f32.mrf.mxu0
    %v7406 = vadd.f32 %v807, %v7405
    %v7407 = vpop.f32.mrf.mxu0
    %7408 = vmatprep.mubr.f32.mxu0 %v6689
    %7409 = vmatmul.mubr.f32.gmra.mxu0 %v6688
    %v7410 = vpop.f32.mrf.mxu0
    %v7411 = vadd.f32 %v812, %v7410
    %v7412 = vpop.f32.mrf.mxu0
    %7413 = vmatprep.mubr.f32.mxu0 %v6698
    %7414 = vmatmul.mubr.f32.gmra.mxu0 %v6697
    %v7415 = vpop.f32.mrf.mxu0
    %v7416 = vadd.f32 %v817, %v7415
    %v7417 = vpop.f32.mrf.mxu0
    %7418 = vmatprep.mubr.f32.mxu0 %v6707
    %7419 = vmatmul.mubr.f32.gmra.mxu0 %v6706
    %v7420 = vpop.f32.mrf.mxu0
    %v7421 = vadd.f32 %v822, %v7420
    %v7422 = vpop.f32.mrf.mxu0
    %7423 = vmatprep.mubr.f32.mxu0 %v6716
    %7424 = vmatmul.mubr.f32.gmra.mxu0 %v6715
    %v7425 = vpop.f32.mrf.mxu0
    %v7426 = vadd.f32 %v827, %v7425
    %v7427 = vpop.f32.mrf.mxu0
    %7428 = vmatprep.mubr.f32.mxu0 %v6725
    %7429 = vmatmul.mubr.f32.gmra.mxu0 %v6724
    %v7430 = vpop.f32.mrf.mxu0
    %v7431 = vadd.f32 %v832, %v7430
    %v7432 = vpop.f32.mrf.mxu0
    %7433 = vmatprep.mubr.f32.mxu0 %v6734
    %7434 = vmatmul.mubr.f32.gmra.mxu0 %v6733
    %v7435 = vpop.f32.mrf.mxu0
    %v7436 = vadd.f32 %v837, %v7435
    %v7437 = vpop.f32.mrf.mxu0
    %7438 = vmatprep.mubr.f32.mxu0 %v6743
    %7439 = vmatmul.mubr.f32.gmra.mxu0 %v6742
    %v7440 = vpop.f32.mrf.mxu0
    %v7441 = vadd.f32 %v842, %v7440
    %v7442 = vpop.f32.mrf.mxu0
    %7443 = vmatprep.mubr.f32.mxu0 %v6752
    %7444 = vmatmul.mubr.f32.gmra.mxu0 %v6751
    %v7445 = vpop.f32.mrf.mxu0
    %v7446 = vadd.f32 %v847, %v7445
    %v7447 = vpop.f32.mrf.mxu0
    %7448 = vmatprep.mubr.f32.mxu0 %v6761
    %7449 = vmatmul.mubr.f32.gmra.mxu0 %v6760
    %v7450 = vpop.f32.mrf.mxu0
    %v7451 = vadd.f32 %v852, %v7450
    %v7452 = vpop.f32.mrf.mxu0
    %7453 = vmatprep.mubr.f32.mxu0 %v6770
    %7454 = vmatmul.mubr.f32.gmra.mxu0 %v6769
    %v7455 = vpop.f32.mrf.mxu0
    %v7456 = vadd.f32 %v857, %v7455
    %v7457 = vpop.f32.mrf.mxu0
    %7458 = vmatprep.mubr.f32.mxu0 %v6779
    %7459 = vmatmul.mubr.f32.gmra.mxu0 %v6778
    %v7460 = vpop.f32.mrf.mxu0
    %v7461 = vadd.f32 %v862, %v7460
    %v7462 = vpop.f32.mrf.mxu0
    %7463 = vmatprep.mubr.f32.mxu0 %v6788
    %7464 = vmatmul.mubr.f32.gmra.mxu0 %v6787
    %v7465 = vpop.f32.mrf.mxu0
    %v7466 = vadd.f32 %v867, %v7465
    %v7467 = vpop.f32.mrf.mxu0
    %7468 = vmatprep.mubr.f32.mxu0 %v6797
    %7469 = vmatmul.mubr.f32.gmra.mxu0 %v6796
    %v7470 = vpop.f32.mrf.mxu0
    %v7471 = vadd.f32 %v872, %v7470
    %v7472 = vpop.f32.mrf.mxu0
    %7473 = vmatprep.mubr.f32.mxu0 %v6806
    %7474 = vmatmul.mubr.f32.gmra.mxu0 %v6805
    %v7475 = vpop.f32.mrf.mxu0
    %v7476 = vadd.f32 %v877, %v7475
    %v7477 = vpop.f32.mrf.mxu0
    %7478 = vmatprep.mubr.f32.mxu0 %v6815
    %7479 = vmatmul.mubr.f32.gmra.mxu0 %v6814
    %v7480 = vpop.f32.mrf.mxu0
    %v7481 = vadd.f32 %v882, %v7480
    %v7482 = vpop.f32.mrf.mxu0
    %7483 = vmatprep.mubr.f32.mxu0 %v6824
    %7484 = vmatmul.mubr.f32.gmra.mxu0 %v6823
    %v7485 = vpop.f32.mrf.mxu0
    %v7486 = vadd.f32 %v887, %v7485
    %v7487 = vpop.f32.mrf.mxu0
    %7488 = vmatprep.mubr.f32.mxu0 %v6833
    %7489 = vmatmul.mubr.f32.gmra.mxu0 %v6832
    %v7490 = vpop.f32.mrf.mxu0
    %v7491 = vadd.f32 %v892, %v7490
    %v7492 = vpop.f32.mrf.mxu0
    %7493 = vmatprep.mubr.f32.mxu0 %v6842
    %7494 = vmatmul.mubr.f32.gmra.mxu0 %v6841
    %v7495 = vpop.f32.mrf.mxu0
    %v7496 = vadd.f32 %v897, %v7495
    %v7497 = vpop.f32.mrf.mxu0
    %7498 = vmatprep.mubr.f32.mxu0 %v6851
    %7499 = vmatmul.mubr.f32.gmra.mxu0 %v6850
    %v7500 = vpop.f32.mrf.mxu0
    %v7501 = vadd.f32 %v902, %v7500
    %v7502 = vpop.f32.mrf.mxu0
    %7503 = vmatprep.mubr.f32.mxu0 %v6860
    %7504 = vmatmul.mubr.f32.gmra.mxu0 %v6859
    %v7505 = vpop.f32.mrf.mxu0
    %v7506 = vadd.f32 %v907, %v7505
    %v7507 = vpop.f32.mrf.mxu0
    %7508 = vmatprep.mubr.f32.mxu0 %v6869
    %7509 = vmatmul.mubr.f32.gmra.mxu0 %v6868
    %v7510 = vpop.f32.mrf.mxu0
    %v7511 = vadd.f32 %v912, %v7510
    %v7512 = vpop.f32.mrf.mxu0
    %7513 = vmatprep.mubr.f32.mxu0 %v6878
    %7514 = vmatmul.mubr.f32.gmra.mxu0 %v6877
    %v7515 = vpop.f32.mrf.mxu0
    %v7516 = vadd.f32 %v917, %v7515
    %v7517 = vpop.f32.mrf.mxu0
    %7518 = vmatprep.mubr.f32.mxu0 %v6887
    %7519 = vmatmul.mubr.f32.gmra.mxu0 %v6886
    %v7520 = vpop.f32.mrf.mxu0
    %v7521 = vadd.f32 %v922, %v7520
    %v7522 = vpop.f32.mrf.mxu0
    %7523 = vmatprep.mubr.f32.mxu0 %v6896
    %7524 = vmatmul.mubr.f32.gmra.mxu0 %v6895
    %v7525 = vpop.f32.mrf.mxu0
    %v7526 = vadd.f32 %v927, %v7525
    %v7527 = vpop.f32.mrf.mxu0
    %7528 = vmatprep.mubr.f32.mxu0 %v6905
    %7529 = vmatmul.mubr.f32.gmra.mxu0 %v6904
    %v7530 = vpop.f32.mrf.mxu0
    %v7531 = vadd.f32 %v932, %v7530
    %v7532 = vpop.f32.mrf.mxu0
    %7533 = vmatprep.mubr.f32.mxu0 %v6914
    %7534 = vmatmul.mubr.f32.gmra.mxu0 %v6913
    %v7535 = vpop.f32.mrf.mxu0
    %v7536 = vadd.f32 %v937, %v7535
    %v7537 = vpop.f32.mrf.mxu0
    %7538 = vmatprep.mubr.f32.mxu0 %v6923
    %7539 = vmatmul.mubr.f32.gmra.mxu0 %v6922
    %v7540 = vpop.f32.mrf.mxu0
    %v7541 = vadd.f32 %v942, %v7540
    %v7542 = vpop.f32.mrf.mxu0
    %7543 = vmatprep.mubr.f32.mxu0 %v6932
    %7544 = vmatmul.mubr.f32.gmra.mxu0 %v6931
    %v7545 = vpop.f32.mrf.mxu0
    %v7546 = vadd.f32 %v947, %v7545
    %v7547 = vpop.f32.mrf.mxu0
    %7548 = vmatprep.mubr.f32.mxu0 %v6941
    %7549 = vmatmul.mubr.f32.gmra.mxu0 %v6940
    %v7550 = vpop.f32.mrf.mxu0
    %v7551 = vadd.f32 %v952, %v7550
    %v7552 = vpop.f32.mrf.mxu0
    %7553 = vmatprep.mubr.f32.mxu0 %v6950
    %7554 = vmatmul.mubr.f32.gmra.mxu0 %v6949
    %v7555 = vpop.f32.mrf.mxu0
    %v7556 = vadd.f32 %v957, %v7555
    %v7557 = vpop.f32.mrf.mxu0
    %7558 = vmatprep.mubr.f32.mxu0 %v6959
    %7559 = vmatmul.mubr.f32.gmra.mxu0 %v6958
    %v7560 = vpop.f32.mrf.mxu0
    %v7561 = vadd.f32 %v962, %v7560
    %v7562 = vpop.f32.mrf.mxu0
    %7563 = vmatprep.mubr.f32.mxu0 %v6968
    %7564 = vmatmul.mubr.f32.gmra.mxu0 %v6967
    %v7565 = vpop.f32.mrf.mxu0
    %v7566 = vadd.f32 %v967, %v7565
    %v7567 = vpop.f32.mrf.mxu0
    %7568 = vmatprep.mubr.f32.mxu0 %v6977
    %7569 = vmatmul.mubr.f32.gmra.mxu0 %v6976
    %v7570 = vpop.f32.mrf.mxu0
    %v7571 = vadd.f32 %v972, %v7570
    %v7572 = vpop.f32.mrf.mxu0
    %7573 = vmatprep.mubr.f32.mxu0 %v6986
    %7574 = vmatmul.mubr.f32.gmra.mxu0 %v6985
    %v7575 = vpop.f32.mrf.mxu0
    %v7576 = vadd.f32 %v977, %v7575
    %v7577 = vpop.f32.mrf.mxu0
    %7578 = vmatprep.mubr.f32.mxu0 %v6995
    %7579 = vmatmul.mubr.f32.gmra.mxu0 %v6994
    %v7580 = vpop.f32.mrf.mxu0
    %v7581 = vadd.f32 %v982, %v7580
    %v7582 = vpop.f32.mrf.mxu0
    %7583 = vmatprep.mubr.f32.mxu0 %v7004
    %7584 = vmatmul.mubr.f32.gmra.mxu0 %v7003
    %v7585 = vpop.f32.mrf.mxu0
    %v7586 = vadd.f32 %v987, %v7585
    %v7587 = vpop.f32.mrf.mxu0
    %7588 = vmatprep.mubr.f32.mxu0 %v7013
    %7589 = vmatmul.mubr.f32.gmra.mxu0 %v7012
    %v7590 = vpop.f32.mrf.mxu0
    %v7591 = vadd.f32 %v992, %v7590
    %v7592 = vpop.f32.mrf.mxu0
    %7593 = vmatprep.mubr.f32.mxu0 %v7022
    %7594 = vmatmul.mubr.f32.gmra.mxu0 %v7021
    %v7595 = vpop.f32.mrf.mxu0
    %v7596 = vadd.f32 %v997, %v7595
    %v7597 = vpop.f32.mrf.mxu0
    %7598 = vmatprep.mubr.f32.mxu0 %v7031
    %7599 = vmatmul.mubr.f32.gmra.mxu0 %v7030
    %v7600 = vpop.f32.mrf.mxu0
    %v7601 = vadd.f32 %v1002, %v7600
    %v7602 = vpop.f32.mrf.mxu0
    %7603 = vmatprep.mubr.f32.mxu0 %v7040
    %7604 = vmatmul.mubr.f32.gmra.mxu0 %v7039
    %v7605 = vpop.f32.mrf.mxu0
    %v7606 = vadd.f32 %v1007, %v7605
    %v7607 = vpop.f32.mrf.mxu0
    %7608 = vmatprep.mubr.f32.mxu0 %v7049
    %7609 = vmatmul.mubr.f32.gmra.mxu0 %v7048
    %v7610 = vpop.f32.mrf.mxu0
    %v7611 = vadd.f32 %v1012, %v7610
    %v7612 = vpop.f32.mrf.mxu0
    %7613 = vmatprep.mubr.f32.mxu0 %v7058
    %7614 = vmatmul.mubr.f32.gmra.mxu0 %v7057
    %v7615 = vpop.f32.mrf.mxu0
    %v7616 = vadd.f32 %v1017, %v7615
    %v7617 = vpop.f32.mrf.mxu0
    %7618 = vmatprep.mubr.f32.mxu0 %v7067
    %7619 = vmatmul.mubr.f32.gmra.mxu0 %v7066
    %v7620 = vpop.f32.mrf.mxu0
    %v7621 = vadd.f32 %v1022, %v7620
    %v7622 = vpop.f32.mrf.mxu0
    %7623 = vmatprep.mubr.f32.mxu0 %v7076
    %7624 = vmatmul.mubr.f32.gmra.mxu0 %v7075
    %v7625 = vpop.f32.mrf.mxu0
    %v7626 = vadd.f32 %v1027, %v7625
    %v7627 = vpop.f32.mrf.mxu0
    %7628 = vmatprep.mubr.f32.mxu0 %v7085
    %7629 = vmatmul.mubr.f32.gmra.mxu0 %v7084
    %v7630 = vpop.f32.mrf.mxu0
    %v7631 = vadd.f32 %v1032, %v7630
    %v7632 = vpop.f32.mrf.mxu0
    %7633 = vmatprep.mubr.f32.mxu0 %v7094
    %7634 = vmatmul.mubr.f32.gmra.mxu0 %v7093
    %v7635 = vpop.f32.mrf.mxu0
    %v7636 = vadd.f32 %v1037, %v7635
    %v7637 = vpop.f32.mrf.mxu0
    %7638 = vmatprep.mubr.f32.mxu0 %v7103
    %7639 = vmatmul.mubr.f32.gmra.mxu0 %v7102
    %v7640 = vpop.f32.mrf.mxu0
    %v7641 = vadd.f32 %v1042, %v7640
    %v7642 = vpop.f32.mrf.mxu0
    %7643 = vmatprep.mubr.f32.mxu0 %v7112
    %7644 = vmatmul.mubr.f32.gmra.mxu0 %v7111
    %v7645 = vpop.f32.mrf.mxu0
    %v7646 = vadd.f32 %v1047, %v7645
    %v7647 = vpop.f32.mrf.mxu0
    %7648 = vdwg.mxu0
    %7649 = vmatprep.subr.mxu0 0.0
    %7650 = vmatpush1.msra.mxu0 %v7167
    %7651 = vmatprep.subr.mxu0 0.0
    %7652 = vmatpush1.msra.mxu0 %v7166
    %7653 = vmatprep.subr.mxu0 0.0
    %7654 = vmatpush1.msra.mxu0 %v7165
    %7655 = vmatprep.subr.mxu0 0.0
    %7656 = vmatpush1.msra.mxu0 %v7164
    %7657 = vmatprep.subr.mxu0 0.0
    %7658 = vmatpush1.msra.mxu0 %v7163
    %7659 = vmatprep.subr.mxu0 0.0
    %7660 = vmatpush1.msra.mxu0 %v7162
    %7661 = vmatprep.subr.mxu0 0.0
    %7662 = vmatpush1.msra.mxu0 %v7161
    %7663 = vmatprep.subr.mxu0 0.0
    %7664 = vmatpush1.msra.mxu0 %v7160
    %7665 = vmatprep.subr.mxu0 0.0
    %7666 = vmatpush1.msra.mxu0 %v7159
    %7667 = vmatprep.subr.mxu0 0.0
    %7668 = vmatpush1.msra.mxu0 %v7158
    %7669 = vmatprep.subr.mxu0 0.0
    %7670 = vmatpush1.msra.mxu0 %v7157
    %7671 = vmatprep.subr.mxu0 0.0
    %7672 = vmatpush1.msra.mxu0 %v7156
    %7673 = vmatprep.subr.mxu0 0.0
    %7674 = vmatpush1.msra.mxu0 %v7155
    %7675 = vmatprep.subr.mxu0 0.0
    %7676 = vmatpush1.msra.mxu0 %v7154
    %7677 = vmatprep.subr.mxu0 0.0
    %7678 = vmatpush1.msra.mxu0 %v7153
    %7679 = vmatprep.subr.mxu0 0.0
    %7680 = vmatpush1.msra.mxu0 %v7152
    %7681 = vmatprep.subr.mxu0 0.0
    %7682 = vmatpush2.msra.mxu0 %v7183
    %7683 = vmatprep.subr.mxu0 0.0
    %7684 = vmatpush2.msra.mxu0 %v7182
    %7685 = vmatprep.subr.mxu0 0.0
    %7686 = vmatpush2.msra.mxu0 %v7181
    %7687 = vmatprep.subr.mxu0 0.0
    %7688 = vmatpush2.msra.mxu0 %v7180
    %7689 = vmatprep.subr.mxu0 0.0
    %7690 = vmatpush2.msra.mxu0 %v7179
    %7691 = vmatprep.subr.mxu0 0.0
    %7692 = vmatpush2.msra.mxu0 %v7178
    %7693 = vmatprep.subr.mxu0 0.0
    %7694 = vmatpush2.msra.mxu0 %v7177
    %7695 = vmatprep.subr.mxu0 0.0
    %7696 = vmatpush2.msra.mxu0 %v7176
    %7697 = vmatprep.subr.mxu0 0.0
    %7698 = vmatpush2.msra.mxu0 %v7175
    %7699 = vmatprep.subr.mxu0 0.0
    %7700 = vmatpush2.msra.mxu0 %v7174
    %7701 = vmatprep.subr.mxu0 0.0
    %7702 = vmatpush2.msra.mxu0 %v7173
    %7703 = vmatprep.subr.mxu0 0.0
    %7704 = vmatpush2.msra.mxu0 %v7172
    %7705 = vmatprep.subr.mxu0 0.0
    %7706 = vmatpush2.msra.mxu0 %v7171
    %7707 = vmatprep.subr.mxu0 0.0
    %7708 = vmatpush2.msra.mxu0 %v7170
    %7709 = vmatprep.subr.mxu0 0.0
    %7710 = vmatpush2.msra.mxu0 %v7169
    %7711 = vmatprep.subr.mxu0 0.0
    %7712 = vmatpush2.msra.mxu0 %v7168
    %7713 = vmatprep.mubr.f32.mxu0 %v6547
    %7714 = vmatmul.mubr.f32.gmra.mxu0 %v6546
    %v7715 = vpop.f32.mrf.mxu0
    %v7716 = vadd.f32 %v7331, %v7715
    %v7717 = vpop.f32.mrf.mxu0
    %7718 = vmatprep.mubr.f32.mxu0 %v6556
    %7719 = vmatmul.mubr.f32.gmra.mxu0 %v6555
    %v7720 = vpop.f32.mrf.mxu0
    %v7721 = vadd.f32 %v7336, %v7720
    %v7722 = vpop.f32.mrf.mxu0
    %7723 = vmatprep.mubr.f32.mxu0 %v6565
    %7724 = vmatmul.mubr.f32.gmra.mxu0 %v6564
    %v7725 = vpop.f32.mrf.mxu0
    %v7726 = vadd.f32 %v7341, %v7725
    %v7727 = vpop.f32.mrf.mxu0
    %7728 = vmatprep.mubr.f32.mxu0 %v6574
    %7729 = vmatmul.mubr.f32.gmra.mxu0 %v6573
    %v7730 = vpop.f32.mrf.mxu0
    %v7731 = vadd.f32 %v7346, %v7730
    %v7732 = vpop.f32.mrf.mxu0
    %7733 = vmatprep.mubr.f32.mxu0 %v6583
    %7734 = vmatmul.mubr.f32.gmra.mxu0 %v6582
    %v7735 = vpop.f32.mrf.mxu0
    %v7736 = vadd.f32 %v7351, %v7735
    %v7737 = vpop.f32.mrf.mxu0
    %7738 = vmatprep.mubr.f32.mxu0 %v6592
    %7739 = vmatmul.mubr.f32.gmra.mxu0 %v6591
    %v7740 = vpop.f32.mrf.mxu0
    %v7741 = vadd.f32 %v7356, %v7740
    %v7742 = vpop.f32.mrf.mxu0
    %7743 = vmatprep.mubr.f32.mxu0 %v6601
    %7744 = vmatmul.mubr.f32.gmra.mxu0 %v6600
    %v7745 = vpop.f32.mrf.mxu0
    %v7746 = vadd.f32 %v7361, %v7745
    %v7747 = vpop.f32.mrf.mxu0
    %7748 = vmatprep.mubr.f32.mxu0 %v6610
    %7749 = vmatmul.mubr.f32.gmra.mxu0 %v6609
    %v7750 = vpop.f32.mrf.mxu0
    %v7751 = vadd.f32 %v7366, %v7750
    %v7752 = vpop.f32.mrf.mxu0
    %7753 = vmatprep.mubr.f32.mxu0 %v6619
    %7754 = vmatmul.mubr.f32.gmra.mxu0 %v6618
    %v7755 = vpop.f32.mrf.mxu0
    %v7756 = vadd.f32 %v7371, %v7755
    %v7757 = vpop.f32.mrf.mxu0
    %7758 = vmatprep.mubr.f32.mxu0 %v6628
    %7759 = vmatmul.mubr.f32.gmra.mxu0 %v6627
    %v7760 = vpop.f32.mrf.mxu0
    %v7761 = vadd.f32 %v7376, %v7760
    %v7762 = vpop.f32.mrf.mxu0
    %7763 = vmatprep.mubr.f32.mxu0 %v6637
    %7764 = vmatmul.mubr.f32.gmra.mxu0 %v6636
    %v7765 = vpop.f32.mrf.mxu0
    %v7766 = vadd.f32 %v7381, %v7765
    %v7767 = vpop.f32.mrf.mxu0
    %7768 = vmatprep.mubr.f32.mxu0 %v6646
    %7769 = vmatmul.mubr.f32.gmra.mxu0 %v6645
    %v7770 = vpop.f32.mrf.mxu0
    %v7771 = vadd.f32 %v7386, %v7770
    %v7772 = vpop.f32.mrf.mxu0
    %7773 = vmatprep.mubr.f32.mxu0 %v6655
    %7774 = vmatmul.mubr.f32.gmra.mxu0 %v6654
    %v7775 = vpop.f32.mrf.mxu0
    %v7776 = vadd.f32 %v7391, %v7775
    %v7777 = vpop.f32.mrf.mxu0
    %7778 = vmatprep.mubr.f32.mxu0 %v6664
    %7779 = vmatmul.mubr.f32.gmra.mxu0 %v6663
    %v7780 = vpop.f32.mrf.mxu0
    %v7781 = vadd.f32 %v7396, %v7780
    %v7782 = vpop.f32.mrf.mxu0
    %7783 = vmatprep.mubr.f32.mxu0 %v6673
    %7784 = vmatmul.mubr.f32.gmra.mxu0 %v6672
    %v7785 = vpop.f32.mrf.mxu0
    %v7786 = vadd.f32 %v7401, %v7785
    %v7787 = vpop.f32.mrf.mxu0
    %7788 = vmatprep.mubr.f32.mxu0 %v6682
    %7789 = vmatmul.mubr.f32.gmra.mxu0 %v6681
    %v7790 = vpop.f32.mrf.mxu0
    %v7791 = vadd.f32 %v7406, %v7790
    %v7792 = vpop.f32.mrf.mxu0
    %7793 = vmatprep.mubr.f32.mxu0 %v6691
    %7794 = vmatmul.mubr.f32.gmra.mxu0 %v6690
    %v7795 = vpop.f32.mrf.mxu0
    %v7796 = vadd.f32 %v7411, %v7795
    %v7797 = vpop.f32.mrf.mxu0
    %7798 = vmatprep.mubr.f32.mxu0 %v6700
    %7799 = vmatmul.mubr.f32.gmra.mxu0 %v6699
    %v7800 = vpop.f32.mrf.mxu0
    %v7801 = vadd.f32 %v7416, %v7800
    %v7802 = vpop.f32.mrf.mxu0
    %7803 = vmatprep.mubr.f32.mxu0 %v6709
    %7804 = vmatmul.mubr.f32.gmra.mxu0 %v6708
    %v7805 = vpop.f32.mrf.mxu0
    %v7806 = vadd.f32 %v7421, %v7805
    %v7807 = vpop.f32.mrf.mxu0
    %7808 = vmatprep.mubr.f32.mxu0 %v6718
    %7809 = vmatmul.mubr.f32.gmra.mxu0 %v6717
    %v7810 = vpop.f32.mrf.mxu0
    %v7811 = vadd.f32 %v7426, %v7810
    %v7812 = vpop.f32.mrf.mxu0
    %7813 = vmatprep.mubr.f32.mxu0 %v6727
    %7814 = vmatmul.mubr.f32.gmra.mxu0 %v6726
    %v7815 = vpop.f32.mrf.mxu0
    %v7816 = vadd.f32 %v7431, %v7815
    %v7817 = vpop.f32.mrf.mxu0
    %7818 = vmatprep.mubr.f32.mxu0 %v6736
    %7819 = vmatmul.mubr.f32.gmra.mxu0 %v6735
    %v7820 = vpop.f32.mrf.mxu0
    %v7821 = vadd.f32 %v7436, %v7820
    %v7822 = vpop.f32.mrf.mxu0
    %7823 = vmatprep.mubr.f32.mxu0 %v6745
    %7824 = vmatmul.mubr.f32.gmra.mxu0 %v6744
    %v7825 = vpop.f32.mrf.mxu0
    %v7826 = vadd.f32 %v7441, %v7825
    %v7827 = vpop.f32.mrf.mxu0
    %7828 = vmatprep.mubr.f32.mxu0 %v6754
    %7829 = vmatmul.mubr.f32.gmra.mxu0 %v6753
    %v7830 = vpop.f32.mrf.mxu0
    %v7831 = vadd.f32 %v7446, %v7830
    %v7832 = vpop.f32.mrf.mxu0
    %7833 = vmatprep.mubr.f32.mxu0 %v6763
    %7834 = vmatmul.mubr.f32.gmra.mxu0 %v6762
    %v7835 = vpop.f32.mrf.mxu0
    %v7836 = vadd.f32 %v7451, %v7835
    %v7837 = vpop.f32.mrf.mxu0
    %7838 = vmatprep.mubr.f32.mxu0 %v6772
    %7839 = vmatmul.mubr.f32.gmra.mxu0 %v6771
    %v7840 = vpop.f32.mrf.mxu0
    %v7841 = vadd.f32 %v7456, %v7840
    %v7842 = vpop.f32.mrf.mxu0
    %7843 = vmatprep.mubr.f32.mxu0 %v6781
    %7844 = vmatmul.mubr.f32.gmra.mxu0 %v6780
    %v7845 = vpop.f32.mrf.mxu0
    %v7846 = vadd.f32 %v7461, %v7845
    %v7847 = vpop.f32.mrf.mxu0
    %7848 = vmatprep.mubr.f32.mxu0 %v6790
    %7849 = vmatmul.mubr.f32.gmra.mxu0 %v6789
    %v7850 = vpop.f32.mrf.mxu0
    %v7851 = vadd.f32 %v7466, %v7850
    %v7852 = vpop.f32.mrf.mxu0
    %7853 = vmatprep.mubr.f32.mxu0 %v6799
    %7854 = vmatmul.mubr.f32.gmra.mxu0 %v6798
    %v7855 = vpop.f32.mrf.mxu0
    %v7856 = vadd.f32 %v7471, %v7855
    %v7857 = vpop.f32.mrf.mxu0
    %7858 = vmatprep.mubr.f32.mxu0 %v6808
    %7859 = vmatmul.mubr.f32.gmra.mxu0 %v6807
    %v7860 = vpop.f32.mrf.mxu0
    %v7861 = vadd.f32 %v7476, %v7860
    %v7862 = vpop.f32.mrf.mxu0
    %7863 = vmatprep.mubr.f32.mxu0 %v6817
    %7864 = vmatmul.mubr.f32.gmra.mxu0 %v6816
    %v7865 = vpop.f32.mrf.mxu0
    %v7866 = vadd.f32 %v7481, %v7865
    %v7867 = vpop.f32.mrf.mxu0
    %7868 = vmatprep.mubr.f32.mxu0 %v6826
    %7869 = vmatmul.mubr.f32.gmra.mxu0 %v6825
    %v7870 = vpop.f32.mrf.mxu0
    %v7871 = vadd.f32 %v7486, %v7870
    %v7872 = vpop.f32.mrf.mxu0
    %7873 = vmatprep.mubr.f32.mxu0 %v6835
    %7874 = vmatmul.mubr.f32.gmra.mxu0 %v6834
    %v7875 = vpop.f32.mrf.mxu0
    %v7876 = vadd.f32 %v7491, %v7875
    %v7877 = vpop.f32.mrf.mxu0
    %7878 = vmatprep.mubr.f32.mxu0 %v6844
    %7879 = vmatmul.mubr.f32.gmra.mxu0 %v6843
    %v7880 = vpop.f32.mrf.mxu0
    %v7881 = vadd.f32 %v7496, %v7880
    %v7882 = vpop.f32.mrf.mxu0
    %7883 = vmatprep.mubr.f32.mxu0 %v6853
    %7884 = vmatmul.mubr.f32.gmra.mxu0 %v6852
    %v7885 = vpop.f32.mrf.mxu0
    %v7886 = vadd.f32 %v7501, %v7885
    %v7887 = vpop.f32.mrf.mxu0
    %7888 = vmatprep.mubr.f32.mxu0 %v6862
    %7889 = vmatmul.mubr.f32.gmra.mxu0 %v6861
    %v7890 = vpop.f32.mrf.mxu0
    %v7891 = vadd.f32 %v7506, %v7890
    %v7892 = vpop.f32.mrf.mxu0
    %7893 = vmatprep.mubr.f32.mxu0 %v6871
    %7894 = vmatmul.mubr.f32.gmra.mxu0 %v6870
    %v7895 = vpop.f32.mrf.mxu0
    %v7896 = vadd.f32 %v7511, %v7895
    %v7897 = vpop.f32.mrf.mxu0
    %7898 = vmatprep.mubr.f32.mxu0 %v6880
    %7899 = vmatmul.mubr.f32.gmra.mxu0 %v6879
    %v7900 = vpop.f32.mrf.mxu0
    %v7901 = vadd.f32 %v7516, %v7900
    %v7902 = vpop.f32.mrf.mxu0
    %7903 = vmatprep.mubr.f32.mxu0 %v6889
    %7904 = vmatmul.mubr.f32.gmra.mxu0 %v6888
    %v7905 = vpop.f32.mrf.mxu0
    %v7906 = vadd.f32 %v7521, %v7905
    %v7907 = vpop.f32.mrf.mxu0
    %7908 = vmatprep.mubr.f32.mxu0 %v6898
    %7909 = vmatmul.mubr.f32.gmra.mxu0 %v6897
    %v7910 = vpop.f32.mrf.mxu0
    %v7911 = vadd.f32 %v7526, %v7910
    %v7912 = vpop.f32.mrf.mxu0
    %7913 = vmatprep.mubr.f32.mxu0 %v6907
    %7914 = vmatmul.mubr.f32.gmra.mxu0 %v6906
    %v7915 = vpop.f32.mrf.mxu0
    %v7916 = vadd.f32 %v7531, %v7915
    %v7917 = vpop.f32.mrf.mxu0
    %7918 = vmatprep.mubr.f32.mxu0 %v6916
    %7919 = vmatmul.mubr.f32.gmra.mxu0 %v6915
    %v7920 = vpop.f32.mrf.mxu0
    %v7921 = vadd.f32 %v7536, %v7920
    %v7922 = vpop.f32.mrf.mxu0
    %7923 = vmatprep.mubr.f32.mxu0 %v6925
    %7924 = vmatmul.mubr.f32.gmra.mxu0 %v6924
    %v7925 = vpop.f32.mrf.mxu0
    %v7926 = vadd.f32 %v7541, %v7925
    %v7927 = vpop.f32.mrf.mxu0
    %7928 = vmatprep.mubr.f32.mxu0 %v6934
    %7929 = vmatmul.mubr.f32.gmra.mxu0 %v6933
    %v7930 = vpop.f32.mrf.mxu0
    %v7931 = vadd.f32 %v7546, %v7930
    %v7932 = vpop.f32.mrf.mxu0
    %7933 = vmatprep.mubr.f32.mxu0 %v6943
    %7934 = vmatmul.mubr.f32.gmra.mxu0 %v6942
    %v7935 = vpop.f32.mrf.mxu0
    %v7936 = vadd.f32 %v7551, %v7935
    %v7937 = vpop.f32.mrf.mxu0
    %7938 = vmatprep.mubr.f32.mxu0 %v6952
    %7939 = vmatmul.mubr.f32.gmra.mxu0 %v6951
    %v7940 = vpop.f32.mrf.mxu0
    %v7941 = vadd.f32 %v7556, %v7940
    %v7942 = vpop.f32.mrf.mxu0
    %7943 = vmatprep.mubr.f32.mxu0 %v6961
    %7944 = vmatmul.mubr.f32.gmra.mxu0 %v6960
    %v7945 = vpop.f32.mrf.mxu0
    %v7946 = vadd.f32 %v7561, %v7945
    %v7947 = vpop.f32.mrf.mxu0
    %7948 = vmatprep.mubr.f32.mxu0 %v6970
    %7949 = vmatmul.mubr.f32.gmra.mxu0 %v6969
    %v7950 = vpop.f32.mrf.mxu0
    %v7951 = vadd.f32 %v7566, %v7950
    %v7952 = vpop.f32.mrf.mxu0
    %7953 = vmatprep.mubr.f32.mxu0 %v6979
    %7954 = vmatmul.mubr.f32.gmra.mxu0 %v6978
    %v7955 = vpop.f32.mrf.mxu0
    %v7956 = vadd.f32 %v7571, %v7955
    %v7957 = vpop.f32.mrf.mxu0
    %7958 = vmatprep.mubr.f32.mxu0 %v6988
    %7959 = vmatmul.mubr.f32.gmra.mxu0 %v6987
    %v7960 = vpop.f32.mrf.mxu0
    %v7961 = vadd.f32 %v7576, %v7960
    %v7962 = vpop.f32.mrf.mxu0
    %7963 = vmatprep.mubr.f32.mxu0 %v6997
    %7964 = vmatmul.mubr.f32.gmra.mxu0 %v6996
    %v7965 = vpop.f32.mrf.mxu0
    %v7966 = vadd.f32 %v7581, %v7965
    %v7967 = vpop.f32.mrf.mxu0
    %7968 = vmatprep.mubr.f32.mxu0 %v7006
    %7969 = vmatmul.mubr.f32.gmra.mxu0 %v7005
    %v7970 = vpop.f32.mrf.mxu0
    %v7971 = vadd.f32 %v7586, %v7970
    %v7972 = vpop.f32.mrf.mxu0
    %7973 = vmatprep.mubr.f32.mxu0 %v7015
    %7974 = vmatmul.mubr.f32.gmra.mxu0 %v7014
    %v7975 = vpop.f32.mrf.mxu0
    %v7976 = vadd.f32 %v7591, %v7975
    %v7977 = vpop.f32.mrf.mxu0
    %7978 = vmatprep.mubr.f32.mxu0 %v7024
    %7979 = vmatmul.mubr.f32.gmra.mxu0 %v7023
    %v7980 = vpop.f32.mrf.mxu0
    %v7981 = vadd.f32 %v7596, %v7980
    %v7982 = vpop.f32.mrf.mxu0
    %7983 = vmatprep.mubr.f32.mxu0 %v7033
    %7984 = vmatmul.mubr.f32.gmra.mxu0 %v7032
    %v7985 = vpop.f32.mrf.mxu0
    %v7986 = vadd.f32 %v7601, %v7985
    %v7987 = vpop.f32.mrf.mxu0
    %7988 = vmatprep.mubr.f32.mxu0 %v7042
    %7989 = vmatmul.mubr.f32.gmra.mxu0 %v7041
    %v7990 = vpop.f32.mrf.mxu0
    %v7991 = vadd.f32 %v7606, %v7990
    %v7992 = vpop.f32.mrf.mxu0
    %7993 = vmatprep.mubr.f32.mxu0 %v7051
    %7994 = vmatmul.mubr.f32.gmra.mxu0 %v7050
    %v7995 = vpop.f32.mrf.mxu0
    %v7996 = vadd.f32 %v7611, %v7995
    %v7997 = vpop.f32.mrf.mxu0
    %7998 = vmatprep.mubr.f32.mxu0 %v7060
    %7999 = vmatmul.mubr.f32.gmra.mxu0 %v7059
    %v8000 = vpop.f32.mrf.mxu0
    %v8001 = vadd.f32 %v7616, %v8000
    %v8002 = vpop.f32.mrf.mxu0
    %8003 = vmatprep.mubr.f32.mxu0 %v7069
    %8004 = vmatmul.mubr.f32.gmra.mxu0 %v7068
    %v8005 = vpop.f32.mrf.mxu0
    %v8006 = vadd.f32 %v7621, %v8005
    %v8007 = vpop.f32.mrf.mxu0
    %8008 = vmatprep.mubr.f32.mxu0 %v7078
    %8009 = vmatmul.mubr.f32.gmra.mxu0 %v7077
    %v8010 = vpop.f32.mrf.mxu0
    %v8011 = vadd.f32 %v7626, %v8010
    %v8012 = vpop.f32.mrf.mxu0
    %8013 = vmatprep.mubr.f32.mxu0 %v7087
    %8014 = vmatmul.mubr.f32.gmra.mxu0 %v7086
    %v8015 = vpop.f32.mrf.mxu0
    %v8016 = vadd.f32 %v7631, %v8015
    %v8017 = vpop.f32.mrf.mxu0
    %8018 = vmatprep.mubr.f32.mxu0 %v7096
    %8019 = vmatmul.mubr.f32.gmra.mxu0 %v7095
    %v8020 = vpop.f32.mrf.mxu0
    %v8021 = vadd.f32 %v7636, %v8020
    %v8022 = vpop.f32.mrf.mxu0
    %8023 = vmatprep.mubr.f32.mxu0 %v7105
    %8024 = vmatmul.mubr.f32.gmra.mxu0 %v7104
    %v8025 = vpop.f32.mrf.mxu0
    %v8026 = vadd.f32 %v7641, %v8025
    %v8027 = vpop.f32.mrf.mxu0
    %8028 = vmatprep.mubr.f32.mxu0 %v7114
    %8029 = vmatmul.mubr.f32.gmra.mxu0 %v7113
    %v8030 = vpop.f32.mrf.mxu0
    %v8031 = vadd.f32 %v7646, %v8030
    %v8032 = vpop.f32.mrf.mxu0
    %8033 = vdwg.mxu0
    %8034 = vmatprep.subr.mxu0 0.0
    %8035 = vmatpush1.msra.mxu0 %v7199
    %8036 = vmatprep.subr.mxu0 0.0
    %8037 = vmatpush1.msra.mxu0 %v7198
    %8038 = vmatprep.subr.mxu0 0.0
    %8039 = vmatpush1.msra.mxu0 %v7197
    %8040 = vmatprep.subr.mxu0 0.0
    %8041 = vmatpush1.msra.mxu0 %v7196
    %8042 = vmatprep.subr.mxu0 0.0
    %8043 = vmatpush1.msra.mxu0 %v7195
    %8044 = vmatprep.subr.mxu0 0.0
    %8045 = vmatpush1.msra.mxu0 %v7194
    %8046 = vmatprep.subr.mxu0 0.0
    %8047 = vmatpush1.msra.mxu0 %v7193
    %8048 = vmatprep.subr.mxu0 0.0
    %8049 = vmatpush1.msra.mxu0 %v7192
    %8050 = vmatprep.subr.mxu0 0.0
    %8051 = vmatpush1.msra.mxu0 %v7191
    %8052 = vmatprep.subr.mxu0 0.0
    %8053 = vmatpush1.msra.mxu0 %v7190
    %8054 = vmatprep.subr.mxu0 0.0
    %8055 = vmatpush1.msra.mxu0 %v7189
    %8056 = vmatprep.subr.mxu0 0.0
    %8057 = vmatpush1.msra.mxu0 %v7188
    %8058 = vmatprep.subr.mxu0 0.0
    %8059 = vmatpush1.msra.mxu0 %v7187
    %8060 = vmatprep.subr.mxu0 0.0
    %8061 = vmatpush1.msra.mxu0 %v7186
    %8062 = vmatprep.subr.mxu0 0.0
    %8063 = vmatpush1.msra.mxu0 %v7185
    %8064 = vmatprep.subr.mxu0 0.0
    %8065 = vmatpush1.msra.mxu0 %v7184
    %8066 = vmatprep.subr.mxu0 0.0
    %8067 = vmatpush2.msra.mxu0 %v7215
    %8068 = vmatprep.subr.mxu0 0.0
    %8069 = vmatpush2.msra.mxu0 %v7214
    %8070 = vmatprep.subr.mxu0 0.0
    %8071 = vmatpush2.msra.mxu0 %v7213
    %8072 = vmatprep.subr.mxu0 0.0
    %8073 = vmatpush2.msra.mxu0 %v7212
    %8074 = vmatprep.subr.mxu0 0.0
    %8075 = vmatpush2.msra.mxu0 %v7211
    %8076 = vmatprep.subr.mxu0 0.0
    %8077 = vmatpush2.msra.mxu0 %v7210
    %8078 = vmatprep.subr.mxu0 0.0
    %8079 = vmatpush2.msra.mxu0 %v7209
    %8080 = vmatprep.subr.mxu0 0.0
    %8081 = vmatpush2.msra.mxu0 %v7208
    %8082 = vmatprep.subr.mxu0 0.0
    %8083 = vmatpush2.msra.mxu0 %v7207
    %8084 = vmatprep.subr.mxu0 0.0
    %8085 = vmatpush2.msra.mxu0 %v7206
    %8086 = vmatprep.subr.mxu0 0.0
    %8087 = vmatpush2.msra.mxu0 %v7205
    %8088 = vmatprep.subr.mxu0 0.0
    %8089 = vmatpush2.msra.mxu0 %v7204
    %8090 = vmatprep.subr.mxu0 0.0
    %8091 = vmatpush2.msra.mxu0 %v7203
    %8092 = vmatprep.subr.mxu0 0.0
    %8093 = vmatpush2.msra.mxu0 %v7202
    %8094 = vmatprep.subr.mxu0 0.0
    %8095 = vmatpush2.msra.mxu0 %v7201
    %8096 = vmatprep.subr.mxu0 0.0
    %8097 = vmatpush2.msra.mxu0 %v7200
    %8098 = vmatprep.mubr.f32.mxu0 %v6549
    %8099 = vmatmul.mubr.f32.gmra.mxu0 %v6548
    %v8100 = vpop.f32.mrf.mxu0
    %v8101 = vadd.f32 %v7716, %v8100
    %v8102 = vpop.f32.mrf.mxu0
    %8103 = vmatprep.mubr.f32.mxu0 %v6558
    %8104 = vmatmul.mubr.f32.gmra.mxu0 %v6557
    %v8105 = vpop.f32.mrf.mxu0
    %v8106 = vadd.f32 %v7721, %v8105
    %v8107 = vpop.f32.mrf.mxu0
    %8108 = vmatprep.mubr.f32.mxu0 %v6567
    %8109 = vmatmul.mubr.f32.gmra.mxu0 %v6566
    %v8110 = vpop.f32.mrf.mxu0
    %v8111 = vadd.f32 %v7726, %v8110
    %v8112 = vpop.f32.mrf.mxu0
    %8113 = vmatprep.mubr.f32.mxu0 %v6576
    %8114 = vmatmul.mubr.f32.gmra.mxu0 %v6575
    %v8115 = vpop.f32.mrf.mxu0
    %v8116 = vadd.f32 %v7731, %v8115
    %v8117 = vpop.f32.mrf.mxu0
    %8118 = vmatprep.mubr.f32.mxu0 %v6585
    %8119 = vmatmul.mubr.f32.gmra.mxu0 %v6584
    %v8120 = vpop.f32.mrf.mxu0
    %v8121 = vadd.f32 %v7736, %v8120
    %v8122 = vpop.f32.mrf.mxu0
    %8123 = vmatprep.mubr.f32.mxu0 %v6594
    %8124 = vmatmul.mubr.f32.gmra.mxu0 %v6593
    %v8125 = vpop.f32.mrf.mxu0
    %v8126 = vadd.f32 %v7741, %v8125
    %v8127 = vpop.f32.mrf.mxu0
    %8128 = vmatprep.mubr.f32.mxu0 %v6603
    %8129 = vmatmul.mubr.f32.gmra.mxu0 %v6602
    %v8130 = vpop.f32.mrf.mxu0
    %v8131 = vadd.f32 %v7746, %v8130
    %v8132 = vpop.f32.mrf.mxu0
    %8133 = vmatprep.mubr.f32.mxu0 %v6612
    %8134 = vmatmul.mubr.f32.gmra.mxu0 %v6611
    %v8135 = vpop.f32.mrf.mxu0
    %v8136 = vadd.f32 %v7751, %v8135
    %v8137 = vpop.f32.mrf.mxu0
    %8138 = vmatprep.mubr.f32.mxu0 %v6621
    %8139 = vmatmul.mubr.f32.gmra.mxu0 %v6620
    %v8140 = vpop.f32.mrf.mxu0
    %v8141 = vadd.f32 %v7756, %v8140
    %v8142 = vpop.f32.mrf.mxu0
    %8143 = vmatprep.mubr.f32.mxu0 %v6630
    %8144 = vmatmul.mubr.f32.gmra.mxu0 %v6629
    %v8145 = vpop.f32.mrf.mxu0
    %v8146 = vadd.f32 %v7761, %v8145
    %v8147 = vpop.f32.mrf.mxu0
    %8148 = vmatprep.mubr.f32.mxu0 %v6639
    %8149 = vmatmul.mubr.f32.gmra.mxu0 %v6638
    %v8150 = vpop.f32.mrf.mxu0
    %v8151 = vadd.f32 %v7766, %v8150
    %v8152 = vpop.f32.mrf.mxu0
    %8153 = vmatprep.mubr.f32.mxu0 %v6648
    %8154 = vmatmul.mubr.f32.gmra.mxu0 %v6647
    %v8155 = vpop.f32.mrf.mxu0
    %v8156 = vadd.f32 %v7771, %v8155
    %v8157 = vpop.f32.mrf.mxu0
    %8158 = vmatprep.mubr.f32.mxu0 %v6657
    %8159 = vmatmul.mubr.f32.gmra.mxu0 %v6656
    %v8160 = vpop.f32.mrf.mxu0
    %v8161 = vadd.f32 %v7776, %v8160
    %v8162 = vpop.f32.mrf.mxu0
    %8163 = vmatprep.mubr.f32.mxu0 %v6666
    %8164 = vmatmul.mubr.f32.gmra.mxu0 %v6665
    %v8165 = vpop.f32.mrf.mxu0
    %v8166 = vadd.f32 %v7781, %v8165
    %v8167 = vpop.f32.mrf.mxu0
    %8168 = vmatprep.mubr.f32.mxu0 %v6675
    %8169 = vmatmul.mubr.f32.gmra.mxu0 %v6674
    %v8170 = vpop.f32.mrf.mxu0
    %v8171 = vadd.f32 %v7786, %v8170
    %v8172 = vpop.f32.mrf.mxu0
    %8173 = vmatprep.mubr.f32.mxu0 %v6684
    %8174 = vmatmul.mubr.f32.gmra.mxu0 %v6683
    %v8175 = vpop.f32.mrf.mxu0
    %v8176 = vadd.f32 %v7791, %v8175
    %v8177 = vpop.f32.mrf.mxu0
    %8178 = vmatprep.mubr.f32.mxu0 %v6693
    %8179 = vmatmul.mubr.f32.gmra.mxu0 %v6692
    %v8180 = vpop.f32.mrf.mxu0
    %v8181 = vadd.f32 %v7796, %v8180
    %v8182 = vpop.f32.mrf.mxu0
    %8183 = vmatprep.mubr.f32.mxu0 %v6702
    %8184 = vmatmul.mubr.f32.gmra.mxu0 %v6701
    %v8185 = vpop.f32.mrf.mxu0
    %v8186 = vadd.f32 %v7801, %v8185
    %v8187 = vpop.f32.mrf.mxu0
    %8188 = vmatprep.mubr.f32.mxu0 %v6711
    %8189 = vmatmul.mubr.f32.gmra.mxu0 %v6710
    %v8190 = vpop.f32.mrf.mxu0
    %v8191 = vadd.f32 %v7806, %v8190
    %v8192 = vpop.f32.mrf.mxu0
    %8193 = vmatprep.mubr.f32.mxu0 %v6720
    %8194 = vmatmul.mubr.f32.gmra.mxu0 %v6719
    %v8195 = vpop.f32.mrf.mxu0
    %v8196 = vadd.f32 %v7811, %v8195
    %v8197 = vpop.f32.mrf.mxu0
    %8198 = vmatprep.mubr.f32.mxu0 %v6729
    %8199 = vmatmul.mubr.f32.gmra.mxu0 %v6728
    %v8200 = vpop.f32.mrf.mxu0
    %v8201 = vadd.f32 %v7816, %v8200
    %v8202 = vpop.f32.mrf.mxu0
    %8203 = vmatprep.mubr.f32.mxu0 %v6738
    %8204 = vmatmul.mubr.f32.gmra.mxu0 %v6737
    %v8205 = vpop.f32.mrf.mxu0
    %v8206 = vadd.f32 %v7821, %v8205
    %v8207 = vpop.f32.mrf.mxu0
    %8208 = vmatprep.mubr.f32.mxu0 %v6747
    %8209 = vmatmul.mubr.f32.gmra.mxu0 %v6746
    %v8210 = vpop.f32.mrf.mxu0
    %v8211 = vadd.f32 %v7826, %v8210
    %v8212 = vpop.f32.mrf.mxu0
    %8213 = vmatprep.mubr.f32.mxu0 %v6756
    %8214 = vmatmul.mubr.f32.gmra.mxu0 %v6755
    %v8215 = vpop.f32.mrf.mxu0
    %v8216 = vadd.f32 %v7831, %v8215
    %v8217 = vpop.f32.mrf.mxu0
    %8218 = vmatprep.mubr.f32.mxu0 %v6765
    %8219 = vmatmul.mubr.f32.gmra.mxu0 %v6764
    %v8220 = vpop.f32.mrf.mxu0
    %v8221 = vadd.f32 %v7836, %v8220
    %v8222 = vpop.f32.mrf.mxu0
    %8223 = vmatprep.mubr.f32.mxu0 %v6774
    %8224 = vmatmul.mubr.f32.gmra.mxu0 %v6773
    %v8225 = vpop.f32.mrf.mxu0
    %v8226 = vadd.f32 %v7841, %v8225
    %v8227 = vpop.f32.mrf.mxu0
    %8228 = vmatprep.mubr.f32.mxu0 %v6783
    %8229 = vmatmul.mubr.f32.gmra.mxu0 %v6782
    %v8230 = vpop.f32.mrf.mxu0
    %v8231 = vadd.f32 %v7846, %v8230
    %v8232 = vpop.f32.mrf.mxu0
    %8233 = vmatprep.mubr.f32.mxu0 %v6792
    %8234 = vmatmul.mubr.f32.gmra.mxu0 %v6791
    %v8235 = vpop.f32.mrf.mxu0
    %v8236 = vadd.f32 %v7851, %v8235
    %v8237 = vpop.f32.mrf.mxu0
    %8238 = vmatprep.mubr.f32.mxu0 %v6801
    %8239 = vmatmul.mubr.f32.gmra.mxu0 %v6800
    %v8240 = vpop.f32.mrf.mxu0
    %v8241 = vadd.f32 %v7856, %v8240
    %v8242 = vpop.f32.mrf.mxu0
    %8243 = vmatprep.mubr.f32.mxu0 %v6810
    %8244 = vmatmul.mubr.f32.gmra.mxu0 %v6809
    %v8245 = vpop.f32.mrf.mxu0
    %v8246 = vadd.f32 %v7861, %v8245
    %v8247 = vpop.f32.mrf.mxu0
    %8248 = vmatprep.mubr.f32.mxu0 %v6819
    %8249 = vmatmul.mubr.f32.gmra.mxu0 %v6818
    %v8250 = vpop.f32.mrf.mxu0
    %v8251 = vadd.f32 %v7866, %v8250
    %v8252 = vpop.f32.mrf.mxu0
    %8253 = vmatprep.mubr.f32.mxu0 %v6828
    %8254 = vmatmul.mubr.f32.gmra.mxu0 %v6827
    %v8255 = vpop.f32.mrf.mxu0
    %v8256 = vadd.f32 %v7871, %v8255
    %v8257 = vpop.f32.mrf.mxu0
    %8258 = vmatprep.mubr.f32.mxu0 %v6837
    %8259 = vmatmul.mubr.f32.gmra.mxu0 %v6836
    %v8260 = vpop.f32.mrf.mxu0
    %v8261 = vadd.f32 %v7876, %v8260
    %v8262 = vpop.f32.mrf.mxu0
    %8263 = vmatprep.mubr.f32.mxu0 %v6846
    %8264 = vmatmul.mubr.f32.gmra.mxu0 %v6845
    %v8265 = vpop.f32.mrf.mxu0
    %v8266 = vadd.f32 %v7881, %v8265
    %v8267 = vpop.f32.mrf.mxu0
    %8268 = vmatprep.mubr.f32.mxu0 %v6855
    %8269 = vmatmul.mubr.f32.gmra.mxu0 %v6854
    %v8270 = vpop.f32.mrf.mxu0
    %v8271 = vadd.f32 %v7886, %v8270
    %v8272 = vpop.f32.mrf.mxu0
    %8273 = vmatprep.mubr.f32.mxu0 %v6864
    %8274 = vmatmul.mubr.f32.gmra.mxu0 %v6863
    %v8275 = vpop.f32.mrf.mxu0
    %v8276 = vadd.f32 %v7891, %v8275
    %v8277 = vpop.f32.mrf.mxu0
    %8278 = vmatprep.mubr.f32.mxu0 %v6873
    %8279 = vmatmul.mubr.f32.gmra.mxu0 %v6872
    %v8280 = vpop.f32.mrf.mxu0
    %v8281 = vadd.f32 %v7896, %v8280
    %v8282 = vpop.f32.mrf.mxu0
    %8283 = vmatprep.mubr.f32.mxu0 %v6882
    %8284 = vmatmul.mubr.f32.gmra.mxu0 %v6881
    %v8285 = vpop.f32.mrf.mxu0
    %v8286 = vadd.f32 %v7901, %v8285
    %v8287 = vpop.f32.mrf.mxu0
    %8288 = vmatprep.mubr.f32.mxu0 %v6891
    %8289 = vmatmul.mubr.f32.gmra.mxu0 %v6890
    %v8290 = vpop.f32.mrf.mxu0
    %v8291 = vadd.f32 %v7906, %v8290
    %v8292 = vpop.f32.mrf.mxu0
    %8293 = vmatprep.mubr.f32.mxu0 %v6900
    %8294 = vmatmul.mubr.f32.gmra.mxu0 %v6899
    %v8295 = vpop.f32.mrf.mxu0
    %v8296 = vadd.f32 %v7911, %v8295
    %v8297 = vpop.f32.mrf.mxu0
    %8298 = vmatprep.mubr.f32.mxu0 %v6909
    %8299 = vmatmul.mubr.f32.gmra.mxu0 %v6908
    %v8300 = vpop.f32.mrf.mxu0
    %v8301 = vadd.f32 %v7916, %v8300
    %v8302 = vpop.f32.mrf.mxu0
    %8303 = vmatprep.mubr.f32.mxu0 %v6918
    %8304 = vmatmul.mubr.f32.gmra.mxu0 %v6917
    %v8305 = vpop.f32.mrf.mxu0
    %v8306 = vadd.f32 %v7921, %v8305
    %v8307 = vpop.f32.mrf.mxu0
    %8308 = vmatprep.mubr.f32.mxu0 %v6927
    %8309 = vmatmul.mubr.f32.gmra.mxu0 %v6926
    %v8310 = vpop.f32.mrf.mxu0
    %v8311 = vadd.f32 %v7926, %v8310
    %v8312 = vpop.f32.mrf.mxu0
    %8313 = vmatprep.mubr.f32.mxu0 %v6936
    %8314 = vmatmul.mubr.f32.gmra.mxu0 %v6935
    %v8315 = vpop.f32.mrf.mxu0
    %v8316 = vadd.f32 %v7931, %v8315
    %v8317 = vpop.f32.mrf.mxu0
    %8318 = vmatprep.mubr.f32.mxu0 %v6945
    %8319 = vmatmul.mubr.f32.gmra.mxu0 %v6944
    %v8320 = vpop.f32.mrf.mxu0
    %v8321 = vadd.f32 %v7936, %v8320
    %v8322 = vpop.f32.mrf.mxu0
    %8323 = vmatprep.mubr.f32.mxu0 %v6954
    %8324 = vmatmul.mubr.f32.gmra.mxu0 %v6953
    %v8325 = vpop.f32.mrf.mxu0
    %v8326 = vadd.f32 %v7941, %v8325
    %v8327 = vpop.f32.mrf.mxu0
    %8328 = vmatprep.mubr.f32.mxu0 %v6963
    %8329 = vmatmul.mubr.f32.gmra.mxu0 %v6962
    %v8330 = vpop.f32.mrf.mxu0
    %v8331 = vadd.f32 %v7946, %v8330
    %v8332 = vpop.f32.mrf.mxu0
    %8333 = vmatprep.mubr.f32.mxu0 %v6972
    %8334 = vmatmul.mubr.f32.gmra.mxu0 %v6971
    %v8335 = vpop.f32.mrf.mxu0
    %v8336 = vadd.f32 %v7951, %v8335
    %v8337 = vpop.f32.mrf.mxu0
    %8338 = vmatprep.mubr.f32.mxu0 %v6981
    %8339 = vmatmul.mubr.f32.gmra.mxu0 %v6980
    %v8340 = vpop.f32.mrf.mxu0
    %v8341 = vadd.f32 %v7956, %v8340
    %v8342 = vpop.f32.mrf.mxu0
    %8343 = vmatprep.mubr.f32.mxu0 %v6990
    %8344 = vmatmul.mubr.f32.gmra.mxu0 %v6989
    %v8345 = vpop.f32.mrf.mxu0
    %v8346 = vadd.f32 %v7961, %v8345
    %v8347 = vpop.f32.mrf.mxu0
    %8348 = vmatprep.mubr.f32.mxu0 %v6999
    %8349 = vmatmul.mubr.f32.gmra.mxu0 %v6998
    %v8350 = vpop.f32.mrf.mxu0
    %v8351 = vadd.f32 %v7966, %v8350
    %v8352 = vpop.f32.mrf.mxu0
    %8353 = vmatprep.mubr.f32.mxu0 %v7008
    %8354 = vmatmul.mubr.f32.gmra.mxu0 %v7007
    %v8355 = vpop.f32.mrf.mxu0
    %v8356 = vadd.f32 %v7971, %v8355
    %v8357 = vpop.f32.mrf.mxu0
    %8358 = vmatprep.mubr.f32.mxu0 %v7017
    %8359 = vmatmul.mubr.f32.gmra.mxu0 %v7016
    %v8360 = vpop.f32.mrf.mxu0
    %v8361 = vadd.f32 %v7976, %v8360
    %v8362 = vpop.f32.mrf.mxu0
    %8363 = vmatprep.mubr.f32.mxu0 %v7026
    %8364 = vmatmul.mubr.f32.gmra.mxu0 %v7025
    %v8365 = vpop.f32.mrf.mxu0
    %v8366 = vadd.f32 %v7981, %v8365
    %v8367 = vpop.f32.mrf.mxu0
    %8368 = vmatprep.mubr.f32.mxu0 %v7035
    %8369 = vmatmul.mubr.f32.gmra.mxu0 %v7034
    %v8370 = vpop.f32.mrf.mxu0
    %v8371 = vadd.f32 %v7986, %v8370
    %v8372 = vpop.f32.mrf.mxu0
    %8373 = vmatprep.mubr.f32.mxu0 %v7044
    %8374 = vmatmul.mubr.f32.gmra.mxu0 %v7043
    %v8375 = vpop.f32.mrf.mxu0
    %v8376 = vadd.f32 %v7991, %v8375
    %v8377 = vpop.f32.mrf.mxu0
    %8378 = vmatprep.mubr.f32.mxu0 %v7053
    %8379 = vmatmul.mubr.f32.gmra.mxu0 %v7052
    %v8380 = vpop.f32.mrf.mxu0
    %v8381 = vadd.f32 %v7996, %v8380
    %v8382 = vpop.f32.mrf.mxu0
    %8383 = vmatprep.mubr.f32.mxu0 %v7062
    %8384 = vmatmul.mubr.f32.gmra.mxu0 %v7061
    %v8385 = vpop.f32.mrf.mxu0
    %v8386 = vadd.f32 %v8001, %v8385
    %v8387 = vpop.f32.mrf.mxu0
    %8388 = vmatprep.mubr.f32.mxu0 %v7071
    %8389 = vmatmul.mubr.f32.gmra.mxu0 %v7070
    %v8390 = vpop.f32.mrf.mxu0
    %v8391 = vadd.f32 %v8006, %v8390
    %v8392 = vpop.f32.mrf.mxu0
    %8393 = vmatprep.mubr.f32.mxu0 %v7080
    %8394 = vmatmul.mubr.f32.gmra.mxu0 %v7079
    %v8395 = vpop.f32.mrf.mxu0
    %v8396 = vadd.f32 %v8011, %v8395
    %v8397 = vpop.f32.mrf.mxu0
    %8398 = vmatprep.mubr.f32.mxu0 %v7089
    %8399 = vmatmul.mubr.f32.gmra.mxu0 %v7088
    %v8400 = vpop.f32.mrf.mxu0
    %v8401 = vadd.f32 %v8016, %v8400
    %v8402 = vpop.f32.mrf.mxu0
    %8403 = vmatprep.mubr.f32.mxu0 %v7098
    %8404 = vmatmul.mubr.f32.gmra.mxu0 %v7097
    %v8405 = vpop.f32.mrf.mxu0
    %v8406 = vadd.f32 %v8021, %v8405
    %v8407 = vpop.f32.mrf.mxu0
    %8408 = vmatprep.mubr.f32.mxu0 %v7107
    %8409 = vmatmul.mubr.f32.gmra.mxu0 %v7106
    %v8410 = vpop.f32.mrf.mxu0
    %v8411 = vadd.f32 %v8026, %v8410
    %v8412 = vpop.f32.mrf.mxu0
    %8413 = vmatprep.mubr.f32.mxu0 %v7116
    %8414 = vmatmul.mubr.f32.gmra.mxu0 %v7115
    %v8415 = vpop.f32.mrf.mxu0
    %v8416 = vadd.f32 %v8031, %v8415
    %v8417 = vpop.f32.mrf.mxu0
    %8418 = vdwg.mxu0
    %8419 = vmatprep.subr.mxu0 0.0
    %8420 = vmatpush1.msra.mxu0 %v7231
    %8421 = vmatprep.subr.mxu0 0.0
    %8422 = vmatpush1.msra.mxu0 %v7230
    %8423 = vmatprep.subr.mxu0 0.0
    %8424 = vmatpush1.msra.mxu0 %v7229
    %8425 = vmatprep.subr.mxu0 0.0
    %8426 = vmatpush1.msra.mxu0 %v7228
    %8427 = vmatprep.subr.mxu0 0.0
    %8428 = vmatpush1.msra.mxu0 %v7227
    %8429 = vmatprep.subr.mxu0 0.0
    %8430 = vmatpush1.msra.mxu0 %v7226
    %8431 = vmatprep.subr.mxu0 0.0
    %8432 = vmatpush1.msra.mxu0 %v7225
    %8433 = vmatprep.subr.mxu0 0.0
    %8434 = vmatpush1.msra.mxu0 %v7224
    %8435 = vmatprep.subr.mxu0 0.0
    %8436 = vmatpush1.msra.mxu0 %v7223
    %8437 = vmatprep.subr.mxu0 0.0
    %8438 = vmatpush1.msra.mxu0 %v7222
    %8439 = vmatprep.subr.mxu0 0.0
    %8440 = vmatpush1.msra.mxu0 %v7221
    %8441 = vmatprep.subr.mxu0 0.0
    %8442 = vmatpush1.msra.mxu0 %v7220
    %8443 = vmatprep.subr.mxu0 0.0
    %8444 = vmatpush1.msra.mxu0 %v7219
    %8445 = vmatprep.subr.mxu0 0.0
    %8446 = vmatpush1.msra.mxu0 %v7218
    %8447 = vmatprep.subr.mxu0 0.0
    %8448 = vmatpush1.msra.mxu0 %v7217
    %8449 = vmatprep.subr.mxu0 0.0
    %8450 = vmatpush1.msra.mxu0 %v7216
    %8451 = vmatprep.subr.mxu0 0.0
    %8452 = vmatpush2.msra.mxu0 %v7247
    %8453 = vmatprep.subr.mxu0 0.0
    %8454 = vmatpush2.msra.mxu0 %v7246
    %8455 = vmatprep.subr.mxu0 0.0
    %8456 = vmatpush2.msra.mxu0 %v7245
    %8457 = vmatprep.subr.mxu0 0.0
    %8458 = vmatpush2.msra.mxu0 %v7244
    %8459 = vmatprep.subr.mxu0 0.0
    %8460 = vmatpush2.msra.mxu0 %v7243
    %8461 = vmatprep.subr.mxu0 0.0
    %8462 = vmatpush2.msra.mxu0 %v7242
    %8463 = vmatprep.subr.mxu0 0.0
    %8464 = vmatpush2.msra.mxu0 %v7241
    %8465 = vmatprep.subr.mxu0 0.0
    %8466 = vmatpush2.msra.mxu0 %v7240
    %8467 = vmatprep.subr.mxu0 0.0
    %8468 = vmatpush2.msra.mxu0 %v7239
    %8469 = vmatprep.subr.mxu0 0.0
    %8470 = vmatpush2.msra.mxu0 %v7238
    %8471 = vmatprep.subr.mxu0 0.0
    %8472 = vmatpush2.msra.mxu0 %v7237
    %8473 = vmatprep.subr.mxu0 0.0
    %8474 = vmatpush2.msra.mxu0 %v7236
    %8475 = vmatprep.subr.mxu0 0.0
    %8476 = vmatpush2.msra.mxu0 %v7235
    %8477 = vmatprep.subr.mxu0 0.0
    %8478 = vmatpush2.msra.mxu0 %v7234
    %8479 = vmatprep.subr.mxu0 0.0
    %8480 = vmatpush2.msra.mxu0 %v7233
    %8481 = vmatprep.subr.mxu0 0.0
    %8482 = vmatpush2.msra.mxu0 %v7232
    %8483 = vmatprep.mubr.f32.mxu0 %v6551
    %8484 = vmatmul.mubr.f32.gmra.mxu0 %v6550
    %v8485 = vpop.f32.mrf.mxu0
    %v8486 = vadd.f32 %v8101, %v8485
    %v8487 = vpop.f32.mrf.mxu0
    %8488 = vmatprep.mubr.f32.mxu0 %v6560
    %8489 = vmatmul.mubr.f32.gmra.mxu0 %v6559
    %v8490 = vpop.f32.mrf.mxu0
    %v8491 = vadd.f32 %v8106, %v8490
    %v8492 = vpop.f32.mrf.mxu0
    %8493 = vmatprep.mubr.f32.mxu0 %v6569
    %8494 = vmatmul.mubr.f32.gmra.mxu0 %v6568
    %v8495 = vpop.f32.mrf.mxu0
    %v8496 = vadd.f32 %v8111, %v8495
    %v8497 = vpop.f32.mrf.mxu0
    %8498 = vmatprep.mubr.f32.mxu0 %v6578
    %8499 = vmatmul.mubr.f32.gmra.mxu0 %v6577
    %v8500 = vpop.f32.mrf.mxu0
    %v8501 = vadd.f32 %v8116, %v8500
    %v8502 = vpop.f32.mrf.mxu0
    %8503 = vmatprep.mubr.f32.mxu0 %v6587
    %8504 = vmatmul.mubr.f32.gmra.mxu0 %v6586
    %v8505 = vpop.f32.mrf.mxu0
    %v8506 = vadd.f32 %v8121, %v8505
    %v8507 = vpop.f32.mrf.mxu0
    %8508 = vmatprep.mubr.f32.mxu0 %v6596
    %8509 = vmatmul.mubr.f32.gmra.mxu0 %v6595
    %v8510 = vpop.f32.mrf.mxu0
    %v8511 = vadd.f32 %v8126, %v8510
    %v8512 = vpop.f32.mrf.mxu0
    %8513 = vmatprep.mubr.f32.mxu0 %v6605
    %8514 = vmatmul.mubr.f32.gmra.mxu0 %v6604
    %v8515 = vpop.f32.mrf.mxu0
    %v8516 = vadd.f32 %v8131, %v8515
    %v8517 = vpop.f32.mrf.mxu0
    %8518 = vmatprep.mubr.f32.mxu0 %v6614
    %8519 = vmatmul.mubr.f32.gmra.mxu0 %v6613
    %v8520 = vpop.f32.mrf.mxu0
    %v8521 = vadd.f32 %v8136, %v8520
    %v8522 = vpop.f32.mrf.mxu0
    %8523 = vmatprep.mubr.f32.mxu0 %v6623
    %8524 = vmatmul.mubr.f32.gmra.mxu0 %v6622
    %v8525 = vpop.f32.mrf.mxu0
    %v8526 = vadd.f32 %v8141, %v8525
    %v8527 = vpop.f32.mrf.mxu0
    %8528 = vmatprep.mubr.f32.mxu0 %v6632
    %8529 = vmatmul.mubr.f32.gmra.mxu0 %v6631
    %v8530 = vpop.f32.mrf.mxu0
    %v8531 = vadd.f32 %v8146, %v8530
    %v8532 = vpop.f32.mrf.mxu0
    %8533 = vmatprep.mubr.f32.mxu0 %v6641
    %8534 = vmatmul.mubr.f32.gmra.mxu0 %v6640
    %v8535 = vpop.f32.mrf.mxu0
    %v8536 = vadd.f32 %v8151, %v8535
    %v8537 = vpop.f32.mrf.mxu0
    %8538 = vmatprep.mubr.f32.mxu0 %v6650
    %8539 = vmatmul.mubr.f32.gmra.mxu0 %v6649
    %v8540 = vpop.f32.mrf.mxu0
    %v8541 = vadd.f32 %v8156, %v8540
    %v8542 = vpop.f32.mrf.mxu0
    %8543 = vmatprep.mubr.f32.mxu0 %v6659
    %8544 = vmatmul.mubr.f32.gmra.mxu0 %v6658
    %v8545 = vpop.f32.mrf.mxu0
    %v8546 = vadd.f32 %v8161, %v8545
    %v8547 = vpop.f32.mrf.mxu0
    %8548 = vmatprep.mubr.f32.mxu0 %v6668
    %8549 = vmatmul.mubr.f32.gmra.mxu0 %v6667
    %v8550 = vpop.f32.mrf.mxu0
    %v8551 = vadd.f32 %v8166, %v8550
    %v8552 = vpop.f32.mrf.mxu0
    %8553 = vmatprep.mubr.f32.mxu0 %v6677
    %8554 = vmatmul.mubr.f32.gmra.mxu0 %v6676
    %v8555 = vpop.f32.mrf.mxu0
    %v8556 = vadd.f32 %v8171, %v8555
    %v8557 = vpop.f32.mrf.mxu0
    %8558 = vmatprep.mubr.f32.mxu0 %v6686
    %8559 = vmatmul.mubr.f32.gmra.mxu0 %v6685
    %v8560 = vpop.f32.mrf.mxu0
    %v8561 = vadd.f32 %v8176, %v8560
    %v8562 = vpop.f32.mrf.mxu0
    %8563 = vmatprep.mubr.f32.mxu0 %v6695
    %8564 = vmatmul.mubr.f32.gmra.mxu0 %v6694
    %v8565 = vpop.f32.mrf.mxu0
    %v8566 = vadd.f32 %v8181, %v8565
    %v8567 = vpop.f32.mrf.mxu0
    %8568 = vmatprep.mubr.f32.mxu0 %v6704
    %8569 = vmatmul.mubr.f32.gmra.mxu0 %v6703
    %v8570 = vpop.f32.mrf.mxu0
    %v8571 = vadd.f32 %v8186, %v8570
    %v8572 = vpop.f32.mrf.mxu0
    %8573 = vmatprep.mubr.f32.mxu0 %v6713
    %8574 = vmatmul.mubr.f32.gmra.mxu0 %v6712
    %v8575 = vpop.f32.mrf.mxu0
    %v8576 = vadd.f32 %v8191, %v8575
    %v8577 = vpop.f32.mrf.mxu0
    %8578 = vmatprep.mubr.f32.mxu0 %v6722
    %8579 = vmatmul.mubr.f32.gmra.mxu0 %v6721
    %v8580 = vpop.f32.mrf.mxu0
    %v8581 = vadd.f32 %v8196, %v8580
    %v8582 = vpop.f32.mrf.mxu0
    %8583 = vmatprep.mubr.f32.mxu0 %v6731
    %8584 = vmatmul.mubr.f32.gmra.mxu0 %v6730
    %v8585 = vpop.f32.mrf.mxu0
    %v8586 = vadd.f32 %v8201, %v8585
    %v8587 = vpop.f32.mrf.mxu0
    %8588 = vmatprep.mubr.f32.mxu0 %v6740
    %8589 = vmatmul.mubr.f32.gmra.mxu0 %v6739
    %v8590 = vpop.f32.mrf.mxu0
    %v8591 = vadd.f32 %v8206, %v8590
    %v8592 = vpop.f32.mrf.mxu0
    %8593 = vmatprep.mubr.f32.mxu0 %v6749
    %8594 = vmatmul.mubr.f32.gmra.mxu0 %v6748
    %v8595 = vpop.f32.mrf.mxu0
    %v8596 = vadd.f32 %v8211, %v8595
    %v8597 = vpop.f32.mrf.mxu0
    %8598 = vmatprep.mubr.f32.mxu0 %v6758
    %8599 = vmatmul.mubr.f32.gmra.mxu0 %v6757
    %v8600 = vpop.f32.mrf.mxu0
    %v8601 = vadd.f32 %v8216, %v8600
    %v8602 = vpop.f32.mrf.mxu0
    %8603 = vmatprep.mubr.f32.mxu0 %v6767
    %8604 = vmatmul.mubr.f32.gmra.mxu0 %v6766
    %v8605 = vpop.f32.mrf.mxu0
    %v8606 = vadd.f32 %v8221, %v8605
    %v8607 = vpop.f32.mrf.mxu0
    %8608 = vmatprep.mubr.f32.mxu0 %v6776
    %8609 = vmatmul.mubr.f32.gmra.mxu0 %v6775
    %v8610 = vpop.f32.mrf.mxu0
    %v8611 = vadd.f32 %v8226, %v8610
    %v8612 = vpop.f32.mrf.mxu0
    %8613 = vmatprep.mubr.f32.mxu0 %v6785
    %8614 = vmatmul.mubr.f32.gmra.mxu0 %v6784
    %v8615 = vpop.f32.mrf.mxu0
    %v8616 = vadd.f32 %v8231, %v8615
    %v8617 = vpop.f32.mrf.mxu0
    %8618 = vmatprep.mubr.f32.mxu0 %v6794
    %8619 = vmatmul.mubr.f32.gmra.mxu0 %v6793
    %v8620 = vpop.f32.mrf.mxu0
    %v8621 = vadd.f32 %v8236, %v8620
    %v8622 = vpop.f32.mrf.mxu0
    %8623 = vmatprep.mubr.f32.mxu0 %v6803
    %8624 = vmatmul.mubr.f32.gmra.mxu0 %v6802
    %v8625 = vpop.f32.mrf.mxu0
    %v8626 = vadd.f32 %v8241, %v8625
    %v8627 = vpop.f32.mrf.mxu0
    %8628 = vmatprep.mubr.f32.mxu0 %v6812
    %8629 = vmatmul.mubr.f32.gmra.mxu0 %v6811
    %v8630 = vpop.f32.mrf.mxu0
    %v8631 = vadd.f32 %v8246, %v8630
    %v8632 = vpop.f32.mrf.mxu0
    %8633 = vmatprep.mubr.f32.mxu0 %v6821
    %8634 = vmatmul.mubr.f32.gmra.mxu0 %v6820
    %v8635 = vpop.f32.mrf.mxu0
    %v8636 = vadd.f32 %v8251, %v8635
    %v8637 = vpop.f32.mrf.mxu0
    %8638 = vmatprep.mubr.f32.mxu0 %v6830
    %8639 = vmatmul.mubr.f32.gmra.mxu0 %v6829
    %v8640 = vpop.f32.mrf.mxu0
    %v8641 = vadd.f32 %v8256, %v8640
    %v8642 = vpop.f32.mrf.mxu0
    %8643 = vmatprep.mubr.f32.mxu0 %v6839
    %8644 = vmatmul.mubr.f32.gmra.mxu0 %v6838
    %v8645 = vpop.f32.mrf.mxu0
    %v8646 = vadd.f32 %v8261, %v8645
    %v8647 = vpop.f32.mrf.mxu0
    %8648 = vmatprep.mubr.f32.mxu0 %v6848
    %8649 = vmatmul.mubr.f32.gmra.mxu0 %v6847
    %v8650 = vpop.f32.mrf.mxu0
    %v8651 = vadd.f32 %v8266, %v8650
    %v8652 = vpop.f32.mrf.mxu0
    %8653 = vmatprep.mubr.f32.mxu0 %v6857
    %8654 = vmatmul.mubr.f32.gmra.mxu0 %v6856
    %v8655 = vpop.f32.mrf.mxu0
    %v8656 = vadd.f32 %v8271, %v8655
    %v8657 = vpop.f32.mrf.mxu0
    %8658 = vmatprep.mubr.f32.mxu0 %v6866
    %8659 = vmatmul.mubr.f32.gmra.mxu0 %v6865
    %v8660 = vpop.f32.mrf.mxu0
    %v8661 = vadd.f32 %v8276, %v8660
    %v8662 = vpop.f32.mrf.mxu0
    %8663 = vmatprep.mubr.f32.mxu0 %v6875
    %8664 = vmatmul.mubr.f32.gmra.mxu0 %v6874
    %v8665 = vpop.f32.mrf.mxu0
    %v8666 = vadd.f32 %v8281, %v8665
    %v8667 = vpop.f32.mrf.mxu0
    %8668 = vmatprep.mubr.f32.mxu0 %v6884
    %8669 = vmatmul.mubr.f32.gmra.mxu0 %v6883
    %v8670 = vpop.f32.mrf.mxu0
    %v8671 = vadd.f32 %v8286, %v8670
    %v8672 = vpop.f32.mrf.mxu0
    %8673 = vmatprep.mubr.f32.mxu0 %v6893
    %8674 = vmatmul.mubr.f32.gmra.mxu0 %v6892
    %v8675 = vpop.f32.mrf.mxu0
    %v8676 = vadd.f32 %v8291, %v8675
    %v8677 = vpop.f32.mrf.mxu0
    %8678 = vmatprep.mubr.f32.mxu0 %v6902
    %8679 = vmatmul.mubr.f32.gmra.mxu0 %v6901
    %v8680 = vpop.f32.mrf.mxu0
    %v8681 = vadd.f32 %v8296, %v8680
    %v8682 = vpop.f32.mrf.mxu0
    %8683 = vmatprep.mubr.f32.mxu0 %v6911
    %8684 = vmatmul.mubr.f32.gmra.mxu0 %v6910
    %v8685 = vpop.f32.mrf.mxu0
    %v8686 = vadd.f32 %v8301, %v8685
    %v8687 = vpop.f32.mrf.mxu0
    %8688 = vmatprep.mubr.f32.mxu0 %v6920
    %8689 = vmatmul.mubr.f32.gmra.mxu0 %v6919
    %v8690 = vpop.f32.mrf.mxu0
    %v8691 = vadd.f32 %v8306, %v8690
    %v8692 = vpop.f32.mrf.mxu0
    %8693 = vmatprep.mubr.f32.mxu0 %v6929
    %8694 = vmatmul.mubr.f32.gmra.mxu0 %v6928
    %v8695 = vpop.f32.mrf.mxu0
    %v8696 = vadd.f32 %v8311, %v8695
    %v8697 = vpop.f32.mrf.mxu0
    %8698 = vmatprep.mubr.f32.mxu0 %v6938
    %8699 = vmatmul.mubr.f32.gmra.mxu0 %v6937
    %v8700 = vpop.f32.mrf.mxu0
    %v8701 = vadd.f32 %v8316, %v8700
    %v8702 = vpop.f32.mrf.mxu0
    %8703 = vmatprep.mubr.f32.mxu0 %v6947
    %8704 = vmatmul.mubr.f32.gmra.mxu0 %v6946
    %v8705 = vpop.f32.mrf.mxu0
    %v8706 = vadd.f32 %v8321, %v8705
    %v8707 = vpop.f32.mrf.mxu0
    %8708 = vmatprep.mubr.f32.mxu0 %v6956
    %8709 = vmatmul.mubr.f32.gmra.mxu0 %v6955
    %v8710 = vpop.f32.mrf.mxu0
    %v8711 = vadd.f32 %v8326, %v8710
    %v8712 = vpop.f32.mrf.mxu0
    %8713 = vmatprep.mubr.f32.mxu0 %v6965
    %8714 = vmatmul.mubr.f32.gmra.mxu0 %v6964
    %v8715 = vpop.f32.mrf.mxu0
    %v8716 = vadd.f32 %v8331, %v8715
    %v8717 = vpop.f32.mrf.mxu0
    %8718 = vmatprep.mubr.f32.mxu0 %v6974
    %8719 = vmatmul.mubr.f32.gmra.mxu0 %v6973
    %v8720 = vpop.f32.mrf.mxu0
    %v8721 = vadd.f32 %v8336, %v8720
    %v8722 = vpop.f32.mrf.mxu0
    %8723 = vmatprep.mubr.f32.mxu0 %v6983
    %8724 = vmatmul.mubr.f32.gmra.mxu0 %v6982
    %v8725 = vpop.f32.mrf.mxu0
    %v8726 = vadd.f32 %v8341, %v8725
    %v8727 = vpop.f32.mrf.mxu0
    %8728 = vmatprep.mubr.f32.mxu0 %v6992
    %8729 = vmatmul.mubr.f32.gmra.mxu0 %v6991
    %v8730 = vpop.f32.mrf.mxu0
    %v8731 = vadd.f32 %v8346, %v8730
    %v8732 = vpop.f32.mrf.mxu0
    %8733 = vmatprep.mubr.f32.mxu0 %v7001
    %8734 = vmatmul.mubr.f32.gmra.mxu0 %v7000
    %v8735 = vpop.f32.mrf.mxu0
    %v8736 = vadd.f32 %v8351, %v8735
    %v8737 = vpop.f32.mrf.mxu0
    %8738 = vmatprep.mubr.f32.mxu0 %v7010
    %8739 = vmatmul.mubr.f32.gmra.mxu0 %v7009
    %v8740 = vpop.f32.mrf.mxu0
    %v8741 = vadd.f32 %v8356, %v8740
    %v8742 = vpop.f32.mrf.mxu0
    %8743 = vmatprep.mubr.f32.mxu0 %v7019
    %8744 = vmatmul.mubr.f32.gmra.mxu0 %v7018
    %v8745 = vpop.f32.mrf.mxu0
    %v8746 = vadd.f32 %v8361, %v8745
    %v8747 = vpop.f32.mrf.mxu0
    %8748 = vmatprep.mubr.f32.mxu0 %v7028
    %8749 = vmatmul.mubr.f32.gmra.mxu0 %v7027
    %v8750 = vpop.f32.mrf.mxu0
    %v8751 = vadd.f32 %v8366, %v8750
    %v8752 = vpop.f32.mrf.mxu0
    %8753 = vmatprep.mubr.f32.mxu0 %v7037
    %8754 = vmatmul.mubr.f32.gmra.mxu0 %v7036
    %v8755 = vpop.f32.mrf.mxu0
    %v8756 = vadd.f32 %v8371, %v8755
    %v8757 = vpop.f32.mrf.mxu0
    %8758 = vmatprep.mubr.f32.mxu0 %v7046
    %8759 = vmatmul.mubr.f32.gmra.mxu0 %v7045
    %v8760 = vpop.f32.mrf.mxu0
    %v8761 = vadd.f32 %v8376, %v8760
    %v8762 = vpop.f32.mrf.mxu0
    %8763 = vmatprep.mubr.f32.mxu0 %v7055
    %8764 = vmatmul.mubr.f32.gmra.mxu0 %v7054
    %v8765 = vpop.f32.mrf.mxu0
    %v8766 = vadd.f32 %v8381, %v8765
    %v8767 = vpop.f32.mrf.mxu0
    %8768 = vmatprep.mubr.f32.mxu0 %v7064
    %8769 = vmatmul.mubr.f32.gmra.mxu0 %v7063
    %v8770 = vpop.f32.mrf.mxu0
    %v8771 = vadd.f32 %v8386, %v8770
    %v8772 = vpop.f32.mrf.mxu0
    %8773 = vmatprep.mubr.f32.mxu0 %v7073
    %8774 = vmatmul.mubr.f32.gmra.mxu0 %v7072
    %v8775 = vpop.f32.mrf.mxu0
    %v8776 = vadd.f32 %v8391, %v8775
    %v8777 = vpop.f32.mrf.mxu0
    %8778 = vmatprep.mubr.f32.mxu0 %v7082
    %8779 = vmatmul.mubr.f32.gmra.mxu0 %v7081
    %v8780 = vpop.f32.mrf.mxu0
    %v8781 = vadd.f32 %v8396, %v8780
    %v8782 = vpop.f32.mrf.mxu0
    %8783 = vmatprep.mubr.f32.mxu0 %v7091
    %8784 = vmatmul.mubr.f32.gmra.mxu0 %v7090
    %v8785 = vpop.f32.mrf.mxu0
    %v8786 = vadd.f32 %v8401, %v8785
    %v8787 = vpop.f32.mrf.mxu0
    %8788 = vmatprep.mubr.f32.mxu0 %v7100
    %8789 = vmatmul.mubr.f32.gmra.mxu0 %v7099
    %v8790 = vpop.f32.mrf.mxu0
    %v8791 = vadd.f32 %v8406, %v8790
    %v8792 = vpop.f32.mrf.mxu0
    %8793 = vmatprep.mubr.f32.mxu0 %v7109
    %8794 = vmatmul.mubr.f32.gmra.mxu0 %v7108
    %v8795 = vpop.f32.mrf.mxu0
    %v8796 = vadd.f32 %v8411, %v8795
    %v8797 = vpop.f32.mrf.mxu0
    %8798 = vmatprep.mubr.f32.mxu0 %v7118
    %8799 = vmatmul.mubr.f32.gmra.mxu0 %v7117
    %v8800 = vpop.f32.mrf.mxu0
    %v8801 = vadd.f32 %v8416, %v8800
    %v8802 = vpop.f32.mrf.mxu0
    %8803 = vdwg.mxu0
    %8804 = vmatprep.subr.mxu0 0.0
    %8805 = vmatpush1.msra.mxu0 %v7263
    %8806 = vmatprep.subr.mxu0 0.0
    %8807 = vmatpush1.msra.mxu0 %v7262
    %8808 = vmatprep.subr.mxu0 0.0
    %8809 = vmatpush1.msra.mxu0 %v7261
    %8810 = vmatprep.subr.mxu0 0.0
    %8811 = vmatpush1.msra.mxu0 %v7260
    %8812 = vmatprep.subr.mxu0 0.0
    %8813 = vmatpush1.msra.mxu0 %v7259
    %8814 = vmatprep.subr.mxu0 0.0
    %8815 = vmatpush1.msra.mxu0 %v7258
    %8816 = vmatprep.subr.mxu0 0.0
    %8817 = vmatpush1.msra.mxu0 %v7257
    %8818 = vmatprep.subr.mxu0 0.0
    %8819 = vmatpush1.msra.mxu0 %v7256
    %8820 = vmatprep.subr.mxu0 0.0
    %8821 = vmatpush1.msra.mxu0 %v7255
    %8822 = vmatprep.subr.mxu0 0.0
    %8823 = vmatpush1.msra.mxu0 %v7254
    %8824 = vmatprep.subr.mxu0 0.0
    %8825 = vmatpush1.msra.mxu0 %v7253
    %8826 = vmatprep.subr.mxu0 0.0
    %8827 = vmatpush1.msra.mxu0 %v7252
    %8828 = vmatprep.subr.mxu0 0.0
    %8829 = vmatpush1.msra.mxu0 %v7251
    %8830 = vmatprep.subr.mxu0 0.0
    %8831 = vmatpush1.msra.mxu0 %v7250
    %8832 = vmatprep.subr.mxu0 0.0
    %8833 = vmatpush1.msra.mxu0 %v7249
    %8834 = vmatprep.subr.mxu0 0.0
    %8835 = vmatpush1.msra.mxu0 %v7248
    %8836 = vmatprep.subr.mxu0 0.0
    %8837 = vmatpush2.msra.mxu0 0.0
    %8838 = vmatprep.subr.mxu0 0.0
    %8839 = vmatpush2.msra.mxu0 0.0
    %8840 = vmatprep.subr.mxu0 0.0
    %8841 = vmatpush2.msra.mxu0 0.0
    %8842 = vmatprep.subr.mxu0 0.0
    %8843 = vmatpush2.msra.mxu0 0.0
    %8844 = vmatprep.subr.mxu0 0.0
    %8845 = vmatpush2.msra.mxu0 0.0
    %8846 = vmatprep.subr.mxu0 0.0
    %8847 = vmatpush2.msra.mxu0 0.0
    %8848 = vmatprep.subr.mxu0 0.0
    %8849 = vmatpush2.msra.mxu0 0.0
    %8850 = vmatprep.subr.mxu0 0.0
    %8851 = vmatpush2.msra.mxu0 0.0
    %8852 = vmatprep.subr.mxu0 0.0
    %8853 = vmatpush2.msra.mxu0 0.0
    %8854 = vmatprep.subr.mxu0 0.0
    %8855 = vmatpush2.msra.mxu0 0.0
    %8856 = vmatprep.subr.mxu0 0.0
    %8857 = vmatpush2.msra.mxu0 0.0
    %8858 = vmatprep.subr.mxu0 0.0
    %8859 = vmatpush2.msra.mxu0 0.0
    %8860 = vmatprep.subr.mxu0 0.0
    %8861 = vmatpush2.msra.mxu0 0.0
    %8862 = vmatprep.subr.mxu0 0.0
    %8863 = vmatpush2.msra.mxu0 0.0
    %8864 = vmatprep.subr.mxu0 0.0
    %8865 = vmatpush2.msra.mxu0 0.0
    %8866 = vmatprep.subr.mxu0 0.0
    %8867 = vmatpush2.msra.mxu0 0.0
    %8868 = vmatprep.mubr.f32.mxu0 0.0
    %8869 = vmatmul.mubr.f32.gmra.mxu0 %v6552
    %v8870 = vpop.f32.mrf.mxu0
    %v8871 = vadd.f32 %v8486, %v8870
    %v8872 = vpop.f32.mrf.mxu0
    %8873 = vmatprep.mubr.f32.mxu0 0.0
    %8874 = vmatmul.mubr.f32.gmra.mxu0 %v6561
    %v8875 = vpop.f32.mrf.mxu0
    %v8876 = vadd.f32 %v8491, %v8875
    %v8877 = vpop.f32.mrf.mxu0
    %8878 = vmatprep.mubr.f32.mxu0 0.0
    %8879 = vmatmul.mubr.f32.gmra.mxu0 %v6570
    %v8880 = vpop.f32.mrf.mxu0
    %v8881 = vadd.f32 %v8496, %v8880
    %v8882 = vpop.f32.mrf.mxu0
    %8883 = vmatprep.mubr.f32.mxu0 0.0
    %8884 = vmatmul.mubr.f32.gmra.mxu0 %v6579
    %v8885 = vpop.f32.mrf.mxu0
    %v8886 = vadd.f32 %v8501, %v8885
    %v8887 = vpop.f32.mrf.mxu0
    %8888 = vmatprep.mubr.f32.mxu0 0.0
    %8889 = vmatmul.mubr.f32.gmra.mxu0 %v6588
    %v8890 = vpop.f32.mrf.mxu0
    %v8891 = vadd.f32 %v8506, %v8890
    %v8892 = vpop.f32.mrf.mxu0
    %8893 = vmatprep.mubr.f32.mxu0 0.0
    %8894 = vmatmul.mubr.f32.gmra.mxu0 %v6597
    %v8895 = vpop.f32.mrf.mxu0
    %v8896 = vadd.f32 %v8511, %v8895
    %v8897 = vpop.f32.mrf.mxu0
    %8898 = vmatprep.mubr.f32.mxu0 0.0
    %8899 = vmatmul.mubr.f32.gmra.mxu0 %v6606
    %v8900 = vpop.f32.mrf.mxu0
    %v8901 = vadd.f32 %v8516, %v8900
    %v8902 = vpop.f32.mrf.mxu0
    %8903 = vmatprep.mubr.f32.mxu0 0.0
    %8904 = vmatmul.mubr.f32.gmra.mxu0 %v6615
    %v8905 = vpop.f32.mrf.mxu0
    %v8906 = vadd.f32 %v8521, %v8905
    %v8907 = vpop.f32.mrf.mxu0
    %8908 = vmatprep.mubr.f32.mxu0 0.0
    %8909 = vmatmul.mubr.f32.gmra.mxu0 %v6624
    %v8910 = vpop.f32.mrf.mxu0
    %v8911 = vadd.f32 %v8526, %v8910
    %v8912 = vpop.f32.mrf.mxu0
    %8913 = vmatprep.mubr.f32.mxu0 0.0
    %8914 = vmatmul.mubr.f32.gmra.mxu0 %v6633
    %v8915 = vpop.f32.mrf.mxu0
    %v8916 = vadd.f32 %v8531, %v8915
    %v8917 = vpop.f32.mrf.mxu0
    %8918 = vmatprep.mubr.f32.mxu0 0.0
    %8919 = vmatmul.mubr.f32.gmra.mxu0 %v6642
    %v8920 = vpop.f32.mrf.mxu0
    %v8921 = vadd.f32 %v8536, %v8920
    %v8922 = vpop.f32.mrf.mxu0
    %8923 = vmatprep.mubr.f32.mxu0 0.0
    %8924 = vmatmul.mubr.f32.gmra.mxu0 %v6651
    %v8925 = vpop.f32.mrf.mxu0
    %v8926 = vadd.f32 %v8541, %v8925
    %v8927 = vpop.f32.mrf.mxu0
    %8928 = vmatprep.mubr.f32.mxu0 0.0
    %8929 = vmatmul.mubr.f32.gmra.mxu0 %v6660
    %v8930 = vpop.f32.mrf.mxu0
    %v8931 = vadd.f32 %v8546, %v8930
    %v8932 = vpop.f32.mrf.mxu0
    %8933 = vmatprep.mubr.f32.mxu0 0.0
    %8934 = vmatmul.mubr.f32.gmra.mxu0 %v6669
    %v8935 = vpop.f32.mrf.mxu0
    %v8936 = vadd.f32 %v8551, %v8935
    %v8937 = vpop.f32.mrf.mxu0
    %8938 = vmatprep.mubr.f32.mxu0 0.0
    %8939 = vmatmul.mubr.f32.gmra.mxu0 %v6678
    %v8940 = vpop.f32.mrf.mxu0
    %v8941 = vadd.f32 %v8556, %v8940
    %v8942 = vpop.f32.mrf.mxu0
    %8943 = vmatprep.mubr.f32.mxu0 0.0
    %8944 = vmatmul.mubr.f32.gmra.mxu0 %v6687
    %v8945 = vpop.f32.mrf.mxu0
    %v8946 = vadd.f32 %v8561, %v8945
    %v8947 = vpop.f32.mrf.mxu0
    %8948 = vmatprep.mubr.f32.mxu0 0.0
    %8949 = vmatmul.mubr.f32.gmra.mxu0 %v6696
    %v8950 = vpop.f32.mrf.mxu0
    %v8951 = vadd.f32 %v8566, %v8950
    %v8952 = vpop.f32.mrf.mxu0
    %8953 = vmatprep.mubr.f32.mxu0 0.0
    %8954 = vmatmul.mubr.f32.gmra.mxu0 %v6705
    %v8955 = vpop.f32.mrf.mxu0
    %v8956 = vadd.f32 %v8571, %v8955
    %v8957 = vpop.f32.mrf.mxu0
    %8958 = vmatprep.mubr.f32.mxu0 0.0
    %8959 = vmatmul.mubr.f32.gmra.mxu0 %v6714
    %v8960 = vpop.f32.mrf.mxu0
    %v8961 = vadd.f32 %v8576, %v8960
    %v8962 = vpop.f32.mrf.mxu0
    %8963 = vmatprep.mubr.f32.mxu0 0.0
    %8964 = vmatmul.mubr.f32.gmra.mxu0 %v6723
    %v8965 = vpop.f32.mrf.mxu0
    %v8966 = vadd.f32 %v8581, %v8965
    %v8967 = vpop.f32.mrf.mxu0
    %8968 = vmatprep.mubr.f32.mxu0 0.0
    %8969 = vmatmul.mubr.f32.gmra.mxu0 %v6732
    %v8970 = vpop.f32.mrf.mxu0
    %v8971 = vadd.f32 %v8586, %v8970
    %v8972 = vpop.f32.mrf.mxu0
    %8973 = vmatprep.mubr.f32.mxu0 0.0
    %8974 = vmatmul.mubr.f32.gmra.mxu0 %v6741
    %v8975 = vpop.f32.mrf.mxu0
    %v8976 = vadd.f32 %v8591, %v8975
    %v8977 = vpop.f32.mrf.mxu0
    %8978 = vmatprep.mubr.f32.mxu0 0.0
    %8979 = vmatmul.mubr.f32.gmra.mxu0 %v6750
    %v8980 = vpop.f32.mrf.mxu0
    %v8981 = vadd.f32 %v8596, %v8980
    %v8982 = vpop.f32.mrf.mxu0
    %8983 = vmatprep.mubr.f32.mxu0 0.0
    %8984 = vmatmul.mubr.f32.gmra.mxu0 %v6759
    %v8985 = vpop.f32.mrf.mxu0
    %v8986 = vadd.f32 %v8601, %v8985
    %v8987 = vpop.f32.mrf.mxu0
    %8988 = vmatprep.mubr.f32.mxu0 0.0
    %8989 = vmatmul.mubr.f32.gmra.mxu0 %v6768
    %v8990 = vpop.f32.mrf.mxu0
    %v8991 = vadd.f32 %v8606, %v8990
    %v8992 = vpop.f32.mrf.mxu0
    %8993 = vmatprep.mubr.f32.mxu0 0.0
    %8994 = vmatmul.mubr.f32.gmra.mxu0 %v6777
    %v8995 = vpop.f32.mrf.mxu0
    %v8996 = vadd.f32 %v8611, %v8995
    %v8997 = vpop.f32.mrf.mxu0
    %8998 = vmatprep.mubr.f32.mxu0 0.0
    %8999 = vmatmul.mubr.f32.gmra.mxu0 %v6786
    %v9000 = vpop.f32.mrf.mxu0
    %v9001 = vadd.f32 %v8616, %v9000
    %v9002 = vpop.f32.mrf.mxu0
    %9003 = vmatprep.mubr.f32.mxu0 0.0
    %9004 = vmatmul.mubr.f32.gmra.mxu0 %v6795
    %v9005 = vpop.f32.mrf.mxu0
    %v9006 = vadd.f32 %v8621, %v9005
    %v9007 = vpop.f32.mrf.mxu0
    %9008 = vmatprep.mubr.f32.mxu0 0.0
    %9009 = vmatmul.mubr.f32.gmra.mxu0 %v6804
    %v9010 = vpop.f32.mrf.mxu0
    %v9011 = vadd.f32 %v8626, %v9010
    %v9012 = vpop.f32.mrf.mxu0
    %9013 = vmatprep.mubr.f32.mxu0 0.0
    %9014 = vmatmul.mubr.f32.gmra.mxu0 %v6813
    %v9015 = vpop.f32.mrf.mxu0
    %v9016 = vadd.f32 %v8631, %v9015
    %v9017 = vpop.f32.mrf.mxu0
    %9018 = vmatprep.mubr.f32.mxu0 0.0
    %9019 = vmatmul.mubr.f32.gmra.mxu0 %v6822
    %v9020 = vpop.f32.mrf.mxu0
    %v9021 = vadd.f32 %v8636, %v9020
    %v9022 = vpop.f32.mrf.mxu0
    %9023 = vmatprep.mubr.f32.mxu0 0.0
    %9024 = vmatmul.mubr.f32.gmra.mxu0 %v6831
    %v9025 = vpop.f32.mrf.mxu0
    %v9026 = vadd.f32 %v8641, %v9025
    %v9027 = vpop.f32.mrf.mxu0
    %9028 = vmatprep.mubr.f32.mxu0 0.0
    %9029 = vmatmul.mubr.f32.gmra.mxu0 %v6840
    %v9030 = vpop.f32.mrf.mxu0
    %v9031 = vadd.f32 %v8646, %v9030
    %v9032 = vpop.f32.mrf.mxu0
    %9033 = vmatprep.mubr.f32.mxu0 0.0
    %9034 = vmatmul.mubr.f32.gmra.mxu0 %v6849
    %v9035 = vpop.f32.mrf.mxu0
    %v9036 = vadd.f32 %v8651, %v9035
    %v9037 = vpop.f32.mrf.mxu0
    %9038 = vmatprep.mubr.f32.mxu0 0.0
    %9039 = vmatmul.mubr.f32.gmra.mxu0 %v6858
    %v9040 = vpop.f32.mrf.mxu0
    %v9041 = vadd.f32 %v8656, %v9040
    %v9042 = vpop.f32.mrf.mxu0
    %9043 = vmatprep.mubr.f32.mxu0 0.0
    %9044 = vmatmul.mubr.f32.gmra.mxu0 %v6867
    %v9045 = vpop.f32.mrf.mxu0
    %v9046 = vadd.f32 %v8661, %v9045
    %v9047 = vpop.f32.mrf.mxu0
    %9048 = vmatprep.mubr.f32.mxu0 0.0
    %9049 = vmatmul.mubr.f32.gmra.mxu0 %v6876
    %v9050 = vpop.f32.mrf.mxu0
    %v9051 = vadd.f32 %v8666, %v9050
    %v9052 = vpop.f32.mrf.mxu0
    %9053 = vmatprep.mubr.f32.mxu0 0.0
    %9054 = vmatmul.mubr.f32.gmra.mxu0 %v6885
    %v9055 = vpop.f32.mrf.mxu0
    %v9056 = vadd.f32 %v8671, %v9055
    %v9057 = vpop.f32.mrf.mxu0
    %9058 = vmatprep.mubr.f32.mxu0 0.0
    %9059 = vmatmul.mubr.f32.gmra.mxu0 %v6894
    %v9060 = vpop.f32.mrf.mxu0
    %v9061 = vadd.f32 %v8676, %v9060
    %v9062 = vpop.f32.mrf.mxu0
    %9063 = vmatprep.mubr.f32.mxu0 0.0
    %9064 = vmatmul.mubr.f32.gmra.mxu0 %v6903
    %v9065 = vpop.f32.mrf.mxu0
    %v9066 = vadd.f32 %v8681, %v9065
    %v9067 = vpop.f32.mrf.mxu0
    %9068 = vmatprep.mubr.f32.mxu0 0.0
    %9069 = vmatmul.mubr.f32.gmra.mxu0 %v6912
    %v9070 = vpop.f32.mrf.mxu0
    %v9071 = vadd.f32 %v8686, %v9070
    %v9072 = vpop.f32.mrf.mxu0
    %9073 = vmatprep.mubr.f32.mxu0 0.0
    %9074 = vmatmul.mubr.f32.gmra.mxu0 %v6921
    %v9075 = vpop.f32.mrf.mxu0
    %v9076 = vadd.f32 %v8691, %v9075
    %v9077 = vpop.f32.mrf.mxu0
    %9078 = vmatprep.mubr.f32.mxu0 0.0
    %9079 = vmatmul.mubr.f32.gmra.mxu0 %v6930
    %v9080 = vpop.f32.mrf.mxu0
    %v9081 = vadd.f32 %v8696, %v9080
    %v9082 = vpop.f32.mrf.mxu0
    %9083 = vmatprep.mubr.f32.mxu0 0.0
    %9084 = vmatmul.mubr.f32.gmra.mxu0 %v6939
    %v9085 = vpop.f32.mrf.mxu0
    %v9086 = vadd.f32 %v8701, %v9085
    %v9087 = vpop.f32.mrf.mxu0
    %9088 = vmatprep.mubr.f32.mxu0 0.0
    %9089 = vmatmul.mubr.f32.gmra.mxu0 %v6948
    %v9090 = vpop.f32.mrf.mxu0
    %v9091 = vadd.f32 %v8706, %v9090
    %v9092 = vpop.f32.mrf.mxu0
    %9093 = vmatprep.mubr.f32.mxu0 0.0
    %9094 = vmatmul.mubr.f32.gmra.mxu0 %v6957
    %v9095 = vpop.f32.mrf.mxu0
    %v9096 = vadd.f32 %v8711, %v9095
    %v9097 = vpop.f32.mrf.mxu0
    %9098 = vmatprep.mubr.f32.mxu0 0.0
    %9099 = vmatmul.mubr.f32.gmra.mxu0 %v6966
    %v9100 = vpop.f32.mrf.mxu0
    %v9101 = vadd.f32 %v8716, %v9100
    %v9102 = vpop.f32.mrf.mxu0
    %9103 = vmatprep.mubr.f32.mxu0 0.0
    %9104 = vmatmul.mubr.f32.gmra.mxu0 %v6975
    %v9105 = vpop.f32.mrf.mxu0
    %v9106 = vadd.f32 %v8721, %v9105
    %v9107 = vpop.f32.mrf.mxu0
    %9108 = vmatprep.mubr.f32.mxu0 0.0
    %9109 = vmatmul.mubr.f32.gmra.mxu0 %v6984
    %v9110 = vpop.f32.mrf.mxu0
    %v9111 = vadd.f32 %v8726, %v9110
    %v9112 = vpop.f32.mrf.mxu0
    %9113 = vmatprep.mubr.f32.mxu0 0.0
    %9114 = vmatmul.mubr.f32.gmra.mxu0 %v6993
    %v9115 = vpop.f32.mrf.mxu0
    %v9116 = vadd.f32 %v8731, %v9115
    %v9117 = vpop.f32.mrf.mxu0
    %9118 = vmatprep.mubr.f32.mxu0 0.0
    %9119 = vmatmul.mubr.f32.gmra.mxu0 %v7002
    %v9120 = vpop.f32.mrf.mxu0
    %v9121 = vadd.f32 %v8736, %v9120
    %v9122 = vpop.f32.mrf.mxu0
    %9123 = vmatprep.mubr.f32.mxu0 0.0
    %9124 = vmatmul.mubr.f32.gmra.mxu0 %v7011
    %v9125 = vpop.f32.mrf.mxu0
    %v9126 = vadd.f32 %v8741, %v9125
    %v9127 = vpop.f32.mrf.mxu0
    %9128 = vmatprep.mubr.f32.mxu0 0.0
    %9129 = vmatmul.mubr.f32.gmra.mxu0 %v7020
    %v9130 = vpop.f32.mrf.mxu0
    %v9131 = vadd.f32 %v8746, %v9130
    %v9132 = vpop.f32.mrf.mxu0
    %9133 = vmatprep.mubr.f32.mxu0 0.0
    %9134 = vmatmul.mubr.f32.gmra.mxu0 %v7029
    %v9135 = vpop.f32.mrf.mxu0
    %v9136 = vadd.f32 %v8751, %v9135
    %v9137 = vpop.f32.mrf.mxu0
    %9138 = vmatprep.mubr.f32.mxu0 0.0
    %9139 = vmatmul.mubr.f32.gmra.mxu0 %v7038
    %v9140 = vpop.f32.mrf.mxu0
    %v9141 = vadd.f32 %v8756, %v9140
    %v9142 = vpop.f32.mrf.mxu0
    %9143 = vmatprep.mubr.f32.mxu0 0.0
    %9144 = vmatmul.mubr.f32.gmra.mxu0 %v7047
    %v9145 = vpop.f32.mrf.mxu0
    %v9146 = vadd.f32 %v8761, %v9145
    %v9147 = vpop.f32.mrf.mxu0
    %9148 = vmatprep.mubr.f32.mxu0 0.0
    %9149 = vmatmul.mubr.f32.gmra.mxu0 %v7056
    %v9150 = vpop.f32.mrf.mxu0
    %v9151 = vadd.f32 %v8766, %v9150
    %v9152 = vpop.f32.mrf.mxu0
    %9153 = vmatprep.mubr.f32.mxu0 0.0
    %9154 = vmatmul.mubr.f32.gmra.mxu0 %v7065
    %v9155 = vpop.f32.mrf.mxu0
    %v9156 = vadd.f32 %v8771, %v9155
    %v9157 = vpop.f32.mrf.mxu0
    %9158 = vmatprep.mubr.f32.mxu0 0.0
    %9159 = vmatmul.mubr.f32.gmra.mxu0 %v7074
    %v9160 = vpop.f32.mrf.mxu0
    %v9161 = vadd.f32 %v8776, %v9160
    %v9162 = vpop.f32.mrf.mxu0
    %9163 = vmatprep.mubr.f32.mxu0 0.0
    %9164 = vmatmul.mubr.f32.gmra.mxu0 %v7083
    %v9165 = vpop.f32.mrf.mxu0
    %v9166 = vadd.f32 %v8781, %v9165
    %v9167 = vpop.f32.mrf.mxu0
    %9168 = vmatprep.mubr.f32.mxu0 0.0
    %9169 = vmatmul.mubr.f32.gmra.mxu0 %v7092
    %v9170 = vpop.f32.mrf.mxu0
    %v9171 = vadd.f32 %v8786, %v9170
    %v9172 = vpop.f32.mrf.mxu0
    %9173 = vmatprep.mubr.f32.mxu0 0.0
    %9174 = vmatmul.mubr.f32.gmra.mxu0 %v7101
    %v9175 = vpop.f32.mrf.mxu0
    %v9176 = vadd.f32 %v8791, %v9175
    %v9177 = vpop.f32.mrf.mxu0
    %9178 = vmatprep.mubr.f32.mxu0 0.0
    %9179 = vmatmul.mubr.f32.gmra.mxu0 %v7110
    %v9180 = vpop.f32.mrf.mxu0
    %v9181 = vadd.f32 %v8796, %v9180
    %v9182 = vpop.f32.mrf.mxu0
    %9183 = vmatprep.mubr.f32.mxu0 0.0
    %9184 = vmatmul.mubr.f32.gmra.mxu0 %v7119
    %v9185 = vpop.f32.mrf.mxu0
    %v9186 = vadd.f32 %v8801, %v9185
    %v9187 = vpop.f32.mrf.mxu0
    %9188 = vdwg.mxu0
    %9189 = vst [vmem:[#allocation12] sm:$0xff] %v8871
    %9190 = vst [vmem:[#allocation12 + $0x8] sm:$0xff] %v8876
    %9191 = vst [vmem:[#allocation12 + $0x10] sm:$0xff] %v8881
    %9192 = vst [vmem:[#allocation12 + $0x18] sm:$0xff] %v8886
    %9193 = vst [vmem:[#allocation12 + $0x20] sm:$0xff] %v8891
    %9194 = vst [vmem:[#allocation12 + $0x28] sm:$0xff] %v8896
    %9195 = vst [vmem:[#allocation12 + $0x30] sm:$0xff] %v8901
    %9196 = vst [vmem:[#allocation12 + $0x38] sm:$0xff] %v8906
    %9197 = vst [vmem:[#allocation12 + $0x40] sm:$0xff] %v8911
    %9198 = vst [vmem:[#allocation12 + $0x48] sm:$0xff] %v8916
    %9199 = vst [vmem:[#allocation12 + $0x50] sm:$0xff] %v8921
    %9200 = vst [vmem:[#allocation12 + $0x58] sm:$0xff] %v8926
    %9201 = vst [vmem:[#allocation12 + $0x60] sm:$0xff] %v8931
    %9202 = vst [vmem:[#allocation12 + $0x68] sm:$0xff] %v8936
    %9203 = vst [vmem:[#allocation12 + $0x70] sm:$0xff] %v8941
    %9204 = vst [vmem:[#allocation12 + $0x78] sm:$0xff] %v8946
    %9205 = vst [vmem:[#allocation12 + $0x80] sm:$0xff] %v8951
    %9206 = vst [vmem:[#allocation12 + $0x88] sm:$0xff] %v8956
    %9207 = vst [vmem:[#allocation12 + $0x90] sm:$0xff] %v8961
    %9208 = vst [vmem:[#allocation12 + $0x98] sm:$0xff] %v8966
    %9209 = vst [vmem:[#allocation12 + $0xa0] sm:$0xff] %v8971
    %9210 = vst [vmem:[#allocation12 + $0xa8] sm:$0xff] %v8976
    %9211 = vst [vmem:[#allocation12 + $0xb0] sm:$0xff] %v8981
    %9212 = vst [vmem:[#allocation12 + $0xb8] sm:$0xff] %v8986
    %9213 = vst [vmem:[#allocation12 + $0xc0] sm:$0xff] %v8991
    %9214 = vst [vmem:[#allocation12 + $0xc8] sm:$0xff] %v8996
    %9215 = vst [vmem:[#allocation12 + $0xd0] sm:$0xff] %v9001
    %9216 = vst [vmem:[#allocation12 + $0xd8] sm:$0xff] %v9006
    %9217 = vst [vmem:[#allocation12 + $0xe0] sm:$0xff] %v9011
    %9218 = vst [vmem:[#allocation12 + $0xe8] sm:$0xff] %v9016
    %9219 = vst [vmem:[#allocation12 + $0xf0] sm:$0xff] %v9021
    %9220 = vst [vmem:[#allocation12 + $0xf8] sm:$0xff] %v9026
    %9221 = vst [vmem:[#allocation12 + $0x100] sm:$0xff] %v9031
    %9222 = vst [vmem:[#allocation12 + $0x108] sm:$0xff] %v9036
    %9223 = vst [vmem:[#allocation12 + $0x110] sm:$0xff] %v9041
    %9224 = vst [vmem:[#allocation12 + $0x118] sm:$0xff] %v9046
    %9225 = vst [vmem:[#allocation12 + $0x120] sm:$0xff] %v9051
    %9226 = vst [vmem:[#allocation12 + $0x128] sm:$0xff] %v9056
    %9227 = vst [vmem:[#allocation12 + $0x130] sm:$0xff] %v9061
    %9228 = vst [vmem:[#allocation12 + $0x138] sm:$0xff] %v9066
    %9229 = vst [vmem:[#allocation12 + $0x140] sm:$0xff] %v9071
    %9230 = vst [vmem:[#allocation12 + $0x148] sm:$0xff] %v9076
    %9231 = vst [vmem:[#allocation12 + $0x150] sm:$0xff] %v9081
    %9232 = vst [vmem:[#allocation12 + $0x158] sm:$0xff] %v9086
    %9233 = vst [vmem:[#allocation12 + $0x160] sm:$0xff] %v9091
    %9234 = vst [vmem:[#allocation12 + $0x168] sm:$0xff] %v9096
    %9235 = vst [vmem:[#allocation12 + $0x170] sm:$0xff] %v9101
    %9236 = vst [vmem:[#allocation12 + $0x178] sm:$0xff] %v9106
    %9237 = vst [vmem:[#allocation12 + $0x180] sm:$0xff] %v9111
    %9238 = vst [vmem:[#allocation12 + $0x188] sm:$0xff] %v9116
    %9239 = vst [vmem:[#allocation12 + $0x190] sm:$0xff] %v9121
    %9240 = vst [vmem:[#allocation12 + $0x198] sm:$0xff] %v9126
    %9241 = vst [vmem:[#allocation12 + $0x1a0] sm:$0xff] %v9131
    %9242 = vst [vmem:[#allocation12 + $0x1a8] sm:$0xff] %v9136
    %9243 = vst [vmem:[#allocation12 + $0x1b0] sm:$0xff] %v9141
    %9244 = vst [vmem:[#allocation12 + $0x1b8] sm:$0xff] %v9146
    %9245 = vst [vmem:[#allocation12 + $0x1c0] sm:$0xff] %v9151
    %9246 = vst [vmem:[#allocation12 + $0x1c8] sm:$0xff] %v9156
    %9247 = vst [vmem:[#allocation12 + $0x1d0] sm:$0xff] %v9161
    %9248 = vst [vmem:[#allocation12 + $0x1d8] sm:$0xff] %v9166
    %9249 = vst [vmem:[#allocation12 + $0x1e0] sm:$0xff] %v9171
    %9250 = vst [vmem:[#allocation12 + $0x1e8] sm:$0xff] %v9176
    %9251 = vst [vmem:[#allocation12 + $0x1f0] sm:$0xff] %v9181
    %9252 = vst [vmem:[#allocation12 + $0x1f8] sm:$0xff] %v9186
    // Predicated region
    $region50: #{tpu_custom_call.1} parent=1 // pred_check
      _
    $region51: #{tpu_custom_call.1} parent=1 // pred_check_branch
      %9254 = sbr.rel (0) target = $region53
    $region52: #{tpu_custom_call.1} parent=1 // pred_region
      %s9256 = ssub.s32 8192, 8192
      %9257 = vsyncadd [#allocation6], %s9256
      %s9258 = sshll.u32 [#allocation12], 4
      %s9259 = int_to_ptr.vmem [resolvable:$true] %s9258
      %9264 = dma.vmem_to_hbm [thread:$0]  %s9259, 8192, %s8, [#allocation6], 128, 128, 8
    $region53: #{tpu_custom_call.1} parent=1 // pred_fallthru
      _
    // Predicated region
    $region54: #{tpu_custom_call.1} parent=1 // pred_check
      _
    $region55: #{tpu_custom_call.1} parent=1 // pred_check_branch
      %9266 = sbr.rel (0) target = $region57
    $region56: #{tpu_custom_call.1} parent=1 // pred_region
      %9267 = dma.done [#allocation6], 8192
    $region57: #{tpu_custom_call.1} parent=1 // pred_fallthru
      _
    %9268 = vsyncpa [#allocation5], 1
    %9269 = vsyncpa [#allocation8], 1
    %9270 = vsyncpa [#allocation11], 1
    %9271 = vsyncpa [#allocation6], 1

</llo_original>
